<compile_context>
chip_gen: v7x
topology: tpu7x:2x2x1
jax: 0.10.0
libtpu: 0.0.40
codegen_flags: <defaults>
</compile_context>

<pallas_src>
import functools

import jax
import jax.numpy as jnp
from jax.experimental import pallas as pl
from jax.experimental.pallas import tpu as pltpu


VMEM_LIMIT = 32 * 1024 * 1024  # explicit scoped-VMEM limit (safe on v5e/v6e/v7x)


# ----------------------------- Pallas kernels -----------------------------

def _conv_kernel(x_ref, w_ref, b_ref, o_ref, *, relu):
    """Patch-matrix conv: (TM, K)bf16 @ (K, Cout)bf16 -> f32, bias+ReLU in f32."""
    acc = jnp.dot(x_ref[...], w_ref[...], preferred_element_type=jnp.float32)
    acc = acc + b_ref[...]
    if relu:
        acc = jnp.maximum(acc, 0.0)
    o_ref[...] = acc.astype(o_ref.dtype)


def _madf_kernel(pm_ref, pe_ref, wm_ref, bm_ref, wf_ref, bf_ref, we_ref, be_ref,
                 m_out_ref, e_out_ref, *, kk, in_e):
    """Fused SimpleMADF block.

    pm_ref : (TM, in_m*kk)   bf16  mask patches (channel-major cols, torch order)
    pe_ref : (kk, TM, in_e)  bf16  unfolded image, tap-major leading dim
    wm_ref : (in_m*kk, out_m) bf16 ; bm_ref : (1, out_m) f32
    wf_ref : (kk, out_m, in_e) bf16 ; bf_ref : (kk, 1, in_e) f32
    we_ref : (in_e, out_e)   bf16 ; be_ref : (1, out_e) f32
    Outputs: m_out (TM, out_m) f32, e_out (TM, out_e) f32.
    All intermediates stay in vregs/VMEM -- nothing round-trips HBM.
    """
    # --- mask stream: k x k conv + ReLU (MXU, f32 accumulation) ---
    m_rows = jnp.dot(pm_ref[...], wm_ref[...], preferred_element_type=jnp.float32)
    m_rows = jnp.maximum(m_rows + bm_ref[...], 0.0)          # f32 VPU epilogue
    m_out_ref[...] = m_rows.astype(m_out_ref.dtype)

    # --- mask-aware dynamic filtering, fused and lane-dense ---
    # For each filter tap j: generate the per-pixel (TM, in_e) filter slab from
    # the mask features (1x1 conv == small MXU matmul), then multiply-accumulate
    # against the matching lane-contiguous slab of the unfolded image (VPU).
    m16 = m_rows.astype(jnp.bfloat16)
    agg = jnp.zeros((m_rows.shape[0], in_e), jnp.float32)
    for j in range(kk):                                       # static unroll, kk <= 25
        f_j = jnp.dot(m16, wf_ref[j], preferred_element_type=jnp.float32) + bf_ref[j]
        agg = agg + f_j * pe_ref[j].astype(jnp.float32)

    # --- 1x1 feature conv + ReLU ---
    e_rows = jnp.dot(agg.astype(jnp.bfloat16), we_ref[...],
                     preferred_element_type=jnp.float32)
    e_out_ref[...] = jnp.maximum(e_rows + be_ref[...], 0.0).astype(e_out_ref.dtype)


# ------------------------------- JAX glue ---------------------------------

def _out_size(x, k, stride, pad):
    return (x + 2 * pad - k) // stride + 1


def _tap_slices(x, k, stride, pad):
    """Return list of k*k arrays (N, C, OH, OW), one per tap (kh, kw)."""
    N, C, H, W = x.shape
    OH = _out_size(H, k, stride, pad)
    OW = _out_size(W, k, stride, pad)
    xp = jnp.pad(x, ((0, 0), (0, 0), (pad, pad), (pad, pad)))
    taps = []
    for i in range(k):
        for j in range(k):
            taps.append(jax.lax.slice(
                xp, (0, 0, i, j),
                (N, C, i + stride * (OH - 1) + 1, j + stride * (OW - 1) + 1),
                (1, 1, stride, stride)))
    return taps, OH, OW


def im2col_cmajor(x, k, stride, pad):
    """NCHW -> (N*OH*OW, C*k*k) patch matrix, column index = c*k*k + (kh*k+kw).
    Matches torch.nn.functional.unfold / Conv2d weight.reshape(out,-1).T."""
    N, C = x.shape[:2]
    taps, OH, OW = _tap_slices(x, k, stride, pad)
    p = jnp.stack(taps, axis=2)                       # (N, C, kk, OH, OW)
    p = p.reshape(N, C * k * k, OH, OW)
    p = p.transpose(0, 2, 3, 1).reshape(N * OH * OW, C * k * k)
    return p, OH, OW


def unfold_tapmajor(x, k, stride, pad):
    """NCHW -> (k*k, N*OH*OW, C): tap-major unfold for lane-dense dyn-filtering."""
    N, C = x.shape[:2]
    taps, OH, OW = _tap_slices(x, k, stride, pad)
    p = jnp.stack(taps, axis=0)                       # (kk, N, C, OH, OW)
    p = p.transpose(0, 1, 3, 4, 2).reshape(k * k, N * OH * OW, C)
    return p, OH, OW


def rows_to_nchw(rows, N, OH, OW):
    return rows.reshape(N, OH, OW, -1).transpose(0, 3, 1, 2)


def _row_tile(R):
    """(8,128)-aligned row tile; 256-row tiles let v7x shard rows over 2 TCs."""
    return 256 if (R > 256 and R % 256 == 0) else R


# ---------------------------- fused layer calls -----------------------------

def conv_block_fwd(x, w, b, k, stride, padding, relu=True):
    """Conv2d + ReLU as a single Pallas matmul+bias+ReLU kernel (bf16 in, f32 acc)."""
    N = x.shape[0]
    patches, OH, OW = im2col_cmajor(x, k, stride, padding)
    R, K = patches.shape
    Cout = w.shape[1]
    TM = _row_tile(R)
    out = pl.pallas_call(
        functools.partial(_conv_kernel, relu=relu),
        grid=(R // TM,),
        in_specs=[
            pl.BlockSpec((TM, K), lambda i: (i, 0)),
            pl.BlockSpec((K, Cout), lambda i: (0, 0)),
            pl.BlockSpec((1, Cout), lambda i: (0, 0)),
        ],
        out_specs=pl.BlockSpec((TM, Cout), lambda i: (i, 0)),
        out_shape=jax.ShapeDtypeStruct((R, Cout), jnp.float32),
        compiler_params=pltpu.CompilerParams(
            dimension_semantics=("parallel",),
            vmem_limit_bytes=VMEM_LIMIT),
    )(patches.astype(jnp.bfloat16), w.astype(jnp.bfloat16), b)
    return rows_to_nchw(out, N, OH, OW)


def simple_madf_fwd(m, e, prm, k, stride, padding):
    """One fused SimpleMADF block == one pallas_call."""
    N = m.shape[0]
    in_e = e.shape[1]
    kk = k * k

    pm, OH, OW = im2col_cmajor(m, k, stride, padding)   # (R, in_m*kk)
    pe, _, _ = unfold_tapmajor(e, k, stride, padding)   # (kk, R, in_e)
    R, Km = pm.shape
    out_m = prm["wm"].shape[1]
    out_e = prm["we"].shape[1]
    TM = _row_tile(R)

    m_rows, e_rows = pl.pallas_call(
        functools.partial(_madf_kernel, kk=kk, in_e=in_e),
        grid=(R // TM,),
        in_specs=[
            pl.BlockSpec((TM, Km), lambda i: (i, 0)),            # mask patches
            pl.BlockSpec((kk, TM, in_e), lambda i: (0, i, 0)),   # image patches
            pl.BlockSpec((Km, out_m), lambda i: (0, 0)),         # wm
            pl.BlockSpec((1, out_m), lambda i: (0, 0)),          # bm
            pl.BlockSpec((kk, out_m, in_e), lambda i: (0, 0, 0)),  # wf (tap-major)
            pl.BlockSpec((kk, 1, in_e), lambda i: (0, 0, 0)),      # bf (tap-major)
            pl.BlockSpec((in_e, out_e), lambda i: (0, 0)),       # we
            pl.BlockSpec((1, out_e), lambda i: (0, 0)),          # be
        ],
        out_specs=(
            pl.BlockSpec((TM, out_m), lambda i: (i, 0)),
            pl.BlockSpec((TM, out_e), lambda i: (i, 0)),
        ),
        out_shape=(
            jax.ShapeDtypeStruct((R, out_m), jnp.float32),
            jax.ShapeDtypeStruct((R, out_e), jnp.float32),
        ),
        compiler_params=pltpu.CompilerParams(
            dimension_semantics=("parallel",),
            vmem_limit_bytes=VMEM_LIMIT),
    )(pm.astype(jnp.bfloat16), pe.astype(jnp.bfloat16),
      prm["wm"].astype(jnp.bfloat16), prm["bm"],
      prm["wf"].astype(jnp.bfloat16), prm["bf"],
      prm["we"].astype(jnp.bfloat16), prm["be"])

    return rows_to_nchw(m_rows, N, OH, OW), rows_to_nchw(e_rows, N, OH, OW)


# --------------------------- parameter creation ----------------------------

MADF_CFG = [
    # (in_m, out_m, in_e, out_e, k, stride, pad)
    (1, 2, 3, 16, 5, 2, 2),
    (2, 4, 16, 32, 3, 2, 1),
    (4, 8, 32, 64, 3, 2, 1),
    (8, 16, 64, 128, 3, 2, 1),
]
UP_CFG = [(3, 16), (16, 16), (32, 32), (64, 64), (128, 128)]  # k=3, s=1, p=1


def _init_dense(key, cin, cout, scale=0.1):
    kw, kb = jax.random.split(key)
    w = scale * jax.random.normal(kw, (cin, cout), jnp.float32)
    b = scale * jax.random.normal(kb, (1, cout), jnp.float32)
    return w, b


def init_params(key):
    params = {"madf": [], "up": []}
    for (in_m, out_m, in_e, out_e, k, _s, _p) in MADF_CFG:
        kk = k * k
        key, k1, k2, k3, k4 = jax.random.split(key, 5)
        # mask conv: rows ordered channel-major (c*kk + tap) == torch
        # Conv2d weight.reshape(out_m, in_m*k*k).T
        wm, bm = _init_dense(k1, in_m * kk, out_m)
        # Filter generator stored tap-major (kk, out_m, in_e).
        # NOTE (torch porting): the PyTorch 1x1 filter-gen conv weight, whose
        # output channels follow unfold's channel-major (c*kk + tap) order, must
        # be permuted into this tap-major layout to load real weights.
        wf = 0.1 * jax.random.normal(k2, (kk, out_m, in_e), jnp.float32)
        bf = 0.1 * jax.random.normal(k3, (kk, 1, in_e), jnp.float32)
        we, be = _init_dense(k4, in_e, out_e)               # 1x1 feature conv
        params["madf"].append({"wm": wm, "bm": bm, "wf": wf, "bf": bf,
                               "we": we, "be": be})
    for (cin, cout) in UP_CFG:
        key, k1 = jax.random.split(key)
        w, b = _init_dense(k1, cin * 9, cout)
        params["up"].append({"w": w, "b": b})
    return params


# ----------------------------- CoarseEncoder -------------------------------

def coarse_encoder_fwd(params, mask, image):
    masks = [mask]
    images = [image]
    m, e = mask, image
    for prm, (_im, _om, _ie, _oe, k, s, p) in zip(params["madf"], MADF_CFG):
        m, e = simple_madf_fwd(m, e, prm, k, s, p)
        masks.append(m)
        images.append(e)
    # Up-convs cannot be batched into one call by row-concat (K/Cout differ per
    # level), so they stay one fused pallas_call per level (5 calls).
    up_layers = []
    for e_l, prm in zip(images, params["up"]):
        up_layers.append(conv_block_fwd(e_l, prm["w"], prm["b"], 3, 1, 1, relu=True))
    return masks, images, up_layers


if __name__ == "__main__":
    key = jax.random.PRNGKey(0)
    k_params, k_mask, k_img = jax.random.split(key, 3)

    params = init_params(k_params)

    N, H, W = 2, 16, 16
    mask = jax.random.bernoulli(k_mask, 0.7, (N, 1, H, W)).astype(jnp.float32)
    image = jax.random.normal(k_img, (N, 3, H, W), jnp.float32)

    fwd = jax.jit(coarse_encoder_fwd)
    masks, images, ups = fwd(params, mask, image)
    jax.block_until_ready((masks, images, ups))

    # sanity: expected shape pyramid
    assert [tuple(x.shape) for x in masks] == [
        (2, 1, 16, 16), (2, 2, 8, 8), (2, 4, 4, 4), (2, 8, 2, 2), (2, 16, 1, 1)]
    assert [tuple(x.shape) for x in images] == [
        (2, 3, 16, 16), (2, 16, 8, 8), (2, 32, 4, 4), (2, 64, 2, 2), (2, 128, 1, 1)]
    assert [tuple(x.shape) for x in ups] == [
        (2, 16, 16, 16), (2, 16, 8, 8), (2, 32, 4, 4), (2, 64, 2, 2), (2, 128, 1, 1)]

    print("KERNEL_OK")
</pallas_src>

<mosaic_0001>
module attributes {stable_mosaic.version = 11 : i64} {
  func.func @_madf_kernel(%arg0: i32, %arg1: memref<128x25xbf16, #tpu.memory_space<vmem>>, %arg2: memref<25x128x3xbf16, #tpu.memory_space<vmem>>, %arg3: memref<25x2xbf16, #tpu.memory_space<vmem>>, %arg4: memref<1x2xf32, #tpu.memory_space<vmem>>, %arg5: memref<25x2x3xbf16, #tpu.memory_space<vmem>>, %arg6: memref<25x1x3xf32, #tpu.memory_space<vmem>>, %arg7: memref<3x16xbf16, #tpu.memory_space<vmem>>, %arg8: memref<1x16xf32, #tpu.memory_space<vmem>>, %arg9: memref<128x2xf32, #tpu.memory_space<vmem>>, %arg10: memref<128x16xf32, #tpu.memory_space<vmem>>) attributes {dimension_semantics = [#tpu.dimension_semantics<parallel>], iteration_bounds = array<i64: 1>, scalar_prefetch = 0 : i64, scratch_operands = 0 : i64, tpu.core_type = #tpu.core_type<tc>, window_params = [{transform_indices = @transform_0, window_bounds = array<i64: 128, 25>}, {transform_indices = @transform_1, window_bounds = array<i64: 25, 128, 3>}, {pipeline_mode = #tpu.pipeline_mode<synchronous>, transform_indices = @transform_2, window_bounds = array<i64: 25, 2>}, {pipeline_mode = #tpu.pipeline_mode<synchronous>, transform_indices = @transform_3, window_bounds = array<i64: 1, 2>}, {pipeline_mode = #tpu.pipeline_mode<synchronous>, transform_indices = @transform_4, window_bounds = array<i64: 25, 2, 3>}, {pipeline_mode = #tpu.pipeline_mode<synchronous>, transform_indices = @transform_5, window_bounds = array<i64: 25, 1, 3>}, {pipeline_mode = #tpu.pipeline_mode<synchronous>, transform_indices = @transform_6, window_bounds = array<i64: 3, 16>}, {pipeline_mode = #tpu.pipeline_mode<synchronous>, transform_indices = @transform_7, window_bounds = array<i64: 1, 16>}, {transform_indices = @transform_8, window_bounds = array<i64: 128, 2>}, {transform_indices = @transform_9, window_bounds = array<i64: 128, 16>}]} {
    %c0 = arith.constant 0 : index
    %c0_0 = arith.constant 0 : index
    %0 = vector.load %arg1[%c0, %c0_0] : memref<128x25xbf16, #tpu.memory_space<vmem>>, vector<128x25xbf16>
    %c0_1 = arith.constant 0 : index
    %c0_2 = arith.constant 0 : index
    %1 = vector.load %arg3[%c0_1, %c0_2] : memref<25x2xbf16, #tpu.memory_space<vmem>>, vector<25x2xbf16>
    %cst = arith.constant dense<0.000000e+00> : vector<128x2xf32>
    %2 = tpu.matmul %0, %1, %cst {dimension_numbers = #tpu.dot_dimension_numbers<[1], [0], [0], [1], [0, 0, 1, 1], [], []>} : vector<128x25xbf16>, vector<25x2xbf16>, vector<128x2xf32> -> vector<128x2xf32>
    %c0_3 = arith.constant 0 : index
    %c0_4 = arith.constant 0 : index
    %3 = vector.load %arg4[%c0_3, %c0_4] : memref<1x2xf32, #tpu.memory_space<vmem>>, vector<1x2xf32>
    %4 = vector.broadcast %3 : vector<1x2xf32> to vector<128x2xf32>
    %5 = arith.addf %2, %4 : vector<128x2xf32>
    %cst_5 = arith.constant 0.000000e+00 : f32
    %6 = vector.broadcast %cst_5 : f32 to vector<128x2xf32>
    %7 = arith.maximumf %5, %6 : vector<128x2xf32>
    %c0_6 = arith.constant 0 : index
    %c0_7 = arith.constant 0 : index
    %8 = vector.load %arg9[%c0_6, %c0_7] : memref<128x2xf32, #tpu.memory_space<vmem>>, vector<128x2xf32>
    tpu.vector_store %arg9[%c0_6, %c0_7], %7 {strides = array<i32>} : memref<128x2xf32, #tpu.memory_space<vmem>>, vector<128x2xf32>,
    %9 = arith.truncf %7 : vector<128x2xf32> to vector<128x2xbf16>
    %cst_8 = arith.constant 0.000000e+00 : f32
    %10 = vector.broadcast %cst_8 : f32 to vector<128x3xf32>
    %c0_9 = arith.constant 0 : index
    %c0_10 = arith.constant 0 : index
    %c0_11 = arith.constant 0 : index
    %11 = vector.load %arg5[%c0_9, %c0_10, %c0_11] : memref<25x2x3xbf16, #tpu.memory_space<vmem>>, vector<1x2x3xbf16>
    %12 = vector.shape_cast %11 : vector<1x2x3xbf16> to vector<2x3xbf16>
    %cst_12 = arith.constant dense<0.000000e+00> : vector<128x3xf32>
    %13 = tpu.matmul %9, %12, %cst_12 {dimension_numbers = #tpu.dot_dimension_numbers<[1], [0], [0], [1], [0, 0, 1, 1], [], []>} : vector<128x2xbf16>, vector<2x3xbf16>, vector<128x3xf32> -> vector<128x3xf32>
    %c0_13 = arith.constant 0 : index
    %c0_14 = arith.constant 0 : index
    %c0_15 = arith.constant 0 : index
    %14 = vector.load %arg6[%c0_13, %c0_14, %c0_15] : memref<25x1x3xf32, #tpu.memory_space<vmem>>, vector<1x1x3xf32>
    %15 = vector.shape_cast %14 : vector<1x1x3xf32> to vector<1x3xf32>
    %16 = vector.broadcast %15 : vector<1x3xf32> to vector<128x3xf32>
    %17 = arith.addf %13, %16 : vector<128x3xf32>
    %c0_16 = arith.constant 0 : index
    %c0_17 = arith.constant 0 : index
    %c0_18 = arith.constant 0 : index
    %18 = vector.load %arg2[%c0_16, %c0_17, %c0_18] : memref<25x128x3xbf16, #tpu.memory_space<vmem>>, vector<1x128x3xbf16>
    %19 = vector.shape_cast %18 : vector<1x128x3xbf16> to vector<128x3xbf16>
    %20 = arith.extf %19 : vector<128x3xbf16> to vector<128x3xf32>
    %21 = arith.mulf %17, %20 : vector<128x3xf32>
    %22 = arith.addf %10, %21 : vector<128x3xf32>
    %c1 = arith.constant 1 : index
    %c0_19 = arith.constant 0 : index
    %c0_20 = arith.constant 0 : index
    %23 = vector.load %arg5[%c1, %c0_19, %c0_20] : memref<25x2x3xbf16, #tpu.memory_space<vmem>>, vector<1x2x3xbf16>
    %24 = vector.shape_cast %23 : vector<1x2x3xbf16> to vector<2x3xbf16>
    %cst_21 = arith.constant dense<0.000000e+00> : vector<128x3xf32>
    %25 = tpu.matmul %9, %24, %cst_21 {dimension_numbers = #tpu.dot_dimension_numbers<[1], [0], [0], [1], [0, 0, 1, 1], [], []>} : vector<128x2xbf16>, vector<2x3xbf16>, vector<128x3xf32> -> vector<128x3xf32>
    %c1_22 = arith.constant 1 : index
    %c0_23 = arith.constant 0 : index
    %c0_24 = arith.constant 0 : index
    %26 = vector.load %arg6[%c1_22, %c0_23, %c0_24] : memref<25x1x3xf32, #tpu.memory_space<vmem>>, vector<1x1x3xf32>
    %27 = vector.shape_cast %26 : vector<1x1x3xf32> to vector<1x3xf32>
    %28 = vector.broadcast %27 : vector<1x3xf32> to vector<128x3xf32>
    %29 = arith.addf %25, %28 : vector<128x3xf32>
    %c1_25 = arith.constant 1 : index
    %c0_26 = arith.constant 0 : index
    %c0_27 = arith.constant 0 : index
    %30 = vector.load %arg2[%c1_25, %c0_26, %c0_27] : memref<25x128x3xbf16, #tpu.memory_space<vmem>>, vector<1x128x3xbf16>
    %31 = vector.shape_cast %30 : vector<1x128x3xbf16> to vector<128x3xbf16>
    %32 = arith.extf %31 : vector<128x3xbf16> to vector<128x3xf32>
    %33 = arith.mulf %29, %32 : vector<128x3xf32>
    %34 = arith.addf %22, %33 : vector<128x3xf32>
    %c2 = arith.constant 2 : index
    %c0_28 = arith.constant 0 : index
    %c0_29 = arith.constant 0 : index
    %35 = vector.load %arg5[%c2, %c0_28, %c0_29] : memref<25x2x3xbf16, #tpu.memory_space<vmem>>, vector<1x2x3xbf16>
    %36 = vector.shape_cast %35 : vector<1x2x3xbf16> to vector<2x3xbf16>
    %cst_30 = arith.constant dense<0.000000e+00> : vector<128x3xf32>
    %37 = tpu.matmul %9, %36, %cst_30 {dimension_numbers = #tpu.dot_dimension_numbers<[1], [0], [0], [1], [0, 0, 1, 1], [], []>} : vector<128x2xbf16>, vector<2x3xbf16>, vector<128x3xf32> -> vector<128x3xf32>
    %c2_31 = arith.constant 2 : index
    %c0_32 = arith.constant 0 : index
    %c0_33 = arith.constant 0 : index
    %38 = vector.load %arg6[%c2_31, %c0_32, %c0_33] : memref<25x1x3xf32, #tpu.memory_space<vmem>>, vector<1x1x3xf32>
    %39 = vector.shape_cast %38 : vector<1x1x3xf32> to vector<1x3xf32>
    %40 = vector.broadcast %39 : vector<1x3xf32> to vector<128x3xf32>
    %41 = arith.addf %37, %40 : vector<128x3xf32>
    %c2_34 = arith.constant 2 : index
    %c0_35 = arith.constant 0 : index
    %c0_36 = arith.constant 0 : index
    %42 = vector.load %arg2[%c2_34, %c0_35, %c0_36] : memref<25x128x3xbf16, #tpu.memory_space<vmem>>, vector<1x128x3xbf16>
    %43 = vector.shape_cast %42 : vector<1x128x3xbf16> to vector<128x3xbf16>
    %44 = arith.extf %43 : vector<128x3xbf16> to vector<128x3xf32>
    %45 = arith.mulf %41, %44 : vector<128x3xf32>
    %46 = arith.addf %34, %45 : vector<128x3xf32>
    %c3 = arith.constant 3 : index
    %c0_37 = arith.constant 0 : index
    %c0_38 = arith.constant 0 : index
    %47 = vector.load %arg5[%c3, %c0_37, %c0_38] : memref<25x2x3xbf16, #tpu.memory_space<vmem>>, vector<1x2x3xbf16>
    %48 = vector.shape_cast %47 : vector<1x2x3xbf16> to vector<2x3xbf16>
    %cst_39 = arith.constant dense<0.000000e+00> : vector<128x3xf32>
    %49 = tpu.matmul %9, %48, %cst_39 {dimension_numbers = #tpu.dot_dimension_numbers<[1], [0], [0], [1], [0, 0, 1, 1], [], []>} : vector<128x2xbf16>, vector<2x3xbf16>, vector<128x3xf32> -> vector<128x3xf32>
    %c3_40 = arith.constant 3 : index
    %c0_41 = arith.constant 0 : index
    %c0_42 = arith.constant 0 : index
    %50 = vector.load %arg6[%c3_40, %c0_41, %c0_42] : memref<25x1x3xf32, #tpu.memory_space<vmem>>, vector<1x1x3xf32>
    %51 = vector.shape_cast %50 : vector<1x1x3xf32> to vector<1x3xf32>
    %52 = vector.broadcast %51 : vector<1x3xf32> to vector<128x3xf32>
    %53 = arith.addf %49, %52 : vector<128x3xf32>
    %c3_43 = arith.constant 3 : index
    %c0_44 = arith.constant 0 : index
    %c0_45 = arith.constant 0 : index
    %54 = vector.load %arg2[%c3_43, %c0_44, %c0_45] : memref<25x128x3xbf16, #tpu.memory_space<vmem>>, vector<1x128x3xbf16>
    %55 = vector.shape_cast %54 : vector<1x128x3xbf16> to vector<128x3xbf16>
    %56 = arith.extf %55 : vector<128x3xbf16> to vector<128x3xf32>
    %57 = arith.mulf %53, %56 : vector<128x3xf32>
    %58 = arith.addf %46, %57 : vector<128x3xf32>
    %c4 = arith.constant 4 : index
    %c0_46 = arith.constant 0 : index
    %c0_47 = arith.constant 0 : index
    %59 = vector.load %arg5[%c4, %c0_46, %c0_47] : memref<25x2x3xbf16, #tpu.memory_space<vmem>>, vector<1x2x3xbf16>
    %60 = vector.shape_cast %59 : vector<1x2x3xbf16> to vector<2x3xbf16>
    %cst_48 = arith.constant dense<0.000000e+00> : vector<128x3xf32>
    %61 = tpu.matmul %9, %60, %cst_48 {dimension_numbers = #tpu.dot_dimension_numbers<[1], [0], [0], [1], [0, 0, 1, 1], [], []>} : vector<128x2xbf16>, vector<2x3xbf16>, vector<128x3xf32> -> vector<128x3xf32>
    %c4_49 = arith.constant 4 : index
    %c0_50 = arith.constant 0 : index
    %c0_51 = arith.constant 0 : index
    %62 = vector.load %arg6[%c4_49, %c0_50, %c0_51] : memref<25x1x3xf32, #tpu.memory_space<vmem>>, vector<1x1x3xf32>
    %63 = vector.shape_cast %62 : vector<1x1x3xf32> to vector<1x3xf32>
    %64 = vector.broadcast %63 : vector<1x3xf32> to vector<128x3xf32>
    %65 = arith.addf %61, %64 : vector<128x3xf32>
    %c4_52 = arith.constant 4 : index
    %c0_53 = arith.constant 0 : index
    %c0_54 = arith.constant 0 : index
    %66 = vector.load %arg2[%c4_52, %c0_53, %c0_54] : memref<25x128x3xbf16, #tpu.memory_space<vmem>>, vector<1x128x3xbf16>
    %67 = vector.shape_cast %66 : vector<1x128x3xbf16> to vector<128x3xbf16>
    %68 = arith.extf %67 : vector<128x3xbf16> to vector<128x3xf32>
    %69 = arith.mulf %65, %68 : vector<128x3xf32>
    %70 = arith.addf %58, %69 : vector<128x3xf32>
    %c5 = arith.constant 5 : index
    %c0_55 = arith.constant 0 : index
    %c0_56 = arith.constant 0 : index
    %71 = vector.load %arg5[%c5, %c0_55, %c0_56] : memref<25x2x3xbf16, #tpu.memory_space<vmem>>, vector<1x2x3xbf16>
    %72 = vector.shape_cast %71 : vector<1x2x3xbf16> to vector<2x3xbf16>
    %cst_57 = arith.constant dense<0.000000e+00> : vector<128x3xf32>
    %73 = tpu.matmul %9, %72, %cst_57 {dimension_numbers = #tpu.dot_dimension_numbers<[1], [0], [0], [1], [0, 0, 1, 1], [], []>} : vector<128x2xbf16>, vector<2x3xbf16>, vector<128x3xf32> -> vector<128x3xf32>
    %c5_58 = arith.constant 5 : index
    %c0_59 = arith.constant 0 : index
    %c0_60 = arith.constant 0 : index
    %74 = vector.load %arg6[%c5_58, %c0_59, %c0_60] : memref<25x1x3xf32, #tpu.memory_space<vmem>>, vector<1x1x3xf32>
    %75 = vector.shape_cast %74 : vector<1x1x3xf32> to vector<1x3xf32>
    %76 = vector.broadcast %75 : vector<1x3xf32> to vector<128x3xf32>
    %77 = arith.addf %73, %76 : vector<128x3xf32>
    %c5_61 = arith.constant 5 : index
    %c0_62 = arith.constant 0 : index
    %c0_63 = arith.constant 0 : index
    %78 = vector.load %arg2[%c5_61, %c0_62, %c0_63] : memref<25x128x3xbf16, #tpu.memory_space<vmem>>, vector<1x128x3xbf16>
    %79 = vector.shape_cast %78 : vector<1x128x3xbf16> to vector<128x3xbf16>
    %80 = arith.extf %79 : vector<128x3xbf16> to vector<128x3xf32>
    %81 = arith.mulf %77, %80 : vector<128x3xf32>
    %82 = arith.addf %70, %81 : vector<128x3xf32>
    %c6 = arith.constant 6 : index
    %c0_64 = arith.constant 0 : index
    %c0_65 = arith.constant 0 : index
    %83 = vector.load %arg5[%c6, %c0_64, %c0_65] : memref<25x2x3xbf16, #tpu.memory_space<vmem>>, vector<1x2x3xbf16>
    %84 = vector.shape_cast %83 : vector<1x2x3xbf16> to vector<2x3xbf16>
    %cst_66 = arith.constant dense<0.000000e+00> : vector<128x3xf32>
    %85 = tpu.matmul %9, %84, %cst_66 {dimension_numbers = #tpu.dot_dimension_numbers<[1], [0], [0], [1], [0, 0, 1, 1], [], []>} : vector<128x2xbf16>, vector<2x3xbf16>, vector<128x3xf32> -> vector<128x3xf32>
    %c6_67 = arith.constant 6 : index
    %c0_68 = arith.constant 0 : index
    %c0_69 = arith.constant 0 : index
    %86 = vector.load %arg6[%c6_67, %c0_68, %c0_69] : memref<25x1x3xf32, #tpu.memory_space<vmem>>, vector<1x1x3xf32>
    %87 = vector.shape_cast %86 : vector<1x1x3xf32> to vector<1x3xf32>
    %88 = vector.broadcast %87 : vector<1x3xf32> to vector<128x3xf32>
    %89 = arith.addf %85, %88 : vector<128x3xf32>
    %c6_70 = arith.constant 6 : index
    %c0_71 = arith.constant 0 : index
    %c0_72 = arith.constant 0 : index
    %90 = vector.load %arg2[%c6_70, %c0_71, %c0_72] : memref<25x128x3xbf16, #tpu.memory_space<vmem>>, vector<1x128x3xbf16>
    %91 = vector.shape_cast %90 : vector<1x128x3xbf16> to vector<128x3xbf16>
    %92 = arith.extf %91 : vector<128x3xbf16> to vector<128x3xf32>
    %93 = arith.mulf %89, %92 : vector<128x3xf32>
    %94 = arith.addf %82, %93 : vector<128x3xf32>
    %c7 = arith.constant 7 : index
    %c0_73 = arith.constant 0 : index
    %c0_74 = arith.constant 0 : index
    %95 = vector.load %arg5[%c7, %c0_73, %c0_74] : memref<25x2x3xbf16, #tpu.memory_space<vmem>>, vector<1x2x3xbf16>
    %96 = vector.shape_cast %95 : vector<1x2x3xbf16> to vector<2x3xbf16>
    %cst_75 = arith.constant dense<0.000000e+00> : vector<128x3xf32>
    %97 = tpu.matmul %9, %96, %cst_75 {dimension_numbers = #tpu.dot_dimension_numbers<[1], [0], [0], [1], [0, 0, 1, 1], [], []>} : vector<128x2xbf16>, vector<2x3xbf16>, vector<128x3xf32> -> vector<128x3xf32>
    %c7_76 = arith.constant 7 : index
    %c0_77 = arith.constant 0 : index
    %c0_78 = arith.constant 0 : index
    %98 = vector.load %arg6[%c7_76, %c0_77, %c0_78] : memref<25x1x3xf32, #tpu.memory_space<vmem>>, vector<1x1x3xf32>
    %99 = vector.shape_cast %98 : vector<1x1x3xf32> to vector<1x3xf32>
    %100 = vector.broadcast %99 : vector<1x3xf32> to vector<128x3xf32>
    %101 = arith.addf %97, %100 : vector<128x3xf32>
    %c7_79 = arith.constant 7 : index
    %c0_80 = arith.constant 0 : index
    %c0_81 = arith.constant 0 : index
    %102 = vector.load %arg2[%c7_79, %c0_80, %c0_81] : memref<25x128x3xbf16, #tpu.memory_space<vmem>>, vector<1x128x3xbf16>
    %103 = vector.shape_cast %102 : vector<1x128x3xbf16> to vector<128x3xbf16>
    %104 = arith.extf %103 : vector<128x3xbf16> to vector<128x3xf32>
    %105 = arith.mulf %101, %104 : vector<128x3xf32>
    %106 = arith.addf %94, %105 : vector<128x3xf32>
    %c8 = arith.constant 8 : index
    %c0_82 = arith.constant 0 : index
    %c0_83 = arith.constant 0 : index
    %107 = vector.load %arg5[%c8, %c0_82, %c0_83] : memref<25x2x3xbf16, #tpu.memory_space<vmem>>, vector<1x2x3xbf16>
    %108 = vector.shape_cast %107 : vector<1x2x3xbf16> to vector<2x3xbf16>
    %cst_84 = arith.constant dense<0.000000e+00> : vector<128x3xf32>
    %109 = tpu.matmul %9, %108, %cst_84 {dimension_numbers = #tpu.dot_dimension_numbers<[1], [0], [0], [1], [0, 0, 1, 1], [], []>} : vector<128x2xbf16>, vector<2x3xbf16>, vector<128x3xf32> -> vector<128x3xf32>
    %c8_85 = arith.constant 8 : index
    %c0_86 = arith.constant 0 : index
    %c0_87 = arith.constant 0 : index
    %110 = vector.load %arg6[%c8_85, %c0_86, %c0_87] : memref<25x1x3xf32, #tpu.memory_space<vmem>>, vector<1x1x3xf32>
    %111 = vector.shape_cast %110 : vector<1x1x3xf32> to vector<1x3xf32>
    %112 = vector.broadcast %111 : vector<1x3xf32> to vector<128x3xf32>
    %113 = arith.addf %109, %112 : vector<128x3xf32>
    %c8_88 = arith.constant 8 : index
    %c0_89 = arith.constant 0 : index
    %c0_90 = arith.constant 0 : index
    %114 = vector.load %arg2[%c8_88, %c0_89, %c0_90] : memref<25x128x3xbf16, #tpu.memory_space<vmem>>, vector<1x128x3xbf16>
    %115 = vector.shape_cast %114 : vector<1x128x3xbf16> to vector<128x3xbf16>
    %116 = arith.extf %115 : vector<128x3xbf16> to vector<128x3xf32>
    %117 = arith.mulf %113, %116 : vector<128x3xf32>
    %118 = arith.addf %106, %117 : vector<128x3xf32>
    %c9 = arith.constant 9 : index
    %c0_91 = arith.constant 0 : index
    %c0_92 = arith.constant 0 : index
    %119 = vector.load %arg5[%c9, %c0_91, %c0_92] : memref<25x2x3xbf16, #tpu.memory_space<vmem>>, vector<1x2x3xbf16>
    %120 = vector.shape_cast %119 : vector<1x2x3xbf16> to vector<2x3xbf16>
    %cst_93 = arith.constant dense<0.000000e+00> : vector<128x3xf32>
    %121 = tpu.matmul %9, %120, %cst_93 {dimension_numbers = #tpu.dot_dimension_numbers<[1], [0], [0], [1], [0, 0, 1, 1], [], []>} : vector<128x2xbf16>, vector<2x3xbf16>, vector<128x3xf32> -> vector<128x3xf32>
    %c9_94 = arith.constant 9 : index
    %c0_95 = arith.constant 0 : index
    %c0_96 = arith.constant 0 : index
    %122 = vector.load %arg6[%c9_94, %c0_95, %c0_96] : memref<25x1x3xf32, #tpu.memory_space<vmem>>, vector<1x1x3xf32>
    %123 = vector.shape_cast %122 : vector<1x1x3xf32> to vector<1x3xf32>
    %124 = vector.broadcast %123 : vector<1x3xf32> to vector<128x3xf32>
    %125 = arith.addf %121, %124 : vector<128x3xf32>
    %c9_97 = arith.constant 9 : index
    %c0_98 = arith.constant 0 : index
    %c0_99 = arith.constant 0 : index
    %126 = vector.load %arg2[%c9_97, %c0_98, %c0_99] : memref<25x128x3xbf16, #tpu.memory_space<vmem>>, vector<1x128x3xbf16>
    %127 = vector.shape_cast %126 : vector<1x128x3xbf16> to vector<128x3xbf16>
    %128 = arith.extf %127 : vector<128x3xbf16> to vector<128x3xf32>
    %129 = arith.mulf %125, %128 : vector<128x3xf32>
    %130 = arith.addf %118, %129 : vector<128x3xf32>
    %c10 = arith.constant 10 : index
    %c0_100 = arith.constant 0 : index
    %c0_101 = arith.constant 0 : index
    %131 = vector.load %arg5[%c10, %c0_100, %c0_101] : memref<25x2x3xbf16, #tpu.memory_space<vmem>>, vector<1x2x3xbf16>
    %132 = vector.shape_cast %131 : vector<1x2x3xbf16> to vector<2x3xbf16>
    %cst_102 = arith.constant dense<0.000000e+00> : vector<128x3xf32>
    %133 = tpu.matmul %9, %132, %cst_102 {dimension_numbers = #tpu.dot_dimension_numbers<[1], [0], [0], [1], [0, 0, 1, 1], [], []>} : vector<128x2xbf16>, vector<2x3xbf16>, vector<128x3xf32> -> vector<128x3xf32>
    %c10_103 = arith.constant 10 : index
    %c0_104 = arith.constant 0 : index
    %c0_105 = arith.constant 0 : index
    %134 = vector.load %arg6[%c10_103, %c0_104, %c0_105] : memref<25x1x3xf32, #tpu.memory_space<vmem>>, vector<1x1x3xf32>
    %135 = vector.shape_cast %134 : vector<1x1x3xf32> to vector<1x3xf32>
    %136 = vector.broadcast %135 : vector<1x3xf32> to vector<128x3xf32>
    %137 = arith.addf %133, %136 : vector<128x3xf32>
    %c10_106 = arith.constant 10 : index
    %c0_107 = arith.constant 0 : index
    %c0_108 = arith.constant 0 : index
    %138 = vector.load %arg2[%c10_106, %c0_107, %c0_108] : memref<25x128x3xbf16, #tpu.memory_space<vmem>>, vector<1x128x3xbf16>
    %139 = vector.shape_cast %138 : vector<1x128x3xbf16> to vector<128x3xbf16>
    %140 = arith.extf %139 : vector<128x3xbf16> to vector<128x3xf32>
    %141 = arith.mulf %137, %140 : vector<128x3xf32>
    %142 = arith.addf %130, %141 : vector<128x3xf32>
    %c11 = arith.constant 11 : index
    %c0_109 = arith.constant 0 : index
    %c0_110 = arith.constant 0 : index
    %143 = vector.load %arg5[%c11, %c0_109, %c0_110] : memref<25x2x3xbf16, #tpu.memory_space<vmem>>, vector<1x2x3xbf16>
    %144 = vector.shape_cast %143 : vector<1x2x3xbf16> to vector<2x3xbf16>
    %cst_111 = arith.constant dense<0.000000e+00> : vector<128x3xf32>
    %145 = tpu.matmul %9, %144, %cst_111 {dimension_numbers = #tpu.dot_dimension_numbers<[1], [0], [0], [1], [0, 0, 1, 1], [], []>} : vector<128x2xbf16>, vector<2x3xbf16>, vector<128x3xf32> -> vector<128x3xf32>
    %c11_112 = arith.constant 11 : index
    %c0_113 = arith.constant 0 : index
    %c0_114 = arith.constant 0 : index
    %146 = vector.load %arg6[%c11_112, %c0_113, %c0_114] : memref<25x1x3xf32, #tpu.memory_space<vmem>>, vector<1x1x3xf32>
    %147 = vector.shape_cast %146 : vector<1x1x3xf32> to vector<1x3xf32>
    %148 = vector.broadcast %147 : vector<1x3xf32> to vector<128x3xf32>
    %149 = arith.addf %145, %148 : vector<128x3xf32>
    %c11_115 = arith.constant 11 : index
    %c0_116 = arith.constant 0 : index
    %c0_117 = arith.constant 0 : index
    %150 = vector.load %arg2[%c11_115, %c0_116, %c0_117] : memref<25x128x3xbf16, #tpu.memory_space<vmem>>, vector<1x128x3xbf16>
    %151 = vector.shape_cast %150 : vector<1x128x3xbf16> to vector<128x3xbf16>
    %152 = arith.extf %151 : vector<128x3xbf16> to vector<128x3xf32>
    %153 = arith.mulf %149, %152 : vector<128x3xf32>
    %154 = arith.addf %142, %153 : vector<128x3xf32>
    %c12 = arith.constant 12 : index
    %c0_118 = arith.constant 0 : index
    %c0_119 = arith.constant 0 : index
    %155 = vector.load %arg5[%c12, %c0_118, %c0_119] : memref<25x2x3xbf16, #tpu.memory_space<vmem>>, vector<1x2x3xbf16>
    %156 = vector.shape_cast %155 : vector<1x2x3xbf16> to vector<2x3xbf16>
    %cst_120 = arith.constant dense<0.000000e+00> : vector<128x3xf32>
    %157 = tpu.matmul %9, %156, %cst_120 {dimension_numbers = #tpu.dot_dimension_numbers<[1], [0], [0], [1], [0, 0, 1, 1], [], []>} : vector<128x2xbf16>, vector<2x3xbf16>, vector<128x3xf32> -> vector<128x3xf32>
    %c12_121 = arith.constant 12 : index
    %c0_122 = arith.constant 0 : index
    %c0_123 = arith.constant 0 : index
    %158 = vector.load %arg6[%c12_121, %c0_122, %c0_123] : memref<25x1x3xf32, #tpu.memory_space<vmem>>, vector<1x1x3xf32>
    %159 = vector.shape_cast %158 : vector<1x1x3xf32> to vector<1x3xf32>
    %160 = vector.broadcast %159 : vector<1x3xf32> to vector<128x3xf32>
    %161 = arith.addf %157, %160 : vector<128x3xf32>
    %c12_124 = arith.constant 12 : index
    %c0_125 = arith.constant 0 : index
    %c0_126 = arith.constant 0 : index
    %162 = vector.load %arg2[%c12_124, %c0_125, %c0_126] : memref<25x128x3xbf16, #tpu.memory_space<vmem>>, vector<1x128x3xbf16>
    %163 = vector.shape_cast %162 : vector<1x128x3xbf16> to vector<128x3xbf16>
    %164 = arith.extf %163 : vector<128x3xbf16> to vector<128x3xf32>
    %165 = arith.mulf %161, %164 : vector<128x3xf32>
    %166 = arith.addf %154, %165 : vector<128x3xf32>
    %c13 = arith.constant 13 : index
    %c0_127 = arith.constant 0 : index
    %c0_128 = arith.constant 0 : index
    %167 = vector.load %arg5[%c13, %c0_127, %c0_128] : memref<25x2x3xbf16, #tpu.memory_space<vmem>>, vector<1x2x3xbf16>
    %168 = vector.shape_cast %167 : vector<1x2x3xbf16> to vector<2x3xbf16>
    %cst_129 = arith.constant dense<0.000000e+00> : vector<128x3xf32>
    %169 = tpu.matmul %9, %168, %cst_129 {dimension_numbers = #tpu.dot_dimension_numbers<[1], [0], [0], [1], [0, 0, 1, 1], [], []>} : vector<128x2xbf16>, vector<2x3xbf16>, vector<128x3xf32> -> vector<128x3xf32>
    %c13_130 = arith.constant 13 : index
    %c0_131 = arith.constant 0 : index
    %c0_132 = arith.constant 0 : index
    %170 = vector.load %arg6[%c13_130, %c0_131, %c0_132] : memref<25x1x3xf32, #tpu.memory_space<vmem>>, vector<1x1x3xf32>
    %171 = vector.shape_cast %170 : vector<1x1x3xf32> to vector<1x3xf32>
    %172 = vector.broadcast %171 : vector<1x3xf32> to vector<128x3xf32>
    %173 = arith.addf %169, %172 : vector<128x3xf32>
    %c13_133 = arith.constant 13 : index
    %c0_134 = arith.constant 0 : index
    %c0_135 = arith.constant 0 : index
    %174 = vector.load %arg2[%c13_133, %c0_134, %c0_135] : memref<25x128x3xbf16, #tpu.memory_space<vmem>>, vector<1x128x3xbf16>
    %175 = vector.shape_cast %174 : vector<1x128x3xbf16> to vector<128x3xbf16>
    %176 = arith.extf %175 : vector<128x3xbf16> to vector<128x3xf32>
    %177 = arith.mulf %173, %176 : vector<128x3xf32>
    %178 = arith.addf %166, %177 : vector<128x3xf32>
    %c14 = arith.constant 14 : index
    %c0_136 = arith.constant 0 : index
    %c0_137 = arith.constant 0 : index
    %179 = vector.load %arg5[%c14, %c0_136, %c0_137] : memref<25x2x3xbf16, #tpu.memory_space<vmem>>, vector<1x2x3xbf16>
    %180 = vector.shape_cast %179 : vector<1x2x3xbf16> to vector<2x3xbf16>
    %cst_138 = arith.constant dense<0.000000e+00> : vector<128x3xf32>
    %181 = tpu.matmul %9, %180, %cst_138 {dimension_numbers = #tpu.dot_dimension_numbers<[1], [0], [0], [1], [0, 0, 1, 1], [], []>} : vector<128x2xbf16>, vector<2x3xbf16>, vector<128x3xf32> -> vector<128x3xf32>
    %c14_139 = arith.constant 14 : index
    %c0_140 = arith.constant 0 : index
    %c0_141 = arith.constant 0 : index
    %182 = vector.load %arg6[%c14_139, %c0_140, %c0_141] : memref<25x1x3xf32, #tpu.memory_space<vmem>>, vector<1x1x3xf32>
    %183 = vector.shape_cast %182 : vector<1x1x3xf32> to vector<1x3xf32>
    %184 = vector.broadcast %183 : vector<1x3xf32> to vector<128x3xf32>
    %185 = arith.addf %181, %184 : vector<128x3xf32>
    %c14_142 = arith.constant 14 : index
    %c0_143 = arith.constant 0 : index
    %c0_144 = arith.constant 0 : index
    %186 = vector.load %arg2[%c14_142, %c0_143, %c0_144] : memref<25x128x3xbf16, #tpu.memory_space<vmem>>, vector<1x128x3xbf16>
    %187 = vector.shape_cast %186 : vector<1x128x3xbf16> to vector<128x3xbf16>
    %188 = arith.extf %187 : vector<128x3xbf16> to vector<128x3xf32>
    %189 = arith.mulf %185, %188 : vector<128x3xf32>
    %190 = arith.addf %178, %189 : vector<128x3xf32>
    %c15 = arith.constant 15 : index
    %c0_145 = arith.constant 0 : index
    %c0_146 = arith.constant 0 : index
    %191 = vector.load %arg5[%c15, %c0_145, %c0_146] : memref<25x2x3xbf16, #tpu.memory_space<vmem>>, vector<1x2x3xbf16>
    %192 = vector.shape_cast %191 : vector<1x2x3xbf16> to vector<2x3xbf16>
    %cst_147 = arith.constant dense<0.000000e+00> : vector<128x3xf32>
    %193 = tpu.matmul %9, %192, %cst_147 {dimension_numbers = #tpu.dot_dimension_numbers<[1], [0], [0], [1], [0, 0, 1, 1], [], []>} : vector<128x2xbf16>, vector<2x3xbf16>, vector<128x3xf32> -> vector<128x3xf32>
    %c15_148 = arith.constant 15 : index
    %c0_149 = arith.constant 0 : index
    %c0_150 = arith.constant 0 : index
    %194 = vector.load %arg6[%c15_148, %c0_149, %c0_150] : memref<25x1x3xf32, #tpu.memory_space<vmem>>, vector<1x1x3xf32>
    %195 = vector.shape_cast %194 : vector<1x1x3xf32> to vector<1x3xf32>
    %196 = vector.broadcast %195 : vector<1x3xf32> to vector<128x3xf32>
    %197 = arith.addf %193, %196 : vector<128x3xf32>
    %c15_151 = arith.constant 15 : index
    %c0_152 = arith.constant 0 : index
    %c0_153 = arith.constant 0 : index
    %198 = vector.load %arg2[%c15_151, %c0_152, %c0_153] : memref<25x128x3xbf16, #tpu.memory_space<vmem>>, vector<1x128x3xbf16>
    %199 = vector.shape_cast %198 : vector<1x128x3xbf16> to vector<128x3xbf16>
    %200 = arith.extf %199 : vector<128x3xbf16> to vector<128x3xf32>
    %201 = arith.mulf %197, %200 : vector<128x3xf32>
    %202 = arith.addf %190, %201 : vector<128x3xf32>
    %c16 = arith.constant 16 : index
    %c0_154 = arith.constant 0 : index
    %c0_155 = arith.constant 0 : index
    %203 = vector.load %arg5[%c16, %c0_154, %c0_155] : memref<25x2x3xbf16, #tpu.memory_space<vmem>>, vector<1x2x3xbf16>
    %204 = vector.shape_cast %203 : vector<1x2x3xbf16> to vector<2x3xbf16>
    %cst_156 = arith.constant dense<0.000000e+00> : vector<128x3xf32>
    %205 = tpu.matmul %9, %204, %cst_156 {dimension_numbers = #tpu.dot_dimension_numbers<[1], [0], [0], [1], [0, 0, 1, 1], [], []>} : vector<128x2xbf16>, vector<2x3xbf16>, vector<128x3xf32> -> vector<128x3xf32>
    %c16_157 = arith.constant 16 : index
    %c0_158 = arith.constant 0 : index
    %c0_159 = arith.constant 0 : index
    %206 = vector.load %arg6[%c16_157, %c0_158, %c0_159] : memref<25x1x3xf32, #tpu.memory_space<vmem>>, vector<1x1x3xf32>
    %207 = vector.shape_cast %206 : vector<1x1x3xf32> to vector<1x3xf32>
    %208 = vector.broadcast %207 : vector<1x3xf32> to vector<128x3xf32>
    %209 = arith.addf %205, %208 : vector<128x3xf32>
    %c16_160 = arith.constant 16 : index
    %c0_161 = arith.constant 0 : index
    %c0_162 = arith.constant 0 : index
    %210 = vector.load %arg2[%c16_160, %c0_161, %c0_162] : memref<25x128x3xbf16, #tpu.memory_space<vmem>>, vector<1x128x3xbf16>
    %211 = vector.shape_cast %210 : vector<1x128x3xbf16> to vector<128x3xbf16>
    %212 = arith.extf %211 : vector<128x3xbf16> to vector<128x3xf32>
    %213 = arith.mulf %209, %212 : vector<128x3xf32>
    %214 = arith.addf %202, %213 : vector<128x3xf32>
    %c17 = arith.constant 17 : index
    %c0_163 = arith.constant 0 : index
    %c0_164 = arith.constant 0 : index
    %215 = vector.load %arg5[%c17, %c0_163, %c0_164] : memref<25x2x3xbf16, #tpu.memory_space<vmem>>, vector<1x2x3xbf16>
    %216 = vector.shape_cast %215 : vector<1x2x3xbf16> to vector<2x3xbf16>
    %cst_165 = arith.constant dense<0.000000e+00> : vector<128x3xf32>
    %217 = tpu.matmul %9, %216, %cst_165 {dimension_numbers = #tpu.dot_dimension_numbers<[1], [0], [0], [1], [0, 0, 1, 1], [], []>} : vector<128x2xbf16>, vector<2x3xbf16>, vector<128x3xf32> -> vector<128x3xf32>
    %c17_166 = arith.constant 17 : index
    %c0_167 = arith.constant 0 : index
    %c0_168 = arith.constant 0 : index
    %218 = vector.load %arg6[%c17_166, %c0_167, %c0_168] : memref<25x1x3xf32, #tpu.memory_space<vmem>>, vector<1x1x3xf32>
    %219 = vector.shape_cast %218 : vector<1x1x3xf32> to vector<1x3xf32>
    %220 = vector.broadcast %219 : vector<1x3xf32> to vector<128x3xf32>
    %221 = arith.addf %217, %220 : vector<128x3xf32>
    %c17_169 = arith.constant 17 : index
    %c0_170 = arith.constant 0 : index
    %c0_171 = arith.constant 0 : index
    %222 = vector.load %arg2[%c17_169, %c0_170, %c0_171] : memref<25x128x3xbf16, #tpu.memory_space<vmem>>, vector<1x128x3xbf16>
    %223 = vector.shape_cast %222 : vector<1x128x3xbf16> to vector<128x3xbf16>
    %224 = arith.extf %223 : vector<128x3xbf16> to vector<128x3xf32>
    %225 = arith.mulf %221, %224 : vector<128x3xf32>
    %226 = arith.addf %214, %225 : vector<128x3xf32>
    %c18 = arith.constant 18 : index
    %c0_172 = arith.constant 0 : index
    %c0_173 = arith.constant 0 : index
    %227 = vector.load %arg5[%c18, %c0_172, %c0_173] : memref<25x2x3xbf16, #tpu.memory_space<vmem>>, vector<1x2x3xbf16>
    %228 = vector.shape_cast %227 : vector<1x2x3xbf16> to vector<2x3xbf16>
    %cst_174 = arith.constant dense<0.000000e+00> : vector<128x3xf32>
    %229 = tpu.matmul %9, %228, %cst_174 {dimension_numbers = #tpu.dot_dimension_numbers<[1], [0], [0], [1], [0, 0, 1, 1], [], []>} : vector<128x2xbf16>, vector<2x3xbf16>, vector<128x3xf32> -> vector<128x3xf32>
    %c18_175 = arith.constant 18 : index
    %c0_176 = arith.constant 0 : index
    %c0_177 = arith.constant 0 : index
    %230 = vector.load %arg6[%c18_175, %c0_176, %c0_177] : memref<25x1x3xf32, #tpu.memory_space<vmem>>, vector<1x1x3xf32>
    %231 = vector.shape_cast %230 : vector<1x1x3xf32> to vector<1x3xf32>
    %232 = vector.broadcast %231 : vector<1x3xf32> to vector<128x3xf32>
    %233 = arith.addf %229, %232 : vector<128x3xf32>
    %c18_178 = arith.constant 18 : index
    %c0_179 = arith.constant 0 : index
    %c0_180 = arith.constant 0 : index
    %234 = vector.load %arg2[%c18_178, %c0_179, %c0_180] : memref<25x128x3xbf16, #tpu.memory_space<vmem>>, vector<1x128x3xbf16>
    %235 = vector.shape_cast %234 : vector<1x128x3xbf16> to vector<128x3xbf16>
    %236 = arith.extf %235 : vector<128x3xbf16> to vector<128x3xf32>
    %237 = arith.mulf %233, %236 : vector<128x3xf32>
    %238 = arith.addf %226, %237 : vector<128x3xf32>
    %c19 = arith.constant 19 : index
    %c0_181 = arith.constant 0 : index
    %c0_182 = arith.constant 0 : index
    %239 = vector.load %arg5[%c19, %c0_181, %c0_182] : memref<25x2x3xbf16, #tpu.memory_space<vmem>>, vector<1x2x3xbf16>
    %240 = vector.shape_cast %239 : vector<1x2x3xbf16> to vector<2x3xbf16>
    %cst_183 = arith.constant dense<0.000000e+00> : vector<128x3xf32>
    %241 = tpu.matmul %9, %240, %cst_183 {dimension_numbers = #tpu.dot_dimension_numbers<[1], [0], [0], [1], [0, 0, 1, 1], [], []>} : vector<128x2xbf16>, vector<2x3xbf16>, vector<128x3xf32> -> vector<128x3xf32>
    %c19_184 = arith.constant 19 : index
    %c0_185 = arith.constant 0 : index
    %c0_186 = arith.constant 0 : index
    %242 = vector.load %arg6[%c19_184, %c0_185, %c0_186] : memref<25x1x3xf32, #tpu.memory_space<vmem>>, vector<1x1x3xf32>
    %243 = vector.shape_cast %242 : vector<1x1x3xf32> to vector<1x3xf32>
    %244 = vector.broadcast %243 : vector<1x3xf32> to vector<128x3xf32>
    %245 = arith.addf %241, %244 : vector<128x3xf32>
    %c19_187 = arith.constant 19 : index
    %c0_188 = arith.constant 0 : index
    %c0_189 = arith.constant 0 : index
    %246 = vector.load %arg2[%c19_187, %c0_188, %c0_189] : memref<25x128x3xbf16, #tpu.memory_space<vmem>>, vector<1x128x3xbf16>
    %247 = vector.shape_cast %246 : vector<1x128x3xbf16> to vector<128x3xbf16>
    %248 = arith.extf %247 : vector<128x3xbf16> to vector<128x3xf32>
    %249 = arith.mulf %245, %248 : vector<128x3xf32>
    %250 = arith.addf %238, %249 : vector<128x3xf32>
    %c20 = arith.constant 20 : index
    %c0_190 = arith.constant 0 : index
    %c0_191 = arith.constant 0 : index
    %251 = vector.load %arg5[%c20, %c0_190, %c0_191] : memref<25x2x3xbf16, #tpu.memory_space<vmem>>, vector<1x2x3xbf16>
    %252 = vector.shape_cast %251 : vector<1x2x3xbf16> to vector<2x3xbf16>
    %cst_192 = arith.constant dense<0.000000e+00> : vector<128x3xf32>
    %253 = tpu.matmul %9, %252, %cst_192 {dimension_numbers = #tpu.dot_dimension_numbers<[1], [0], [0], [1], [0, 0, 1, 1], [], []>} : vector<128x2xbf16>, vector<2x3xbf16>, vector<128x3xf32> -> vector<128x3xf32>
    %c20_193 = arith.constant 20 : index
    %c0_194 = arith.constant 0 : index
    %c0_195 = arith.constant 0 : index
    %254 = vector.load %arg6[%c20_193, %c0_194, %c0_195] : memref<25x1x3xf32, #tpu.memory_space<vmem>>, vector<1x1x3xf32>
    %255 = vector.shape_cast %254 : vector<1x1x3xf32> to vector<1x3xf32>
    %256 = vector.broadcast %255 : vector<1x3xf32> to vector<128x3xf32>
    %257 = arith.addf %253, %256 : vector<128x3xf32>
    %c20_196 = arith.constant 20 : index
    %c0_197 = arith.constant 0 : index
    %c0_198 = arith.constant 0 : index
    %258 = vector.load %arg2[%c20_196, %c0_197, %c0_198] : memref<25x128x3xbf16, #tpu.memory_space<vmem>>, vector<1x128x3xbf16>
    %259 = vector.shape_cast %258 : vector<1x128x3xbf16> to vector<128x3xbf16>
    %260 = arith.extf %259 : vector<128x3xbf16> to vector<128x3xf32>
    %261 = arith.mulf %257, %260 : vector<128x3xf32>
    %262 = arith.addf %250, %261 : vector<128x3xf32>
    %c21 = arith.constant 21 : index
    %c0_199 = arith.constant 0 : index
    %c0_200 = arith.constant 0 : index
    %263 = vector.load %arg5[%c21, %c0_199, %c0_200] : memref<25x2x3xbf16, #tpu.memory_space<vmem>>, vector<1x2x3xbf16>
    %264 = vector.shape_cast %263 : vector<1x2x3xbf16> to vector<2x3xbf16>
    %cst_201 = arith.constant dense<0.000000e+00> : vector<128x3xf32>
    %265 = tpu.matmul %9, %264, %cst_201 {dimension_numbers = #tpu.dot_dimension_numbers<[1], [0], [0], [1], [0, 0, 1, 1], [], []>} : vector<128x2xbf16>, vector<2x3xbf16>, vector<128x3xf32> -> vector<128x3xf32>
    %c21_202 = arith.constant 21 : index
    %c0_203 = arith.constant 0 : index
    %c0_204 = arith.constant 0 : index
    %266 = vector.load %arg6[%c21_202, %c0_203, %c0_204] : memref<25x1x3xf32, #tpu.memory_space<vmem>>, vector<1x1x3xf32>
    %267 = vector.shape_cast %266 : vector<1x1x3xf32> to vector<1x3xf32>
    %268 = vector.broadcast %267 : vector<1x3xf32> to vector<128x3xf32>
    %269 = arith.addf %265, %268 : vector<128x3xf32>
    %c21_205 = arith.constant 21 : index
    %c0_206 = arith.constant 0 : index
    %c0_207 = arith.constant 0 : index
    %270 = vector.load %arg2[%c21_205, %c0_206, %c0_207] : memref<25x128x3xbf16, #tpu.memory_space<vmem>>, vector<1x128x3xbf16>
    %271 = vector.shape_cast %270 : vector<1x128x3xbf16> to vector<128x3xbf16>
    %272 = arith.extf %271 : vector<128x3xbf16> to vector<128x3xf32>
    %273 = arith.mulf %269, %272 : vector<128x3xf32>
    %274 = arith.addf %262, %273 : vector<128x3xf32>
    %c22 = arith.constant 22 : index
    %c0_208 = arith.constant 0 : index
    %c0_209 = arith.constant 0 : index
    %275 = vector.load %arg5[%c22, %c0_208, %c0_209] : memref<25x2x3xbf16, #tpu.memory_space<vmem>>, vector<1x2x3xbf16>
    %276 = vector.shape_cast %275 : vector<1x2x3xbf16> to vector<2x3xbf16>
    %cst_210 = arith.constant dense<0.000000e+00> : vector<128x3xf32>
    %277 = tpu.matmul %9, %276, %cst_210 {dimension_numbers = #tpu.dot_dimension_numbers<[1], [0], [0], [1], [0, 0, 1, 1], [], []>} : vector<128x2xbf16>, vector<2x3xbf16>, vector<128x3xf32> -> vector<128x3xf32>
    %c22_211 = arith.constant 22 : index
    %c0_212 = arith.constant 0 : index
    %c0_213 = arith.constant 0 : index
    %278 = vector.load %arg6[%c22_211, %c0_212, %c0_213] : memref<25x1x3xf32, #tpu.memory_space<vmem>>, vector<1x1x3xf32>
    %279 = vector.shape_cast %278 : vector<1x1x3xf32> to vector<1x3xf32>
    %280 = vector.broadcast %279 : vector<1x3xf32> to vector<128x3xf32>
    %281 = arith.addf %277, %280 : vector<128x3xf32>
    %c22_214 = arith.constant 22 : index
    %c0_215 = arith.constant 0 : index
    %c0_216 = arith.constant 0 : index
    %282 = vector.load %arg2[%c22_214, %c0_215, %c0_216] : memref<25x128x3xbf16, #tpu.memory_space<vmem>>, vector<1x128x3xbf16>
    %283 = vector.shape_cast %282 : vector<1x128x3xbf16> to vector<128x3xbf16>
    %284 = arith.extf %283 : vector<128x3xbf16> to vector<128x3xf32>
    %285 = arith.mulf %281, %284 : vector<128x3xf32>
    %286 = arith.addf %274, %285 : vector<128x3xf32>
    %c23 = arith.constant 23 : index
    %c0_217 = arith.constant 0 : index
    %c0_218 = arith.constant 0 : index
    %287 = vector.load %arg5[%c23, %c0_217, %c0_218] : memref<25x2x3xbf16, #tpu.memory_space<vmem>>, vector<1x2x3xbf16>
    %288 = vector.shape_cast %287 : vector<1x2x3xbf16> to vector<2x3xbf16>
    %cst_219 = arith.constant dense<0.000000e+00> : vector<128x3xf32>
    %289 = tpu.matmul %9, %288, %cst_219 {dimension_numbers = #tpu.dot_dimension_numbers<[1], [0], [0], [1], [0, 0, 1, 1], [], []>} : vector<128x2xbf16>, vector<2x3xbf16>, vector<128x3xf32> -> vector<128x3xf32>
    %c23_220 = arith.constant 23 : index
    %c0_221 = arith.constant 0 : index
    %c0_222 = arith.constant 0 : index
    %290 = vector.load %arg6[%c23_220, %c0_221, %c0_222] : memref<25x1x3xf32, #tpu.memory_space<vmem>>, vector<1x1x3xf32>
    %291 = vector.shape_cast %290 : vector<1x1x3xf32> to vector<1x3xf32>
    %292 = vector.broadcast %291 : vector<1x3xf32> to vector<128x3xf32>
    %293 = arith.addf %289, %292 : vector<128x3xf32>
    %c23_223 = arith.constant 23 : index
    %c0_224 = arith.constant 0 : index
    %c0_225 = arith.constant 0 : index
    %294 = vector.load %arg2[%c23_223, %c0_224, %c0_225] : memref<25x128x3xbf16, #tpu.memory_space<vmem>>, vector<1x128x3xbf16>
    %295 = vector.shape_cast %294 : vector<1x128x3xbf16> to vector<128x3xbf16>
    %296 = arith.extf %295 : vector<128x3xbf16> to vector<128x3xf32>
    %297 = arith.mulf %293, %296 : vector<128x3xf32>
    %298 = arith.addf %286, %297 : vector<128x3xf32>
    %c24 = arith.constant 24 : index
    %c0_226 = arith.constant 0 : index
    %c0_227 = arith.constant 0 : index
    %299 = vector.load %arg5[%c24, %c0_226, %c0_227] : memref<25x2x3xbf16, #tpu.memory_space<vmem>>, vector<1x2x3xbf16>
    %300 = vector.shape_cast %299 : vector<1x2x3xbf16> to vector<2x3xbf16>
    %cst_228 = arith.constant dense<0.000000e+00> : vector<128x3xf32>
    %301 = tpu.matmul %9, %300, %cst_228 {dimension_numbers = #tpu.dot_dimension_numbers<[1], [0], [0], [1], [0, 0, 1, 1], [], []>} : vector<128x2xbf16>, vector<2x3xbf16>, vector<128x3xf32> -> vector<128x3xf32>
    %c24_229 = arith.constant 24 : index
    %c0_230 = arith.constant 0 : index
    %c0_231 = arith.constant 0 : index
    %302 = vector.load %arg6[%c24_229, %c0_230, %c0_231] : memref<25x1x3xf32, #tpu.memory_space<vmem>>, vector<1x1x3xf32>
    %303 = vector.shape_cast %302 : vector<1x1x3xf32> to vector<1x3xf32>
    %304 = vector.broadcast %303 : vector<1x3xf32> to vector<128x3xf32>
    %305 = arith.addf %301, %304 : vector<128x3xf32>
    %c24_232 = arith.constant 24 : index
    %c0_233 = arith.constant 0 : index
    %c0_234 = arith.constant 0 : index
    %306 = vector.load %arg2[%c24_232, %c0_233, %c0_234] : memref<25x128x3xbf16, #tpu.memory_space<vmem>>, vector<1x128x3xbf16>
    %307 = vector.shape_cast %306 : vector<1x128x3xbf16> to vector<128x3xbf16>
    %308 = arith.extf %307 : vector<128x3xbf16> to vector<128x3xf32>
    %309 = arith.mulf %305, %308 : vector<128x3xf32>
    %310 = arith.addf %298, %309 : vector<128x3xf32>
    %311 = arith.truncf %310 : vector<128x3xf32> to vector<128x3xbf16>
    %c0_235 = arith.constant 0 : index
    %c0_236 = arith.constant 0 : index
    %312 = vector.load %arg7[%c0_235, %c0_236] : memref<3x16xbf16, #tpu.memory_space<vmem>>, vector<3x16xbf16>
    %cst_237 = arith.constant dense<0.000000e+00> : vector<128x16xf32>
    %313 = tpu.matmul %311, %312, %cst_237 {dimension_numbers = #tpu.dot_dimension_numbers<[1], [0], [0], [1], [0, 0, 1, 1], [], []>} : vector<128x3xbf16>, vector<3x16xbf16>, vector<128x16xf32> -> vector<128x16xf32>
    %c0_238 = arith.constant 0 : index
    %c0_239 = arith.constant 0 : index
    %314 = vector.load %arg8[%c0_238, %c0_239] : memref<1x16xf32, #tpu.memory_space<vmem>>, vector<1x16xf32>
    %315 = vector.broadcast %314 : vector<1x16xf32> to vector<128x16xf32>
    %316 = arith.addf %313, %315 : vector<128x16xf32>
    %cst_240 = arith.constant 0.000000e+00 : f32
    %317 = vector.broadcast %cst_240 : f32 to vector<128x16xf32>
    %318 = arith.maximumf %316, %317 : vector<128x16xf32>
    %c0_241 = arith.constant 0 : index
    %c0_242 = arith.constant 0 : index
    %319 = vector.load %arg10[%c0_241, %c0_242] : memref<128x16xf32, #tpu.memory_space<vmem>>, vector<128x16xf32>
    tpu.vector_store %arg10[%c0_241, %c0_242], %318 {strides = array<i32>} : memref<128x16xf32, #tpu.memory_space<vmem>>, vector<128x16xf32>,
    return
  }
  func.func @transform_0(%arg0: i32) -> (i32, i32) {
    %c0_i32 = arith.constant 0 : i32
    %c0_i32_0 = arith.constant 0 : i32
    return %arg0, %c0_i32 : i32, i32
  }
  func.func @transform_1(%arg0: i32) -> (i32, i32, i32) {
    %c0_i32 = arith.constant 0 : i32
    %c0_i32_0 = arith.constant 0 : i32
    %c0_i32_1 = arith.constant 0 : i32
    return %c0_i32, %arg0, %c0_i32_0 : i32, i32, i32
  }
  func.func @transform_2(%arg0: i32) -> (i32, i32) {
    %c0_i32 = arith.constant 0 : i32
    %c0_i32_0 = arith.constant 0 : i32
    %c0_i32_1 = arith.constant 0 : i32
    return %c0_i32, %c0_i32_0 : i32, i32
  }
  func.func @transform_3(%arg0: i32) -> (i32, i32) {
    %c0_i32 = arith.constant 0 : i32
    %c0_i32_0 = arith.constant 0 : i32
    %c0_i32_1 = arith.constant 0 : i32
    return %c0_i32, %c0_i32_0 : i32, i32
  }
  func.func @transform_4(%arg0: i32) -> (i32, i32, i32) {
    %c0_i32 = arith.constant 0 : i32
    %c0_i32_0 = arith.constant 0 : i32
    %c0_i32_1 = arith.constant 0 : i32
    %c0_i32_2 = arith.constant 0 : i32
    return %c0_i32, %c0_i32_0, %c0_i32_1 : i32, i32, i32
  }
  func.func @transform_5(%arg0: i32) -> (i32, i32, i32) {
    %c0_i32 = arith.constant 0 : i32
    %c0_i32_0 = arith.constant 0 : i32
    %c0_i32_1 = arith.constant 0 : i32
    %c0_i32_2 = arith.constant 0 : i32
    return %c0_i32, %c0_i32_0, %c0_i32_1 : i32, i32, i32
  }
  func.func @transform_6(%arg0: i32) -> (i32, i32) {
    %c0_i32 = arith.constant 0 : i32
    %c0_i32_0 = arith.constant 0 : i32
    %c0_i32_1 = arith.constant 0 : i32
    return %c0_i32, %c0_i32_0 : i32, i32
  }
  func.func @transform_7(%arg0: i32) -> (i32, i32) {
    %c0_i32 = arith.constant 0 : i32
    %c0_i32_0 = arith.constant 0 : i32
    %c0_i32_1 = arith.constant 0 : i32
    return %c0_i32, %c0_i32_0 : i32, i32
  }
  func.func @transform_8(%arg0: i32) -> (i32, i32) {
    %c0_i32 = arith.constant 0 : i32
    %c0_i32_0 = arith.constant 0 : i32
    return %arg0, %c0_i32 : i32, i32
  }
  func.func @transform_9(%arg0: i32) -> (i32, i32) {
    %c0_i32 = arith.constant 0 : i32
    %c0_i32_0 = arith.constant 0 : i32
    return %arg0, %c0_i32 : i32, i32
  }
}

module attributes {stable_mosaic.version = 11 : i64} {
  func.func @_madf_kernel(%arg0: i32, %arg1: memref<32x18xbf16, #tpu.memory_space<vmem>>, %arg2: memref<9x32x16xbf16, #tpu.memory_space<vmem>>, %arg3: memref<18x4xbf16, #tpu.memory_space<vmem>>, %arg4: memref<1x4xf32, #tpu.memory_space<vmem>>, %arg5: memref<9x4x16xbf16, #tpu.memory_space<vmem>>, %arg6: memref<9x1x16xf32, #tpu.memory_space<vmem>>, %arg7: memref<16x32xbf16, #tpu.memory_space<vmem>>, %arg8: memref<1x32xf32, #tpu.memory_space<vmem>>, %arg9: memref<32x4xf32, #tpu.memory_space<vmem>>, %arg10: memref<32x32xf32, #tpu.memory_space<vmem>>) attributes {dimension_semantics = [#tpu.dimension_semantics<parallel>], iteration_bounds = array<i64: 1>, scalar_prefetch = 0 : i64, scratch_operands = 0 : i64, tpu.core_type = #tpu.core_type<tc>, window_params = [{transform_indices = @transform_0, window_bounds = array<i64: 32, 18>}, {transform_indices = @transform_1, window_bounds = array<i64: 9, 32, 16>}, {pipeline_mode = #tpu.pipeline_mode<synchronous>, transform_indices = @transform_2, window_bounds = array<i64: 18, 4>}, {pipeline_mode = #tpu.pipeline_mode<synchronous>, transform_indices = @transform_3, window_bounds = array<i64: 1, 4>}, {pipeline_mode = #tpu.pipeline_mode<synchronous>, transform_indices = @transform_4, window_bounds = array<i64: 9, 4, 16>}, {pipeline_mode = #tpu.pipeline_mode<synchronous>, transform_indices = @transform_5, window_bounds = array<i64: 9, 1, 16>}, {pipeline_mode = #tpu.pipeline_mode<synchronous>, transform_indices = @transform_6, window_bounds = array<i64: 16, 32>}, {pipeline_mode = #tpu.pipeline_mode<synchronous>, transform_indices = @transform_7, window_bounds = array<i64: 1, 32>}, {transform_indices = @transform_8, window_bounds = array<i64: 32, 4>}, {transform_indices = @transform_9, window_bounds = array<i64: 32, 32>}]} {
    %c0 = arith.constant 0 : index
    %c0_0 = arith.constant 0 : index
    %0 = vector.load %arg1[%c0, %c0_0] : memref<32x18xbf16, #tpu.memory_space<vmem>>, vector<32x18xbf16>
    %c0_1 = arith.constant 0 : index
    %c0_2 = arith.constant 0 : index
    %1 = vector.load %arg3[%c0_1, %c0_2] : memref<18x4xbf16, #tpu.memory_space<vmem>>, vector<18x4xbf16>
    %cst = arith.constant dense<0.000000e+00> : vector<32x4xf32>
    %2 = tpu.matmul %0, %1, %cst {dimension_numbers = #tpu.dot_dimension_numbers<[1], [0], [0], [1], [0, 0, 1, 1], [], []>} : vector<32x18xbf16>, vector<18x4xbf16>, vector<32x4xf32> -> vector<32x4xf32>
    %c0_3 = arith.constant 0 : index
    %c0_4 = arith.constant 0 : index
    %3 = vector.load %arg4[%c0_3, %c0_4] : memref<1x4xf32, #tpu.memory_space<vmem>>, vector<1x4xf32>
    %4 = vector.broadcast %3 : vector<1x4xf32> to vector<32x4xf32>
    %5 = arith.addf %2, %4 : vector<32x4xf32>
    %cst_5 = arith.constant 0.000000e+00 : f32
    %6 = vector.broadcast %cst_5 : f32 to vector<32x4xf32>
    %7 = arith.maximumf %5, %6 : vector<32x4xf32>
    %c0_6 = arith.constant 0 : index
    %c0_7 = arith.constant 0 : index
    %8 = vector.load %arg9[%c0_6, %c0_7] : memref<32x4xf32, #tpu.memory_space<vmem>>, vector<32x4xf32>
    tpu.vector_store %arg9[%c0_6, %c0_7], %7 {strides = array<i32>} : memref<32x4xf32, #tpu.memory_space<vmem>>, vector<32x4xf32>,
    %9 = arith.truncf %7 : vector<32x4xf32> to vector<32x4xbf16>
    %cst_8 = arith.constant 0.000000e+00 : f32
    %10 = vector.broadcast %cst_8 : f32 to vector<32x16xf32>
    %c0_9 = arith.constant 0 : index
    %c0_10 = arith.constant 0 : index
    %c0_11 = arith.constant 0 : index
    %11 = vector.load %arg5[%c0_9, %c0_10, %c0_11] : memref<9x4x16xbf16, #tpu.memory_space<vmem>>, vector<1x4x16xbf16>
    %12 = vector.shape_cast %11 : vector<1x4x16xbf16> to vector<4x16xbf16>
    %cst_12 = arith.constant dense<0.000000e+00> : vector<32x16xf32>
    %13 = tpu.matmul %9, %12, %cst_12 {dimension_numbers = #tpu.dot_dimension_numbers<[1], [0], [0], [1], [0, 0, 1, 1], [], []>} : vector<32x4xbf16>, vector<4x16xbf16>, vector<32x16xf32> -> vector<32x16xf32>
    %c0_13 = arith.constant 0 : index
    %c0_14 = arith.constant 0 : index
    %c0_15 = arith.constant 0 : index
    %14 = vector.load %arg6[%c0_13, %c0_14, %c0_15] : memref<9x1x16xf32, #tpu.memory_space<vmem>>, vector<1x1x16xf32>
    %15 = vector.shape_cast %14 : vector<1x1x16xf32> to vector<1x16xf32>
    %16 = vector.broadcast %15 : vector<1x16xf32> to vector<32x16xf32>
    %17 = arith.addf %13, %16 : vector<32x16xf32>
    %c0_16 = arith.constant 0 : index
    %c0_17 = arith.constant 0 : index
    %c0_18 = arith.constant 0 : index
    %18 = vector.load %arg2[%c0_16, %c0_17, %c0_18] : memref<9x32x16xbf16, #tpu.memory_space<vmem>>, vector<1x32x16xbf16>
    %19 = vector.shape_cast %18 : vector<1x32x16xbf16> to vector<32x16xbf16>
    %20 = arith.extf %19 : vector<32x16xbf16> to vector<32x16xf32>
    %21 = arith.mulf %17, %20 : vector<32x16xf32>
    %22 = arith.addf %10, %21 : vector<32x16xf32>
    %c1 = arith.constant 1 : index
    %c0_19 = arith.constant 0 : index
    %c0_20 = arith.constant 0 : index
    %23 = vector.load %arg5[%c1, %c0_19, %c0_20] : memref<9x4x16xbf16, #tpu.memory_space<vmem>>, vector<1x4x16xbf16>
    %24 = vector.shape_cast %23 : vector<1x4x16xbf16> to vector<4x16xbf16>
    %cst_21 = arith.constant dense<0.000000e+00> : vector<32x16xf32>
    %25 = tpu.matmul %9, %24, %cst_21 {dimension_numbers = #tpu.dot_dimension_numbers<[1], [0], [0], [1], [0, 0, 1, 1], [], []>} : vector<32x4xbf16>, vector<4x16xbf16>, vector<32x16xf32> -> vector<32x16xf32>
    %c1_22 = arith.constant 1 : index
    %c0_23 = arith.constant 0 : index
    %c0_24 = arith.constant 0 : index
    %26 = vector.load %arg6[%c1_22, %c0_23, %c0_24] : memref<9x1x16xf32, #tpu.memory_space<vmem>>, vector<1x1x16xf32>
    %27 = vector.shape_cast %26 : vector<1x1x16xf32> to vector<1x16xf32>
    %28 = vector.broadcast %27 : vector<1x16xf32> to vector<32x16xf32>
    %29 = arith.addf %25, %28 : vector<32x16xf32>
    %c1_25 = arith.constant 1 : index
    %c0_26 = arith.constant 0 : index
    %c0_27 = arith.constant 0 : index
    %30 = vector.load %arg2[%c1_25, %c0_26, %c0_27] : memref<9x32x16xbf16, #tpu.memory_space<vmem>>, vector<1x32x16xbf16>
    %31 = vector.shape_cast %30 : vector<1x32x16xbf16> to vector<32x16xbf16>
    %32 = arith.extf %31 : vector<32x16xbf16> to vector<32x16xf32>
    %33 = arith.mulf %29, %32 : vector<32x16xf32>
    %34 = arith.addf %22, %33 : vector<32x16xf32>
    %c2 = arith.constant 2 : index
    %c0_28 = arith.constant 0 : index
    %c0_29 = arith.constant 0 : index
    %35 = vector.load %arg5[%c2, %c0_28, %c0_29] : memref<9x4x16xbf16, #tpu.memory_space<vmem>>, vector<1x4x16xbf16>
    %36 = vector.shape_cast %35 : vector<1x4x16xbf16> to vector<4x16xbf16>
    %cst_30 = arith.constant dense<0.000000e+00> : vector<32x16xf32>
    %37 = tpu.matmul %9, %36, %cst_30 {dimension_numbers = #tpu.dot_dimension_numbers<[1], [0], [0], [1], [0, 0, 1, 1], [], []>} : vector<32x4xbf16>, vector<4x16xbf16>, vector<32x16xf32> -> vector<32x16xf32>
    %c2_31 = arith.constant 2 : index
    %c0_32 = arith.constant 0 : index
    %c0_33 = arith.constant 0 : index
    %38 = vector.load %arg6[%c2_31, %c0_32, %c0_33] : memref<9x1x16xf32, #tpu.memory_space<vmem>>, vector<1x1x16xf32>
    %39 = vector.shape_cast %38 : vector<1x1x16xf32> to vector<1x16xf32>
    %40 = vector.broadcast %39 : vector<1x16xf32> to vector<32x16xf32>
    %41 = arith.addf %37, %40 : vector<32x16xf32>
    %c2_34 = arith.constant 2 : index
    %c0_35 = arith.constant 0 : index
    %c0_36 = arith.constant 0 : index
    %42 = vector.load %arg2[%c2_34, %c0_35, %c0_36] : memref<9x32x16xbf16, #tpu.memory_space<vmem>>, vector<1x32x16xbf16>
    %43 = vector.shape_cast %42 : vector<1x32x16xbf16> to vector<32x16xbf16>
    %44 = arith.extf %43 : vector<32x16xbf16> to vector<32x16xf32>
    %45 = arith.mulf %41, %44 : vector<32x16xf32>
    %46 = arith.addf %34, %45 : vector<32x16xf32>
    %c3 = arith.constant 3 : index
    %c0_37 = arith.constant 0 : index
    %c0_38 = arith.constant 0 : index
    %47 = vector.load %arg5[%c3, %c0_37, %c0_38] : memref<9x4x16xbf16, #tpu.memory_space<vmem>>, vector<1x4x16xbf16>
    %48 = vector.shape_cast %47 : vector<1x4x16xbf16> to vector<4x16xbf16>
    %cst_39 = arith.constant dense<0.000000e+00> : vector<32x16xf32>
    %49 = tpu.matmul %9, %48, %cst_39 {dimension_numbers = #tpu.dot_dimension_numbers<[1], [0], [0], [1], [0, 0, 1, 1], [], []>} : vector<32x4xbf16>, vector<4x16xbf16>, vector<32x16xf32> -> vector<32x16xf32>
    %c3_40 = arith.constant 3 : index
    %c0_41 = arith.constant 0 : index
    %c0_42 = arith.constant 0 : index
    %50 = vector.load %arg6[%c3_40, %c0_41, %c0_42] : memref<9x1x16xf32, #tpu.memory_space<vmem>>, vector<1x1x16xf32>
    %51 = vector.shape_cast %50 : vector<1x1x16xf32> to vector<1x16xf32>
    %52 = vector.broadcast %51 : vector<1x16xf32> to vector<32x16xf32>
    %53 = arith.addf %49, %52 : vector<32x16xf32>
    %c3_43 = arith.constant 3 : index
    %c0_44 = arith.constant 0 : index
    %c0_45 = arith.constant 0 : index
    %54 = vector.load %arg2[%c3_43, %c0_44, %c0_45] : memref<9x32x16xbf16, #tpu.memory_space<vmem>>, vector<1x32x16xbf16>
    %55 = vector.shape_cast %54 : vector<1x32x16xbf16> to vector<32x16xbf16>
    %56 = arith.extf %55 : vector<32x16xbf16> to vector<32x16xf32>
    %57 = arith.mulf %53, %56 : vector<32x16xf32>
    %58 = arith.addf %46, %57 : vector<32x16xf32>
    %c4 = arith.constant 4 : index
    %c0_46 = arith.constant 0 : index
    %c0_47 = arith.constant 0 : index
    %59 = vector.load %arg5[%c4, %c0_46, %c0_47] : memref<9x4x16xbf16, #tpu.memory_space<vmem>>, vector<1x4x16xbf16>
    %60 = vector.shape_cast %59 : vector<1x4x16xbf16> to vector<4x16xbf16>
    %cst_48 = arith.constant dense<0.000000e+00> : vector<32x16xf32>
    %61 = tpu.matmul %9, %60, %cst_48 {dimension_numbers = #tpu.dot_dimension_numbers<[1], [0], [0], [1], [0, 0, 1, 1], [], []>} : vector<32x4xbf16>, vector<4x16xbf16>, vector<32x16xf32> -> vector<32x16xf32>
    %c4_49 = arith.constant 4 : index
    %c0_50 = arith.constant 0 : index
    %c0_51 = arith.constant 0 : index
    %62 = vector.load %arg6[%c4_49, %c0_50, %c0_51] : memref<9x1x16xf32, #tpu.memory_space<vmem>>, vector<1x1x16xf32>
    %63 = vector.shape_cast %62 : vector<1x1x16xf32> to vector<1x16xf32>
    %64 = vector.broadcast %63 : vector<1x16xf32> to vector<32x16xf32>
    %65 = arith.addf %61, %64 : vector<32x16xf32>
    %c4_52 = arith.constant 4 : index
    %c0_53 = arith.constant 0 : index
    %c0_54 = arith.constant 0 : index
    %66 = vector.load %arg2[%c4_52, %c0_53, %c0_54] : memref<9x32x16xbf16, #tpu.memory_space<vmem>>, vector<1x32x16xbf16>
    %67 = vector.shape_cast %66 : vector<1x32x16xbf16> to vector<32x16xbf16>
    %68 = arith.extf %67 : vector<32x16xbf16> to vector<32x16xf32>
    %69 = arith.mulf %65, %68 : vector<32x16xf32>
    %70 = arith.addf %58, %69 : vector<32x16xf32>
    %c5 = arith.constant 5 : index
    %c0_55 = arith.constant 0 : index
    %c0_56 = arith.constant 0 : index
    %71 = vector.load %arg5[%c5, %c0_55, %c0_56] : memref<9x4x16xbf16, #tpu.memory_space<vmem>>, vector<1x4x16xbf16>
    %72 = vector.shape_cast %71 : vector<1x4x16xbf16> to vector<4x16xbf16>
    %cst_57 = arith.constant dense<0.000000e+00> : vector<32x16xf32>
    %73 = tpu.matmul %9, %72, %cst_57 {dimension_numbers = #tpu.dot_dimension_numbers<[1], [0], [0], [1], [0, 0, 1, 1], [], []>} : vector<32x4xbf16>, vector<4x16xbf16>, vector<32x16xf32> -> vector<32x16xf32>
    %c5_58 = arith.constant 5 : index
    %c0_59 = arith.constant 0 : index
    %c0_60 = arith.constant 0 : index
    %74 = vector.load %arg6[%c5_58, %c0_59, %c0_60] : memref<9x1x16xf32, #tpu.memory_space<vmem>>, vector<1x1x16xf32>
    %75 = vector.shape_cast %74 : vector<1x1x16xf32> to vector<1x16xf32>
    %76 = vector.broadcast %75 : vector<1x16xf32> to vector<32x16xf32>
    %77 = arith.addf %73, %76 : vector<32x16xf32>
    %c5_61 = arith.constant 5 : index
    %c0_62 = arith.constant 0 : index
    %c0_63 = arith.constant 0 : index
    %78 = vector.load %arg2[%c5_61, %c0_62, %c0_63] : memref<9x32x16xbf16, #tpu.memory_space<vmem>>, vector<1x32x16xbf16>
    %79 = vector.shape_cast %78 : vector<1x32x16xbf16> to vector<32x16xbf16>
    %80 = arith.extf %79 : vector<32x16xbf16> to vector<32x16xf32>
    %81 = arith.mulf %77, %80 : vector<32x16xf32>
    %82 = arith.addf %70, %81 : vector<32x16xf32>
    %c6 = arith.constant 6 : index
    %c0_64 = arith.constant 0 : index
    %c0_65 = arith.constant 0 : index
    %83 = vector.load %arg5[%c6, %c0_64, %c0_65] : memref<9x4x16xbf16, #tpu.memory_space<vmem>>, vector<1x4x16xbf16>
    %84 = vector.shape_cast %83 : vector<1x4x16xbf16> to vector<4x16xbf16>
    %cst_66 = arith.constant dense<0.000000e+00> : vector<32x16xf32>
    %85 = tpu.matmul %9, %84, %cst_66 {dimension_numbers = #tpu.dot_dimension_numbers<[1], [0], [0], [1], [0, 0, 1, 1], [], []>} : vector<32x4xbf16>, vector<4x16xbf16>, vector<32x16xf32> -> vector<32x16xf32>
    %c6_67 = arith.constant 6 : index
    %c0_68 = arith.constant 0 : index
    %c0_69 = arith.constant 0 : index
    %86 = vector.load %arg6[%c6_67, %c0_68, %c0_69] : memref<9x1x16xf32, #tpu.memory_space<vmem>>, vector<1x1x16xf32>
    %87 = vector.shape_cast %86 : vector<1x1x16xf32> to vector<1x16xf32>
    %88 = vector.broadcast %87 : vector<1x16xf32> to vector<32x16xf32>
    %89 = arith.addf %85, %88 : vector<32x16xf32>
    %c6_70 = arith.constant 6 : index
    %c0_71 = arith.constant 0 : index
    %c0_72 = arith.constant 0 : index
    %90 = vector.load %arg2[%c6_70, %c0_71, %c0_72] : memref<9x32x16xbf16, #tpu.memory_space<vmem>>, vector<1x32x16xbf16>
    %91 = vector.shape_cast %90 : vector<1x32x16xbf16> to vector<32x16xbf16>
    %92 = arith.extf %91 : vector<32x16xbf16> to vector<32x16xf32>
    %93 = arith.mulf %89, %92 : vector<32x16xf32>
    %94 = arith.addf %82, %93 : vector<32x16xf32>
    %c7 = arith.constant 7 : index
    %c0_73 = arith.constant 0 : index
    %c0_74 = arith.constant 0 : index
    %95 = vector.load %arg5[%c7, %c0_73, %c0_74] : memref<9x4x16xbf16, #tpu.memory_space<vmem>>, vector<1x4x16xbf16>
    %96 = vector.shape_cast %95 : vector<1x4x16xbf16> to vector<4x16xbf16>
    %cst_75 = arith.constant dense<0.000000e+00> : vector<32x16xf32>
    %97 = tpu.matmul %9, %96, %cst_75 {dimension_numbers = #tpu.dot_dimension_numbers<[1], [0], [0], [1], [0, 0, 1, 1], [], []>} : vector<32x4xbf16>, vector<4x16xbf16>, vector<32x16xf32> -> vector<32x16xf32>
    %c7_76 = arith.constant 7 : index
    %c0_77 = arith.constant 0 : index
    %c0_78 = arith.constant 0 : index
    %98 = vector.load %arg6[%c7_76, %c0_77, %c0_78] : memref<9x1x16xf32, #tpu.memory_space<vmem>>, vector<1x1x16xf32>
    %99 = vector.shape_cast %98 : vector<1x1x16xf32> to vector<1x16xf32>
    %100 = vector.broadcast %99 : vector<1x16xf32> to vector<32x16xf32>
    %101 = arith.addf %97, %100 : vector<32x16xf32>
    %c7_79 = arith.constant 7 : index
    %c0_80 = arith.constant 0 : index
    %c0_81 = arith.constant 0 : index
    %102 = vector.load %arg2[%c7_79, %c0_80, %c0_81] : memref<9x32x16xbf16, #tpu.memory_space<vmem>>, vector<1x32x16xbf16>
    %103 = vector.shape_cast %102 : vector<1x32x16xbf16> to vector<32x16xbf16>
    %104 = arith.extf %103 : vector<32x16xbf16> to vector<32x16xf32>
    %105 = arith.mulf %101, %104 : vector<32x16xf32>
    %106 = arith.addf %94, %105 : vector<32x16xf32>
    %c8 = arith.constant 8 : index
    %c0_82 = arith.constant 0 : index
    %c0_83 = arith.constant 0 : index
    %107 = vector.load %arg5[%c8, %c0_82, %c0_83] : memref<9x4x16xbf16, #tpu.memory_space<vmem>>, vector<1x4x16xbf16>
    %108 = vector.shape_cast %107 : vector<1x4x16xbf16> to vector<4x16xbf16>
    %cst_84 = arith.constant dense<0.000000e+00> : vector<32x16xf32>
    %109 = tpu.matmul %9, %108, %cst_84 {dimension_numbers = #tpu.dot_dimension_numbers<[1], [0], [0], [1], [0, 0, 1, 1], [], []>} : vector<32x4xbf16>, vector<4x16xbf16>, vector<32x16xf32> -> vector<32x16xf32>
    %c8_85 = arith.constant 8 : index
    %c0_86 = arith.constant 0 : index
    %c0_87 = arith.constant 0 : index
    %110 = vector.load %arg6[%c8_85, %c0_86, %c0_87] : memref<9x1x16xf32, #tpu.memory_space<vmem>>, vector<1x1x16xf32>
    %111 = vector.shape_cast %110 : vector<1x1x16xf32> to vector<1x16xf32>
    %112 = vector.broadcast %111 : vector<1x16xf32> to vector<32x16xf32>
    %113 = arith.addf %109, %112 : vector<32x16xf32>
    %c8_88 = arith.constant 8 : index
    %c0_89 = arith.constant 0 : index
    %c0_90 = arith.constant 0 : index
    %114 = vector.load %arg2[%c8_88, %c0_89, %c0_90] : memref<9x32x16xbf16, #tpu.memory_space<vmem>>, vector<1x32x16xbf16>
    %115 = vector.shape_cast %114 : vector<1x32x16xbf16> to vector<32x16xbf16>
    %116 = arith.extf %115 : vector<32x16xbf16> to vector<32x16xf32>
    %117 = arith.mulf %113, %116 : vector<32x16xf32>
    %118 = arith.addf %106, %117 : vector<32x16xf32>
    %119 = arith.truncf %118 : vector<32x16xf32> to vector<32x16xbf16>
    %c0_91 = arith.constant 0 : index
    %c0_92 = arith.constant 0 : index
    %120 = vector.load %arg7[%c0_91, %c0_92] : memref<16x32xbf16, #tpu.memory_space<vmem>>, vector<16x32xbf16>
    %cst_93 = arith.constant dense<0.000000e+00> : vector<32x32xf32>
    %121 = tpu.matmul %119, %120, %cst_93 {dimension_numbers = #tpu.dot_dimension_numbers<[1], [0], [0], [1], [0, 0, 1, 1], [], []>} : vector<32x16xbf16>, vector<16x32xbf16>, vector<32x32xf32> -> vector<32x32xf32>
    %c0_94 = arith.constant 0 : index
    %c0_95 = arith.constant 0 : index
    %122 = vector.load %arg8[%c0_94, %c0_95] : memref<1x32xf32, #tpu.memory_space<vmem>>, vector<1x32xf32>
    %123 = vector.broadcast %122 : vector<1x32xf32> to vector<32x32xf32>
    %124 = arith.addf %121, %123 : vector<32x32xf32>
    %cst_96 = arith.constant 0.000000e+00 : f32
    %125 = vector.broadcast %cst_96 : f32 to vector<32x32xf32>
    %126 = arith.maximumf %124, %125 : vector<32x32xf32>
    %c0_97 = arith.constant 0 : index
    %c0_98 = arith.constant 0 : index
    %127 = vector.load %arg10[%c0_97, %c0_98] : memref<32x32xf32, #tpu.memory_space<vmem>>, vector<32x32xf32>
    tpu.vector_store %arg10[%c0_97, %c0_98], %126 {strides = array<i32>} : memref<32x32xf32, #tpu.memory_space<vmem>>, vector<32x32xf32>,
    return
  }
  func.func @transform_0(%arg0: i32) -> (i32, i32) {
    %c0_i32 = arith.constant 0 : i32
    %c0_i32_0 = arith.constant 0 : i32
    return %arg0, %c0_i32 : i32, i32
  }
  func.func @transform_1(%arg0: i32) -> (i32, i32, i32) {
    %c0_i32 = arith.constant 0 : i32
    %c0_i32_0 = arith.constant 0 : i32
    %c0_i32_1 = arith.constant 0 : i32
    return %c0_i32, %arg0, %c0_i32_0 : i32, i32, i32
  }
  func.func @transform_2(%arg0: i32) -> (i32, i32) {
    %c0_i32 = arith.constant 0 : i32
    %c0_i32_0 = arith.constant 0 : i32
    %c0_i32_1 = arith.constant 0 : i32
    return %c0_i32, %c0_i32_0 : i32, i32
  }
  func.func @transform_3(%arg0: i32) -> (i32, i32) {
    %c0_i32 = arith.constant 0 : i32
    %c0_i32_0 = arith.constant 0 : i32
    %c0_i32_1 = arith.constant 0 : i32
    return %c0_i32, %c0_i32_0 : i32, i32
  }
  func.func @transform_4(%arg0: i32) -> (i32, i32, i32) {
    %c0_i32 = arith.constant 0 : i32
    %c0_i32_0 = arith.constant 0 : i32
    %c0_i32_1 = arith.constant 0 : i32
    %c0_i32_2 = arith.constant 0 : i32
    return %c0_i32, %c0_i32_0, %c0_i32_1 : i32, i32, i32
  }
  func.func @transform_5(%arg0: i32) -> (i32, i32, i32) {
    %c0_i32 = arith.constant 0 : i32
    %c0_i32_0 = arith.constant 0 : i32
    %c0_i32_1 = arith.constant 0 : i32
    %c0_i32_2 = arith.constant 0 : i32
    return %c0_i32, %c0_i32_0, %c0_i32_1 : i32, i32, i32
  }
  func.func @transform_6(%arg0: i32) -> (i32, i32) {
    %c0_i32 = arith.constant 0 : i32
    %c0_i32_0 = arith.constant 0 : i32
    %c0_i32_1 = arith.constant 0 : i32
    return %c0_i32, %c0_i32_0 : i32, i32
  }
  func.func @transform_7(%arg0: i32) -> (i32, i32) {
    %c0_i32 = arith.constant 0 : i32
    %c0_i32_0 = arith.constant 0 : i32
    %c0_i32_1 = arith.constant 0 : i32
    return %c0_i32, %c0_i32_0 : i32, i32
  }
  func.func @transform_8(%arg0: i32) -> (i32, i32) {
    %c0_i32 = arith.constant 0 : i32
    %c0_i32_0 = arith.constant 0 : i32
    return %arg0, %c0_i32 : i32, i32
  }
  func.func @transform_9(%arg0: i32) -> (i32, i32) {
    %c0_i32 = arith.constant 0 : i32
    %c0_i32_0 = arith.constant 0 : i32
    return %arg0, %c0_i32 : i32, i32
  }
}

module attributes {stable_mosaic.version = 11 : i64} {
  func.func @_madf_kernel(%arg0: i32, %arg1: memref<8x36xbf16, #tpu.memory_space<vmem>>, %arg2: memref<9x8x32xbf16, #tpu.memory_space<vmem>>, %arg3: memref<36x8xbf16, #tpu.memory_space<vmem>>, %arg4: memref<1x8xf32, #tpu.memory_space<vmem>>, %arg5: memref<9x8x32xbf16, #tpu.memory_space<vmem>>, %arg6: memref<9x1x32xf32, #tpu.memory_space<vmem>>, %arg7: memref<32x64xbf16, #tpu.memory_space<vmem>>, %arg8: memref<1x64xf32, #tpu.memory_space<vmem>>, %arg9: memref<8x8xf32, #tpu.memory_space<vmem>>, %arg10: memref<8x64xf32, #tpu.memory_space<vmem>>) attributes {dimension_semantics = [#tpu.dimension_semantics<parallel>], iteration_bounds = array<i64: 1>, scalar_prefetch = 0 : i64, scratch_operands = 0 : i64, tpu.core_type = #tpu.core_type<tc>, window_params = [{transform_indices = @transform_0, window_bounds = array<i64: 8, 36>}, {transform_indices = @transform_1, window_bounds = array<i64: 9, 8, 32>}, {pipeline_mode = #tpu.pipeline_mode<synchronous>, transform_indices = @transform_2, window_bounds = array<i64: 36, 8>}, {pipeline_mode = #tpu.pipeline_mode<synchronous>, transform_indices = @transform_3, window_bounds = array<i64: 1, 8>}, {pipeline_mode = #tpu.pipeline_mode<synchronous>, transform_indices = @transform_4, window_bounds = array<i64: 9, 8, 32>}, {pipeline_mode = #tpu.pipeline_mode<synchronous>, transform_indices = @transform_5, window_bounds = array<i64: 9, 1, 32>}, {pipeline_mode = #tpu.pipeline_mode<synchronous>, transform_indices = @transform_6, window_bounds = array<i64: 32, 64>}, {pipeline_mode = #tpu.pipeline_mode<synchronous>, transform_indices = @transform_7, window_bounds = array<i64: 1, 64>}, {transform_indices = @transform_8, window_bounds = array<i64: 8, 8>}, {transform_indices = @transform_9, window_bounds = array<i64: 8, 64>}]} {
    %c0 = arith.constant 0 : index
    %c0_0 = arith.constant 0 : index
    %0 = vector.load %arg1[%c0, %c0_0] : memref<8x36xbf16, #tpu.memory_space<vmem>>, vector<8x36xbf16>
    %c0_1 = arith.constant 0 : index
    %c0_2 = arith.constant 0 : index
    %1 = vector.load %arg3[%c0_1, %c0_2] : memref<36x8xbf16, #tpu.memory_space<vmem>>, vector<36x8xbf16>
    %cst = arith.constant dense<0.000000e+00> : vector<8x8xf32>
    %2 = tpu.matmul %0, %1, %cst {dimension_numbers = #tpu.dot_dimension_numbers<[1], [0], [0], [1], [0, 0, 1, 1], [], []>} : vector<8x36xbf16>, vector<36x8xbf16>, vector<8x8xf32> -> vector<8x8xf32>
    %c0_3 = arith.constant 0 : index
    %c0_4 = arith.constant 0 : index
    %3 = vector.load %arg4[%c0_3, %c0_4] : memref<1x8xf32, #tpu.memory_space<vmem>>, vector<1x8xf32>
    %4 = vector.broadcast %3 : vector<1x8xf32> to vector<8x8xf32>
    %5 = arith.addf %2, %4 : vector<8x8xf32>
    %cst_5 = arith.constant 0.000000e+00 : f32
    %6 = vector.broadcast %cst_5 : f32 to vector<8x8xf32>
    %7 = arith.maximumf %5, %6 : vector<8x8xf32>
    %c0_6 = arith.constant 0 : index
    %c0_7 = arith.constant 0 : index
    %8 = vector.load %arg9[%c0_6, %c0_7] : memref<8x8xf32, #tpu.memory_space<vmem>>, vector<8x8xf32>
    tpu.vector_store %arg9[%c0_6, %c0_7], %7 {strides = array<i32>} : memref<8x8xf32, #tpu.memory_space<vmem>>, vector<8x8xf32>,
    %9 = arith.truncf %7 : vector<8x8xf32> to vector<8x8xbf16>
    %cst_8 = arith.constant 0.000000e+00 : f32
    %10 = vector.broadcast %cst_8 : f32 to vector<8x32xf32>
    %c0_9 = arith.constant 0 : index
    %c0_10 = arith.constant 0 : index
    %c0_11 = arith.constant 0 : index
    %11 = vector.load %arg5[%c0_9, %c0_10, %c0_11] : memref<9x8x32xbf16, #tpu.memory_space<vmem>>, vector<1x8x32xbf16>
    %12 = vector.shape_cast %11 : vector<1x8x32xbf16> to vector<8x32xbf16>
    %cst_12 = arith.constant dense<0.000000e+00> : vector<8x32xf32>
    %13 = tpu.matmul %9, %12, %cst_12 {dimension_numbers = #tpu.dot_dimension_numbers<[1], [0], [0], [1], [0, 0, 1, 1], [], []>} : vector<8x8xbf16>, vector<8x32xbf16>, vector<8x32xf32> -> vector<8x32xf32>
    %c0_13 = arith.constant 0 : index
    %c0_14 = arith.constant 0 : index
    %c0_15 = arith.constant 0 : index
    %14 = vector.load %arg6[%c0_13, %c0_14, %c0_15] : memref<9x1x32xf32, #tpu.memory_space<vmem>>, vector<1x1x32xf32>
    %15 = vector.shape_cast %14 : vector<1x1x32xf32> to vector<1x32xf32>
    %16 = vector.broadcast %15 : vector<1x32xf32> to vector<8x32xf32>
    %17 = arith.addf %13, %16 : vector<8x32xf32>
    %c0_16 = arith.constant 0 : index
    %c0_17 = arith.constant 0 : index
    %c0_18 = arith.constant 0 : index
    %18 = vector.load %arg2[%c0_16, %c0_17, %c0_18] : memref<9x8x32xbf16, #tpu.memory_space<vmem>>, vector<1x8x32xbf16>
    %19 = vector.shape_cast %18 : vector<1x8x32xbf16> to vector<8x32xbf16>
    %20 = arith.extf %19 : vector<8x32xbf16> to vector<8x32xf32>
    %21 = arith.mulf %17, %20 : vector<8x32xf32>
    %22 = arith.addf %10, %21 : vector<8x32xf32>
    %c1 = arith.constant 1 : index
    %c0_19 = arith.constant 0 : index
    %c0_20 = arith.constant 0 : index
    %23 = vector.load %arg5[%c1, %c0_19, %c0_20] : memref<9x8x32xbf16, #tpu.memory_space<vmem>>, vector<1x8x32xbf16>
    %24 = vector.shape_cast %23 : vector<1x8x32xbf16> to vector<8x32xbf16>
    %cst_21 = arith.constant dense<0.000000e+00> : vector<8x32xf32>
    %25 = tpu.matmul %9, %24, %cst_21 {dimension_numbers = #tpu.dot_dimension_numbers<[1], [0], [0], [1], [0, 0, 1, 1], [], []>} : vector<8x8xbf16>, vector<8x32xbf16>, vector<8x32xf32> -> vector<8x32xf32>
    %c1_22 = arith.constant 1 : index
    %c0_23 = arith.constant 0 : index
    %c0_24 = arith.constant 0 : index
    %26 = vector.load %arg6[%c1_22, %c0_23, %c0_24] : memref<9x1x32xf32, #tpu.memory_space<vmem>>, vector<1x1x32xf32>
    %27 = vector.shape_cast %26 : vector<1x1x32xf32> to vector<1x32xf32>
    %28 = vector.broadcast %27 : vector<1x32xf32> to vector<8x32xf32>
    %29 = arith.addf %25, %28 : vector<8x32xf32>
    %c1_25 = arith.constant 1 : index
    %c0_26 = arith.constant 0 : index
    %c0_27 = arith.constant 0 : index
    %30 = vector.load %arg2[%c1_25, %c0_26, %c0_27] : memref<9x8x32xbf16, #tpu.memory_space<vmem>>, vector<1x8x32xbf16>
    %31 = vector.shape_cast %30 : vector<1x8x32xbf16> to vector<8x32xbf16>
    %32 = arith.extf %31 : vector<8x32xbf16> to vector<8x32xf32>
    %33 = arith.mulf %29, %32 : vector<8x32xf32>
    %34 = arith.addf %22, %33 : vector<8x32xf32>
    %c2 = arith.constant 2 : index
    %c0_28 = arith.constant 0 : index
    %c0_29 = arith.constant 0 : index
    %35 = vector.load %arg5[%c2, %c0_28, %c0_29] : memref<9x8x32xbf16, #tpu.memory_space<vmem>>, vector<1x8x32xbf16>
    %36 = vector.shape_cast %35 : vector<1x8x32xbf16> to vector<8x32xbf16>
    %cst_30 = arith.constant dense<0.000000e+00> : vector<8x32xf32>
    %37 = tpu.matmul %9, %36, %cst_30 {dimension_numbers = #tpu.dot_dimension_numbers<[1], [0], [0], [1], [0, 0, 1, 1], [], []>} : vector<8x8xbf16>, vector<8x32xbf16>, vector<8x32xf32> -> vector<8x32xf32>
    %c2_31 = arith.constant 2 : index
    %c0_32 = arith.constant 0 : index
    %c0_33 = arith.constant 0 : index
    %38 = vector.load %arg6[%c2_31, %c0_32, %c0_33] : memref<9x1x32xf32, #tpu.memory_space<vmem>>, vector<1x1x32xf32>
    %39 = vector.shape_cast %38 : vector<1x1x32xf32> to vector<1x32xf32>
    %40 = vector.broadcast %39 : vector<1x32xf32> to vector<8x32xf32>
    %41 = arith.addf %37, %40 : vector<8x32xf32>
    %c2_34 = arith.constant 2 : index
    %c0_35 = arith.constant 0 : index
    %c0_36 = arith.constant 0 : index
    %42 = vector.load %arg2[%c2_34, %c0_35, %c0_36] : memref<9x8x32xbf16, #tpu.memory_space<vmem>>, vector<1x8x32xbf16>
    %43 = vector.shape_cast %42 : vector<1x8x32xbf16> to vector<8x32xbf16>
    %44 = arith.extf %43 : vector<8x32xbf16> to vector<8x32xf32>
    %45 = arith.mulf %41, %44 : vector<8x32xf32>
    %46 = arith.addf %34, %45 : vector<8x32xf32>
    %c3 = arith.constant 3 : index
    %c0_37 = arith.constant 0 : index
    %c0_38 = arith.constant 0 : index
    %47 = vector.load %arg5[%c3, %c0_37, %c0_38] : memref<9x8x32xbf16, #tpu.memory_space<vmem>>, vector<1x8x32xbf16>
    %48 = vector.shape_cast %47 : vector<1x8x32xbf16> to vector<8x32xbf16>
    %cst_39 = arith.constant dense<0.000000e+00> : vector<8x32xf32>
    %49 = tpu.matmul %9, %48, %cst_39 {dimension_numbers = #tpu.dot_dimension_numbers<[1], [0], [0], [1], [0, 0, 1, 1], [], []>} : vector<8x8xbf16>, vector<8x32xbf16>, vector<8x32xf32> -> vector<8x32xf32>
    %c3_40 = arith.constant 3 : index
    %c0_41 = arith.constant 0 : index
    %c0_42 = arith.constant 0 : index
    %50 = vector.load %arg6[%c3_40, %c0_41, %c0_42] : memref<9x1x32xf32, #tpu.memory_space<vmem>>, vector<1x1x32xf32>
    %51 = vector.shape_cast %50 : vector<1x1x32xf32> to vector<1x32xf32>
    %52 = vector.broadcast %51 : vector<1x32xf32> to vector<8x32xf32>
    %53 = arith.addf %49, %52 : vector<8x32xf32>
    %c3_43 = arith.constant 3 : index
    %c0_44 = arith.constant 0 : index
    %c0_45 = arith.constant 0 : index
    %54 = vector.load %arg2[%c3_43, %c0_44, %c0_45] : memref<9x8x32xbf16, #tpu.memory_space<vmem>>, vector<1x8x32xbf16>
    %55 = vector.shape_cast %54 : vector<1x8x32xbf16> to vector<8x32xbf16>
    %56 = arith.extf %55 : vector<8x32xbf16> to vector<8x32xf32>
    %57 = arith.mulf %53, %56 : vector<8x32xf32>
    %58 = arith.addf %46, %57 : vector<8x32xf32>
    %c4 = arith.constant 4 : index
    %c0_46 = arith.constant 0 : index
    %c0_47 = arith.constant 0 : index
    %59 = vector.load %arg5[%c4, %c0_46, %c0_47] : memref<9x8x32xbf16, #tpu.memory_space<vmem>>, vector<1x8x32xbf16>
    %60 = vector.shape_cast %59 : vector<1x8x32xbf16> to vector<8x32xbf16>
    %cst_48 = arith.constant dense<0.000000e+00> : vector<8x32xf32>
    %61 = tpu.matmul %9, %60, %cst_48 {dimension_numbers = #tpu.dot_dimension_numbers<[1], [0], [0], [1], [0, 0, 1, 1], [], []>} : vector<8x8xbf16>, vector<8x32xbf16>, vector<8x32xf32> -> vector<8x32xf32>
    %c4_49 = arith.constant 4 : index
    %c0_50 = arith.constant 0 : index
    %c0_51 = arith.constant 0 : index
    %62 = vector.load %arg6[%c4_49, %c0_50, %c0_51] : memref<9x1x32xf32, #tpu.memory_space<vmem>>, vector<1x1x32xf32>
    %63 = vector.shape_cast %62 : vector<1x1x32xf32> to vector<1x32xf32>
    %64 = vector.broadcast %63 : vector<1x32xf32> to vector<8x32xf32>
    %65 = arith.addf %61, %64 : vector<8x32xf32>
    %c4_52 = arith.constant 4 : index
    %c0_53 = arith.constant 0 : index
    %c0_54 = arith.constant 0 : index
    %66 = vector.load %arg2[%c4_52, %c0_53, %c0_54] : memref<9x8x32xbf16, #tpu.memory_space<vmem>>, vector<1x8x32xbf16>
    %67 = vector.shape_cast %66 : vector<1x8x32xbf16> to vector<8x32xbf16>
    %68 = arith.extf %67 : vector<8x32xbf16> to vector<8x32xf32>
    %69 = arith.mulf %65, %68 : vector<8x32xf32>
    %70 = arith.addf %58, %69 : vector<8x32xf32>
    %c5 = arith.constant 5 : index
    %c0_55 = arith.constant 0 : index
    %c0_56 = arith.constant 0 : index
    %71 = vector.load %arg5[%c5, %c0_55, %c0_56] : memref<9x8x32xbf16, #tpu.memory_space<vmem>>, vector<1x8x32xbf16>
    %72 = vector.shape_cast %71 : vector<1x8x32xbf16> to vector<8x32xbf16>
    %cst_57 = arith.constant dense<0.000000e+00> : vector<8x32xf32>
    %73 = tpu.matmul %9, %72, %cst_57 {dimension_numbers = #tpu.dot_dimension_numbers<[1], [0], [0], [1], [0, 0, 1, 1], [], []>} : vector<8x8xbf16>, vector<8x32xbf16>, vector<8x32xf32> -> vector<8x32xf32>
    %c5_58 = arith.constant 5 : index
    %c0_59 = arith.constant 0 : index
    %c0_60 = arith.constant 0 : index
    %74 = vector.load %arg6[%c5_58, %c0_59, %c0_60] : memref<9x1x32xf32, #tpu.memory_space<vmem>>, vector<1x1x32xf32>
    %75 = vector.shape_cast %74 : vector<1x1x32xf32> to vector<1x32xf32>
    %76 = vector.broadcast %75 : vector<1x32xf32> to vector<8x32xf32>
    %77 = arith.addf %73, %76 : vector<8x32xf32>
    %c5_61 = arith.constant 5 : index
    %c0_62 = arith.constant 0 : index
    %c0_63 = arith.constant 0 : index
    %78 = vector.load %arg2[%c5_61, %c0_62, %c0_63] : memref<9x8x32xbf16, #tpu.memory_space<vmem>>, vector<1x8x32xbf16>
    %79 = vector.shape_cast %78 : vector<1x8x32xbf16> to vector<8x32xbf16>
    %80 = arith.extf %79 : vector<8x32xbf16> to vector<8x32xf32>
    %81 = arith.mulf %77, %80 : vector<8x32xf32>
    %82 = arith.addf %70, %81 : vector<8x32xf32>
    %c6 = arith.constant 6 : index
    %c0_64 = arith.constant 0 : index
    %c0_65 = arith.constant 0 : index
    %83 = vector.load %arg5[%c6, %c0_64, %c0_65] : memref<9x8x32xbf16, #tpu.memory_space<vmem>>, vector<1x8x32xbf16>
    %84 = vector.shape_cast %83 : vector<1x8x32xbf16> to vector<8x32xbf16>
    %cst_66 = arith.constant dense<0.000000e+00> : vector<8x32xf32>
    %85 = tpu.matmul %9, %84, %cst_66 {dimension_numbers = #tpu.dot_dimension_numbers<[1], [0], [0], [1], [0, 0, 1, 1], [], []>} : vector<8x8xbf16>, vector<8x32xbf16>, vector<8x32xf32> -> vector<8x32xf32>
    %c6_67 = arith.constant 6 : index
    %c0_68 = arith.constant 0 : index
    %c0_69 = arith.constant 0 : index
    %86 = vector.load %arg6[%c6_67, %c0_68, %c0_69] : memref<9x1x32xf32, #tpu.memory_space<vmem>>, vector<1x1x32xf32>
    %87 = vector.shape_cast %86 : vector<1x1x32xf32> to vector<1x32xf32>
    %88 = vector.broadcast %87 : vector<1x32xf32> to vector<8x32xf32>
    %89 = arith.addf %85, %88 : vector<8x32xf32>
    %c6_70 = arith.constant 6 : index
    %c0_71 = arith.constant 0 : index
    %c0_72 = arith.constant 0 : index
    %90 = vector.load %arg2[%c6_70, %c0_71, %c0_72] : memref<9x8x32xbf16, #tpu.memory_space<vmem>>, vector<1x8x32xbf16>
    %91 = vector.shape_cast %90 : vector<1x8x32xbf16> to vector<8x32xbf16>
    %92 = arith.extf %91 : vector<8x32xbf16> to vector<8x32xf32>
    %93 = arith.mulf %89, %92 : vector<8x32xf32>
    %94 = arith.addf %82, %93 : vector<8x32xf32>
    %c7 = arith.constant 7 : index
    %c0_73 = arith.constant 0 : index
    %c0_74 = arith.constant 0 : index
    %95 = vector.load %arg5[%c7, %c0_73, %c0_74] : memref<9x8x32xbf16, #tpu.memory_space<vmem>>, vector<1x8x32xbf16>
    %96 = vector.shape_cast %95 : vector<1x8x32xbf16> to vector<8x32xbf16>
    %cst_75 = arith.constant dense<0.000000e+00> : vector<8x32xf32>
    %97 = tpu.matmul %9, %96, %cst_75 {dimension_numbers = #tpu.dot_dimension_numbers<[1], [0], [0], [1], [0, 0, 1, 1], [], []>} : vector<8x8xbf16>, vector<8x32xbf16>, vector<8x32xf32> -> vector<8x32xf32>
    %c7_76 = arith.constant 7 : index
    %c0_77 = arith.constant 0 : index
    %c0_78 = arith.constant 0 : index
    %98 = vector.load %arg6[%c7_76, %c0_77, %c0_78] : memref<9x1x32xf32, #tpu.memory_space<vmem>>, vector<1x1x32xf32>
    %99 = vector.shape_cast %98 : vector<1x1x32xf32> to vector<1x32xf32>
    %100 = vector.broadcast %99 : vector<1x32xf32> to vector<8x32xf32>
    %101 = arith.addf %97, %100 : vector<8x32xf32>
    %c7_79 = arith.constant 7 : index
    %c0_80 = arith.constant 0 : index
    %c0_81 = arith.constant 0 : index
    %102 = vector.load %arg2[%c7_79, %c0_80, %c0_81] : memref<9x8x32xbf16, #tpu.memory_space<vmem>>, vector<1x8x32xbf16>
    %103 = vector.shape_cast %102 : vector<1x8x32xbf16> to vector<8x32xbf16>
    %104 = arith.extf %103 : vector<8x32xbf16> to vector<8x32xf32>
    %105 = arith.mulf %101, %104 : vector<8x32xf32>
    %106 = arith.addf %94, %105 : vector<8x32xf32>
    %c8 = arith.constant 8 : index
    %c0_82 = arith.constant 0 : index
    %c0_83 = arith.constant 0 : index
    %107 = vector.load %arg5[%c8, %c0_82, %c0_83] : memref<9x8x32xbf16, #tpu.memory_space<vmem>>, vector<1x8x32xbf16>
    %108 = vector.shape_cast %107 : vector<1x8x32xbf16> to vector<8x32xbf16>
    %cst_84 = arith.constant dense<0.000000e+00> : vector<8x32xf32>
    %109 = tpu.matmul %9, %108, %cst_84 {dimension_numbers = #tpu.dot_dimension_numbers<[1], [0], [0], [1], [0, 0, 1, 1], [], []>} : vector<8x8xbf16>, vector<8x32xbf16>, vector<8x32xf32> -> vector<8x32xf32>
    %c8_85 = arith.constant 8 : index
    %c0_86 = arith.constant 0 : index
    %c0_87 = arith.constant 0 : index
    %110 = vector.load %arg6[%c8_85, %c0_86, %c0_87] : memref<9x1x32xf32, #tpu.memory_space<vmem>>, vector<1x1x32xf32>
    %111 = vector.shape_cast %110 : vector<1x1x32xf32> to vector<1x32xf32>
    %112 = vector.broadcast %111 : vector<1x32xf32> to vector<8x32xf32>
    %113 = arith.addf %109, %112 : vector<8x32xf32>
    %c8_88 = arith.constant 8 : index
    %c0_89 = arith.constant 0 : index
    %c0_90 = arith.constant 0 : index
    %114 = vector.load %arg2[%c8_88, %c0_89, %c0_90] : memref<9x8x32xbf16, #tpu.memory_space<vmem>>, vector<1x8x32xbf16>
    %115 = vector.shape_cast %114 : vector<1x8x32xbf16> to vector<8x32xbf16>
    %116 = arith.extf %115 : vector<8x32xbf16> to vector<8x32xf32>
    %117 = arith.mulf %113, %116 : vector<8x32xf32>
    %118 = arith.addf %106, %117 : vector<8x32xf32>
    %119 = arith.truncf %118 : vector<8x32xf32> to vector<8x32xbf16>
    %c0_91 = arith.constant 0 : index
    %c0_92 = arith.constant 0 : index
    %120 = vector.load %arg7[%c0_91, %c0_92] : memref<32x64xbf16, #tpu.memory_space<vmem>>, vector<32x64xbf16>
    %cst_93 = arith.constant dense<0.000000e+00> : vector<8x64xf32>
    %121 = tpu.matmul %119, %120, %cst_93 {dimension_numbers = #tpu.dot_dimension_numbers<[1], [0], [0], [1], [0, 0, 1, 1], [], []>} : vector<8x32xbf16>, vector<32x64xbf16>, vector<8x64xf32> -> vector<8x64xf32>
    %c0_94 = arith.constant 0 : index
    %c0_95 = arith.constant 0 : index
    %122 = vector.load %arg8[%c0_94, %c0_95] : memref<1x64xf32, #tpu.memory_space<vmem>>, vector<1x64xf32>
    %123 = vector.broadcast %122 : vector<1x64xf32> to vector<8x64xf32>
    %124 = arith.addf %121, %123 : vector<8x64xf32>
    %cst_96 = arith.constant 0.000000e+00 : f32
    %125 = vector.broadcast %cst_96 : f32 to vector<8x64xf32>
    %126 = arith.maximumf %124, %125 : vector<8x64xf32>
    %c0_97 = arith.constant 0 : index
    %c0_98 = arith.constant 0 : index
    %127 = vector.load %arg10[%c0_97, %c0_98] : memref<8x64xf32, #tpu.memory_space<vmem>>, vector<8x64xf32>
    tpu.vector_store %arg10[%c0_97, %c0_98], %126 {strides = array<i32>} : memref<8x64xf32, #tpu.memory_space<vmem>>, vector<8x64xf32>,
    return
  }
  func.func @transform_0(%arg0: i32) -> (i32, i32) {
    %c0_i32 = arith.constant 0 : i32
    %c0_i32_0 = arith.constant 0 : i32
    return %arg0, %c0_i32 : i32, i32
  }
  func.func @transform_1(%arg0: i32) -> (i32, i32, i32) {
    %c0_i32 = arith.constant 0 : i32
    %c0_i32_0 = arith.constant 0 : i32
    %c0_i32_1 = arith.constant 0 : i32
    return %c0_i32, %arg0, %c0_i32_0 : i32, i32, i32
  }
  func.func @transform_2(%arg0: i32) -> (i32, i32) {
    %c0_i32 = arith.constant 0 : i32
    %c0_i32_0 = arith.constant 0 : i32
    %c0_i32_1 = arith.constant 0 : i32
    return %c0_i32, %c0_i32_0 : i32, i32
  }
  func.func @transform_3(%arg0: i32) -> (i32, i32) {
    %c0_i32 = arith.constant 0 : i32
    %c0_i32_0 = arith.constant 0 : i32
    %c0_i32_1 = arith.constant 0 : i32
    return %c0_i32, %c0_i32_0 : i32, i32
  }
  func.func @transform_4(%arg0: i32) -> (i32, i32, i32) {
    %c0_i32 = arith.constant 0 : i32
    %c0_i32_0 = arith.constant 0 : i32
    %c0_i32_1 = arith.constant 0 : i32
    %c0_i32_2 = arith.constant 0 : i32
    return %c0_i32, %c0_i32_0, %c0_i32_1 : i32, i32, i32
  }
  func.func @transform_5(%arg0: i32) -> (i32, i32, i32) {
    %c0_i32 = arith.constant 0 : i32
    %c0_i32_0 = arith.constant 0 : i32
    %c0_i32_1 = arith.constant 0 : i32
    %c0_i32_2 = arith.constant 0 : i32
    return %c0_i32, %c0_i32_0, %c0_i32_1 : i32, i32, i32
  }
  func.func @transform_6(%arg0: i32) -> (i32, i32) {
    %c0_i32 = arith.constant 0 : i32
    %c0_i32_0 = arith.constant 0 : i32
    %c0_i32_1 = arith.constant 0 : i32
    return %c0_i32, %c0_i32_0 : i32, i32
  }
  func.func @transform_7(%arg0: i32) -> (i32, i32) {
    %c0_i32 = arith.constant 0 : i32
    %c0_i32_0 = arith.constant 0 : i32
    %c0_i32_1 = arith.constant 0 : i32
    return %c0_i32, %c0_i32_0 : i32, i32
  }
  func.func @transform_8(%arg0: i32) -> (i32, i32) {
    %c0_i32 = arith.constant 0 : i32
    %c0_i32_0 = arith.constant 0 : i32
    return %arg0, %c0_i32 : i32, i32
  }
  func.func @transform_9(%arg0: i32) -> (i32, i32) {
    %c0_i32 = arith.constant 0 : i32
    %c0_i32_0 = arith.constant 0 : i32
    return %arg0, %c0_i32 : i32, i32
  }
}

module attributes {stable_mosaic.version = 11 : i64} {
  func.func @_conv_kernel(%arg0: i32, %arg1: memref<8x576xbf16, #tpu.memory_space<vmem>>, %arg2: memref<576x64xbf16, #tpu.memory_space<vmem>>, %arg3: memref<1x64xf32, #tpu.memory_space<vmem>>, %arg4: memref<8x64xf32, #tpu.memory_space<vmem>>) attributes {dimension_semantics = [#tpu.dimension_semantics<parallel>], iteration_bounds = array<i64: 1>, scalar_prefetch = 0 : i64, scratch_operands = 0 : i64, tpu.core_type = #tpu.core_type<tc>, window_params = [{transform_indices = @transform_0, window_bounds = array<i64: 8, 576>}, {pipeline_mode = #tpu.pipeline_mode<synchronous>, transform_indices = @transform_1, window_bounds = array<i64: 576, 64>}, {pipeline_mode = #tpu.pipeline_mode<synchronous>, transform_indices = @transform_2, window_bounds = array<i64: 1, 64>}, {transform_indices = @transform_3, window_bounds = array<i64: 8, 64>}]} {
    %c0 = arith.constant 0 : index
    %c0_0 = arith.constant 0 : index
    %0 = vector.load %arg1[%c0, %c0_0] : memref<8x576xbf16, #tpu.memory_space<vmem>>, vector<8x576xbf16>
    %c0_1 = arith.constant 0 : index
    %c0_2 = arith.constant 0 : index
    %1 = vector.load %arg2[%c0_1, %c0_2] : memref<576x64xbf16, #tpu.memory_space<vmem>>, vector<576x64xbf16>
    %cst = arith.constant dense<0.000000e+00> : vector<8x64xf32>
    %2 = tpu.matmul %0, %1, %cst {dimension_numbers = #tpu.dot_dimension_numbers<[1], [0], [0], [1], [0, 0, 1, 1], [], []>} : vector<8x576xbf16>, vector<576x64xbf16>, vector<8x64xf32> -> vector<8x64xf32>
    %c0_3 = arith.constant 0 : index
    %c0_4 = arith.constant 0 : index
    %3 = vector.load %arg3[%c0_3, %c0_4] : memref<1x64xf32, #tpu.memory_space<vmem>>, vector<1x64xf32>
    %4 = vector.broadcast %3 : vector<1x64xf32> to vector<8x64xf32>
    %5 = arith.addf %2, %4 : vector<8x64xf32>
    %cst_5 = arith.constant 0.000000e+00 : f32
    %6 = vector.broadcast %cst_5 : f32 to vector<8x64xf32>
    %7 = arith.maximumf %5, %6 : vector<8x64xf32>
    %c0_6 = arith.constant 0 : index
    %c0_7 = arith.constant 0 : index
    %8 = vector.load %arg4[%c0_6, %c0_7] : memref<8x64xf32, #tpu.memory_space<vmem>>, vector<8x64xf32>
    tpu.vector_store %arg4[%c0_6, %c0_7], %7 {strides = array<i32>} : memref<8x64xf32, #tpu.memory_space<vmem>>, vector<8x64xf32>,
    return
  }
  func.func @transform_0(%arg0: i32) -> (i32, i32) {
    %c0_i32 = arith.constant 0 : i32
    %c0_i32_0 = arith.constant 0 : i32
    return %arg0, %c0_i32 : i32, i32
  }
  func.func @transform_1(%arg0: i32) -> (i32, i32) {
    %c0_i32 = arith.constant 0 : i32
    %c0_i32_0 = arith.constant 0 : i32
    %c0_i32_1 = arith.constant 0 : i32
    return %c0_i32, %c0_i32_0 : i32, i32
  }
  func.func @transform_2(%arg0: i32) -> (i32, i32) {
    %c0_i32 = arith.constant 0 : i32
    %c0_i32_0 = arith.constant 0 : i32
    %c0_i32_1 = arith.constant 0 : i32
    return %c0_i32, %c0_i32_0 : i32, i32
  }
  func.func @transform_3(%arg0: i32) -> (i32, i32) {
    %c0_i32 = arith.constant 0 : i32
    %c0_i32_0 = arith.constant 0 : i32
    return %arg0, %c0_i32 : i32, i32
  }
}

module attributes {stable_mosaic.version = 11 : i64} {
  func.func @_conv_kernel(%arg0: i32, %arg1: memref<32x288xbf16, #tpu.memory_space<vmem>>, %arg2: memref<288x32xbf16, #tpu.memory_space<vmem>>, %arg3: memref<1x32xf32, #tpu.memory_space<vmem>>, %arg4: memref<32x32xf32, #tpu.memory_space<vmem>>) attributes {dimension_semantics = [#tpu.dimension_semantics<parallel>], iteration_bounds = array<i64: 1>, scalar_prefetch = 0 : i64, scratch_operands = 0 : i64, tpu.core_type = #tpu.core_type<tc>, window_params = [{transform_indices = @transform_0, window_bounds = array<i64: 32, 288>}, {pipeline_mode = #tpu.pipeline_mode<synchronous>, transform_indices = @transform_1, window_bounds = array<i64: 288, 32>}, {pipeline_mode = #tpu.pipeline_mode<synchronous>, transform_indices = @transform_2, window_bounds = array<i64: 1, 32>}, {transform_indices = @transform_3, window_bounds = array<i64: 32, 32>}]} {
    %c0 = arith.constant 0 : index
    %c0_0 = arith.constant 0 : index
    %0 = vector.load %arg1[%c0, %c0_0] : memref<32x288xbf16, #tpu.memory_space<vmem>>, vector<32x288xbf16>
    %c0_1 = arith.constant 0 : index
    %c0_2 = arith.constant 0 : index
    %1 = vector.load %arg2[%c0_1, %c0_2] : memref<288x32xbf16, #tpu.memory_space<vmem>>, vector<288x32xbf16>
    %cst = arith.constant dense<0.000000e+00> : vector<32x32xf32>
    %2 = tpu.matmul %0, %1, %cst {dimension_numbers = #tpu.dot_dimension_numbers<[1], [0], [0], [1], [0, 0, 1, 1], [], []>} : vector<32x288xbf16>, vector<288x32xbf16>, vector<32x32xf32> -> vector<32x32xf32>
    %c0_3 = arith.constant 0 : index
    %c0_4 = arith.constant 0 : index
    %3 = vector.load %arg3[%c0_3, %c0_4] : memref<1x32xf32, #tpu.memory_space<vmem>>, vector<1x32xf32>
    %4 = vector.broadcast %3 : vector<1x32xf32> to vector<32x32xf32>
    %5 = arith.addf %2, %4 : vector<32x32xf32>
    %cst_5 = arith.constant 0.000000e+00 : f32
    %6 = vector.broadcast %cst_5 : f32 to vector<32x32xf32>
    %7 = arith.maximumf %5, %6 : vector<32x32xf32>
    %c0_6 = arith.constant 0 : index
    %c0_7 = arith.constant 0 : index
    %8 = vector.load %arg4[%c0_6, %c0_7] : memref<32x32xf32, #tpu.memory_space<vmem>>, vector<32x32xf32>
    tpu.vector_store %arg4[%c0_6, %c0_7], %7 {strides = array<i32>} : memref<32x32xf32, #tpu.memory_space<vmem>>, vector<32x32xf32>,
    return
  }
  func.func @transform_0(%arg0: i32) -> (i32, i32) {
    %c0_i32 = arith.constant 0 : i32
    %c0_i32_0 = arith.constant 0 : i32
    return %arg0, %c0_i32 : i32, i32
  }
  func.func @transform_1(%arg0: i32) -> (i32, i32) {
    %c0_i32 = arith.constant 0 : i32
    %c0_i32_0 = arith.constant 0 : i32
    %c0_i32_1 = arith.constant 0 : i32
    return %c0_i32, %c0_i32_0 : i32, i32
  }
  func.func @transform_2(%arg0: i32) -> (i32, i32) {
    %c0_i32 = arith.constant 0 : i32
    %c0_i32_0 = arith.constant 0 : i32
    %c0_i32_1 = arith.constant 0 : i32
    return %c0_i32, %c0_i32_0 : i32, i32
  }
  func.func @transform_3(%arg0: i32) -> (i32, i32) {
    %c0_i32 = arith.constant 0 : i32
    %c0_i32_0 = arith.constant 0 : i32
    return %arg0, %c0_i32 : i32, i32
  }
}

module attributes {stable_mosaic.version = 11 : i64} {
  func.func @_conv_kernel(%arg0: i32, %arg1: memref<128x144xbf16, #tpu.memory_space<vmem>>, %arg2: memref<144x16xbf16, #tpu.memory_space<vmem>>, %arg3: memref<1x16xf32, #tpu.memory_space<vmem>>, %arg4: memref<128x16xf32, #tpu.memory_space<vmem>>) attributes {dimension_semantics = [#tpu.dimension_semantics<parallel>], iteration_bounds = array<i64: 1>, scalar_prefetch = 0 : i64, scratch_operands = 0 : i64, tpu.core_type = #tpu.core_type<tc>, window_params = [{transform_indices = @transform_0, window_bounds = array<i64: 128, 144>}, {pipeline_mode = #tpu.pipeline_mode<synchronous>, transform_indices = @transform_1, window_bounds = array<i64: 144, 16>}, {pipeline_mode = #tpu.pipeline_mode<synchronous>, transform_indices = @transform_2, window_bounds = array<i64: 1, 16>}, {transform_indices = @transform_3, window_bounds = array<i64: 128, 16>}]} {
    %c0 = arith.constant 0 : index
    %c0_0 = arith.constant 0 : index
    %0 = vector.load %arg1[%c0, %c0_0] : memref<128x144xbf16, #tpu.memory_space<vmem>>, vector<128x144xbf16>
    %c0_1 = arith.constant 0 : index
    %c0_2 = arith.constant 0 : index
    %1 = vector.load %arg2[%c0_1, %c0_2] : memref<144x16xbf16, #tpu.memory_space<vmem>>, vector<144x16xbf16>
    %cst = arith.constant dense<0.000000e+00> : vector<128x16xf32>
    %2 = tpu.matmul %0, %1, %cst {dimension_numbers = #tpu.dot_dimension_numbers<[1], [0], [0], [1], [0, 0, 1, 1], [], []>} : vector<128x144xbf16>, vector<144x16xbf16>, vector<128x16xf32> -> vector<128x16xf32>
    %c0_3 = arith.constant 0 : index
    %c0_4 = arith.constant 0 : index
    %3 = vector.load %arg3[%c0_3, %c0_4] : memref<1x16xf32, #tpu.memory_space<vmem>>, vector<1x16xf32>
    %4 = vector.broadcast %3 : vector<1x16xf32> to vector<128x16xf32>
    %5 = arith.addf %2, %4 : vector<128x16xf32>
    %cst_5 = arith.constant 0.000000e+00 : f32
    %6 = vector.broadcast %cst_5 : f32 to vector<128x16xf32>
    %7 = arith.maximumf %5, %6 : vector<128x16xf32>
    %c0_6 = arith.constant 0 : index
    %c0_7 = arith.constant 0 : index
    %8 = vector.load %arg4[%c0_6, %c0_7] : memref<128x16xf32, #tpu.memory_space<vmem>>, vector<128x16xf32>
    tpu.vector_store %arg4[%c0_6, %c0_7], %7 {strides = array<i32>} : memref<128x16xf32, #tpu.memory_space<vmem>>, vector<128x16xf32>,
    return
  }
  func.func @transform_0(%arg0: i32) -> (i32, i32) {
    %c0_i32 = arith.constant 0 : i32
    %c0_i32_0 = arith.constant 0 : i32
    return %arg0, %c0_i32 : i32, i32
  }
  func.func @transform_1(%arg0: i32) -> (i32, i32) {
    %c0_i32 = arith.constant 0 : i32
    %c0_i32_0 = arith.constant 0 : i32
    %c0_i32_1 = arith.constant 0 : i32
    return %c0_i32, %c0_i32_0 : i32, i32
  }
  func.func @transform_2(%arg0: i32) -> (i32, i32) {
    %c0_i32 = arith.constant 0 : i32
    %c0_i32_0 = arith.constant 0 : i32
    %c0_i32_1 = arith.constant 0 : i32
    return %c0_i32, %c0_i32_0 : i32, i32
  }
  func.func @transform_3(%arg0: i32) -> (i32, i32) {
    %c0_i32 = arith.constant 0 : i32
    %c0_i32_0 = arith.constant 0 : i32
    return %arg0, %c0_i32 : i32, i32
  }
}

module attributes {stable_mosaic.version = 11 : i64} {
  func.func @_madf_kernel(%arg0: i32, %arg1: memref<2x72xbf16, #tpu.memory_space<vmem>>, %arg2: memref<9x2x64xbf16, #tpu.memory_space<vmem>>, %arg3: memref<72x16xbf16, #tpu.memory_space<vmem>>, %arg4: memref<1x16xf32, #tpu.memory_space<vmem>>, %arg5: memref<9x16x64xbf16, #tpu.memory_space<vmem>>, %arg6: memref<9x1x64xf32, #tpu.memory_space<vmem>>, %arg7: memref<64x128xbf16, #tpu.memory_space<vmem>>, %arg8: memref<1x128xf32, #tpu.memory_space<vmem>>, %arg9: memref<2x16xf32, #tpu.memory_space<vmem>>, %arg10: memref<2x128xf32, #tpu.memory_space<vmem>>) attributes {dimension_semantics = [#tpu.dimension_semantics<parallel>], iteration_bounds = array<i64: 1>, scalar_prefetch = 0 : i64, scratch_operands = 0 : i64, tpu.core_type = #tpu.core_type<tc>, window_params = [{transform_indices = @transform_0, window_bounds = array<i64: 2, 72>}, {transform_indices = @transform_1, window_bounds = array<i64: 9, 2, 64>}, {pipeline_mode = #tpu.pipeline_mode<synchronous>, transform_indices = @transform_2, window_bounds = array<i64: 72, 16>}, {pipeline_mode = #tpu.pipeline_mode<synchronous>, transform_indices = @transform_3, window_bounds = array<i64: 1, 16>}, {pipeline_mode = #tpu.pipeline_mode<synchronous>, transform_indices = @transform_4, window_bounds = array<i64: 9, 16, 64>}, {pipeline_mode = #tpu.pipeline_mode<synchronous>, transform_indices = @transform_5, window_bounds = array<i64: 9, 1, 64>}, {pipeline_mode = #tpu.pipeline_mode<synchronous>, transform_indices = @transform_6, window_bounds = array<i64: 64, 128>}, {pipeline_mode = #tpu.pipeline_mode<synchronous>, transform_indices = @transform_7, window_bounds = array<i64: 1, 128>}, {transform_indices = @transform_8, window_bounds = array<i64: 2, 16>}, {transform_indices = @transform_9, window_bounds = array<i64: 2, 128>}]} {
    %c0 = arith.constant 0 : index
    %c0_0 = arith.constant 0 : index
    %0 = vector.load %arg1[%c0, %c0_0] : memref<2x72xbf16, #tpu.memory_space<vmem>>, vector<2x72xbf16>
    %c0_1 = arith.constant 0 : index
    %c0_2 = arith.constant 0 : index
    %1 = vector.load %arg3[%c0_1, %c0_2] : memref<72x16xbf16, #tpu.memory_space<vmem>>, vector<72x16xbf16>
    %cst = arith.constant dense<0.000000e+00> : vector<2x16xf32>
    %2 = tpu.matmul %0, %1, %cst {dimension_numbers = #tpu.dot_dimension_numbers<[1], [0], [0], [1], [0, 0, 1, 1], [], []>} : vector<2x72xbf16>, vector<72x16xbf16>, vector<2x16xf32> -> vector<2x16xf32>
    %c0_3 = arith.constant 0 : index
    %c0_4 = arith.constant 0 : index
    %3 = vector.load %arg4[%c0_3, %c0_4] : memref<1x16xf32, #tpu.memory_space<vmem>>, vector<1x16xf32>
    %4 = vector.broadcast %3 : vector<1x16xf32> to vector<2x16xf32>
    %5 = arith.addf %2, %4 : vector<2x16xf32>
    %cst_5 = arith.constant 0.000000e+00 : f32
    %6 = vector.broadcast %cst_5 : f32 to vector<2x16xf32>
    %7 = arith.maximumf %5, %6 : vector<2x16xf32>
    %c0_6 = arith.constant 0 : index
    %c0_7 = arith.constant 0 : index
    %8 = vector.load %arg9[%c0_6, %c0_7] : memref<2x16xf32, #tpu.memory_space<vmem>>, vector<2x16xf32>
    tpu.vector_store %arg9[%c0_6, %c0_7], %7 {strides = array<i32>} : memref<2x16xf32, #tpu.memory_space<vmem>>, vector<2x16xf32>,
    %9 = arith.truncf %7 : vector<2x16xf32> to vector<2x16xbf16>
    %cst_8 = arith.constant 0.000000e+00 : f32
    %10 = vector.broadcast %cst_8 : f32 to vector<2x64xf32>
    %c0_9 = arith.constant 0 : index
    %c0_10 = arith.constant 0 : index
    %c0_11 = arith.constant 0 : index
    %11 = vector.load %arg5[%c0_9, %c0_10, %c0_11] : memref<9x16x64xbf16, #tpu.memory_space<vmem>>, vector<1x16x64xbf16>
    %12 = vector.shape_cast %11 : vector<1x16x64xbf16> to vector<16x64xbf16>
    %cst_12 = arith.constant dense<0.000000e+00> : vector<2x64xf32>
    %13 = tpu.matmul %9, %12, %cst_12 {dimension_numbers = #tpu.dot_dimension_numbers<[1], [0], [0], [1], [0, 0, 1, 1], [], []>} : vector<2x16xbf16>, vector<16x64xbf16>, vector<2x64xf32> -> vector<2x64xf32>
    %c0_13 = arith.constant 0 : index
    %c0_14 = arith.constant 0 : index
    %c0_15 = arith.constant 0 : index
    %14 = vector.load %arg6[%c0_13, %c0_14, %c0_15] : memref<9x1x64xf32, #tpu.memory_space<vmem>>, vector<1x1x64xf32>
    %15 = vector.shape_cast %14 : vector<1x1x64xf32> to vector<1x64xf32>
    %16 = vector.broadcast %15 : vector<1x64xf32> to vector<2x64xf32>
    %17 = arith.addf %13, %16 : vector<2x64xf32>
    %c0_16 = arith.constant 0 : index
    %c0_17 = arith.constant 0 : index
    %c0_18 = arith.constant 0 : index
    %18 = vector.load %arg2[%c0_16, %c0_17, %c0_18] : memref<9x2x64xbf16, #tpu.memory_space<vmem>>, vector<1x2x64xbf16>
    %19 = vector.shape_cast %18 : vector<1x2x64xbf16> to vector<2x64xbf16>
    %20 = arith.extf %19 : vector<2x64xbf16> to vector<2x64xf32>
    %21 = arith.mulf %17, %20 : vector<2x64xf32>
    %22 = arith.addf %10, %21 : vector<2x64xf32>
    %c1 = arith.constant 1 : index
    %c0_19 = arith.constant 0 : index
    %c0_20 = arith.constant 0 : index
    %23 = vector.load %arg5[%c1, %c0_19, %c0_20] : memref<9x16x64xbf16, #tpu.memory_space<vmem>>, vector<1x16x64xbf16>
    %24 = vector.shape_cast %23 : vector<1x16x64xbf16> to vector<16x64xbf16>
    %cst_21 = arith.constant dense<0.000000e+00> : vector<2x64xf32>
    %25 = tpu.matmul %9, %24, %cst_21 {dimension_numbers = #tpu.dot_dimension_numbers<[1], [0], [0], [1], [0, 0, 1, 1], [], []>} : vector<2x16xbf16>, vector<16x64xbf16>, vector<2x64xf32> -> vector<2x64xf32>
    %c1_22 = arith.constant 1 : index
    %c0_23 = arith.constant 0 : index
    %c0_24 = arith.constant 0 : index
    %26 = vector.load %arg6[%c1_22, %c0_23, %c0_24] : memref<9x1x64xf32, #tpu.memory_space<vmem>>, vector<1x1x64xf32>
    %27 = vector.shape_cast %26 : vector<1x1x64xf32> to vector<1x64xf32>
    %28 = vector.broadcast %27 : vector<1x64xf32> to vector<2x64xf32>
    %29 = arith.addf %25, %28 : vector<2x64xf32>
    %c1_25 = arith.constant 1 : index
    %c0_26 = arith.constant 0 : index
    %c0_27 = arith.constant 0 : index
    %30 = vector.load %arg2[%c1_25, %c0_26, %c0_27] : memref<9x2x64xbf16, #tpu.memory_space<vmem>>, vector<1x2x64xbf16>
    %31 = vector.shape_cast %30 : vector<1x2x64xbf16> to vector<2x64xbf16>
    %32 = arith.extf %31 : vector<2x64xbf16> to vector<2x64xf32>
    %33 = arith.mulf %29, %32 : vector<2x64xf32>
    %34 = arith.addf %22, %33 : vector<2x64xf32>
    %c2 = arith.constant 2 : index
    %c0_28 = arith.constant 0 : index
    %c0_29 = arith.constant 0 : index
    %35 = vector.load %arg5[%c2, %c0_28, %c0_29] : memref<9x16x64xbf16, #tpu.memory_space<vmem>>, vector<1x16x64xbf16>
    %36 = vector.shape_cast %35 : vector<1x16x64xbf16> to vector<16x64xbf16>
    %cst_30 = arith.constant dense<0.000000e+00> : vector<2x64xf32>
    %37 = tpu.matmul %9, %36, %cst_30 {dimension_numbers = #tpu.dot_dimension_numbers<[1], [0], [0], [1], [0, 0, 1, 1], [], []>} : vector<2x16xbf16>, vector<16x64xbf16>, vector<2x64xf32> -> vector<2x64xf32>
    %c2_31 = arith.constant 2 : index
    %c0_32 = arith.constant 0 : index
    %c0_33 = arith.constant 0 : index
    %38 = vector.load %arg6[%c2_31, %c0_32, %c0_33] : memref<9x1x64xf32, #tpu.memory_space<vmem>>, vector<1x1x64xf32>
    %39 = vector.shape_cast %38 : vector<1x1x64xf32> to vector<1x64xf32>
    %40 = vector.broadcast %39 : vector<1x64xf32> to vector<2x64xf32>
    %41 = arith.addf %37, %40 : vector<2x64xf32>
    %c2_34 = arith.constant 2 : index
    %c0_35 = arith.constant 0 : index
    %c0_36 = arith.constant 0 : index
    %42 = vector.load %arg2[%c2_34, %c0_35, %c0_36] : memref<9x2x64xbf16, #tpu.memory_space<vmem>>, vector<1x2x64xbf16>
    %43 = vector.shape_cast %42 : vector<1x2x64xbf16> to vector<2x64xbf16>
    %44 = arith.extf %43 : vector<2x64xbf16> to vector<2x64xf32>
    %45 = arith.mulf %41, %44 : vector<2x64xf32>
    %46 = arith.addf %34, %45 : vector<2x64xf32>
    %c3 = arith.constant 3 : index
    %c0_37 = arith.constant 0 : index
    %c0_38 = arith.constant 0 : index
    %47 = vector.load %arg5[%c3, %c0_37, %c0_38] : memref<9x16x64xbf16, #tpu.memory_space<vmem>>, vector<1x16x64xbf16>
    %48 = vector.shape_cast %47 : vector<1x16x64xbf16> to vector<16x64xbf16>
    %cst_39 = arith.constant dense<0.000000e+00> : vector<2x64xf32>
    %49 = tpu.matmul %9, %48, %cst_39 {dimension_numbers = #tpu.dot_dimension_numbers<[1], [0], [0], [1], [0, 0, 1, 1], [], []>} : vector<2x16xbf16>, vector<16x64xbf16>, vector<2x64xf32> -> vector<2x64xf32>
    %c3_40 = arith.constant 3 : index
    %c0_41 = arith.constant 0 : index
    %c0_42 = arith.constant 0 : index
    %50 = vector.load %arg6[%c3_40, %c0_41, %c0_42] : memref<9x1x64xf32, #tpu.memory_space<vmem>>, vector<1x1x64xf32>
    %51 = vector.shape_cast %50 : vector<1x1x64xf32> to vector<1x64xf32>
    %52 = vector.broadcast %51 : vector<1x64xf32> to vector<2x64xf32>
    %53 = arith.addf %49, %52 : vector<2x64xf32>
    %c3_43 = arith.constant 3 : index
    %c0_44 = arith.constant 0 : index
    %c0_45 = arith.constant 0 : index
    %54 = vector.load %arg2[%c3_43, %c0_44, %c0_45] : memref<9x2x64xbf16, #tpu.memory_space<vmem>>, vector<1x2x64xbf16>
    %55 = vector.shape_cast %54 : vector<1x2x64xbf16> to vector<2x64xbf16>
    %56 = arith.extf %55 : vector<2x64xbf16> to vector<2x64xf32>
    %57 = arith.mulf %53, %56 : vector<2x64xf32>
    %58 = arith.addf %46, %57 : vector<2x64xf32>
    %c4 = arith.constant 4 : index
    %c0_46 = arith.constant 0 : index
    %c0_47 = arith.constant 0 : index
    %59 = vector.load %arg5[%c4, %c0_46, %c0_47] : memref<9x16x64xbf16, #tpu.memory_space<vmem>>, vector<1x16x64xbf16>
    %60 = vector.shape_cast %59 : vector<1x16x64xbf16> to vector<16x64xbf16>
    %cst_48 = arith.constant dense<0.000000e+00> : vector<2x64xf32>
    %61 = tpu.matmul %9, %60, %cst_48 {dimension_numbers = #tpu.dot_dimension_numbers<[1], [0], [0], [1], [0, 0, 1, 1], [], []>} : vector<2x16xbf16>, vector<16x64xbf16>, vector<2x64xf32> -> vector<2x64xf32>
    %c4_49 = arith.constant 4 : index
    %c0_50 = arith.constant 0 : index
    %c0_51 = arith.constant 0 : index
    %62 = vector.load %arg6[%c4_49, %c0_50, %c0_51] : memref<9x1x64xf32, #tpu.memory_space<vmem>>, vector<1x1x64xf32>
    %63 = vector.shape_cast %62 : vector<1x1x64xf32> to vector<1x64xf32>
    %64 = vector.broadcast %63 : vector<1x64xf32> to vector<2x64xf32>
    %65 = arith.addf %61, %64 : vector<2x64xf32>
    %c4_52 = arith.constant 4 : index
    %c0_53 = arith.constant 0 : index
    %c0_54 = arith.constant 0 : index
    %66 = vector.load %arg2[%c4_52, %c0_53, %c0_54] : memref<9x2x64xbf16, #tpu.memory_space<vmem>>, vector<1x2x64xbf16>
    %67 = vector.shape_cast %66 : vector<1x2x64xbf16> to vector<2x64xbf16>
    %68 = arith.extf %67 : vector<2x64xbf16> to vector<2x64xf32>
    %69 = arith.mulf %65, %68 : vector<2x64xf32>
    %70 = arith.addf %58, %69 : vector<2x64xf32>
    %c5 = arith.constant 5 : index
    %c0_55 = arith.constant 0 : index
    %c0_56 = arith.constant 0 : index
    %71 = vector.load %arg5[%c5, %c0_55, %c0_56] : memref<9x16x64xbf16, #tpu.memory_space<vmem>>, vector<1x16x64xbf16>
    %72 = vector.shape_cast %71 : vector<1x16x64xbf16> to vector<16x64xbf16>
    %cst_57 = arith.constant dense<0.000000e+00> : vector<2x64xf32>
    %73 = tpu.matmul %9, %72, %cst_57 {dimension_numbers = #tpu.dot_dimension_numbers<[1], [0], [0], [1], [0, 0, 1, 1], [], []>} : vector<2x16xbf16>, vector<16x64xbf16>, vector<2x64xf32> -> vector<2x64xf32>
    %c5_58 = arith.constant 5 : index
    %c0_59 = arith.constant 0 : index
    %c0_60 = arith.constant 0 : index
    %74 = vector.load %arg6[%c5_58, %c0_59, %c0_60] : memref<9x1x64xf32, #tpu.memory_space<vmem>>, vector<1x1x64xf32>
    %75 = vector.shape_cast %74 : vector<1x1x64xf32> to vector<1x64xf32>
    %76 = vector.broadcast %75 : vector<1x64xf32> to vector<2x64xf32>
    %77 = arith.addf %73, %76 : vector<2x64xf32>
    %c5_61 = arith.constant 5 : index
    %c0_62 = arith.constant 0 : index
    %c0_63 = arith.constant 0 : index
    %78 = vector.load %arg2[%c5_61, %c0_62, %c0_63] : memref<9x2x64xbf16, #tpu.memory_space<vmem>>, vector<1x2x64xbf16>
    %79 = vector.shape_cast %78 : vector<1x2x64xbf16> to vector<2x64xbf16>
    %80 = arith.extf %79 : vector<2x64xbf16> to vector<2x64xf32>
    %81 = arith.mulf %77, %80 : vector<2x64xf32>
    %82 = arith.addf %70, %81 : vector<2x64xf32>
    %c6 = arith.constant 6 : index
    %c0_64 = arith.constant 0 : index
    %c0_65 = arith.constant 0 : index
    %83 = vector.load %arg5[%c6, %c0_64, %c0_65] : memref<9x16x64xbf16, #tpu.memory_space<vmem>>, vector<1x16x64xbf16>
    %84 = vector.shape_cast %83 : vector<1x16x64xbf16> to vector<16x64xbf16>
    %cst_66 = arith.constant dense<0.000000e+00> : vector<2x64xf32>
    %85 = tpu.matmul %9, %84, %cst_66 {dimension_numbers = #tpu.dot_dimension_numbers<[1], [0], [0], [1], [0, 0, 1, 1], [], []>} : vector<2x16xbf16>, vector<16x64xbf16>, vector<2x64xf32> -> vector<2x64xf32>
    %c6_67 = arith.constant 6 : index
    %c0_68 = arith.constant 0 : index
    %c0_69 = arith.constant 0 : index
    %86 = vector.load %arg6[%c6_67, %c0_68, %c0_69] : memref<9x1x64xf32, #tpu.memory_space<vmem>>, vector<1x1x64xf32>
    %87 = vector.shape_cast %86 : vector<1x1x64xf32> to vector<1x64xf32>
    %88 = vector.broadcast %87 : vector<1x64xf32> to vector<2x64xf32>
    %89 = arith.addf %85, %88 : vector<2x64xf32>
    %c6_70 = arith.constant 6 : index
    %c0_71 = arith.constant 0 : index
    %c0_72 = arith.constant 0 : index
    %90 = vector.load %arg2[%c6_70, %c0_71, %c0_72] : memref<9x2x64xbf16, #tpu.memory_space<vmem>>, vector<1x2x64xbf16>
    %91 = vector.shape_cast %90 : vector<1x2x64xbf16> to vector<2x64xbf16>
    %92 = arith.extf %91 : vector<2x64xbf16> to vector<2x64xf32>
    %93 = arith.mulf %89, %92 : vector<2x64xf32>
    %94 = arith.addf %82, %93 : vector<2x64xf32>
    %c7 = arith.constant 7 : index
    %c0_73 = arith.constant 0 : index
    %c0_74 = arith.constant 0 : index
    %95 = vector.load %arg5[%c7, %c0_73, %c0_74] : memref<9x16x64xbf16, #tpu.memory_space<vmem>>, vector<1x16x64xbf16>
    %96 = vector.shape_cast %95 : vector<1x16x64xbf16> to vector<16x64xbf16>
    %cst_75 = arith.constant dense<0.000000e+00> : vector<2x64xf32>
    %97 = tpu.matmul %9, %96, %cst_75 {dimension_numbers = #tpu.dot_dimension_numbers<[1], [0], [0], [1], [0, 0, 1, 1], [], []>} : vector<2x16xbf16>, vector<16x64xbf16>, vector<2x64xf32> -> vector<2x64xf32>
    %c7_76 = arith.constant 7 : index
    %c0_77 = arith.constant 0 : index
    %c0_78 = arith.constant 0 : index
    %98 = vector.load %arg6[%c7_76, %c0_77, %c0_78] : memref<9x1x64xf32, #tpu.memory_space<vmem>>, vector<1x1x64xf32>
    %99 = vector.shape_cast %98 : vector<1x1x64xf32> to vector<1x64xf32>
    %100 = vector.broadcast %99 : vector<1x64xf32> to vector<2x64xf32>
    %101 = arith.addf %97, %100 : vector<2x64xf32>
    %c7_79 = arith.constant 7 : index
    %c0_80 = arith.constant 0 : index
    %c0_81 = arith.constant 0 : index
    %102 = vector.load %arg2[%c7_79, %c0_80, %c0_81] : memref<9x2x64xbf16, #tpu.memory_space<vmem>>, vector<1x2x64xbf16>
    %103 = vector.shape_cast %102 : vector<1x2x64xbf16> to vector<2x64xbf16>
    %104 = arith.extf %103 : vector<2x64xbf16> to vector<2x64xf32>
    %105 = arith.mulf %101, %104 : vector<2x64xf32>
    %106 = arith.addf %94, %105 : vector<2x64xf32>
    %c8 = arith.constant 8 : index
    %c0_82 = arith.constant 0 : index
    %c0_83 = arith.constant 0 : index
    %107 = vector.load %arg5[%c8, %c0_82, %c0_83] : memref<9x16x64xbf16, #tpu.memory_space<vmem>>, vector<1x16x64xbf16>
    %108 = vector.shape_cast %107 : vector<1x16x64xbf16> to vector<16x64xbf16>
    %cst_84 = arith.constant dense<0.000000e+00> : vector<2x64xf32>
    %109 = tpu.matmul %9, %108, %cst_84 {dimension_numbers = #tpu.dot_dimension_numbers<[1], [0], [0], [1], [0, 0, 1, 1], [], []>} : vector<2x16xbf16>, vector<16x64xbf16>, vector<2x64xf32> -> vector<2x64xf32>
    %c8_85 = arith.constant 8 : index
    %c0_86 = arith.constant 0 : index
    %c0_87 = arith.constant 0 : index
    %110 = vector.load %arg6[%c8_85, %c0_86, %c0_87] : memref<9x1x64xf32, #tpu.memory_space<vmem>>, vector<1x1x64xf32>
    %111 = vector.shape_cast %110 : vector<1x1x64xf32> to vector<1x64xf32>
    %112 = vector.broadcast %111 : vector<1x64xf32> to vector<2x64xf32>
    %113 = arith.addf %109, %112 : vector<2x64xf32>
    %c8_88 = arith.constant 8 : index
    %c0_89 = arith.constant 0 : index
    %c0_90 = arith.constant 0 : index
    %114 = vector.load %arg2[%c8_88, %c0_89, %c0_90] : memref<9x2x64xbf16, #tpu.memory_space<vmem>>, vector<1x2x64xbf16>
    %115 = vector.shape_cast %114 : vector<1x2x64xbf16> to vector<2x64xbf16>
    %116 = arith.extf %115 : vector<2x64xbf16> to vector<2x64xf32>
    %117 = arith.mulf %113, %116 : vector<2x64xf32>
    %118 = arith.addf %106, %117 : vector<2x64xf32>
    %119 = arith.truncf %118 : vector<2x64xf32> to vector<2x64xbf16>
    %c0_91 = arith.constant 0 : index
    %c0_92 = arith.constant 0 : index
    %120 = vector.load %arg7[%c0_91, %c0_92] : memref<64x128xbf16, #tpu.memory_space<vmem>>, vector<64x128xbf16>
    %cst_93 = arith.constant dense<0.000000e+00> : vector<2x128xf32>
    %121 = tpu.matmul %119, %120, %cst_93 {dimension_numbers = #tpu.dot_dimension_numbers<[1], [0], [0], [1], [0, 0, 1, 1], [], []>} : vector<2x64xbf16>, vector<64x128xbf16>, vector<2x128xf32> -> vector<2x128xf32>
    %c0_94 = arith.constant 0 : index
    %c0_95 = arith.constant 0 : index
    %122 = vector.load %arg8[%c0_94, %c0_95] : memref<1x128xf32, #tpu.memory_space<vmem>>, vector<1x128xf32>
    %123 = vector.broadcast %122 : vector<1x128xf32> to vector<2x128xf32>
    %124 = arith.addf %121, %123 : vector<2x128xf32>
    %cst_96 = arith.constant 0.000000e+00 : f32
    %125 = vector.broadcast %cst_96 : f32 to vector<2x128xf32>
    %126 = arith.maximumf %124, %125 : vector<2x128xf32>
    %c0_97 = arith.constant 0 : index
    %c0_98 = arith.constant 0 : index
    %127 = vector.load %arg10[%c0_97, %c0_98] : memref<2x128xf32, #tpu.memory_space<vmem>>, vector<2x128xf32>
    tpu.vector_store %arg10[%c0_97, %c0_98], %126 {strides = array<i32>} : memref<2x128xf32, #tpu.memory_space<vmem>>, vector<2x128xf32>,
    return
  }
  func.func @transform_0(%arg0: i32) -> (i32, i32) {
    %c0_i32 = arith.constant 0 : i32
    %c0_i32_0 = arith.constant 0 : i32
    return %arg0, %c0_i32 : i32, i32
  }
  func.func @transform_1(%arg0: i32) -> (i32, i32, i32) {
    %c0_i32 = arith.constant 0 : i32
    %c0_i32_0 = arith.constant 0 : i32
    %c0_i32_1 = arith.constant 0 : i32
    return %c0_i32, %arg0, %c0_i32_0 : i32, i32, i32
  }
  func.func @transform_2(%arg0: i32) -> (i32, i32) {
    %c0_i32 = arith.constant 0 : i32
    %c0_i32_0 = arith.constant 0 : i32
    %c0_i32_1 = arith.constant 0 : i32
    return %c0_i32, %c0_i32_0 : i32, i32
  }
  func.func @transform_3(%arg0: i32) -> (i32, i32) {
    %c0_i32 = arith.constant 0 : i32
    %c0_i32_0 = arith.constant 0 : i32
    %c0_i32_1 = arith.constant 0 : i32
    return %c0_i32, %c0_i32_0 : i32, i32
  }
  func.func @transform_4(%arg0: i32) -> (i32, i32, i32) {
    %c0_i32 = arith.constant 0 : i32
    %c0_i32_0 = arith.constant 0 : i32
    %c0_i32_1 = arith.constant 0 : i32
    %c0_i32_2 = arith.constant 0 : i32
    return %c0_i32, %c0_i32_0, %c0_i32_1 : i32, i32, i32
  }
  func.func @transform_5(%arg0: i32) -> (i32, i32, i32) {
    %c0_i32 = arith.constant 0 : i32
    %c0_i32_0 = arith.constant 0 : i32
    %c0_i32_1 = arith.constant 0 : i32
    %c0_i32_2 = arith.constant 0 : i32
    return %c0_i32, %c0_i32_0, %c0_i32_1 : i32, i32, i32
  }
  func.func @transform_6(%arg0: i32) -> (i32, i32) {
    %c0_i32 = arith.constant 0 : i32
    %c0_i32_0 = arith.constant 0 : i32
    %c0_i32_1 = arith.constant 0 : i32
    return %c0_i32, %c0_i32_0 : i32, i32
  }
  func.func @transform_7(%arg0: i32) -> (i32, i32) {
    %c0_i32 = arith.constant 0 : i32
    %c0_i32_0 = arith.constant 0 : i32
    %c0_i32_1 = arith.constant 0 : i32
    return %c0_i32, %c0_i32_0 : i32, i32
  }
  func.func @transform_8(%arg0: i32) -> (i32, i32) {
    %c0_i32 = arith.constant 0 : i32
    %c0_i32_0 = arith.constant 0 : i32
    return %arg0, %c0_i32 : i32, i32
  }
  func.func @transform_9(%arg0: i32) -> (i32, i32) {
    %c0_i32 = arith.constant 0 : i32
    %c0_i32_0 = arith.constant 0 : i32
    return %arg0, %c0_i32 : i32, i32
  }
}

module attributes {stable_mosaic.version = 11 : i64} {
  func.func @_conv_kernel(%arg0: i32, %arg1: memref<2x1152xbf16, #tpu.memory_space<vmem>>, %arg2: memref<1152x128xbf16, #tpu.memory_space<vmem>>, %arg3: memref<1x128xf32, #tpu.memory_space<vmem>>, %arg4: memref<2x128xf32, #tpu.memory_space<vmem>>) attributes {dimension_semantics = [#tpu.dimension_semantics<parallel>], iteration_bounds = array<i64: 1>, scalar_prefetch = 0 : i64, scratch_operands = 0 : i64, tpu.core_type = #tpu.core_type<tc>, window_params = [{transform_indices = @transform_0, window_bounds = array<i64: 2, 1152>}, {pipeline_mode = #tpu.pipeline_mode<synchronous>, transform_indices = @transform_1, window_bounds = array<i64: 1152, 128>}, {pipeline_mode = #tpu.pipeline_mode<synchronous>, transform_indices = @transform_2, window_bounds = array<i64: 1, 128>}, {transform_indices = @transform_3, window_bounds = array<i64: 2, 128>}]} {
    %c0 = arith.constant 0 : index
    %c0_0 = arith.constant 0 : index
    %0 = vector.load %arg1[%c0, %c0_0] : memref<2x1152xbf16, #tpu.memory_space<vmem>>, vector<2x1152xbf16>
    %c0_1 = arith.constant 0 : index
    %c0_2 = arith.constant 0 : index
    %1 = vector.load %arg2[%c0_1, %c0_2] : memref<1152x128xbf16, #tpu.memory_space<vmem>>, vector<1152x128xbf16>
    %cst = arith.constant dense<0.000000e+00> : vector<2x128xf32>
    %2 = tpu.matmul %0, %1, %cst {dimension_numbers = #tpu.dot_dimension_numbers<[1], [0], [0], [1], [0, 0, 1, 1], [], []>} : vector<2x1152xbf16>, vector<1152x128xbf16>, vector<2x128xf32> -> vector<2x128xf32>
    %c0_3 = arith.constant 0 : index
    %c0_4 = arith.constant 0 : index
    %3 = vector.load %arg3[%c0_3, %c0_4] : memref<1x128xf32, #tpu.memory_space<vmem>>, vector<1x128xf32>
    %4 = vector.broadcast %3 : vector<1x128xf32> to vector<2x128xf32>
    %5 = arith.addf %2, %4 : vector<2x128xf32>
    %cst_5 = arith.constant 0.000000e+00 : f32
    %6 = vector.broadcast %cst_5 : f32 to vector<2x128xf32>
    %7 = arith.maximumf %5, %6 : vector<2x128xf32>
    %c0_6 = arith.constant 0 : index
    %c0_7 = arith.constant 0 : index
    %8 = vector.load %arg4[%c0_6, %c0_7] : memref<2x128xf32, #tpu.memory_space<vmem>>, vector<2x128xf32>
    tpu.vector_store %arg4[%c0_6, %c0_7], %7 {strides = array<i32>} : memref<2x128xf32, #tpu.memory_space<vmem>>, vector<2x128xf32>,
    return
  }
  func.func @transform_0(%arg0: i32) -> (i32, i32) {
    %c0_i32 = arith.constant 0 : i32
    %c0_i32_0 = arith.constant 0 : i32
    return %arg0, %c0_i32 : i32, i32
  }
  func.func @transform_1(%arg0: i32) -> (i32, i32) {
    %c0_i32 = arith.constant 0 : i32
    %c0_i32_0 = arith.constant 0 : i32
    %c0_i32_1 = arith.constant 0 : i32
    return %c0_i32, %c0_i32_0 : i32, i32
  }
  func.func @transform_2(%arg0: i32) -> (i32, i32) {
    %c0_i32 = arith.constant 0 : i32
    %c0_i32_0 = arith.constant 0 : i32
    %c0_i32_1 = arith.constant 0 : i32
    return %c0_i32, %c0_i32_0 : i32, i32
  }
  func.func @transform_3(%arg0: i32) -> (i32, i32) {
    %c0_i32 = arith.constant 0 : i32
    %c0_i32_0 = arith.constant 0 : i32
    return %arg0, %c0_i32 : i32, i32
  }
}

module attributes {stable_mosaic.version = 11 : i64} {
  func.func @_conv_kernel(%arg0: i32, %arg1: memref<256x27xbf16, #tpu.memory_space<vmem>>, %arg2: memref<27x16xbf16, #tpu.memory_space<vmem>>, %arg3: memref<1x16xf32, #tpu.memory_space<vmem>>, %arg4: memref<256x16xf32, #tpu.memory_space<vmem>>) attributes {dimension_semantics = [#tpu.dimension_semantics<parallel>], iteration_bounds = array<i64: 2>, scalar_prefetch = 0 : i64, scratch_operands = 0 : i64, tpu.core_type = #tpu.core_type<tc>, window_params = [{transform_indices = @transform_0, window_bounds = array<i64: 256, 27>}, {pipeline_mode = #tpu.pipeline_mode<synchronous>, transform_indices = @transform_1, window_bounds = array<i64: 27, 16>}, {pipeline_mode = #tpu.pipeline_mode<synchronous>, transform_indices = @transform_2, window_bounds = array<i64: 1, 16>}, {transform_indices = @transform_3, window_bounds = array<i64: 256, 16>}]} {
    %c0 = arith.constant 0 : index
    %c0_0 = arith.constant 0 : index
    %0 = vector.load %arg1[%c0, %c0_0] : memref<256x27xbf16, #tpu.memory_space<vmem>>, vector<256x27xbf16>
    %c0_1 = arith.constant 0 : index
    %c0_2 = arith.constant 0 : index
    %1 = vector.load %arg2[%c0_1, %c0_2] : memref<27x16xbf16, #tpu.memory_space<vmem>>, vector<27x16xbf16>
    %cst = arith.constant dense<0.000000e+00> : vector<256x16xf32>
    %2 = tpu.matmul %0, %1, %cst {dimension_numbers = #tpu.dot_dimension_numbers<[1], [0], [0], [1], [0, 0, 1, 1], [], []>} : vector<256x27xbf16>, vector<27x16xbf16>, vector<256x16xf32> -> vector<256x16xf32>
    %c0_3 = arith.constant 0 : index
    %c0_4 = arith.constant 0 : index
    %3 = vector.load %arg3[%c0_3, %c0_4] : memref<1x16xf32, #tpu.memory_space<vmem>>, vector<1x16xf32>
    %4 = vector.broadcast %3 : vector<1x16xf32> to vector<256x16xf32>
    %5 = arith.addf %2, %4 : vector<256x16xf32>
    %cst_5 = arith.constant 0.000000e+00 : f32
    %6 = vector.broadcast %cst_5 : f32 to vector<256x16xf32>
    %7 = arith.maximumf %5, %6 : vector<256x16xf32>
    %c0_6 = arith.constant 0 : index
    %c0_7 = arith.constant 0 : index
    %8 = vector.load %arg4[%c0_6, %c0_7] : memref<256x16xf32, #tpu.memory_space<vmem>>, vector<256x16xf32>
    tpu.vector_store %arg4[%c0_6, %c0_7], %7 {strides = array<i32>} : memref<256x16xf32, #tpu.memory_space<vmem>>, vector<256x16xf32>,
    return
  }
  func.func @transform_0(%arg0: i32) -> (i32, i32) {
    %c0_i32 = arith.constant 0 : i32
    %c0_i32_0 = arith.constant 0 : i32
    return %arg0, %c0_i32 : i32, i32
  }
  func.func @transform_1(%arg0: i32) -> (i32, i32) {
    %c0_i32 = arith.constant 0 : i32
    %c0_i32_0 = arith.constant 0 : i32
    %c0_i32_1 = arith.constant 0 : i32
    return %c0_i32, %c0_i32_0 : i32, i32
  }
  func.func @transform_2(%arg0: i32) -> (i32, i32) {
    %c0_i32 = arith.constant 0 : i32
    %c0_i32_0 = arith.constant 0 : i32
    %c0_i32_1 = arith.constant 0 : i32
    return %c0_i32, %c0_i32_0 : i32, i32
  }
  func.func @transform_3(%arg0: i32) -> (i32, i32) {
    %c0_i32 = arith.constant 0 : i32
    %c0_i32_0 = arith.constant 0 : i32
    return %arg0, %c0_i32 : i32, i32
  }
}

</mosaic_0001>

<llo_original>
// kernel: coarse_encoder_fwd.10
$region0: #{coarse_encoder_fwd.10}
  #allocation0 [shape = 'u32[]', space=smem, size = 0x4, offset = 0x4, fixed_abs, tag = 'smem constant byte address 0x4 - core index']
  #allocation1 [shape = 'u32[144,128]{1,0:T(1,128)}', space=vmem, size = 0x12000, scoped, tag = 'internal scratch']
  %s0 = inlined_call_operand.vmem [shape: bf16[32,18], index: 0, kind: input, shape index: {}]
  %s1 = inlined_call_operand.vmem [shape: bf16[9,32,16], index: 1, kind: input, shape index: {}]
  %s2 = inlined_call_operand.vmem [shape: bf16[18,4], index: 2, kind: input, shape index: {}]
  %s3 = inlined_call_operand.vmem [shape: f32[1,4], index: 3, kind: input, shape index: {}]
  %s4 = inlined_call_operand.vmem [shape: bf16[9,4,16], index: 4, kind: input, shape index: {}]
  %s5 = inlined_call_operand.vmem [shape: f32[9,1,16], index: 5, kind: input, shape index: {}]
  %s6 = inlined_call_operand.vmem [shape: bf16[16,32], index: 6, kind: input, shape index: {}]
  %s7 = inlined_call_operand.vmem [shape: f32[1,32], index: 7, kind: input, shape index: {}]
  %s8 = inlined_call_operand.vmem [shape: f32[32,4], index: 8, kind: output, shape index: {0}]
  %s9 = inlined_call_operand.vmem [shape: f32[32,32], index: 9, kind: output, shape index: {1}]
  %10 = xla_tuple %s8, %s9
  %s11 = sld [smem:[#allocation0]]
  $region50: #{coarse_encoder_fwd.10} parent=0
    _
  %s13 = ssub.s32 1, %s11
  %s14 = scalar_select 0, %s13, %s11
  // Predicated region
  $region2: #{coarse_encoder_fwd.10} parent=0 // pred_check
    _
  $region3: #{coarse_encoder_fwd.10} parent=0 // pred_check_branch
    %16 = sbr.rel (0) target = $region5
  $region4: #{coarse_encoder_fwd.10} parent=0 // pred_region
    _
  $region5: #{coarse_encoder_fwd.10} parent=0 // pred_fallthru
    _
  // Predicated region
  $region6: #{coarse_encoder_fwd.10} parent=0 // pred_check
    _
  $region7: #{coarse_encoder_fwd.10} parent=0 // pred_check_branch
    %18 = sbr.rel (0) target = $region9
  $region8: #{coarse_encoder_fwd.10} parent=0 // pred_region
    _
  $region9: #{coarse_encoder_fwd.10} parent=0 // pred_fallthru
    _
  // Predicated region
  $region10: #{coarse_encoder_fwd.10} parent=0 // pred_check
    _
  $region11: #{coarse_encoder_fwd.10} parent=0 // pred_check_branch
    %20 = sbr.rel (0) target = $region13
  $region12: #{coarse_encoder_fwd.10} parent=0 // pred_region
    _
  $region13: #{coarse_encoder_fwd.10} parent=0 // pred_fallthru
    _
  // Predicated region
  $region14: #{coarse_encoder_fwd.10} parent=0 // pred_check
    _
  $region15: #{coarse_encoder_fwd.10} parent=0 // pred_check_branch
    %22 = sbr.rel (0) target = $region17
  $region16: #{coarse_encoder_fwd.10} parent=0 // pred_region
    _
  $region17: #{coarse_encoder_fwd.10} parent=0 // pred_fallthru
    _
  // Predicated region
  $region18: #{coarse_encoder_fwd.10} parent=0 // pred_check
    _
  $region19: #{coarse_encoder_fwd.10} parent=0 // pred_check_branch
    %24 = sbr.rel (0) target = $region21
  $region20: #{coarse_encoder_fwd.10} parent=0 // pred_region
    _
  $region21: #{coarse_encoder_fwd.10} parent=0 // pred_fallthru
    _
  // Predicated region
  $region22: #{coarse_encoder_fwd.10} parent=0 // pred_check
    _
  $region23: #{coarse_encoder_fwd.10} parent=0 // pred_check_branch
    %26 = sbr.rel (0) target = $region25
  $region24: #{coarse_encoder_fwd.10} parent=0 // pred_region
    _
  $region25: #{coarse_encoder_fwd.10} parent=0 // pred_fallthru
    _
  // Predicated region
  $region26: #{coarse_encoder_fwd.10} parent=0 // pred_check
    _
  $region27: #{coarse_encoder_fwd.10} parent=0 // pred_check_branch
    %28 = sbr.rel (0) target = $region29
  $region28: #{coarse_encoder_fwd.10} parent=0 // pred_region
    _
  $region29: #{coarse_encoder_fwd.10} parent=0 // pred_fallthru
    _
  // Predicated region
  $region30: #{coarse_encoder_fwd.10} parent=0 // pred_check
    _
  $region31: #{coarse_encoder_fwd.10} parent=0 // pred_check_branch
    %30 = sbr.rel (0) target = $region33
  $region32: #{coarse_encoder_fwd.10} parent=0 // pred_region
    _
  $region33: #{coarse_encoder_fwd.10} parent=0 // pred_fallthru
    _
  %v32 = vld [vmem:[%s0] sm:$0xf]
  %v33 = vld [vmem:[%s0 + $0x4] sm:$0xf]
  %v34 = vld [vmem:[%s0 + $0x8] sm:$0xf]
  %v35 = vld [vmem:[%s0 + $0xc] sm:$0xf]
  %v36 = vld [vmem:[%s2] sm:$0xf]
  %v37 = vld [vmem:[%s2 + $0x4] sm:$0xf]
  %v38 = vld [vmem:[%s2 + $0x8] sm:$0x1]
  %v39 = vld [vmem:[%s3] sm:$0x1]
  %v41 = vlaneseq
  %v42 = vshrl.u32 %v41, 7
  %v43 = vsub.s32 0, %v42
  %v44 = vrot.slane %v39, %v43
  %v50 = vunpack.c.l.b16 %v32
  %v51 = vunpack.c.l.b16 %v33
  %v52 = vunpack.c.l.b16 %v34
  %v53 = vunpack.c.l.b16 %v35
  %v54 = vpack.c.b16 %v51, %v50
  %v55 = vpack.c.b16 %v53, %v52
  %v59 = vunpack.c.l.b16 %v36
  %v60 = vunpack.c.l.b16 %v37
  %v61 = vunpack.c.l.b16 %v38
  %v62 = vpack.c.b16 %v60, %v59
  %v63 = vpack.c.b16 %v61, %v61
  %vm65 = vcmask 146432
  %v67 = vsel %vm65, %v54, 0
  %v70 = vsel %vm65, %v55, 0
  %vm72 = vcmask 1040384
  %v74 = vsel %vm72, %v63, 0
  %76 = vmatprep.subr.bf16.mxu0 0
  %77 = vmatpush1.bf16.msra.mxu0 %v62
  %78 = vmatprep.subr.bf16.mxu0 0
  %79 = vmatpush1.bf16.msra.mxu0 %v74
  %80 = vmatprep.subr.bf16.mxu0 0
  %81 = vmatpush1.bf16.msra.mxu0 0
  %82 = vmatprep.subr.bf16.mxu0 0
  %83 = vmatpush1.bf16.msra.mxu0 0
  %84 = vmatprep.subr.bf16.mxu0 0
  %85 = vmatpush1.bf16.msra.mxu0 0
  %86 = vmatprep.subr.bf16.mxu0 0
  %87 = vmatpush1.bf16.msra.mxu0 0
  %88 = vmatprep.subr.bf16.mxu0 0
  %89 = vmatpush1.bf16.msra.mxu0 0
  %90 = vmatprep.subr.bf16.mxu0 0
  %91 = vmatpush1.bf16.msra.mxu0 0
  %92 = vmatprep.subr.bf16.mxu0 0
  %93 = vmatpush1.bf16.msra.mxu0 0
  %94 = vmatprep.subr.bf16.mxu0 0
  %95 = vmatpush1.bf16.msra.mxu0 0
  %96 = vmatprep.subr.bf16.mxu0 0
  %97 = vmatpush1.bf16.msra.mxu0 0
  %98 = vmatprep.subr.bf16.mxu0 0
  %99 = vmatpush1.bf16.msra.mxu0 0
  %100 = vmatprep.subr.bf16.mxu0 0
  %101 = vmatpush1.bf16.msra.mxu0 0
  %102 = vmatprep.subr.bf16.mxu0 0
  %103 = vmatpush1.bf16.msra.mxu0 0
  %104 = vmatprep.subr.bf16.mxu0 0
  %105 = vmatpush1.bf16.msra.mxu0 0
  %106 = vmatprep.subr.bf16.mxu0 0
  %107 = vmatpush1.bf16.msra.mxu0 0
  %108 = vmatprep.mubr.bf16.mxu0 0
  %109 = vmatmul.mubr.bf16.gmra.mrb[0].mxu0 %v67
  %v110 = vpop.f32.mrb[0].mxu0
  %v111 = vadd.f32 %v44, %v110
  %v112 = vpop.f32.mrb[0].mxu0
  %v113 = vpop.f32.mrb[0].mxu0
  %v114 = vadd.f32 %v44, %v113
  %v115 = vpop.f32.mrb[0].mxu0
  %116 = vmatprep.mubr.bf16.mxu0 0
  %117 = vmatmul.mubr.bf16.gmra.mrb[0].mxu0 %v70
  %v118 = vpop.f32.mrb[0].mxu0
  %v119 = vadd.f32 %v44, %v118
  %v120 = vpop.f32.mrb[0].mxu0
  %v121 = vpop.f32.mrb[0].mxu0
  %v122 = vadd.f32 %v44, %v121
  %v123 = vpop.f32.mrb[0].mxu0
  %124 = vdwg.mxu0
  %v125 = vmax.f32 %v111, 0.0
  %v126 = vmax.f32 %v114, 0.0
  %v127 = vmax.f32 %v119, 0.0
  %v128 = vmax.f32 %v122, 0.0
  %vm129 = vcmask 31744
  %130 = vst.msk [vmem:[%s8] sm:$0xff] %vm129, %v125
  %131 = vst.msk [vmem:[%s8 + $0x8] sm:$0xff] %vm129, %v126
  %132 = vst.msk [vmem:[%s8 + $0x10] sm:$0xff] %vm129, %v127
  %133 = vst.msk [vmem:[%s8 + $0x18] sm:$0xff] %vm129, %v128
  %v134 = vpack.c.bf16 %v126, %v125
  %v135 = vpack.c.bf16 %v128, %v127
  %v136 = vld [vmem:[%s4] sm:$0x3]
  %v137 = vld [vmem:[%s5] sm:$0x1]
  %v139 = vlaneseq
  %v140 = vshrl.u32 %v139, 7
  %v141 = vsub.s32 0, %v140
  %v142 = vrot.slane %v137, %v141
  %v145 = vsel %vm129, %v134, 0
  %v148 = vsel %vm129, %v135, 0
  %vm150 = vcmask 1041408
  %v152 = vsel %vm150, %v136, 0
  %154 = vmatprep.subr.bf16.mxu0 0
  %155 = vmatpush1.bf16.msra.mxu0 %v152
  %156 = vmatprep.subr.bf16.mxu0 0
  %157 = vmatpush1.bf16.msra.mxu0 0
  %158 = vmatprep.subr.bf16.mxu0 0
  %159 = vmatpush1.bf16.msra.mxu0 0
  %160 = vmatprep.subr.bf16.mxu0 0
  %161 = vmatpush1.bf16.msra.mxu0 0
  %162 = vmatprep.subr.bf16.mxu0 0
  %163 = vmatpush1.bf16.msra.mxu0 0
  %164 = vmatprep.subr.bf16.mxu0 0
  %165 = vmatpush1.bf16.msra.mxu0 0
  %166 = vmatprep.subr.bf16.mxu0 0
  %167 = vmatpush1.bf16.msra.mxu0 0
  %168 = vmatprep.subr.bf16.mxu0 0
  %169 = vmatpush1.bf16.msra.mxu0 0
  %170 = vmatprep.subr.bf16.mxu0 0
  %171 = vmatpush1.bf16.msra.mxu0 0
  %172 = vmatprep.subr.bf16.mxu0 0
  %173 = vmatpush1.bf16.msra.mxu0 0
  %174 = vmatprep.subr.bf16.mxu0 0
  %175 = vmatpush1.bf16.msra.mxu0 0
  %176 = vmatprep.subr.bf16.mxu0 0
  %177 = vmatpush1.bf16.msra.mxu0 0
  %178 = vmatprep.subr.bf16.mxu0 0
  %179 = vmatpush1.bf16.msra.mxu0 0
  %180 = vmatprep.subr.bf16.mxu0 0
  %181 = vmatpush1.bf16.msra.mxu0 0
  %182 = vmatprep.subr.bf16.mxu0 0
  %183 = vmatpush1.bf16.msra.mxu0 0
  %184 = vmatprep.subr.bf16.mxu0 0
  %185 = vmatpush1.bf16.msra.mxu0 0
  %186 = vmatprep.mubr.bf16.mxu0 0
  %187 = vmatmul.mubr.bf16.gmra.mrb[0].mxu0 %v145
  %v188 = vpop.f32.mrb[0].mxu0
  %v189 = vadd.f32 %v142, %v188
  %v190 = vpop.f32.mrb[0].mxu0
  %v191 = vpop.f32.mrb[0].mxu0
  %v192 = vadd.f32 %v142, %v191
  %v193 = vpop.f32.mrb[0].mxu0
  %194 = vmatprep.mubr.bf16.mxu0 0
  %195 = vmatmul.mubr.bf16.gmra.mrb[0].mxu0 %v148
  %v196 = vpop.f32.mrb[0].mxu0
  %v197 = vadd.f32 %v142, %v196
  %v198 = vpop.f32.mrb[0].mxu0
  %v199 = vpop.f32.mrb[0].mxu0
  %v200 = vadd.f32 %v142, %v199
  %v201 = vpop.f32.mrb[0].mxu0
  %202 = vdwg.mxu0
  %v203 = vld [vmem:[%s1] sm:$0xf]
  %v204 = vld [vmem:[%s1 + $0x4] sm:$0xf]
  %v205 = vld [vmem:[%s1 + $0x8] sm:$0xf]
  %v206 = vld [vmem:[%s1 + $0xc] sm:$0xf]
  %v207 = vunpack.c.l.bf16 %v203
  %v208 = vunpack.c.l.bf16 %v204
  %v209 = vunpack.c.l.bf16 %v205
  %v210 = vunpack.c.l.bf16 %v206
  %v211 = vmul.f32 %v189, %v207
  %v212 = vmul.f32 %v192, %v208
  %v213 = vmul.f32 %v197, %v209
  %v214 = vmul.f32 %v200, %v210
  %v215 = vadd.f32 %v211, 0.0
  %v216 = vadd.f32 %v212, 0.0
  %v217 = vadd.f32 %v213, 0.0
  %v218 = vadd.f32 %v214, 0.0
  %s219 = scalar_lea.vmem %s4, 2
  %v220 = vld [vmem:[%s219] sm:$0x3]
  %s221 = scalar_lea.vmem %s5, 1
  %v222 = vld [vmem:[%s221] sm:$0x1]
  %v224 = vlaneseq
  %v225 = vshrl.u32 %v224, 7
  %v226 = vsub.s32 0, %v225
  %v227 = vrot.slane %v222, %v226
  %v230 = vsel %vm150, %v220, 0
  %232 = vmatprep.subr.bf16.mxu0 0
  %233 = vmatpush1.bf16.msra.mxu0 %v230
  %234 = vmatprep.subr.bf16.mxu0 0
  %235 = vmatpush1.bf16.msra.mxu0 0
  %236 = vmatprep.subr.bf16.mxu0 0
  %237 = vmatpush1.bf16.msra.mxu0 0
  %238 = vmatprep.subr.bf16.mxu0 0
  %239 = vmatpush1.bf16.msra.mxu0 0
  %240 = vmatprep.subr.bf16.mxu0 0
  %241 = vmatpush1.bf16.msra.mxu0 0
  %242 = vmatprep.subr.bf16.mxu0 0
  %243 = vmatpush1.bf16.msra.mxu0 0
  %244 = vmatprep.subr.bf16.mxu0 0
  %245 = vmatpush1.bf16.msra.mxu0 0
  %246 = vmatprep.subr.bf16.mxu0 0
  %247 = vmatpush1.bf16.msra.mxu0 0
  %248 = vmatprep.subr.bf16.mxu0 0
  %249 = vmatpush1.bf16.msra.mxu0 0
  %250 = vmatprep.subr.bf16.mxu0 0
  %251 = vmatpush1.bf16.msra.mxu0 0
  %252 = vmatprep.subr.bf16.mxu0 0
  %253 = vmatpush1.bf16.msra.mxu0 0
  %254 = vmatprep.subr.bf16.mxu0 0
  %255 = vmatpush1.bf16.msra.mxu0 0
  %256 = vmatprep.subr.bf16.mxu0 0
  %257 = vmatpush1.bf16.msra.mxu0 0
  %258 = vmatprep.subr.bf16.mxu0 0
  %259 = vmatpush1.bf16.msra.mxu0 0
  %260 = vmatprep.subr.bf16.mxu0 0
  %261 = vmatpush1.bf16.msra.mxu0 0
  %262 = vmatprep.subr.bf16.mxu0 0
  %263 = vmatpush1.bf16.msra.mxu0 0
  %264 = vmatprep.mubr.bf16.mxu0 0
  %265 = vmatmul.mubr.bf16.gmra.mrb[0].mxu0 %v145
  %v266 = vpop.f32.mrb[0].mxu0
  %v267 = vadd.f32 %v227, %v266
  %v268 = vpop.f32.mrb[0].mxu0
  %v269 = vpop.f32.mrb[0].mxu0
  %v270 = vadd.f32 %v227, %v269
  %v271 = vpop.f32.mrb[0].mxu0
  %272 = vmatprep.mubr.bf16.mxu0 0
  %273 = vmatmul.mubr.bf16.gmra.mrb[0].mxu0 %v148
  %v274 = vpop.f32.mrb[0].mxu0
  %v275 = vadd.f32 %v227, %v274
  %v276 = vpop.f32.mrb[0].mxu0
  %v277 = vpop.f32.mrb[0].mxu0
  %v278 = vadd.f32 %v227, %v277
  %v279 = vpop.f32.mrb[0].mxu0
  %280 = vdwg.mxu0
  %s281 = scalar_lea.vmem %s1, 16
  %v282 = vld [vmem:[%s281] sm:$0xf]
  %v283 = vld [vmem:[%s281 + $0x4] sm:$0xf]
  %v284 = vld [vmem:[%s281 + $0x8] sm:$0xf]
  %v285 = vld [vmem:[%s281 + $0xc] sm:$0xf]
  %v286 = vunpack.c.l.bf16 %v282
  %v287 = vunpack.c.l.bf16 %v283
  %v288 = vunpack.c.l.bf16 %v284
  %v289 = vunpack.c.l.bf16 %v285
  %v290 = vmul.f32 %v267, %v286
  %v291 = vmul.f32 %v270, %v287
  %v292 = vmul.f32 %v275, %v288
  %v293 = vmul.f32 %v278, %v289
  %v294 = vadd.f32 %v215, %v290
  %v295 = vadd.f32 %v216, %v291
  %v296 = vadd.f32 %v217, %v292
  %v297 = vadd.f32 %v218, %v293
  %s298 = scalar_lea.vmem %s4, 4
  %v299 = vld [vmem:[%s298] sm:$0x3]
  %s300 = scalar_lea.vmem %s5, 2
  %v301 = vld [vmem:[%s300] sm:$0x1]
  %v303 = vlaneseq
  %v304 = vshrl.u32 %v303, 7
  %v305 = vsub.s32 0, %v304
  %v306 = vrot.slane %v301, %v305
  %v309 = vsel %vm150, %v299, 0
  %311 = vmatprep.subr.bf16.mxu0 0
  %312 = vmatpush1.bf16.msra.mxu0 %v309
  %313 = vmatprep.subr.bf16.mxu0 0
  %314 = vmatpush1.bf16.msra.mxu0 0
  %315 = vmatprep.subr.bf16.mxu0 0
  %316 = vmatpush1.bf16.msra.mxu0 0
  %317 = vmatprep.subr.bf16.mxu0 0
  %318 = vmatpush1.bf16.msra.mxu0 0
  %319 = vmatprep.subr.bf16.mxu0 0
  %320 = vmatpush1.bf16.msra.mxu0 0
  %321 = vmatprep.subr.bf16.mxu0 0
  %322 = vmatpush1.bf16.msra.mxu0 0
  %323 = vmatprep.subr.bf16.mxu0 0
  %324 = vmatpush1.bf16.msra.mxu0 0
  %325 = vmatprep.subr.bf16.mxu0 0
  %326 = vmatpush1.bf16.msra.mxu0 0
  %327 = vmatprep.subr.bf16.mxu0 0
  %328 = vmatpush1.bf16.msra.mxu0 0
  %329 = vmatprep.subr.bf16.mxu0 0
  %330 = vmatpush1.bf16.msra.mxu0 0
  %331 = vmatprep.subr.bf16.mxu0 0
  %332 = vmatpush1.bf16.msra.mxu0 0
  %333 = vmatprep.subr.bf16.mxu0 0
  %334 = vmatpush1.bf16.msra.mxu0 0
  %335 = vmatprep.subr.bf16.mxu0 0
  %336 = vmatpush1.bf16.msra.mxu0 0
  %337 = vmatprep.subr.bf16.mxu0 0
  %338 = vmatpush1.bf16.msra.mxu0 0
  %339 = vmatprep.subr.bf16.mxu0 0
  %340 = vmatpush1.bf16.msra.mxu0 0
  %341 = vmatprep.subr.bf16.mxu0 0
  %342 = vmatpush1.bf16.msra.mxu0 0
  %343 = vmatprep.mubr.bf16.mxu0 0
  %344 = vmatmul.mubr.bf16.gmra.mrb[0].mxu0 %v145
  %v345 = vpop.f32.mrb[0].mxu0
  %v346 = vadd.f32 %v306, %v345
  %v347 = vpop.f32.mrb[0].mxu0
  %v348 = vpop.f32.mrb[0].mxu0
  %v349 = vadd.f32 %v306, %v348
  %v350 = vpop.f32.mrb[0].mxu0
  %351 = vmatprep.mubr.bf16.mxu0 0
  %352 = vmatmul.mubr.bf16.gmra.mrb[0].mxu0 %v148
  %v353 = vpop.f32.mrb[0].mxu0
  %v354 = vadd.f32 %v306, %v353
  %v355 = vpop.f32.mrb[0].mxu0
  %v356 = vpop.f32.mrb[0].mxu0
  %v357 = vadd.f32 %v306, %v356
  %v358 = vpop.f32.mrb[0].mxu0
  %359 = vdwg.mxu0
  %s360 = scalar_lea.vmem %s1, 32
  %v361 = vld [vmem:[%s360] sm:$0xf]
  %v362 = vld [vmem:[%s360 + $0x4] sm:$0xf]
  %v363 = vld [vmem:[%s360 + $0x8] sm:$0xf]
  %v364 = vld [vmem:[%s360 + $0xc] sm:$0xf]
  %v365 = vunpack.c.l.bf16 %v361
  %v366 = vunpack.c.l.bf16 %v362
  %v367 = vunpack.c.l.bf16 %v363
  %v368 = vunpack.c.l.bf16 %v364
  %v369 = vmul.f32 %v346, %v365
  %v370 = vmul.f32 %v349, %v366
  %v371 = vmul.f32 %v354, %v367
  %v372 = vmul.f32 %v357, %v368
  %v373 = vadd.f32 %v294, %v369
  %v374 = vadd.f32 %v295, %v370
  %v375 = vadd.f32 %v296, %v371
  %v376 = vadd.f32 %v297, %v372
  %s377 = scalar_lea.vmem %s4, 6
  %v378 = vld [vmem:[%s377] sm:$0x3]
  %s379 = scalar_lea.vmem %s5, 3
  %v380 = vld [vmem:[%s379] sm:$0x1]
  %v382 = vlaneseq
  %v383 = vshrl.u32 %v382, 7
  %v384 = vsub.s32 0, %v383
  %v385 = vrot.slane %v380, %v384
  %v388 = vsel %vm150, %v378, 0
  %390 = vmatprep.subr.bf16.mxu0 0
  %391 = vmatpush1.bf16.msra.mxu0 %v388
  %392 = vmatprep.subr.bf16.mxu0 0
  %393 = vmatpush1.bf16.msra.mxu0 0
  %394 = vmatprep.subr.bf16.mxu0 0
  %395 = vmatpush1.bf16.msra.mxu0 0
  %396 = vmatprep.subr.bf16.mxu0 0
  %397 = vmatpush1.bf16.msra.mxu0 0
  %398 = vmatprep.subr.bf16.mxu0 0
  %399 = vmatpush1.bf16.msra.mxu0 0
  %400 = vmatprep.subr.bf16.mxu0 0
  %401 = vmatpush1.bf16.msra.mxu0 0
  %402 = vmatprep.subr.bf16.mxu0 0
  %403 = vmatpush1.bf16.msra.mxu0 0
  %404 = vmatprep.subr.bf16.mxu0 0
  %405 = vmatpush1.bf16.msra.mxu0 0
  %406 = vmatprep.subr.bf16.mxu0 0
  %407 = vmatpush1.bf16.msra.mxu0 0
  %408 = vmatprep.subr.bf16.mxu0 0
  %409 = vmatpush1.bf16.msra.mxu0 0
  %410 = vmatprep.subr.bf16.mxu0 0
  %411 = vmatpush1.bf16.msra.mxu0 0
  %412 = vmatprep.subr.bf16.mxu0 0
  %413 = vmatpush1.bf16.msra.mxu0 0
  %414 = vmatprep.subr.bf16.mxu0 0
  %415 = vmatpush1.bf16.msra.mxu0 0
  %416 = vmatprep.subr.bf16.mxu0 0
  %417 = vmatpush1.bf16.msra.mxu0 0
  %418 = vmatprep.subr.bf16.mxu0 0
  %419 = vmatpush1.bf16.msra.mxu0 0
  %420 = vmatprep.subr.bf16.mxu0 0
  %421 = vmatpush1.bf16.msra.mxu0 0
  %422 = vmatprep.mubr.bf16.mxu0 0
  %423 = vmatmul.mubr.bf16.gmra.mrb[0].mxu0 %v145
  %v424 = vpop.f32.mrb[0].mxu0
  %v425 = vadd.f32 %v385, %v424
  %v426 = vpop.f32.mrb[0].mxu0
  %v427 = vpop.f32.mrb[0].mxu0
  %v428 = vadd.f32 %v385, %v427
  %v429 = vpop.f32.mrb[0].mxu0
  %430 = vmatprep.mubr.bf16.mxu0 0
  %431 = vmatmul.mubr.bf16.gmra.mrb[0].mxu0 %v148
  %v432 = vpop.f32.mrb[0].mxu0
  %v433 = vadd.f32 %v385, %v432
  %v434 = vpop.f32.mrb[0].mxu0
  %v435 = vpop.f32.mrb[0].mxu0
  %v436 = vadd.f32 %v385, %v435
  %v437 = vpop.f32.mrb[0].mxu0
  %438 = vdwg.mxu0
  %s439 = scalar_lea.vmem %s1, 48
  %v440 = vld [vmem:[%s439] sm:$0xf]
  %v441 = vld [vmem:[%s439 + $0x4] sm:$0xf]
  %v442 = vld [vmem:[%s439 + $0x8] sm:$0xf]
  %v443 = vld [vmem:[%s439 + $0xc] sm:$0xf]
  %v444 = vunpack.c.l.bf16 %v440
  %v445 = vunpack.c.l.bf16 %v441
  %v446 = vunpack.c.l.bf16 %v442
  %v447 = vunpack.c.l.bf16 %v443
  %v448 = vmul.f32 %v425, %v444
  %v449 = vmul.f32 %v428, %v445
  %v450 = vmul.f32 %v433, %v446
  %v451 = vmul.f32 %v436, %v447
  %v452 = vadd.f32 %v373, %v448
  %v453 = vadd.f32 %v374, %v449
  %v454 = vadd.f32 %v375, %v450
  %v455 = vadd.f32 %v376, %v451
  %s456 = scalar_lea.vmem %s4, 8
  %v457 = vld [vmem:[%s456] sm:$0x3]
  %s458 = scalar_lea.vmem %s5, 4
  %v459 = vld [vmem:[%s458] sm:$0x1]
  %v461 = vlaneseq
  %v462 = vshrl.u32 %v461, 7
  %v463 = vsub.s32 0, %v462
  %v464 = vrot.slane %v459, %v463
  %v467 = vsel %vm150, %v457, 0
  %469 = vmatprep.subr.bf16.mxu0 0
  %470 = vmatpush1.bf16.msra.mxu0 %v467
  %471 = vmatprep.subr.bf16.mxu0 0
  %472 = vmatpush1.bf16.msra.mxu0 0
  %473 = vmatprep.subr.bf16.mxu0 0
  %474 = vmatpush1.bf16.msra.mxu0 0
  %475 = vmatprep.subr.bf16.mxu0 0
  %476 = vmatpush1.bf16.msra.mxu0 0
  %477 = vmatprep.subr.bf16.mxu0 0
  %478 = vmatpush1.bf16.msra.mxu0 0
  %479 = vmatprep.subr.bf16.mxu0 0
  %480 = vmatpush1.bf16.msra.mxu0 0
  %481 = vmatprep.subr.bf16.mxu0 0
  %482 = vmatpush1.bf16.msra.mxu0 0
  %483 = vmatprep.subr.bf16.mxu0 0
  %484 = vmatpush1.bf16.msra.mxu0 0
  %485 = vmatprep.subr.bf16.mxu0 0
  %486 = vmatpush1.bf16.msra.mxu0 0
  %487 = vmatprep.subr.bf16.mxu0 0
  %488 = vmatpush1.bf16.msra.mxu0 0
  %489 = vmatprep.subr.bf16.mxu0 0
  %490 = vmatpush1.bf16.msra.mxu0 0
  %491 = vmatprep.subr.bf16.mxu0 0
  %492 = vmatpush1.bf16.msra.mxu0 0
  %493 = vmatprep.subr.bf16.mxu0 0
  %494 = vmatpush1.bf16.msra.mxu0 0
  %495 = vmatprep.subr.bf16.mxu0 0
  %496 = vmatpush1.bf16.msra.mxu0 0
  %497 = vmatprep.subr.bf16.mxu0 0
  %498 = vmatpush1.bf16.msra.mxu0 0
  %499 = vmatprep.subr.bf16.mxu0 0
  %500 = vmatpush1.bf16.msra.mxu0 0
  %501 = vmatprep.mubr.bf16.mxu0 0
  %502 = vmatmul.mubr.bf16.gmra.mrb[0].mxu0 %v145
  %v503 = vpop.f32.mrb[0].mxu0
  %v504 = vadd.f32 %v464, %v503
  %v505 = vpop.f32.mrb[0].mxu0
  %v506 = vpop.f32.mrb[0].mxu0
  %v507 = vadd.f32 %v464, %v506
  %v508 = vpop.f32.mrb[0].mxu0
  %509 = vmatprep.mubr.bf16.mxu0 0
  %510 = vmatmul.mubr.bf16.gmra.mrb[0].mxu0 %v148
  %v511 = vpop.f32.mrb[0].mxu0
  %v512 = vadd.f32 %v464, %v511
  %v513 = vpop.f32.mrb[0].mxu0
  %v514 = vpop.f32.mrb[0].mxu0
  %v515 = vadd.f32 %v464, %v514
  %v516 = vpop.f32.mrb[0].mxu0
  %517 = vdwg.mxu0
  %s518 = scalar_lea.vmem %s1, 64
  %v519 = vld [vmem:[%s518] sm:$0xf]
  %v520 = vld [vmem:[%s518 + $0x4] sm:$0xf]
  %v521 = vld [vmem:[%s518 + $0x8] sm:$0xf]
  %v522 = vld [vmem:[%s518 + $0xc] sm:$0xf]
  %v523 = vunpack.c.l.bf16 %v519
  %v524 = vunpack.c.l.bf16 %v520
  %v525 = vunpack.c.l.bf16 %v521
  %v526 = vunpack.c.l.bf16 %v522
  %v527 = vmul.f32 %v504, %v523
  %v528 = vmul.f32 %v507, %v524
  %v529 = vmul.f32 %v512, %v525
  %v530 = vmul.f32 %v515, %v526
  %v531 = vadd.f32 %v452, %v527
  %v532 = vadd.f32 %v453, %v528
  %v533 = vadd.f32 %v454, %v529
  %v534 = vadd.f32 %v455, %v530
  %s535 = scalar_lea.vmem %s4, 10
  %v536 = vld [vmem:[%s535] sm:$0x3]
  %s537 = scalar_lea.vmem %s5, 5
  %v538 = vld [vmem:[%s537] sm:$0x1]
  %v540 = vlaneseq
  %v541 = vshrl.u32 %v540, 7
  %v542 = vsub.s32 0, %v541
  %v543 = vrot.slane %v538, %v542
  %v546 = vsel %vm150, %v536, 0
  %548 = vmatprep.subr.bf16.mxu0 0
  %549 = vmatpush1.bf16.msra.mxu0 %v546
  %550 = vmatprep.subr.bf16.mxu0 0
  %551 = vmatpush1.bf16.msra.mxu0 0
  %552 = vmatprep.subr.bf16.mxu0 0
  %553 = vmatpush1.bf16.msra.mxu0 0
  %554 = vmatprep.subr.bf16.mxu0 0
  %555 = vmatpush1.bf16.msra.mxu0 0
  %556 = vmatprep.subr.bf16.mxu0 0
  %557 = vmatpush1.bf16.msra.mxu0 0
  %558 = vmatprep.subr.bf16.mxu0 0
  %559 = vmatpush1.bf16.msra.mxu0 0
  %560 = vmatprep.subr.bf16.mxu0 0
  %561 = vmatpush1.bf16.msra.mxu0 0
  %562 = vmatprep.subr.bf16.mxu0 0
  %563 = vmatpush1.bf16.msra.mxu0 0
  %564 = vmatprep.subr.bf16.mxu0 0
  %565 = vmatpush1.bf16.msra.mxu0 0
  %566 = vmatprep.subr.bf16.mxu0 0
  %567 = vmatpush1.bf16.msra.mxu0 0
  %568 = vmatprep.subr.bf16.mxu0 0
  %569 = vmatpush1.bf16.msra.mxu0 0
  %570 = vmatprep.subr.bf16.mxu0 0
  %571 = vmatpush1.bf16.msra.mxu0 0
  %572 = vmatprep.subr.bf16.mxu0 0
  %573 = vmatpush1.bf16.msra.mxu0 0
  %574 = vmatprep.subr.bf16.mxu0 0
  %575 = vmatpush1.bf16.msra.mxu0 0
  %576 = vmatprep.subr.bf16.mxu0 0
  %577 = vmatpush1.bf16.msra.mxu0 0
  %578 = vmatprep.subr.bf16.mxu0 0
  %579 = vmatpush1.bf16.msra.mxu0 0
  %580 = vmatprep.mubr.bf16.mxu0 0
  %581 = vmatmul.mubr.bf16.gmra.mrb[0].mxu0 %v145
  %v582 = vpop.f32.mrb[0].mxu0
  %v583 = vadd.f32 %v543, %v582
  %v584 = vpop.f32.mrb[0].mxu0
  %v585 = vpop.f32.mrb[0].mxu0
  %v586 = vadd.f32 %v543, %v585
  %v587 = vpop.f32.mrb[0].mxu0
  %588 = vmatprep.mubr.bf16.mxu0 0
  %589 = vmatmul.mubr.bf16.gmra.mrb[0].mxu0 %v148
  %v590 = vpop.f32.mrb[0].mxu0
  %v591 = vadd.f32 %v543, %v590
  %v592 = vpop.f32.mrb[0].mxu0
  %v593 = vpop.f32.mrb[0].mxu0
  %v594 = vadd.f32 %v543, %v593
  %v595 = vpop.f32.mrb[0].mxu0
  %596 = vdwg.mxu0
  %s597 = scalar_lea.vmem %s1, 80
  %v598 = vld [vmem:[%s597] sm:$0xf]
  %v599 = vld [vmem:[%s597 + $0x4] sm:$0xf]
  %v600 = vld [vmem:[%s597 + $0x8] sm:$0xf]
  %v601 = vld [vmem:[%s597 + $0xc] sm:$0xf]
  %v602 = vunpack.c.l.bf16 %v598
  %v603 = vunpack.c.l.bf16 %v599
  %v604 = vunpack.c.l.bf16 %v600
  %v605 = vunpack.c.l.bf16 %v601
  %v606 = vmul.f32 %v583, %v602
  %v607 = vmul.f32 %v586, %v603
  %v608 = vmul.f32 %v591, %v604
  %v609 = vmul.f32 %v594, %v605
  %v610 = vadd.f32 %v531, %v606
  %v611 = vadd.f32 %v532, %v607
  %v612 = vadd.f32 %v533, %v608
  %v613 = vadd.f32 %v534, %v609
  %s614 = scalar_lea.vmem %s4, 12
  %v615 = vld [vmem:[%s614] sm:$0x3]
  %s616 = scalar_lea.vmem %s5, 6
  %v617 = vld [vmem:[%s616] sm:$0x1]
  %v619 = vlaneseq
  %v620 = vshrl.u32 %v619, 7
  %v621 = vsub.s32 0, %v620
  %v622 = vrot.slane %v617, %v621
  %v625 = vsel %vm150, %v615, 0
  %627 = vmatprep.subr.bf16.mxu0 0
  %628 = vmatpush1.bf16.msra.mxu0 %v625
  %629 = vmatprep.subr.bf16.mxu0 0
  %630 = vmatpush1.bf16.msra.mxu0 0
  %631 = vmatprep.subr.bf16.mxu0 0
  %632 = vmatpush1.bf16.msra.mxu0 0
  %633 = vmatprep.subr.bf16.mxu0 0
  %634 = vmatpush1.bf16.msra.mxu0 0
  %635 = vmatprep.subr.bf16.mxu0 0
  %636 = vmatpush1.bf16.msra.mxu0 0
  %637 = vmatprep.subr.bf16.mxu0 0
  %638 = vmatpush1.bf16.msra.mxu0 0
  %639 = vmatprep.subr.bf16.mxu0 0
  %640 = vmatpush1.bf16.msra.mxu0 0
  %641 = vmatprep.subr.bf16.mxu0 0
  %642 = vmatpush1.bf16.msra.mxu0 0
  %643 = vmatprep.subr.bf16.mxu0 0
  %644 = vmatpush1.bf16.msra.mxu0 0
  %645 = vmatprep.subr.bf16.mxu0 0
  %646 = vmatpush1.bf16.msra.mxu0 0
  %647 = vmatprep.subr.bf16.mxu0 0
  %648 = vmatpush1.bf16.msra.mxu0 0
  %649 = vmatprep.subr.bf16.mxu0 0
  %650 = vmatpush1.bf16.msra.mxu0 0
  %651 = vmatprep.subr.bf16.mxu0 0
  %652 = vmatpush1.bf16.msra.mxu0 0
  %653 = vmatprep.subr.bf16.mxu0 0
  %654 = vmatpush1.bf16.msra.mxu0 0
  %655 = vmatprep.subr.bf16.mxu0 0
  %656 = vmatpush1.bf16.msra.mxu0 0
  %657 = vmatprep.subr.bf16.mxu0 0
  %658 = vmatpush1.bf16.msra.mxu0 0
  %659 = vmatprep.mubr.bf16.mxu0 0
  %660 = vmatmul.mubr.bf16.gmra.mrb[0].mxu0 %v145
  %v661 = vpop.f32.mrb[0].mxu0
  %v662 = vadd.f32 %v622, %v661
  %v663 = vpop.f32.mrb[0].mxu0
  %v664 = vpop.f32.mrb[0].mxu0
  %v665 = vadd.f32 %v622, %v664
  %v666 = vpop.f32.mrb[0].mxu0
  %667 = vmatprep.mubr.bf16.mxu0 0
  %668 = vmatmul.mubr.bf16.gmra.mrb[0].mxu0 %v148
  %v669 = vpop.f32.mrb[0].mxu0
  %v670 = vadd.f32 %v622, %v669
  %v671 = vpop.f32.mrb[0].mxu0
  %v672 = vpop.f32.mrb[0].mxu0
  %v673 = vadd.f32 %v622, %v672
  %v674 = vpop.f32.mrb[0].mxu0
  %675 = vdwg.mxu0
  %s676 = scalar_lea.vmem %s1, 96
  %v677 = vld [vmem:[%s676] sm:$0xf]
  %v678 = vld [vmem:[%s676 + $0x4] sm:$0xf]
  %v679 = vld [vmem:[%s676 + $0x8] sm:$0xf]
  %v680 = vld [vmem:[%s676 + $0xc] sm:$0xf]
  %v681 = vunpack.c.l.bf16 %v677
  %v682 = vunpack.c.l.bf16 %v678
  %v683 = vunpack.c.l.bf16 %v679
  %v684 = vunpack.c.l.bf16 %v680
  %v685 = vmul.f32 %v662, %v681
  %v686 = vmul.f32 %v665, %v682
  %v687 = vmul.f32 %v670, %v683
  %v688 = vmul.f32 %v673, %v684
  %v689 = vadd.f32 %v610, %v685
  %v690 = vadd.f32 %v611, %v686
  %v691 = vadd.f32 %v612, %v687
  %v692 = vadd.f32 %v613, %v688
  %s693 = scalar_lea.vmem %s4, 14
  %v694 = vld [vmem:[%s693] sm:$0x3]
  %s695 = scalar_lea.vmem %s5, 7
  %v696 = vld [vmem:[%s695] sm:$0x1]
  %v698 = vlaneseq
  %v699 = vshrl.u32 %v698, 7
  %v700 = vsub.s32 0, %v699
  %v701 = vrot.slane %v696, %v700
  %v704 = vsel %vm150, %v694, 0
  %706 = vmatprep.subr.bf16.mxu0 0
  %707 = vmatpush1.bf16.msra.mxu0 %v704
  %708 = vmatprep.subr.bf16.mxu0 0
  %709 = vmatpush1.bf16.msra.mxu0 0
  %710 = vmatprep.subr.bf16.mxu0 0
  %711 = vmatpush1.bf16.msra.mxu0 0
  %712 = vmatprep.subr.bf16.mxu0 0
  %713 = vmatpush1.bf16.msra.mxu0 0
  %714 = vmatprep.subr.bf16.mxu0 0
  %715 = vmatpush1.bf16.msra.mxu0 0
  %716 = vmatprep.subr.bf16.mxu0 0
  %717 = vmatpush1.bf16.msra.mxu0 0
  %718 = vmatprep.subr.bf16.mxu0 0
  %719 = vmatpush1.bf16.msra.mxu0 0
  %720 = vmatprep.subr.bf16.mxu0 0
  %721 = vmatpush1.bf16.msra.mxu0 0
  %722 = vmatprep.subr.bf16.mxu0 0
  %723 = vmatpush1.bf16.msra.mxu0 0
  %724 = vmatprep.subr.bf16.mxu0 0
  %725 = vmatpush1.bf16.msra.mxu0 0
  %726 = vmatprep.subr.bf16.mxu0 0
  %727 = vmatpush1.bf16.msra.mxu0 0
  %728 = vmatprep.subr.bf16.mxu0 0
  %729 = vmatpush1.bf16.msra.mxu0 0
  %730 = vmatprep.subr.bf16.mxu0 0
  %731 = vmatpush1.bf16.msra.mxu0 0
  %732 = vmatprep.subr.bf16.mxu0 0
  %733 = vmatpush1.bf16.msra.mxu0 0
  %734 = vmatprep.subr.bf16.mxu0 0
  %735 = vmatpush1.bf16.msra.mxu0 0
  %736 = vmatprep.subr.bf16.mxu0 0
  %737 = vmatpush1.bf16.msra.mxu0 0
  %738 = vmatprep.mubr.bf16.mxu0 0
  %739 = vmatmul.mubr.bf16.gmra.mrb[0].mxu0 %v145
  %v740 = vpop.f32.mrb[0].mxu0
  %v741 = vadd.f32 %v701, %v740
  %v742 = vpop.f32.mrb[0].mxu0
  %v743 = vpop.f32.mrb[0].mxu0
  %v744 = vadd.f32 %v701, %v743
  %v745 = vpop.f32.mrb[0].mxu0
  %746 = vmatprep.mubr.bf16.mxu0 0
  %747 = vmatmul.mubr.bf16.gmra.mrb[0].mxu0 %v148
  %v748 = vpop.f32.mrb[0].mxu0
  %v749 = vadd.f32 %v701, %v748
  %v750 = vpop.f32.mrb[0].mxu0
  %v751 = vpop.f32.mrb[0].mxu0
  %v752 = vadd.f32 %v701, %v751
  %v753 = vpop.f32.mrb[0].mxu0
  %754 = vdwg.mxu0
  %s755 = scalar_lea.vmem %s1, 112
  %v756 = vld [vmem:[%s755] sm:$0xf]
  %v757 = vld [vmem:[%s755 + $0x4] sm:$0xf]
  %v758 = vld [vmem:[%s755 + $0x8] sm:$0xf]
  %v759 = vld [vmem:[%s755 + $0xc] sm:$0xf]
  %v760 = vunpack.c.l.bf16 %v756
  %v761 = vunpack.c.l.bf16 %v757
  %v762 = vunpack.c.l.bf16 %v758
  %v763 = vunpack.c.l.bf16 %v759
  %v764 = vmul.f32 %v741, %v760
  %v765 = vmul.f32 %v744, %v761
  %v766 = vmul.f32 %v749, %v762
  %v767 = vmul.f32 %v752, %v763
  %v768 = vadd.f32 %v689, %v764
  %v769 = vadd.f32 %v690, %v765
  %v770 = vadd.f32 %v691, %v766
  %v771 = vadd.f32 %v692, %v767
  %s772 = scalar_lea.vmem %s4, 16
  %v773 = vld [vmem:[%s772] sm:$0x3]
  %s774 = scalar_lea.vmem %s5, 8
  %v775 = vld [vmem:[%s774] sm:$0x1]
  %v777 = vlaneseq
  %v778 = vshrl.u32 %v777, 7
  %v779 = vsub.s32 0, %v778
  %v780 = vrot.slane %v775, %v779
  %v783 = vsel %vm150, %v773, 0
  %785 = vmatprep.subr.bf16.mxu0 0
  %786 = vmatpush1.bf16.msra.mxu0 %v783
  %787 = vmatprep.subr.bf16.mxu0 0
  %788 = vmatpush1.bf16.msra.mxu0 0
  %789 = vmatprep.subr.bf16.mxu0 0
  %790 = vmatpush1.bf16.msra.mxu0 0
  %791 = vmatprep.subr.bf16.mxu0 0
  %792 = vmatpush1.bf16.msra.mxu0 0
  %793 = vmatprep.subr.bf16.mxu0 0
  %794 = vmatpush1.bf16.msra.mxu0 0
  %795 = vmatprep.subr.bf16.mxu0 0
  %796 = vmatpush1.bf16.msra.mxu0 0
  %797 = vmatprep.subr.bf16.mxu0 0
  %798 = vmatpush1.bf16.msra.mxu0 0
  %799 = vmatprep.subr.bf16.mxu0 0
  %800 = vmatpush1.bf16.msra.mxu0 0
  %801 = vmatprep.subr.bf16.mxu0 0
  %802 = vmatpush1.bf16.msra.mxu0 0
  %803 = vmatprep.subr.bf16.mxu0 0
  %804 = vmatpush1.bf16.msra.mxu0 0
  %805 = vmatprep.subr.bf16.mxu0 0
  %806 = vmatpush1.bf16.msra.mxu0 0
  %807 = vmatprep.subr.bf16.mxu0 0
  %808 = vmatpush1.bf16.msra.mxu0 0
  %809 = vmatprep.subr.bf16.mxu0 0
  %810 = vmatpush1.bf16.msra.mxu0 0
  %811 = vmatprep.subr.bf16.mxu0 0
  %812 = vmatpush1.bf16.msra.mxu0 0
  %813 = vmatprep.subr.bf16.mxu0 0
  %814 = vmatpush1.bf16.msra.mxu0 0
  %815 = vmatprep.subr.bf16.mxu0 0
  %816 = vmatpush1.bf16.msra.mxu0 0
  %817 = vmatprep.mubr.bf16.mxu0 0
  %818 = vmatmul.mubr.bf16.gmra.mrb[0].mxu0 %v145
  %v819 = vpop.f32.mrb[0].mxu0
  %v820 = vadd.f32 %v780, %v819
  %v821 = vpop.f32.mrb[0].mxu0
  %v822 = vpop.f32.mrb[0].mxu0
  %v823 = vadd.f32 %v780, %v822
  %v824 = vpop.f32.mrb[0].mxu0
  %825 = vmatprep.mubr.bf16.mxu0 0
  %826 = vmatmul.mubr.bf16.gmra.mrb[0].mxu0 %v148
  %v827 = vpop.f32.mrb[0].mxu0
  %v828 = vadd.f32 %v780, %v827
  %v829 = vpop.f32.mrb[0].mxu0
  %v830 = vpop.f32.mrb[0].mxu0
  %v831 = vadd.f32 %v780, %v830
  %v832 = vpop.f32.mrb[0].mxu0
  %833 = vdwg.mxu0
  %s834 = scalar_lea.vmem %s1, 128
  %v835 = vld [vmem:[%s834] sm:$0xf]
  %v836 = vld [vmem:[%s834 + $0x4] sm:$0xf]
  %v837 = vld [vmem:[%s834 + $0x8] sm:$0xf]
  %v838 = vld [vmem:[%s834 + $0xc] sm:$0xf]
  %v839 = vunpack.c.l.bf16 %v835
  %v840 = vunpack.c.l.bf16 %v836
  %v841 = vunpack.c.l.bf16 %v837
  %v842 = vunpack.c.l.bf16 %v838
  %v843 = vmul.f32 %v820, %v839
  %v844 = vmul.f32 %v823, %v840
  %v845 = vmul.f32 %v828, %v841
  %v846 = vmul.f32 %v831, %v842
  %v847 = vadd.f32 %v768, %v843
  %v848 = vadd.f32 %v769, %v844
  %v849 = vadd.f32 %v770, %v845
  %v850 = vadd.f32 %v771, %v846
  %v851 = vpack.c.bf16 %v848, %v847
  %v852 = vpack.c.bf16 %v850, %v849
  %v853 = vld [vmem:[%s6] sm:$0xf]
  %v854 = vld [vmem:[%s6 + $0x4] sm:$0xf]
  %v855 = vld [vmem:[%s7] sm:$0x1]
  %v857 = vlaneseq
  %v858 = vshrl.u32 %v857, 7
  %v859 = vsub.s32 0, %v858
  %v860 = vrot.slane %v855, %v859
  %v864 = vunpack.c.l.b16 %v853
  %v865 = vunpack.c.l.b16 %v854
  %v866 = vpack.c.b16 %v865, %v864
  %vm868 = vcmask 130048
  %v870 = vsel %vm868, %v851, 0
  %v873 = vsel %vm868, %v852, 0
  %875 = vmatprep.subr.bf16.mxu0 0
  %876 = vmatpush1.bf16.msra.mxu0 %v866
  %877 = vmatprep.subr.bf16.mxu0 0
  %878 = vmatpush1.bf16.msra.mxu0 0
  %879 = vmatprep.subr.bf16.mxu0 0
  %880 = vmatpush1.bf16.msra.mxu0 0
  %881 = vmatprep.subr.bf16.mxu0 0
  %882 = vmatpush1.bf16.msra.mxu0 0
  %883 = vmatprep.subr.bf16.mxu0 0
  %884 = vmatpush1.bf16.msra.mxu0 0
  %885 = vmatprep.subr.bf16.mxu0 0
  %886 = vmatpush1.bf16.msra.mxu0 0
  %887 = vmatprep.subr.bf16.mxu0 0
  %888 = vmatpush1.bf16.msra.mxu0 0
  %889 = vmatprep.subr.bf16.mxu0 0
  %890 = vmatpush1.bf16.msra.mxu0 0
  %891 = vmatprep.subr.bf16.mxu0 0
  %892 = vmatpush1.bf16.msra.mxu0 0
  %893 = vmatprep.subr.bf16.mxu0 0
  %894 = vmatpush1.bf16.msra.mxu0 0
  %895 = vmatprep.subr.bf16.mxu0 0
  %896 = vmatpush1.bf16.msra.mxu0 0
  %897 = vmatprep.subr.bf16.mxu0 0
  %898 = vmatpush1.bf16.msra.mxu0 0
  %899 = vmatprep.subr.bf16.mxu0 0
  %900 = vmatpush1.bf16.msra.mxu0 0
  %901 = vmatprep.subr.bf16.mxu0 0
  %902 = vmatpush1.bf16.msra.mxu0 0
  %903 = vmatprep.subr.bf16.mxu0 0
  %904 = vmatpush1.bf16.msra.mxu0 0
  %905 = vmatprep.subr.bf16.mxu0 0
  %906 = vmatpush1.bf16.msra.mxu0 0
  %907 = vmatprep.mubr.bf16.mxu0 0
  %908 = vmatmul.mubr.bf16.gmra.mrb[0].mxu0 %v870
  %v909 = vpop.f32.mrb[0].mxu0
  %v910 = vadd.f32 %v860, %v909
  %v911 = vpop.f32.mrb[0].mxu0
  %v912 = vpop.f32.mrb[0].mxu0
  %v913 = vadd.f32 %v860, %v912
  %v914 = vpop.f32.mrb[0].mxu0
  %915 = vmatprep.mubr.bf16.mxu0 0
  %916 = vmatmul.mubr.bf16.gmra.mrb[0].mxu0 %v873
  %v917 = vpop.f32.mrb[0].mxu0
  %v918 = vadd.f32 %v860, %v917
  %v919 = vpop.f32.mrb[0].mxu0
  %v920 = vpop.f32.mrb[0].mxu0
  %v921 = vadd.f32 %v860, %v920
  %v922 = vpop.f32.mrb[0].mxu0
  %923 = vdwg.mxu0
  %v924 = vmax.f32 %v910, 0.0
  %v925 = vmax.f32 %v913, 0.0
  %v926 = vmax.f32 %v918, 0.0
  %v927 = vmax.f32 %v921, 0.0
  %vm928 = vcmask 261120
  %929 = vst.msk [vmem:[%s9] sm:$0xff] %vm928, %v924
  %930 = vst.msk [vmem:[%s9 + $0x8] sm:$0xff] %vm928, %v925
  %931 = vst.msk [vmem:[%s9 + $0x10] sm:$0xff] %vm928, %v926
  %932 = vst.msk [vmem:[%s9 + $0x18] sm:$0xff] %vm928, %v927
  // Predicated region
  $region34: #{coarse_encoder_fwd.10} parent=0 // pred_check
    _
  $region35: #{coarse_encoder_fwd.10} parent=0 // pred_check_branch
    %934 = sbr.rel (0) target = $region37
  $region36: #{coarse_encoder_fwd.10} parent=0 // pred_region
    _
  $region37: #{coarse_encoder_fwd.10} parent=0 // pred_fallthru
    _
  // Predicated region
  $region38: #{coarse_encoder_fwd.10} parent=0 // pred_check
    _
  $region39: #{coarse_encoder_fwd.10} parent=0 // pred_check_branch
    %936 = sbr.rel (0) target = $region41
  $region40: #{coarse_encoder_fwd.10} parent=0 // pred_region
    _
  $region41: #{coarse_encoder_fwd.10} parent=0 // pred_fallthru
    _
  // Predicated region
  $region42: #{coarse_encoder_fwd.10} parent=0 // pred_check
    _
  $region43: #{coarse_encoder_fwd.10} parent=0 // pred_check_branch
    %938 = sbr.rel (0) target = $region45
  $region44: #{coarse_encoder_fwd.10} parent=0 // pred_region
    _
  $region45: #{coarse_encoder_fwd.10} parent=0 // pred_fallthru
    _
  // Predicated region
  $region46: #{coarse_encoder_fwd.10} parent=0 // pred_check
    _
  $region47: #{coarse_encoder_fwd.10} parent=0 // pred_check_branch
    %940 = sbr.rel (0) target = $region49
  $region48: #{coarse_encoder_fwd.10} parent=0 // pred_region
    _
  $region49: #{coarse_encoder_fwd.10} parent=0 // pred_fallthru
    _

// kernel: coarse_encoder_fwd.9
$region0: #{coarse_encoder_fwd.9}
  #allocation0 [shape = 'u32[]', space=smem, size = 0x4, offset = 0x4, fixed_abs, tag = 'smem constant byte address 0x4 - core index']
  #allocation1 [shape = 'u32[144,128]{1,0:T(1,128)}', space=vmem, size = 0x12000, scoped, tag = 'internal scratch']
  %s0 = inlined_call_operand.vmem [shape: bf16[128,25], index: 0, kind: input, shape index: {}]
  %s1 = inlined_call_operand.vmem [shape: bf16[25,128,3], index: 1, kind: input, shape index: {}]
  %s2 = inlined_call_operand.vmem [shape: bf16[25,2], index: 2, kind: input, shape index: {}]
  %s3 = inlined_call_operand.vmem [shape: f32[1,2], index: 3, kind: input, shape index: {}]
  %s4 = inlined_call_operand.vmem [shape: bf16[25,2,3], index: 4, kind: input, shape index: {}]
  %s5 = inlined_call_operand.vmem [shape: f32[25,1,3], index: 5, kind: input, shape index: {}]
  %s6 = inlined_call_operand.vmem [shape: bf16[3,16], index: 6, kind: input, shape index: {}]
  %s7 = inlined_call_operand.vmem [shape: f32[1,16], index: 7, kind: input, shape index: {}]
  %s8 = inlined_call_operand.vmem [shape: f32[128,2], index: 8, kind: output, shape index: {0}]
  %s9 = inlined_call_operand.vmem [shape: f32[128,16], index: 9, kind: output, shape index: {1}]
  %10 = xla_tuple %s8, %s9
  %s11 = sld [smem:[#allocation0]]
  $region50: #{coarse_encoder_fwd.9} parent=0
    _
  %s13 = ssub.s32 1, %s11
  %s14 = scalar_select 0, %s13, %s11
  // Predicated region
  $region2: #{coarse_encoder_fwd.9} parent=0 // pred_check
    _
  $region3: #{coarse_encoder_fwd.9} parent=0 // pred_check_branch
    %16 = sbr.rel (0) target = $region5
  $region4: #{coarse_encoder_fwd.9} parent=0 // pred_region
    _
  $region5: #{coarse_encoder_fwd.9} parent=0 // pred_fallthru
    _
  // Predicated region
  $region6: #{coarse_encoder_fwd.9} parent=0 // pred_check
    _
  $region7: #{coarse_encoder_fwd.9} parent=0 // pred_check_branch
    %18 = sbr.rel (0) target = $region9
  $region8: #{coarse_encoder_fwd.9} parent=0 // pred_region
    _
  $region9: #{coarse_encoder_fwd.9} parent=0 // pred_fallthru
    _
  // Predicated region
  $region10: #{coarse_encoder_fwd.9} parent=0 // pred_check
    _
  $region11: #{coarse_encoder_fwd.9} parent=0 // pred_check_branch
    %20 = sbr.rel (0) target = $region13
  $region12: #{coarse_encoder_fwd.9} parent=0 // pred_region
    _
  $region13: #{coarse_encoder_fwd.9} parent=0 // pred_fallthru
    _
  // Predicated region
  $region14: #{coarse_encoder_fwd.9} parent=0 // pred_check
    _
  $region15: #{coarse_encoder_fwd.9} parent=0 // pred_check_branch
    %22 = sbr.rel (0) target = $region17
  $region16: #{coarse_encoder_fwd.9} parent=0 // pred_region
    _
  $region17: #{coarse_encoder_fwd.9} parent=0 // pred_fallthru
    _
  // Predicated region
  $region18: #{coarse_encoder_fwd.9} parent=0 // pred_check
    _
  $region19: #{coarse_encoder_fwd.9} parent=0 // pred_check_branch
    %24 = sbr.rel (0) target = $region21
  $region20: #{coarse_encoder_fwd.9} parent=0 // pred_region
    _
  $region21: #{coarse_encoder_fwd.9} parent=0 // pred_fallthru
    _
  // Predicated region
  $region22: #{coarse_encoder_fwd.9} parent=0 // pred_check
    _
  $region23: #{coarse_encoder_fwd.9} parent=0 // pred_check_branch
    %26 = sbr.rel (0) target = $region25
  $region24: #{coarse_encoder_fwd.9} parent=0 // pred_region
    _
  $region25: #{coarse_encoder_fwd.9} parent=0 // pred_fallthru
    _
  // Predicated region
  $region26: #{coarse_encoder_fwd.9} parent=0 // pred_check
    _
  $region27: #{coarse_encoder_fwd.9} parent=0 // pred_check_branch
    %28 = sbr.rel (0) target = $region29
  $region28: #{coarse_encoder_fwd.9} parent=0 // pred_region
    _
  $region29: #{coarse_encoder_fwd.9} parent=0 // pred_fallthru
    _
  // Predicated region
  $region30: #{coarse_encoder_fwd.9} parent=0 // pred_check
    _
  $region31: #{coarse_encoder_fwd.9} parent=0 // pred_check_branch
    %30 = sbr.rel (0) target = $region33
  $region32: #{coarse_encoder_fwd.9} parent=0 // pred_region
    _
  $region33: #{coarse_encoder_fwd.9} parent=0 // pred_fallthru
    _
  %v32 = vld [vmem:[%s0] sm:$0xf]
  %v33 = vld [vmem:[%s0 + $0x4] sm:$0xf]
  %v34 = vld [vmem:[%s0 + $0x8] sm:$0xf]
  %v35 = vld [vmem:[%s0 + $0xc] sm:$0xf]
  %v36 = vld [vmem:[%s0 + $0x10] sm:$0xf]
  %v37 = vld [vmem:[%s0 + $0x14] sm:$0xf]
  %v38 = vld [vmem:[%s0 + $0x18] sm:$0xf]
  %v39 = vld [vmem:[%s0 + $0x1c] sm:$0xf]
  %v40 = vld [vmem:[%s0 + $0x20] sm:$0xf]
  %v41 = vld [vmem:[%s0 + $0x24] sm:$0xf]
  %v42 = vld [vmem:[%s0 + $0x28] sm:$0xf]
  %v43 = vld [vmem:[%s0 + $0x2c] sm:$0xf]
  %v44 = vld [vmem:[%s0 + $0x30] sm:$0xf]
  %v45 = vld [vmem:[%s0 + $0x34] sm:$0xf]
  %v46 = vld [vmem:[%s0 + $0x38] sm:$0xf]
  %v47 = vld [vmem:[%s0 + $0x3c] sm:$0xf]
  %v48 = vld [vmem:[%s2] sm:$0xf]
  %v49 = vld [vmem:[%s2 + $0x4] sm:$0xf]
  %v50 = vld [vmem:[%s2 + $0x8] sm:$0xf]
  %v51 = vld [vmem:[%s2 + $0xc] sm:$0x1]
  %v52 = vld [vmem:[%s3] sm:$0x1]
  %v54 = vlaneseq
  %v55 = vshrl.u32 %v54, 7
  %v56 = vsub.s32 0, %v55
  %v57 = vrot.slane %v52, %v56
  %v75 = vunpack.c.l.b16 %v32
  %v76 = vunpack.c.l.b16 %v33
  %v77 = vunpack.c.l.b16 %v34
  %v78 = vunpack.c.l.b16 %v35
  %v79 = vunpack.c.l.b16 %v36
  %v80 = vunpack.c.l.b16 %v37
  %v81 = vunpack.c.l.b16 %v38
  %v82 = vunpack.c.l.b16 %v39
  %v83 = vunpack.c.l.b16 %v40
  %v84 = vunpack.c.l.b16 %v41
  %v85 = vunpack.c.l.b16 %v42
  %v86 = vunpack.c.l.b16 %v43
  %v87 = vunpack.c.l.b16 %v44
  %v88 = vunpack.c.l.b16 %v45
  %v89 = vunpack.c.l.b16 %v46
  %v90 = vunpack.c.l.b16 %v47
  %v91 = vpack.c.b16 %v76, %v75
  %v92 = vpack.c.b16 %v78, %v77
  %v93 = vpack.c.b16 %v80, %v79
  %v94 = vpack.c.b16 %v82, %v81
  %v95 = vpack.c.b16 %v84, %v83
  %v96 = vpack.c.b16 %v86, %v85
  %v97 = vpack.c.b16 %v88, %v87
  %v98 = vpack.c.b16 %v90, %v89
  %v103 = vunpack.c.l.b16 %v48
  %v104 = vunpack.c.l.b16 %v49
  %v105 = vunpack.c.l.b16 %v50
  %v106 = vunpack.c.l.b16 %v51
  %v107 = vpack.c.b16 %v104, %v103
  %v108 = vpack.c.b16 %v106, %v105
  %vm110 = vcmask 203776
  %v112 = vsel %vm110, %v91, 0
  %v115 = vsel %vm110, %v92, 0
  %v118 = vsel %vm110, %v93, 0
  %v121 = vsel %vm110, %v94, 0
  %v124 = vsel %vm110, %v95, 0
  %v127 = vsel %vm110, %v96, 0
  %v130 = vsel %vm110, %v97, 0
  %v133 = vsel %vm110, %v98, 0
  %vm135 = vcmask 1043456
  %vm136 = vcmask 1044480
  %v137 = vsel %vm135, 4294967295, 65535
  %v138 = vsel %vm136, %v137, 0
  %v140 = vand.u32 %v108, %v138
  %142 = vmatprep.subr.bf16.mxu0 0
  %143 = vmatpush1.bf16.msra.mxu0 %v107
  %144 = vmatprep.subr.bf16.mxu0 0
  %145 = vmatpush1.bf16.msra.mxu0 %v140
  %146 = vmatprep.subr.bf16.mxu0 0
  %147 = vmatpush1.bf16.msra.mxu0 0
  %148 = vmatprep.subr.bf16.mxu0 0
  %149 = vmatpush1.bf16.msra.mxu0 0
  %150 = vmatprep.subr.bf16.mxu0 0
  %151 = vmatpush1.bf16.msra.mxu0 0
  %152 = vmatprep.subr.bf16.mxu0 0
  %153 = vmatpush1.bf16.msra.mxu0 0
  %154 = vmatprep.subr.bf16.mxu0 0
  %155 = vmatpush1.bf16.msra.mxu0 0
  %156 = vmatprep.subr.bf16.mxu0 0
  %157 = vmatpush1.bf16.msra.mxu0 0
  %158 = vmatprep.subr.bf16.mxu0 0
  %159 = vmatpush1.bf16.msra.mxu0 0
  %160 = vmatprep.subr.bf16.mxu0 0
  %161 = vmatpush1.bf16.msra.mxu0 0
  %162 = vmatprep.subr.bf16.mxu0 0
  %163 = vmatpush1.bf16.msra.mxu0 0
  %164 = vmatprep.subr.bf16.mxu0 0
  %165 = vmatpush1.bf16.msra.mxu0 0
  %166 = vmatprep.subr.bf16.mxu0 0
  %167 = vmatpush1.bf16.msra.mxu0 0
  %168 = vmatprep.subr.bf16.mxu0 0
  %169 = vmatpush1.bf16.msra.mxu0 0
  %170 = vmatprep.subr.bf16.mxu0 0
  %171 = vmatpush1.bf16.msra.mxu0 0
  %172 = vmatprep.subr.bf16.mxu0 0
  %173 = vmatpush1.bf16.msra.mxu0 0
  %174 = vmatprep.mubr.bf16.mxu0 0
  %175 = vmatmul.mubr.bf16.gmra.mrb[0].mxu0 %v112
  %v176 = vpop.f32.mrb[0].mxu0
  %v177 = vadd.f32 %v57, %v176
  %v178 = vpop.f32.mrb[0].mxu0
  %v179 = vpop.f32.mrb[0].mxu0
  %v180 = vadd.f32 %v57, %v179
  %v181 = vpop.f32.mrb[0].mxu0
  %182 = vmatprep.mubr.bf16.mxu0 0
  %183 = vmatmul.mubr.bf16.gmra.mrb[0].mxu0 %v115
  %v184 = vpop.f32.mrb[0].mxu0
  %v185 = vadd.f32 %v57, %v184
  %v186 = vpop.f32.mrb[0].mxu0
  %v187 = vpop.f32.mrb[0].mxu0
  %v188 = vadd.f32 %v57, %v187
  %v189 = vpop.f32.mrb[0].mxu0
  %190 = vmatprep.mubr.bf16.mxu0 0
  %191 = vmatmul.mubr.bf16.gmra.mrb[0].mxu0 %v118
  %v192 = vpop.f32.mrb[0].mxu0
  %v193 = vadd.f32 %v57, %v192
  %v194 = vpop.f32.mrb[0].mxu0
  %v195 = vpop.f32.mrb[0].mxu0
  %v196 = vadd.f32 %v57, %v195
  %v197 = vpop.f32.mrb[0].mxu0
  %198 = vmatprep.mubr.bf16.mxu0 0
  %199 = vmatmul.mubr.bf16.gmra.mrb[0].mxu0 %v121
  %v200 = vpop.f32.mrb[0].mxu0
  %v201 = vadd.f32 %v57, %v200
  %v202 = vpop.f32.mrb[0].mxu0
  %v203 = vpop.f32.mrb[0].mxu0
  %v204 = vadd.f32 %v57, %v203
  %v205 = vpop.f32.mrb[0].mxu0
  %206 = vmatprep.mubr.bf16.mxu0 0
  %207 = vmatmul.mubr.bf16.gmra.mrb[0].mxu0 %v124
  %v208 = vpop.f32.mrb[0].mxu0
  %v209 = vadd.f32 %v57, %v208
  %v210 = vpop.f32.mrb[0].mxu0
  %v211 = vpop.f32.mrb[0].mxu0
  %v212 = vadd.f32 %v57, %v211
  %v213 = vpop.f32.mrb[0].mxu0
  %214 = vmatprep.mubr.bf16.mxu0 0
  %215 = vmatmul.mubr.bf16.gmra.mrb[0].mxu0 %v127
  %v216 = vpop.f32.mrb[0].mxu0
  %v217 = vadd.f32 %v57, %v216
  %v218 = vpop.f32.mrb[0].mxu0
  %v219 = vpop.f32.mrb[0].mxu0
  %v220 = vadd.f32 %v57, %v219
  %v221 = vpop.f32.mrb[0].mxu0
  %222 = vmatprep.mubr.bf16.mxu0 0
  %223 = vmatmul.mubr.bf16.gmra.mrb[0].mxu0 %v130
  %v224 = vpop.f32.mrb[0].mxu0
  %v225 = vadd.f32 %v57, %v224
  %v226 = vpop.f32.mrb[0].mxu0
  %v227 = vpop.f32.mrb[0].mxu0
  %v228 = vadd.f32 %v57, %v227
  %v229 = vpop.f32.mrb[0].mxu0
  %230 = vmatprep.mubr.bf16.mxu0 0
  %231 = vmatmul.mubr.bf16.gmra.mrb[0].mxu0 %v133
  %v232 = vpop.f32.mrb[0].mxu0
  %v233 = vadd.f32 %v57, %v232
  %v234 = vpop.f32.mrb[0].mxu0
  %v235 = vpop.f32.mrb[0].mxu0
  %v236 = vadd.f32 %v57, %v235
  %v237 = vpop.f32.mrb[0].mxu0
  %238 = vdwg.mxu0
  %v239 = vmax.f32 %v177, 0.0
  %v240 = vmax.f32 %v180, 0.0
  %v241 = vmax.f32 %v185, 0.0
  %v242 = vmax.f32 %v188, 0.0
  %v243 = vmax.f32 %v193, 0.0
  %v244 = vmax.f32 %v196, 0.0
  %v245 = vmax.f32 %v201, 0.0
  %v246 = vmax.f32 %v204, 0.0
  %v247 = vmax.f32 %v209, 0.0
  %v248 = vmax.f32 %v212, 0.0
  %v249 = vmax.f32 %v217, 0.0
  %v250 = vmax.f32 %v220, 0.0
  %v251 = vmax.f32 %v225, 0.0
  %v252 = vmax.f32 %v228, 0.0
  %v253 = vmax.f32 %v233, 0.0
  %v254 = vmax.f32 %v236, 0.0
  %vm255 = vcmask 15360
  %256 = vst.msk [vmem:[%s8] sm:$0xff] %vm255, %v239
  %257 = vst.msk [vmem:[%s8 + $0x8] sm:$0xff] %vm255, %v240
  %258 = vst.msk [vmem:[%s8 + $0x10] sm:$0xff] %vm255, %v241
  %259 = vst.msk [vmem:[%s8 + $0x18] sm:$0xff] %vm255, %v242
  %260 = vst.msk [vmem:[%s8 + $0x20] sm:$0xff] %vm255, %v243
  %261 = vst.msk [vmem:[%s8 + $0x28] sm:$0xff] %vm255, %v244
  %262 = vst.msk [vmem:[%s8 + $0x30] sm:$0xff] %vm255, %v245
  %263 = vst.msk [vmem:[%s8 + $0x38] sm:$0xff] %vm255, %v246
  %264 = vst.msk [vmem:[%s8 + $0x40] sm:$0xff] %vm255, %v247
  %265 = vst.msk [vmem:[%s8 + $0x48] sm:$0xff] %vm255, %v248
  %266 = vst.msk [vmem:[%s8 + $0x50] sm:$0xff] %vm255, %v249
  %267 = vst.msk [vmem:[%s8 + $0x58] sm:$0xff] %vm255, %v250
  %268 = vst.msk [vmem:[%s8 + $0x60] sm:$0xff] %vm255, %v251
  %269 = vst.msk [vmem:[%s8 + $0x68] sm:$0xff] %vm255, %v252
  %270 = vst.msk [vmem:[%s8 + $0x70] sm:$0xff] %vm255, %v253
  %271 = vst.msk [vmem:[%s8 + $0x78] sm:$0xff] %vm255, %v254
  %v272 = vpack.c.bf16 %v240, %v239
  %v273 = vpack.c.bf16 %v242, %v241
  %v274 = vpack.c.bf16 %v244, %v243
  %v275 = vpack.c.bf16 %v246, %v245
  %v276 = vpack.c.bf16 %v248, %v247
  %v277 = vpack.c.bf16 %v250, %v249
  %v278 = vpack.c.bf16 %v252, %v251
  %v279 = vpack.c.bf16 %v254, %v253
  %v280 = vld [vmem:[%s4] sm:$0x1]
  %v281 = vld [vmem:[%s5] sm:$0x1]
  %v283 = vlaneseq
  %v284 = vshrl.u32 %v283, 7
  %v285 = vsub.s32 0, %v284
  %v286 = vrot.slane %v281, %v285
  %v289 = vsel %vm255, %v272, 0
  %v292 = vsel %vm255, %v273, 0
  %v295 = vsel %vm255, %v274, 0
  %v298 = vsel %vm255, %v275, 0
  %v301 = vsel %vm255, %v276, 0
  %v304 = vsel %vm255, %v277, 0
  %v307 = vsel %vm255, %v278, 0
  %v310 = vsel %vm255, %v279, 0
  %vm312 = vcmask 1040384
  %v314 = vsel %vm312, %v280, 0
  %316 = vmatprep.subr.bf16.mxu0 0
  %317 = vmatpush1.bf16.msra.mxu0 %v314
  %318 = vmatprep.subr.bf16.mxu0 0
  %319 = vmatpush1.bf16.msra.mxu0 0
  %320 = vmatprep.subr.bf16.mxu0 0
  %321 = vmatpush1.bf16.msra.mxu0 0
  %322 = vmatprep.subr.bf16.mxu0 0
  %323 = vmatpush1.bf16.msra.mxu0 0
  %324 = vmatprep.subr.bf16.mxu0 0
  %325 = vmatpush1.bf16.msra.mxu0 0
  %326 = vmatprep.subr.bf16.mxu0 0
  %327 = vmatpush1.bf16.msra.mxu0 0
  %328 = vmatprep.subr.bf16.mxu0 0
  %329 = vmatpush1.bf16.msra.mxu0 0
  %330 = vmatprep.subr.bf16.mxu0 0
  %331 = vmatpush1.bf16.msra.mxu0 0
  %332 = vmatprep.subr.bf16.mxu0 0
  %333 = vmatpush1.bf16.msra.mxu0 0
  %334 = vmatprep.subr.bf16.mxu0 0
  %335 = vmatpush1.bf16.msra.mxu0 0
  %336 = vmatprep.subr.bf16.mxu0 0
  %337 = vmatpush1.bf16.msra.mxu0 0
  %338 = vmatprep.subr.bf16.mxu0 0
  %339 = vmatpush1.bf16.msra.mxu0 0
  %340 = vmatprep.subr.bf16.mxu0 0
  %341 = vmatpush1.bf16.msra.mxu0 0
  %342 = vmatprep.subr.bf16.mxu0 0
  %343 = vmatpush1.bf16.msra.mxu0 0
  %344 = vmatprep.subr.bf16.mxu0 0
  %345 = vmatpush1.bf16.msra.mxu0 0
  %346 = vmatprep.subr.bf16.mxu0 0
  %347 = vmatpush1.bf16.msra.mxu0 0
  %348 = vmatprep.mubr.bf16.mxu0 0
  %349 = vmatmul.mubr.bf16.gmra.mrb[0].mxu0 %v289
  %v350 = vpop.f32.mrb[0].mxu0
  %v351 = vadd.f32 %v286, %v350
  %v352 = vpop.f32.mrb[0].mxu0
  %v353 = vpop.f32.mrb[0].mxu0
  %v354 = vadd.f32 %v286, %v353
  %v355 = vpop.f32.mrb[0].mxu0
  %356 = vmatprep.mubr.bf16.mxu0 0
  %357 = vmatmul.mubr.bf16.gmra.mrb[0].mxu0 %v292
  %v358 = vpop.f32.mrb[0].mxu0
  %v359 = vadd.f32 %v286, %v358
  %v360 = vpop.f32.mrb[0].mxu0
  %v361 = vpop.f32.mrb[0].mxu0
  %v362 = vadd.f32 %v286, %v361
  %v363 = vpop.f32.mrb[0].mxu0
  %364 = vmatprep.mubr.bf16.mxu0 0
  %365 = vmatmul.mubr.bf16.gmra.mrb[0].mxu0 %v295
  %v366 = vpop.f32.mrb[0].mxu0
  %v367 = vadd.f32 %v286, %v366
  %v368 = vpop.f32.mrb[0].mxu0
  %v369 = vpop.f32.mrb[0].mxu0
  %v370 = vadd.f32 %v286, %v369
  %v371 = vpop.f32.mrb[0].mxu0
  %372 = vmatprep.mubr.bf16.mxu0 0
  %373 = vmatmul.mubr.bf16.gmra.mrb[0].mxu0 %v298
  %v374 = vpop.f32.mrb[0].mxu0
  %v375 = vadd.f32 %v286, %v374
  %v376 = vpop.f32.mrb[0].mxu0
  %v377 = vpop.f32.mrb[0].mxu0
  %v378 = vadd.f32 %v286, %v377
  %v379 = vpop.f32.mrb[0].mxu0
  %380 = vmatprep.mubr.bf16.mxu0 0
  %381 = vmatmul.mubr.bf16.gmra.mrb[0].mxu0 %v301
  %v382 = vpop.f32.mrb[0].mxu0
  %v383 = vadd.f32 %v286, %v382
  %v384 = vpop.f32.mrb[0].mxu0
  %v385 = vpop.f32.mrb[0].mxu0
  %v386 = vadd.f32 %v286, %v385
  %v387 = vpop.f32.mrb[0].mxu0
  %388 = vmatprep.mubr.bf16.mxu0 0
  %389 = vmatmul.mubr.bf16.gmra.mrb[0].mxu0 %v304
  %v390 = vpop.f32.mrb[0].mxu0
  %v391 = vadd.f32 %v286, %v390
  %v392 = vpop.f32.mrb[0].mxu0
  %v393 = vpop.f32.mrb[0].mxu0
  %v394 = vadd.f32 %v286, %v393
  %v395 = vpop.f32.mrb[0].mxu0
  %396 = vmatprep.mubr.bf16.mxu0 0
  %397 = vmatmul.mubr.bf16.gmra.mrb[0].mxu0 %v307
  %v398 = vpop.f32.mrb[0].mxu0
  %v399 = vadd.f32 %v286, %v398
  %v400 = vpop.f32.mrb[0].mxu0
  %v401 = vpop.f32.mrb[0].mxu0
  %v402 = vadd.f32 %v286, %v401
  %v403 = vpop.f32.mrb[0].mxu0
  %404 = vmatprep.mubr.bf16.mxu0 0
  %405 = vmatmul.mubr.bf16.gmra.mrb[0].mxu0 %v310
  %v406 = vpop.f32.mrb[0].mxu0
  %v407 = vadd.f32 %v286, %v406
  %v408 = vpop.f32.mrb[0].mxu0
  %v409 = vpop.f32.mrb[0].mxu0
  %v410 = vadd.f32 %v286, %v409
  %v411 = vpop.f32.mrb[0].mxu0
  %412 = vdwg.mxu0
  %v413 = vld [vmem:[%s1] sm:$0xf]
  %v414 = vld [vmem:[%s1 + $0x4] sm:$0xf]
  %v415 = vld [vmem:[%s1 + $0x8] sm:$0xf]
  %v416 = vld [vmem:[%s1 + $0xc] sm:$0xf]
  %v417 = vld [vmem:[%s1 + $0x10] sm:$0xf]
  %v418 = vld [vmem:[%s1 + $0x14] sm:$0xf]
  %v419 = vld [vmem:[%s1 + $0x18] sm:$0xf]
  %v420 = vld [vmem:[%s1 + $0x1c] sm:$0xf]
  %v421 = vld [vmem:[%s1 + $0x20] sm:$0xf]
  %v422 = vld [vmem:[%s1 + $0x24] sm:$0xf]
  %v423 = vld [vmem:[%s1 + $0x28] sm:$0xf]
  %v424 = vld [vmem:[%s1 + $0x2c] sm:$0xf]
  %v425 = vld [vmem:[%s1 + $0x30] sm:$0xf]
  %v426 = vld [vmem:[%s1 + $0x34] sm:$0xf]
  %v427 = vld [vmem:[%s1 + $0x38] sm:$0xf]
  %v428 = vld [vmem:[%s1 + $0x3c] sm:$0xf]
  %v429 = vunpack.c.l.bf16 %v413
  %v430 = vunpack.c.l.bf16 %v414
  %v431 = vunpack.c.l.bf16 %v415
  %v432 = vunpack.c.l.bf16 %v416
  %v433 = vunpack.c.l.bf16 %v417
  %v434 = vunpack.c.l.bf16 %v418
  %v435 = vunpack.c.l.bf16 %v419
  %v436 = vunpack.c.l.bf16 %v420
  %v437 = vunpack.c.l.bf16 %v421
  %v438 = vunpack.c.l.bf16 %v422
  %v439 = vunpack.c.l.bf16 %v423
  %v440 = vunpack.c.l.bf16 %v424
  %v441 = vunpack.c.l.bf16 %v425
  %v442 = vunpack.c.l.bf16 %v426
  %v443 = vunpack.c.l.bf16 %v427
  %v444 = vunpack.c.l.bf16 %v428
  %v445 = vmul.f32 %v351, %v429
  %v446 = vmul.f32 %v354, %v430
  %v447 = vmul.f32 %v359, %v431
  %v448 = vmul.f32 %v362, %v432
  %v449 = vmul.f32 %v367, %v433
  %v450 = vmul.f32 %v370, %v434
  %v451 = vmul.f32 %v375, %v435
  %v452 = vmul.f32 %v378, %v436
  %v453 = vmul.f32 %v383, %v437
  %v454 = vmul.f32 %v386, %v438
  %v455 = vmul.f32 %v391, %v439
  %v456 = vmul.f32 %v394, %v440
  %v457 = vmul.f32 %v399, %v441
  %v458 = vmul.f32 %v402, %v442
  %v459 = vmul.f32 %v407, %v443
  %v460 = vmul.f32 %v410, %v444
  %v461 = vadd.f32 %v445, 0.0
  %v462 = vadd.f32 %v446, 0.0
  %v463 = vadd.f32 %v447, 0.0
  %v464 = vadd.f32 %v448, 0.0
  %v465 = vadd.f32 %v449, 0.0
  %v466 = vadd.f32 %v450, 0.0
  %v467 = vadd.f32 %v451, 0.0
  %v468 = vadd.f32 %v452, 0.0
  %v469 = vadd.f32 %v453, 0.0
  %v470 = vadd.f32 %v454, 0.0
  %v471 = vadd.f32 %v455, 0.0
  %v472 = vadd.f32 %v456, 0.0
  %v473 = vadd.f32 %v457, 0.0
  %v474 = vadd.f32 %v458, 0.0
  %v475 = vadd.f32 %v459, 0.0
  %v476 = vadd.f32 %v460, 0.0
  %s477 = scalar_lea.vmem %s4, 1
  %v478 = vld [vmem:[%s477] sm:$0x1]
  %s479 = scalar_lea.vmem %s5, 1
  %v480 = vld [vmem:[%s479] sm:$0x1]
  %v482 = vlaneseq
  %v483 = vshrl.u32 %v482, 7
  %v484 = vsub.s32 0, %v483
  %v485 = vrot.slane %v480, %v484
  %v488 = vsel %vm312, %v478, 0
  %490 = vmatprep.subr.bf16.mxu0 0
  %491 = vmatpush1.bf16.msra.mxu0 %v488
  %492 = vmatprep.subr.bf16.mxu0 0
  %493 = vmatpush1.bf16.msra.mxu0 0
  %494 = vmatprep.subr.bf16.mxu0 0
  %495 = vmatpush1.bf16.msra.mxu0 0
  %496 = vmatprep.subr.bf16.mxu0 0
  %497 = vmatpush1.bf16.msra.mxu0 0
  %498 = vmatprep.subr.bf16.mxu0 0
  %499 = vmatpush1.bf16.msra.mxu0 0
  %500 = vmatprep.subr.bf16.mxu0 0
  %501 = vmatpush1.bf16.msra.mxu0 0
  %502 = vmatprep.subr.bf16.mxu0 0
  %503 = vmatpush1.bf16.msra.mxu0 0
  %504 = vmatprep.subr.bf16.mxu0 0
  %505 = vmatpush1.bf16.msra.mxu0 0
  %506 = vmatprep.subr.bf16.mxu0 0
  %507 = vmatpush1.bf16.msra.mxu0 0
  %508 = vmatprep.subr.bf16.mxu0 0
  %509 = vmatpush1.bf16.msra.mxu0 0
  %510 = vmatprep.subr.bf16.mxu0 0
  %511 = vmatpush1.bf16.msra.mxu0 0
  %512 = vmatprep.subr.bf16.mxu0 0
  %513 = vmatpush1.bf16.msra.mxu0 0
  %514 = vmatprep.subr.bf16.mxu0 0
  %515 = vmatpush1.bf16.msra.mxu0 0
  %516 = vmatprep.subr.bf16.mxu0 0
  %517 = vmatpush1.bf16.msra.mxu0 0
  %518 = vmatprep.subr.bf16.mxu0 0
  %519 = vmatpush1.bf16.msra.mxu0 0
  %520 = vmatprep.subr.bf16.mxu0 0
  %521 = vmatpush1.bf16.msra.mxu0 0
  %522 = vmatprep.mubr.bf16.mxu0 0
  %523 = vmatmul.mubr.bf16.gmra.mrb[0].mxu0 %v289
  %v524 = vpop.f32.mrb[0].mxu0
  %v525 = vadd.f32 %v485, %v524
  %v526 = vpop.f32.mrb[0].mxu0
  %v527 = vpop.f32.mrb[0].mxu0
  %v528 = vadd.f32 %v485, %v527
  %v529 = vpop.f32.mrb[0].mxu0
  %530 = vmatprep.mubr.bf16.mxu0 0
  %531 = vmatmul.mubr.bf16.gmra.mrb[0].mxu0 %v292
  %v532 = vpop.f32.mrb[0].mxu0
  %v533 = vadd.f32 %v485, %v532
  %v534 = vpop.f32.mrb[0].mxu0
  %v535 = vpop.f32.mrb[0].mxu0
  %v536 = vadd.f32 %v485, %v535
  %v537 = vpop.f32.mrb[0].mxu0
  %538 = vmatprep.mubr.bf16.mxu0 0
  %539 = vmatmul.mubr.bf16.gmra.mrb[0].mxu0 %v295
  %v540 = vpop.f32.mrb[0].mxu0
  %v541 = vadd.f32 %v485, %v540
  %v542 = vpop.f32.mrb[0].mxu0
  %v543 = vpop.f32.mrb[0].mxu0
  %v544 = vadd.f32 %v485, %v543
  %v545 = vpop.f32.mrb[0].mxu0
  %546 = vmatprep.mubr.bf16.mxu0 0
  %547 = vmatmul.mubr.bf16.gmra.mrb[0].mxu0 %v298
  %v548 = vpop.f32.mrb[0].mxu0
  %v549 = vadd.f32 %v485, %v548
  %v550 = vpop.f32.mrb[0].mxu0
  %v551 = vpop.f32.mrb[0].mxu0
  %v552 = vadd.f32 %v485, %v551
  %v553 = vpop.f32.mrb[0].mxu0
  %554 = vmatprep.mubr.bf16.mxu0 0
  %555 = vmatmul.mubr.bf16.gmra.mrb[0].mxu0 %v301
  %v556 = vpop.f32.mrb[0].mxu0
  %v557 = vadd.f32 %v485, %v556
  %v558 = vpop.f32.mrb[0].mxu0
  %v559 = vpop.f32.mrb[0].mxu0
  %v560 = vadd.f32 %v485, %v559
  %v561 = vpop.f32.mrb[0].mxu0
  %562 = vmatprep.mubr.bf16.mxu0 0
  %563 = vmatmul.mubr.bf16.gmra.mrb[0].mxu0 %v304
  %v564 = vpop.f32.mrb[0].mxu0
  %v565 = vadd.f32 %v485, %v564
  %v566 = vpop.f32.mrb[0].mxu0
  %v567 = vpop.f32.mrb[0].mxu0
  %v568 = vadd.f32 %v485, %v567
  %v569 = vpop.f32.mrb[0].mxu0
  %570 = vmatprep.mubr.bf16.mxu0 0
  %571 = vmatmul.mubr.bf16.gmra.mrb[0].mxu0 %v307
  %v572 = vpop.f32.mrb[0].mxu0
  %v573 = vadd.f32 %v485, %v572
  %v574 = vpop.f32.mrb[0].mxu0
  %v575 = vpop.f32.mrb[0].mxu0
  %v576 = vadd.f32 %v485, %v575
  %v577 = vpop.f32.mrb[0].mxu0
  %578 = vmatprep.mubr.bf16.mxu0 0
  %579 = vmatmul.mubr.bf16.gmra.mrb[0].mxu0 %v310
  %v580 = vpop.f32.mrb[0].mxu0
  %v581 = vadd.f32 %v485, %v580
  %v582 = vpop.f32.mrb[0].mxu0
  %v583 = vpop.f32.mrb[0].mxu0
  %v584 = vadd.f32 %v485, %v583
  %v585 = vpop.f32.mrb[0].mxu0
  %586 = vdwg.mxu0
  %s587 = scalar_lea.vmem %s1, 64
  %v588 = vld [vmem:[%s587] sm:$0xf]
  %v589 = vld [vmem:[%s587 + $0x4] sm:$0xf]
  %v590 = vld [vmem:[%s587 + $0x8] sm:$0xf]
  %v591 = vld [vmem:[%s587 + $0xc] sm:$0xf]
  %v592 = vld [vmem:[%s587 + $0x10] sm:$0xf]
  %v593 = vld [vmem:[%s587 + $0x14] sm:$0xf]
  %v594 = vld [vmem:[%s587 + $0x18] sm:$0xf]
  %v595 = vld [vmem:[%s587 + $0x1c] sm:$0xf]
  %v596 = vld [vmem:[%s587 + $0x20] sm:$0xf]
  %v597 = vld [vmem:[%s587 + $0x24] sm:$0xf]
  %v598 = vld [vmem:[%s587 + $0x28] sm:$0xf]
  %v599 = vld [vmem:[%s587 + $0x2c] sm:$0xf]
  %v600 = vld [vmem:[%s587 + $0x30] sm:$0xf]
  %v601 = vld [vmem:[%s587 + $0x34] sm:$0xf]
  %v602 = vld [vmem:[%s587 + $0x38] sm:$0xf]
  %v603 = vld [vmem:[%s587 + $0x3c] sm:$0xf]
  %v604 = vunpack.c.l.bf16 %v588
  %v605 = vunpack.c.l.bf16 %v589
  %v606 = vunpack.c.l.bf16 %v590
  %v607 = vunpack.c.l.bf16 %v591
  %v608 = vunpack.c.l.bf16 %v592
  %v609 = vunpack.c.l.bf16 %v593
  %v610 = vunpack.c.l.bf16 %v594
  %v611 = vunpack.c.l.bf16 %v595
  %v612 = vunpack.c.l.bf16 %v596
  %v613 = vunpack.c.l.bf16 %v597
  %v614 = vunpack.c.l.bf16 %v598
  %v615 = vunpack.c.l.bf16 %v599
  %v616 = vunpack.c.l.bf16 %v600
  %v617 = vunpack.c.l.bf16 %v601
  %v618 = vunpack.c.l.bf16 %v602
  %v619 = vunpack.c.l.bf16 %v603
  %v620 = vmul.f32 %v525, %v604
  %v621 = vmul.f32 %v528, %v605
  %v622 = vmul.f32 %v533, %v606
  %v623 = vmul.f32 %v536, %v607
  %v624 = vmul.f32 %v541, %v608
  %v625 = vmul.f32 %v544, %v609
  %v626 = vmul.f32 %v549, %v610
  %v627 = vmul.f32 %v552, %v611
  %v628 = vmul.f32 %v557, %v612
  %v629 = vmul.f32 %v560, %v613
  %v630 = vmul.f32 %v565, %v614
  %v631 = vmul.f32 %v568, %v615
  %v632 = vmul.f32 %v573, %v616
  %v633 = vmul.f32 %v576, %v617
  %v634 = vmul.f32 %v581, %v618
  %v635 = vmul.f32 %v584, %v619
  %v636 = vadd.f32 %v461, %v620
  %v637 = vadd.f32 %v462, %v621
  %v638 = vadd.f32 %v463, %v622
  %v639 = vadd.f32 %v464, %v623
  %v640 = vadd.f32 %v465, %v624
  %v641 = vadd.f32 %v466, %v625
  %v642 = vadd.f32 %v467, %v626
  %v643 = vadd.f32 %v468, %v627
  %v644 = vadd.f32 %v469, %v628
  %v645 = vadd.f32 %v470, %v629
  %v646 = vadd.f32 %v471, %v630
  %v647 = vadd.f32 %v472, %v631
  %v648 = vadd.f32 %v473, %v632
  %v649 = vadd.f32 %v474, %v633
  %v650 = vadd.f32 %v475, %v634
  %v651 = vadd.f32 %v476, %v635
  %s652 = scalar_lea.vmem %s4, 2
  %v653 = vld [vmem:[%s652] sm:$0x1]
  %s654 = scalar_lea.vmem %s5, 2
  %v655 = vld [vmem:[%s654] sm:$0x1]
  %v657 = vlaneseq
  %v658 = vshrl.u32 %v657, 7
  %v659 = vsub.s32 0, %v658
  %v660 = vrot.slane %v655, %v659
  %v663 = vsel %vm312, %v653, 0
  %665 = vmatprep.subr.bf16.mxu0 0
  %666 = vmatpush1.bf16.msra.mxu0 %v663
  %667 = vmatprep.subr.bf16.mxu0 0
  %668 = vmatpush1.bf16.msra.mxu0 0
  %669 = vmatprep.subr.bf16.mxu0 0
  %670 = vmatpush1.bf16.msra.mxu0 0
  %671 = vmatprep.subr.bf16.mxu0 0
  %672 = vmatpush1.bf16.msra.mxu0 0
  %673 = vmatprep.subr.bf16.mxu0 0
  %674 = vmatpush1.bf16.msra.mxu0 0
  %675 = vmatprep.subr.bf16.mxu0 0
  %676 = vmatpush1.bf16.msra.mxu0 0
  %677 = vmatprep.subr.bf16.mxu0 0
  %678 = vmatpush1.bf16.msra.mxu0 0
  %679 = vmatprep.subr.bf16.mxu0 0
  %680 = vmatpush1.bf16.msra.mxu0 0
  %681 = vmatprep.subr.bf16.mxu0 0
  %682 = vmatpush1.bf16.msra.mxu0 0
  %683 = vmatprep.subr.bf16.mxu0 0
  %684 = vmatpush1.bf16.msra.mxu0 0
  %685 = vmatprep.subr.bf16.mxu0 0
  %686 = vmatpush1.bf16.msra.mxu0 0
  %687 = vmatprep.subr.bf16.mxu0 0
  %688 = vmatpush1.bf16.msra.mxu0 0
  %689 = vmatprep.subr.bf16.mxu0 0
  %690 = vmatpush1.bf16.msra.mxu0 0
  %691 = vmatprep.subr.bf16.mxu0 0
  %692 = vmatpush1.bf16.msra.mxu0 0
  %693 = vmatprep.subr.bf16.mxu0 0
  %694 = vmatpush1.bf16.msra.mxu0 0
  %695 = vmatprep.subr.bf16.mxu0 0
  %696 = vmatpush1.bf16.msra.mxu0 0
  %697 = vmatprep.mubr.bf16.mxu0 0
  %698 = vmatmul.mubr.bf16.gmra.mrb[0].mxu0 %v289
  %v699 = vpop.f32.mrb[0].mxu0
  %v700 = vadd.f32 %v660, %v699
  %v701 = vpop.f32.mrb[0].mxu0
  %v702 = vpop.f32.mrb[0].mxu0
  %v703 = vadd.f32 %v660, %v702
  %v704 = vpop.f32.mrb[0].mxu0
  %705 = vmatprep.mubr.bf16.mxu0 0
  %706 = vmatmul.mubr.bf16.gmra.mrb[0].mxu0 %v292
  %v707 = vpop.f32.mrb[0].mxu0
  %v708 = vadd.f32 %v660, %v707
  %v709 = vpop.f32.mrb[0].mxu0
  %v710 = vpop.f32.mrb[0].mxu0
  %v711 = vadd.f32 %v660, %v710
  %v712 = vpop.f32.mrb[0].mxu0
  %713 = vmatprep.mubr.bf16.mxu0 0
  %714 = vmatmul.mubr.bf16.gmra.mrb[0].mxu0 %v295
  %v715 = vpop.f32.mrb[0].mxu0
  %v716 = vadd.f32 %v660, %v715
  %v717 = vpop.f32.mrb[0].mxu0
  %v718 = vpop.f32.mrb[0].mxu0
  %v719 = vadd.f32 %v660, %v718
  %v720 = vpop.f32.mrb[0].mxu0
  %721 = vmatprep.mubr.bf16.mxu0 0
  %722 = vmatmul.mubr.bf16.gmra.mrb[0].mxu0 %v298
  %v723 = vpop.f32.mrb[0].mxu0
  %v724 = vadd.f32 %v660, %v723
  %v725 = vpop.f32.mrb[0].mxu0
  %v726 = vpop.f32.mrb[0].mxu0
  %v727 = vadd.f32 %v660, %v726
  %v728 = vpop.f32.mrb[0].mxu0
  %729 = vmatprep.mubr.bf16.mxu0 0
  %730 = vmatmul.mubr.bf16.gmra.mrb[0].mxu0 %v301
  %v731 = vpop.f32.mrb[0].mxu0
  %v732 = vadd.f32 %v660, %v731
  %v733 = vpop.f32.mrb[0].mxu0
  %v734 = vpop.f32.mrb[0].mxu0
  %v735 = vadd.f32 %v660, %v734
  %v736 = vpop.f32.mrb[0].mxu0
  %737 = vmatprep.mubr.bf16.mxu0 0
  %738 = vmatmul.mubr.bf16.gmra.mrb[0].mxu0 %v304
  %v739 = vpop.f32.mrb[0].mxu0
  %v740 = vadd.f32 %v660, %v739
  %v741 = vpop.f32.mrb[0].mxu0
  %v742 = vpop.f32.mrb[0].mxu0
  %v743 = vadd.f32 %v660, %v742
  %v744 = vpop.f32.mrb[0].mxu0
  %745 = vmatprep.mubr.bf16.mxu0 0
  %746 = vmatmul.mubr.bf16.gmra.mrb[0].mxu0 %v307
  %v747 = vpop.f32.mrb[0].mxu0
  %v748 = vadd.f32 %v660, %v747
  %v749 = vpop.f32.mrb[0].mxu0
  %v750 = vpop.f32.mrb[0].mxu0
  %v751 = vadd.f32 %v660, %v750
  %v752 = vpop.f32.mrb[0].mxu0
  %753 = vmatprep.mubr.bf16.mxu0 0
  %754 = vmatmul.mubr.bf16.gmra.mrb[0].mxu0 %v310
  %v755 = vpop.f32.mrb[0].mxu0
  %v756 = vadd.f32 %v660, %v755
  %v757 = vpop.f32.mrb[0].mxu0
  %v758 = vpop.f32.mrb[0].mxu0
  %v759 = vadd.f32 %v660, %v758
  %v760 = vpop.f32.mrb[0].mxu0
  %761 = vdwg.mxu0
  %s762 = scalar_lea.vmem %s1, 128
  %v763 = vld [vmem:[%s762] sm:$0xf]
  %v764 = vld [vmem:[%s762 + $0x4] sm:$0xf]
  %v765 = vld [vmem:[%s762 + $0x8] sm:$0xf]
  %v766 = vld [vmem:[%s762 + $0xc] sm:$0xf]
  %v767 = vld [vmem:[%s762 + $0x10] sm:$0xf]
  %v768 = vld [vmem:[%s762 + $0x14] sm:$0xf]
  %v769 = vld [vmem:[%s762 + $0x18] sm:$0xf]
  %v770 = vld [vmem:[%s762 + $0x1c] sm:$0xf]
  %v771 = vld [vmem:[%s762 + $0x20] sm:$0xf]
  %v772 = vld [vmem:[%s762 + $0x24] sm:$0xf]
  %v773 = vld [vmem:[%s762 + $0x28] sm:$0xf]
  %v774 = vld [vmem:[%s762 + $0x2c] sm:$0xf]
  %v775 = vld [vmem:[%s762 + $0x30] sm:$0xf]
  %v776 = vld [vmem:[%s762 + $0x34] sm:$0xf]
  %v777 = vld [vmem:[%s762 + $0x38] sm:$0xf]
  %v778 = vld [vmem:[%s762 + $0x3c] sm:$0xf]
  %v779 = vunpack.c.l.bf16 %v763
  %v780 = vunpack.c.l.bf16 %v764
  %v781 = vunpack.c.l.bf16 %v765
  %v782 = vunpack.c.l.bf16 %v766
  %v783 = vunpack.c.l.bf16 %v767
  %v784 = vunpack.c.l.bf16 %v768
  %v785 = vunpack.c.l.bf16 %v769
  %v786 = vunpack.c.l.bf16 %v770
  %v787 = vunpack.c.l.bf16 %v771
  %v788 = vunpack.c.l.bf16 %v772
  %v789 = vunpack.c.l.bf16 %v773
  %v790 = vunpack.c.l.bf16 %v774
  %v791 = vunpack.c.l.bf16 %v775
  %v792 = vunpack.c.l.bf16 %v776
  %v793 = vunpack.c.l.bf16 %v777
  %v794 = vunpack.c.l.bf16 %v778
  %v795 = vmul.f32 %v700, %v779
  %v796 = vmul.f32 %v703, %v780
  %v797 = vmul.f32 %v708, %v781
  %v798 = vmul.f32 %v711, %v782
  %v799 = vmul.f32 %v716, %v783
  %v800 = vmul.f32 %v719, %v784
  %v801 = vmul.f32 %v724, %v785
  %v802 = vmul.f32 %v727, %v786
  %v803 = vmul.f32 %v732, %v787
  %v804 = vmul.f32 %v735, %v788
  %v805 = vmul.f32 %v740, %v789
  %v806 = vmul.f32 %v743, %v790
  %v807 = vmul.f32 %v748, %v791
  %v808 = vmul.f32 %v751, %v792
  %v809 = vmul.f32 %v756, %v793
  %v810 = vmul.f32 %v759, %v794
  %v811 = vadd.f32 %v636, %v795
  %v812 = vadd.f32 %v637, %v796
  %v813 = vadd.f32 %v638, %v797
  %v814 = vadd.f32 %v639, %v798
  %v815 = vadd.f32 %v640, %v799
  %v816 = vadd.f32 %v641, %v800
  %v817 = vadd.f32 %v642, %v801
  %v818 = vadd.f32 %v643, %v802
  %v819 = vadd.f32 %v644, %v803
  %v820 = vadd.f32 %v645, %v804
  %v821 = vadd.f32 %v646, %v805
  %v822 = vadd.f32 %v647, %v806
  %v823 = vadd.f32 %v648, %v807
  %v824 = vadd.f32 %v649, %v808
  %v825 = vadd.f32 %v650, %v809
  %v826 = vadd.f32 %v651, %v810
  %s827 = scalar_lea.vmem %s4, 3
  %v828 = vld [vmem:[%s827] sm:$0x1]
  %s829 = scalar_lea.vmem %s5, 3
  %v830 = vld [vmem:[%s829] sm:$0x1]
  %v832 = vlaneseq
  %v833 = vshrl.u32 %v832, 7
  %v834 = vsub.s32 0, %v833
  %v835 = vrot.slane %v830, %v834
  %v838 = vsel %vm312, %v828, 0
  %840 = vmatprep.subr.bf16.mxu0 0
  %841 = vmatpush1.bf16.msra.mxu0 %v838
  %842 = vmatprep.subr.bf16.mxu0 0
  %843 = vmatpush1.bf16.msra.mxu0 0
  %844 = vmatprep.subr.bf16.mxu0 0
  %845 = vmatpush1.bf16.msra.mxu0 0
  %846 = vmatprep.subr.bf16.mxu0 0
  %847 = vmatpush1.bf16.msra.mxu0 0
  %848 = vmatprep.subr.bf16.mxu0 0
  %849 = vmatpush1.bf16.msra.mxu0 0
  %850 = vmatprep.subr.bf16.mxu0 0
  %851 = vmatpush1.bf16.msra.mxu0 0
  %852 = vmatprep.subr.bf16.mxu0 0
  %853 = vmatpush1.bf16.msra.mxu0 0
  %854 = vmatprep.subr.bf16.mxu0 0
  %855 = vmatpush1.bf16.msra.mxu0 0
  %856 = vmatprep.subr.bf16.mxu0 0
  %857 = vmatpush1.bf16.msra.mxu0 0
  %858 = vmatprep.subr.bf16.mxu0 0
  %859 = vmatpush1.bf16.msra.mxu0 0
  %860 = vmatprep.subr.bf16.mxu0 0
  %861 = vmatpush1.bf16.msra.mxu0 0
  %862 = vmatprep.subr.bf16.mxu0 0
  %863 = vmatpush1.bf16.msra.mxu0 0
  %864 = vmatprep.subr.bf16.mxu0 0
  %865 = vmatpush1.bf16.msra.mxu0 0
  %866 = vmatprep.subr.bf16.mxu0 0
  %867 = vmatpush1.bf16.msra.mxu0 0
  %868 = vmatprep.subr.bf16.mxu0 0
  %869 = vmatpush1.bf16.msra.mxu0 0
  %870 = vmatprep.subr.bf16.mxu0 0
  %871 = vmatpush1.bf16.msra.mxu0 0
  %872 = vmatprep.mubr.bf16.mxu0 0
  %873 = vmatmul.mubr.bf16.gmra.mrb[0].mxu0 %v289
  %v874 = vpop.f32.mrb[0].mxu0
  %v875 = vadd.f32 %v835, %v874
  %v876 = vpop.f32.mrb[0].mxu0
  %v877 = vpop.f32.mrb[0].mxu0
  %v878 = vadd.f32 %v835, %v877
  %v879 = vpop.f32.mrb[0].mxu0
  %880 = vmatprep.mubr.bf16.mxu0 0
  %881 = vmatmul.mubr.bf16.gmra.mrb[0].mxu0 %v292
  %v882 = vpop.f32.mrb[0].mxu0
  %v883 = vadd.f32 %v835, %v882
  %v884 = vpop.f32.mrb[0].mxu0
  %v885 = vpop.f32.mrb[0].mxu0
  %v886 = vadd.f32 %v835, %v885
  %v887 = vpop.f32.mrb[0].mxu0
  %888 = vmatprep.mubr.bf16.mxu0 0
  %889 = vmatmul.mubr.bf16.gmra.mrb[0].mxu0 %v295
  %v890 = vpop.f32.mrb[0].mxu0
  %v891 = vadd.f32 %v835, %v890
  %v892 = vpop.f32.mrb[0].mxu0
  %v893 = vpop.f32.mrb[0].mxu0
  %v894 = vadd.f32 %v835, %v893
  %v895 = vpop.f32.mrb[0].mxu0
  %896 = vmatprep.mubr.bf16.mxu0 0
  %897 = vmatmul.mubr.bf16.gmra.mrb[0].mxu0 %v298
  %v898 = vpop.f32.mrb[0].mxu0
  %v899 = vadd.f32 %v835, %v898
  %v900 = vpop.f32.mrb[0].mxu0
  %v901 = vpop.f32.mrb[0].mxu0
  %v902 = vadd.f32 %v835, %v901
  %v903 = vpop.f32.mrb[0].mxu0
  %904 = vmatprep.mubr.bf16.mxu0 0
  %905 = vmatmul.mubr.bf16.gmra.mrb[0].mxu0 %v301
  %v906 = vpop.f32.mrb[0].mxu0
  %v907 = vadd.f32 %v835, %v906
  %v908 = vpop.f32.mrb[0].mxu0
  %v909 = vpop.f32.mrb[0].mxu0
  %v910 = vadd.f32 %v835, %v909
  %v911 = vpop.f32.mrb[0].mxu0
  %912 = vmatprep.mubr.bf16.mxu0 0
  %913 = vmatmul.mubr.bf16.gmra.mrb[0].mxu0 %v304
  %v914 = vpop.f32.mrb[0].mxu0
  %v915 = vadd.f32 %v835, %v914
  %v916 = vpop.f32.mrb[0].mxu0
  %v917 = vpop.f32.mrb[0].mxu0
  %v918 = vadd.f32 %v835, %v917
  %v919 = vpop.f32.mrb[0].mxu0
  %920 = vmatprep.mubr.bf16.mxu0 0
  %921 = vmatmul.mubr.bf16.gmra.mrb[0].mxu0 %v307
  %v922 = vpop.f32.mrb[0].mxu0
  %v923 = vadd.f32 %v835, %v922
  %v924 = vpop.f32.mrb[0].mxu0
  %v925 = vpop.f32.mrb[0].mxu0
  %v926 = vadd.f32 %v835, %v925
  %v927 = vpop.f32.mrb[0].mxu0
  %928 = vmatprep.mubr.bf16.mxu0 0
  %929 = vmatmul.mubr.bf16.gmra.mrb[0].mxu0 %v310
  %v930 = vpop.f32.mrb[0].mxu0
  %v931 = vadd.f32 %v835, %v930
  %v932 = vpop.f32.mrb[0].mxu0
  %v933 = vpop.f32.mrb[0].mxu0
  %v934 = vadd.f32 %v835, %v933
  %v935 = vpop.f32.mrb[0].mxu0
  %936 = vdwg.mxu0
  %s937 = scalar_lea.vmem %s1, 192
  %v938 = vld [vmem:[%s937] sm:$0xf]
  %v939 = vld [vmem:[%s937 + $0x4] sm:$0xf]
  %v940 = vld [vmem:[%s937 + $0x8] sm:$0xf]
  %v941 = vld [vmem:[%s937 + $0xc] sm:$0xf]
  %v942 = vld [vmem:[%s937 + $0x10] sm:$0xf]
  %v943 = vld [vmem:[%s937 + $0x14] sm:$0xf]
  %v944 = vld [vmem:[%s937 + $0x18] sm:$0xf]
  %v945 = vld [vmem:[%s937 + $0x1c] sm:$0xf]
  %v946 = vld [vmem:[%s937 + $0x20] sm:$0xf]
  %v947 = vld [vmem:[%s937 + $0x24] sm:$0xf]
  %v948 = vld [vmem:[%s937 + $0x28] sm:$0xf]
  %v949 = vld [vmem:[%s937 + $0x2c] sm:$0xf]
  %v950 = vld [vmem:[%s937 + $0x30] sm:$0xf]
  %v951 = vld [vmem:[%s937 + $0x34] sm:$0xf]
  %v952 = vld [vmem:[%s937 + $0x38] sm:$0xf]
  %v953 = vld [vmem:[%s937 + $0x3c] sm:$0xf]
  %v954 = vunpack.c.l.bf16 %v938
  %v955 = vunpack.c.l.bf16 %v939
  %v956 = vunpack.c.l.bf16 %v940
  %v957 = vunpack.c.l.bf16 %v941
  %v958 = vunpack.c.l.bf16 %v942
  %v959 = vunpack.c.l.bf16 %v943
  %v960 = vunpack.c.l.bf16 %v944
  %v961 = vunpack.c.l.bf16 %v945
  %v962 = vunpack.c.l.bf16 %v946
  %v963 = vunpack.c.l.bf16 %v947
  %v964 = vunpack.c.l.bf16 %v948
  %v965 = vunpack.c.l.bf16 %v949
  %v966 = vunpack.c.l.bf16 %v950
  %v967 = vunpack.c.l.bf16 %v951
  %v968 = vunpack.c.l.bf16 %v952
  %v969 = vunpack.c.l.bf16 %v953
  %v970 = vmul.f32 %v875, %v954
  %v971 = vmul.f32 %v878, %v955
  %v972 = vmul.f32 %v883, %v956
  %v973 = vmul.f32 %v886, %v957
  %v974 = vmul.f32 %v891, %v958
  %v975 = vmul.f32 %v894, %v959
  %v976 = vmul.f32 %v899, %v960
  %v977 = vmul.f32 %v902, %v961
  %v978 = vmul.f32 %v907, %v962
  %v979 = vmul.f32 %v910, %v963
  %v980 = vmul.f32 %v915, %v964
  %v981 = vmul.f32 %v918, %v965
  %v982 = vmul.f32 %v923, %v966
  %v983 = vmul.f32 %v926, %v967
  %v984 = vmul.f32 %v931, %v968
  %v985 = vmul.f32 %v934, %v969
  %v986 = vadd.f32 %v811, %v970
  %v987 = vadd.f32 %v812, %v971
  %v988 = vadd.f32 %v813, %v972
  %v989 = vadd.f32 %v814, %v973
  %v990 = vadd.f32 %v815, %v974
  %v991 = vadd.f32 %v816, %v975
  %v992 = vadd.f32 %v817, %v976
  %v993 = vadd.f32 %v818, %v977
  %v994 = vadd.f32 %v819, %v978
  %v995 = vadd.f32 %v820, %v979
  %v996 = vadd.f32 %v821, %v980
  %v997 = vadd.f32 %v822, %v981
  %v998 = vadd.f32 %v823, %v982
  %v999 = vadd.f32 %v824, %v983
  %v1000 = vadd.f32 %v825, %v984
  %v1001 = vadd.f32 %v826, %v985
  %s1002 = scalar_lea.vmem %s4, 4
  %v1003 = vld [vmem:[%s1002] sm:$0x1]
  %s1004 = scalar_lea.vmem %s5, 4
  %v1005 = vld [vmem:[%s1004] sm:$0x1]
  %v1007 = vlaneseq
  %v1008 = vshrl.u32 %v1007, 7
  %v1009 = vsub.s32 0, %v1008
  %v1010 = vrot.slane %v1005, %v1009
  %v1013 = vsel %vm312, %v1003, 0
  %1015 = vmatprep.subr.bf16.mxu0 0
  %1016 = vmatpush1.bf16.msra.mxu0 %v1013
  %1017 = vmatprep.subr.bf16.mxu0 0
  %1018 = vmatpush1.bf16.msra.mxu0 0
  %1019 = vmatprep.subr.bf16.mxu0 0
  %1020 = vmatpush1.bf16.msra.mxu0 0
  %1021 = vmatprep.subr.bf16.mxu0 0
  %1022 = vmatpush1.bf16.msra.mxu0 0
  %1023 = vmatprep.subr.bf16.mxu0 0
  %1024 = vmatpush1.bf16.msra.mxu0 0
  %1025 = vmatprep.subr.bf16.mxu0 0
  %1026 = vmatpush1.bf16.msra.mxu0 0
  %1027 = vmatprep.subr.bf16.mxu0 0
  %1028 = vmatpush1.bf16.msra.mxu0 0
  %1029 = vmatprep.subr.bf16.mxu0 0
  %1030 = vmatpush1.bf16.msra.mxu0 0
  %1031 = vmatprep.subr.bf16.mxu0 0
  %1032 = vmatpush1.bf16.msra.mxu0 0
  %1033 = vmatprep.subr.bf16.mxu0 0
  %1034 = vmatpush1.bf16.msra.mxu0 0
  %1035 = vmatprep.subr.bf16.mxu0 0
  %1036 = vmatpush1.bf16.msra.mxu0 0
  %1037 = vmatprep.subr.bf16.mxu0 0
  %1038 = vmatpush1.bf16.msra.mxu0 0
  %1039 = vmatprep.subr.bf16.mxu0 0
  %1040 = vmatpush1.bf16.msra.mxu0 0
  %1041 = vmatprep.subr.bf16.mxu0 0
  %1042 = vmatpush1.bf16.msra.mxu0 0
  %1043 = vmatprep.subr.bf16.mxu0 0
  %1044 = vmatpush1.bf16.msra.mxu0 0
  %1045 = vmatprep.subr.bf16.mxu0 0
  %1046 = vmatpush1.bf16.msra.mxu0 0
  %1047 = vmatprep.mubr.bf16.mxu0 0
  %1048 = vmatmul.mubr.bf16.gmra.mrb[0].mxu0 %v289
  %v1049 = vpop.f32.mrb[0].mxu0
  %v1050 = vadd.f32 %v1010, %v1049
  %v1051 = vpop.f32.mrb[0].mxu0
  %v1052 = vpop.f32.mrb[0].mxu0
  %v1053 = vadd.f32 %v1010, %v1052
  %v1054 = vpop.f32.mrb[0].mxu0
  %1055 = vmatprep.mubr.bf16.mxu0 0
  %1056 = vmatmul.mubr.bf16.gmra.mrb[0].mxu0 %v292
  %v1057 = vpop.f32.mrb[0].mxu0
  %v1058 = vadd.f32 %v1010, %v1057
  %v1059 = vpop.f32.mrb[0].mxu0
  %v1060 = vpop.f32.mrb[0].mxu0
  %v1061 = vadd.f32 %v1010, %v1060
  %v1062 = vpop.f32.mrb[0].mxu0
  %1063 = vmatprep.mubr.bf16.mxu0 0
  %1064 = vmatmul.mubr.bf16.gmra.mrb[0].mxu0 %v295
  %v1065 = vpop.f32.mrb[0].mxu0
  %v1066 = vadd.f32 %v1010, %v1065
  %v1067 = vpop.f32.mrb[0].mxu0
  %v1068 = vpop.f32.mrb[0].mxu0
  %v1069 = vadd.f32 %v1010, %v1068
  %v1070 = vpop.f32.mrb[0].mxu0
  %1071 = vmatprep.mubr.bf16.mxu0 0
  %1072 = vmatmul.mubr.bf16.gmra.mrb[0].mxu0 %v298
  %v1073 = vpop.f32.mrb[0].mxu0
  %v1074 = vadd.f32 %v1010, %v1073
  %v1075 = vpop.f32.mrb[0].mxu0
  %v1076 = vpop.f32.mrb[0].mxu0
  %v1077 = vadd.f32 %v1010, %v1076
  %v1078 = vpop.f32.mrb[0].mxu0
  %1079 = vmatprep.mubr.bf16.mxu0 0
  %1080 = vmatmul.mubr.bf16.gmra.mrb[0].mxu0 %v301
  %v1081 = vpop.f32.mrb[0].mxu0
  %v1082 = vadd.f32 %v1010, %v1081
  %v1083 = vpop.f32.mrb[0].mxu0
  %v1084 = vpop.f32.mrb[0].mxu0
  %v1085 = vadd.f32 %v1010, %v1084
  %v1086 = vpop.f32.mrb[0].mxu0
  %1087 = vmatprep.mubr.bf16.mxu0 0
  %1088 = vmatmul.mubr.bf16.gmra.mrb[0].mxu0 %v304
  %v1089 = vpop.f32.mrb[0].mxu0
  %v1090 = vadd.f32 %v1010, %v1089
  %v1091 = vpop.f32.mrb[0].mxu0
  %v1092 = vpop.f32.mrb[0].mxu0
  %v1093 = vadd.f32 %v1010, %v1092
  %v1094 = vpop.f32.mrb[0].mxu0
  %1095 = vmatprep.mubr.bf16.mxu0 0
  %1096 = vmatmul.mubr.bf16.gmra.mrb[0].mxu0 %v307
  %v1097 = vpop.f32.mrb[0].mxu0
  %v1098 = vadd.f32 %v1010, %v1097
  %v1099 = vpop.f32.mrb[0].mxu0
  %v1100 = vpop.f32.mrb[0].mxu0
  %v1101 = vadd.f32 %v1010, %v1100
  %v1102 = vpop.f32.mrb[0].mxu0
  %1103 = vmatprep.mubr.bf16.mxu0 0
  %1104 = vmatmul.mubr.bf16.gmra.mrb[0].mxu0 %v310
  %v1105 = vpop.f32.mrb[0].mxu0
  %v1106 = vadd.f32 %v1010, %v1105
  %v1107 = vpop.f32.mrb[0].mxu0
  %v1108 = vpop.f32.mrb[0].mxu0
  %v1109 = vadd.f32 %v1010, %v1108
  %v1110 = vpop.f32.mrb[0].mxu0
  %1111 = vdwg.mxu0
  %s1112 = scalar_lea.vmem %s1, 256
  %v1113 = vld [vmem:[%s1112] sm:$0xf]
  %v1114 = vld [vmem:[%s1112 + $0x4] sm:$0xf]
  %v1115 = vld [vmem:[%s1112 + $0x8] sm:$0xf]
  %v1116 = vld [vmem:[%s1112 + $0xc] sm:$0xf]
  %v1117 = vld [vmem:[%s1112 + $0x10] sm:$0xf]
  %v1118 = vld [vmem:[%s1112 + $0x14] sm:$0xf]
  %v1119 = vld [vmem:[%s1112 + $0x18] sm:$0xf]
  %v1120 = vld [vmem:[%s1112 + $0x1c] sm:$0xf]
  %v1121 = vld [vmem:[%s1112 + $0x20] sm:$0xf]
  %v1122 = vld [vmem:[%s1112 + $0x24] sm:$0xf]
  %v1123 = vld [vmem:[%s1112 + $0x28] sm:$0xf]
  %v1124 = vld [vmem:[%s1112 + $0x2c] sm:$0xf]
  %v1125 = vld [vmem:[%s1112 + $0x30] sm:$0xf]
  %v1126 = vld [vmem:[%s1112 + $0x34] sm:$0xf]
  %v1127 = vld [vmem:[%s1112 + $0x38] sm:$0xf]
  %v1128 = vld [vmem:[%s1112 + $0x3c] sm:$0xf]
  %v1129 = vunpack.c.l.bf16 %v1113
  %v1130 = vunpack.c.l.bf16 %v1114
  %v1131 = vunpack.c.l.bf16 %v1115
  %v1132 = vunpack.c.l.bf16 %v1116
  %v1133 = vunpack.c.l.bf16 %v1117
  %v1134 = vunpack.c.l.bf16 %v1118
  %v1135 = vunpack.c.l.bf16 %v1119
  %v1136 = vunpack.c.l.bf16 %v1120
  %v1137 = vunpack.c.l.bf16 %v1121
  %v1138 = vunpack.c.l.bf16 %v1122
  %v1139 = vunpack.c.l.bf16 %v1123
  %v1140 = vunpack.c.l.bf16 %v1124
  %v1141 = vunpack.c.l.bf16 %v1125
  %v1142 = vunpack.c.l.bf16 %v1126
  %v1143 = vunpack.c.l.bf16 %v1127
  %v1144 = vunpack.c.l.bf16 %v1128
  %v1145 = vmul.f32 %v1050, %v1129
  %v1146 = vmul.f32 %v1053, %v1130
  %v1147 = vmul.f32 %v1058, %v1131
  %v1148 = vmul.f32 %v1061, %v1132
  %v1149 = vmul.f32 %v1066, %v1133
  %v1150 = vmul.f32 %v1069, %v1134
  %v1151 = vmul.f32 %v1074, %v1135
  %v1152 = vmul.f32 %v1077, %v1136
  %v1153 = vmul.f32 %v1082, %v1137
  %v1154 = vmul.f32 %v1085, %v1138
  %v1155 = vmul.f32 %v1090, %v1139
  %v1156 = vmul.f32 %v1093, %v1140
  %v1157 = vmul.f32 %v1098, %v1141
  %v1158 = vmul.f32 %v1101, %v1142
  %v1159 = vmul.f32 %v1106, %v1143
  %v1160 = vmul.f32 %v1109, %v1144
  %v1161 = vadd.f32 %v986, %v1145
  %v1162 = vadd.f32 %v987, %v1146
  %v1163 = vadd.f32 %v988, %v1147
  %v1164 = vadd.f32 %v989, %v1148
  %v1165 = vadd.f32 %v990, %v1149
  %v1166 = vadd.f32 %v991, %v1150
  %v1167 = vadd.f32 %v992, %v1151
  %v1168 = vadd.f32 %v993, %v1152
  %v1169 = vadd.f32 %v994, %v1153
  %v1170 = vadd.f32 %v995, %v1154
  %v1171 = vadd.f32 %v996, %v1155
  %v1172 = vadd.f32 %v997, %v1156
  %v1173 = vadd.f32 %v998, %v1157
  %v1174 = vadd.f32 %v999, %v1158
  %v1175 = vadd.f32 %v1000, %v1159
  %v1176 = vadd.f32 %v1001, %v1160
  %s1177 = scalar_lea.vmem %s4, 5
  %v1178 = vld [vmem:[%s1177] sm:$0x1]
  %s1179 = scalar_lea.vmem %s5, 5
  %v1180 = vld [vmem:[%s1179] sm:$0x1]
  %v1182 = vlaneseq
  %v1183 = vshrl.u32 %v1182, 7
  %v1184 = vsub.s32 0, %v1183
  %v1185 = vrot.slane %v1180, %v1184
  %v1188 = vsel %vm312, %v1178, 0
  %1190 = vmatprep.subr.bf16.mxu0 0
  %1191 = vmatpush1.bf16.msra.mxu0 %v1188
  %1192 = vmatprep.subr.bf16.mxu0 0
  %1193 = vmatpush1.bf16.msra.mxu0 0
  %1194 = vmatprep.subr.bf16.mxu0 0
  %1195 = vmatpush1.bf16.msra.mxu0 0
  %1196 = vmatprep.subr.bf16.mxu0 0
  %1197 = vmatpush1.bf16.msra.mxu0 0
  %1198 = vmatprep.subr.bf16.mxu0 0
  %1199 = vmatpush1.bf16.msra.mxu0 0
  %1200 = vmatprep.subr.bf16.mxu0 0
  %1201 = vmatpush1.bf16.msra.mxu0 0
  %1202 = vmatprep.subr.bf16.mxu0 0
  %1203 = vmatpush1.bf16.msra.mxu0 0
  %1204 = vmatprep.subr.bf16.mxu0 0
  %1205 = vmatpush1.bf16.msra.mxu0 0
  %1206 = vmatprep.subr.bf16.mxu0 0
  %1207 = vmatpush1.bf16.msra.mxu0 0
  %1208 = vmatprep.subr.bf16.mxu0 0
  %1209 = vmatpush1.bf16.msra.mxu0 0
  %1210 = vmatprep.subr.bf16.mxu0 0
  %1211 = vmatpush1.bf16.msra.mxu0 0
  %1212 = vmatprep.subr.bf16.mxu0 0
  %1213 = vmatpush1.bf16.msra.mxu0 0
  %1214 = vmatprep.subr.bf16.mxu0 0
  %1215 = vmatpush1.bf16.msra.mxu0 0
  %1216 = vmatprep.subr.bf16.mxu0 0
  %1217 = vmatpush1.bf16.msra.mxu0 0
  %1218 = vmatprep.subr.bf16.mxu0 0
  %1219 = vmatpush1.bf16.msra.mxu0 0
  %1220 = vmatprep.subr.bf16.mxu0 0
  %1221 = vmatpush1.bf16.msra.mxu0 0
  %1222 = vmatprep.mubr.bf16.mxu0 0
  %1223 = vmatmul.mubr.bf16.gmra.mrb[0].mxu0 %v289
  %v1224 = vpop.f32.mrb[0].mxu0
  %v1225 = vadd.f32 %v1185, %v1224
  %v1226 = vpop.f32.mrb[0].mxu0
  %v1227 = vpop.f32.mrb[0].mxu0
  %v1228 = vadd.f32 %v1185, %v1227
  %v1229 = vpop.f32.mrb[0].mxu0
  %1230 = vmatprep.mubr.bf16.mxu0 0
  %1231 = vmatmul.mubr.bf16.gmra.mrb[0].mxu0 %v292
  %v1232 = vpop.f32.mrb[0].mxu0
  %v1233 = vadd.f32 %v1185, %v1232
  %v1234 = vpop.f32.mrb[0].mxu0
  %v1235 = vpop.f32.mrb[0].mxu0
  %v1236 = vadd.f32 %v1185, %v1235
  %v1237 = vpop.f32.mrb[0].mxu0
  %1238 = vmatprep.mubr.bf16.mxu0 0
  %1239 = vmatmul.mubr.bf16.gmra.mrb[0].mxu0 %v295
  %v1240 = vpop.f32.mrb[0].mxu0
  %v1241 = vadd.f32 %v1185, %v1240
  %v1242 = vpop.f32.mrb[0].mxu0
  %v1243 = vpop.f32.mrb[0].mxu0
  %v1244 = vadd.f32 %v1185, %v1243
  %v1245 = vpop.f32.mrb[0].mxu0
  %1246 = vmatprep.mubr.bf16.mxu0 0
  %1247 = vmatmul.mubr.bf16.gmra.mrb[0].mxu0 %v298
  %v1248 = vpop.f32.mrb[0].mxu0
  %v1249 = vadd.f32 %v1185, %v1248
  %v1250 = vpop.f32.mrb[0].mxu0
  %v1251 = vpop.f32.mrb[0].mxu0
  %v1252 = vadd.f32 %v1185, %v1251
  %v1253 = vpop.f32.mrb[0].mxu0
  %1254 = vmatprep.mubr.bf16.mxu0 0
  %1255 = vmatmul.mubr.bf16.gmra.mrb[0].mxu0 %v301
  %v1256 = vpop.f32.mrb[0].mxu0
  %v1257 = vadd.f32 %v1185, %v1256
  %v1258 = vpop.f32.mrb[0].mxu0
  %v1259 = vpop.f32.mrb[0].mxu0
  %v1260 = vadd.f32 %v1185, %v1259
  %v1261 = vpop.f32.mrb[0].mxu0
  %1262 = vmatprep.mubr.bf16.mxu0 0
  %1263 = vmatmul.mubr.bf16.gmra.mrb[0].mxu0 %v304
  %v1264 = vpop.f32.mrb[0].mxu0
  %v1265 = vadd.f32 %v1185, %v1264
  %v1266 = vpop.f32.mrb[0].mxu0
  %v1267 = vpop.f32.mrb[0].mxu0
  %v1268 = vadd.f32 %v1185, %v1267
  %v1269 = vpop.f32.mrb[0].mxu0
  %1270 = vmatprep.mubr.bf16.mxu0 0
  %1271 = vmatmul.mubr.bf16.gmra.mrb[0].mxu0 %v307
  %v1272 = vpop.f32.mrb[0].mxu0
  %v1273 = vadd.f32 %v1185, %v1272
  %v1274 = vpop.f32.mrb[0].mxu0
  %v1275 = vpop.f32.mrb[0].mxu0
  %v1276 = vadd.f32 %v1185, %v1275
  %v1277 = vpop.f32.mrb[0].mxu0
  %1278 = vmatprep.mubr.bf16.mxu0 0
  %1279 = vmatmul.mubr.bf16.gmra.mrb[0].mxu0 %v310
  %v1280 = vpop.f32.mrb[0].mxu0
  %v1281 = vadd.f32 %v1185, %v1280
  %v1282 = vpop.f32.mrb[0].mxu0
  %v1283 = vpop.f32.mrb[0].mxu0
  %v1284 = vadd.f32 %v1185, %v1283
  %v1285 = vpop.f32.mrb[0].mxu0
  %1286 = vdwg.mxu0
  %s1287 = scalar_lea.vmem %s1, 320
  %v1288 = vld [vmem:[%s1287] sm:$0xf]
  %v1289 = vld [vmem:[%s1287 + $0x4] sm:$0xf]
  %v1290 = vld [vmem:[%s1287 + $0x8] sm:$0xf]
  %v1291 = vld [vmem:[%s1287 + $0xc] sm:$0xf]
  %v1292 = vld [vmem:[%s1287 + $0x10] sm:$0xf]
  %v1293 = vld [vmem:[%s1287 + $0x14] sm:$0xf]
  %v1294 = vld [vmem:[%s1287 + $0x18] sm:$0xf]
  %v1295 = vld [vmem:[%s1287 + $0x1c] sm:$0xf]
  %v1296 = vld [vmem:[%s1287 + $0x20] sm:$0xf]
  %v1297 = vld [vmem:[%s1287 + $0x24] sm:$0xf]
  %v1298 = vld [vmem:[%s1287 + $0x28] sm:$0xf]
  %v1299 = vld [vmem:[%s1287 + $0x2c] sm:$0xf]
  %v1300 = vld [vmem:[%s1287 + $0x30] sm:$0xf]
  %v1301 = vld [vmem:[%s1287 + $0x34] sm:$0xf]
  %v1302 = vld [vmem:[%s1287 + $0x38] sm:$0xf]
  %v1303 = vld [vmem:[%s1287 + $0x3c] sm:$0xf]
  %v1304 = vunpack.c.l.bf16 %v1288
  %v1305 = vunpack.c.l.bf16 %v1289
  %v1306 = vunpack.c.l.bf16 %v1290
  %v1307 = vunpack.c.l.bf16 %v1291
  %v1308 = vunpack.c.l.bf16 %v1292
  %v1309 = vunpack.c.l.bf16 %v1293
  %v1310 = vunpack.c.l.bf16 %v1294
  %v1311 = vunpack.c.l.bf16 %v1295
  %v1312 = vunpack.c.l.bf16 %v1296
  %v1313 = vunpack.c.l.bf16 %v1297
  %v1314 = vunpack.c.l.bf16 %v1298
  %v1315 = vunpack.c.l.bf16 %v1299
  %v1316 = vunpack.c.l.bf16 %v1300
  %v1317 = vunpack.c.l.bf16 %v1301
  %v1318 = vunpack.c.l.bf16 %v1302
  %v1319 = vunpack.c.l.bf16 %v1303
  %v1320 = vmul.f32 %v1225, %v1304
  %v1321 = vmul.f32 %v1228, %v1305
  %v1322 = vmul.f32 %v1233, %v1306
  %v1323 = vmul.f32 %v1236, %v1307
  %v1324 = vmul.f32 %v1241, %v1308
  %v1325 = vmul.f32 %v1244, %v1309
  %v1326 = vmul.f32 %v1249, %v1310
  %v1327 = vmul.f32 %v1252, %v1311
  %v1328 = vmul.f32 %v1257, %v1312
  %v1329 = vmul.f32 %v1260, %v1313
  %v1330 = vmul.f32 %v1265, %v1314
  %v1331 = vmul.f32 %v1268, %v1315
  %v1332 = vmul.f32 %v1273, %v1316
  %v1333 = vmul.f32 %v1276, %v1317
  %v1334 = vmul.f32 %v1281, %v1318
  %v1335 = vmul.f32 %v1284, %v1319
  %v1336 = vadd.f32 %v1161, %v1320
  %v1337 = vadd.f32 %v1162, %v1321
  %v1338 = vadd.f32 %v1163, %v1322
  %v1339 = vadd.f32 %v1164, %v1323
  %v1340 = vadd.f32 %v1165, %v1324
  %v1341 = vadd.f32 %v1166, %v1325
  %v1342 = vadd.f32 %v1167, %v1326
  %v1343 = vadd.f32 %v1168, %v1327
  %v1344 = vadd.f32 %v1169, %v1328
  %v1345 = vadd.f32 %v1170, %v1329
  %v1346 = vadd.f32 %v1171, %v1330
  %v1347 = vadd.f32 %v1172, %v1331
  %v1348 = vadd.f32 %v1173, %v1332
  %v1349 = vadd.f32 %v1174, %v1333
  %v1350 = vadd.f32 %v1175, %v1334
  %v1351 = vadd.f32 %v1176, %v1335
  %s1352 = scalar_lea.vmem %s4, 6
  %v1353 = vld [vmem:[%s1352] sm:$0x1]
  %s1354 = scalar_lea.vmem %s5, 6
  %v1355 = vld [vmem:[%s1354] sm:$0x1]
  %v1357 = vlaneseq
  %v1358 = vshrl.u32 %v1357, 7
  %v1359 = vsub.s32 0, %v1358
  %v1360 = vrot.slane %v1355, %v1359
  %v1363 = vsel %vm312, %v1353, 0
  %1365 = vmatprep.subr.bf16.mxu0 0
  %1366 = vmatpush1.bf16.msra.mxu0 %v1363
  %1367 = vmatprep.subr.bf16.mxu0 0
  %1368 = vmatpush1.bf16.msra.mxu0 0
  %1369 = vmatprep.subr.bf16.mxu0 0
  %1370 = vmatpush1.bf16.msra.mxu0 0
  %1371 = vmatprep.subr.bf16.mxu0 0
  %1372 = vmatpush1.bf16.msra.mxu0 0
  %1373 = vmatprep.subr.bf16.mxu0 0
  %1374 = vmatpush1.bf16.msra.mxu0 0
  %1375 = vmatprep.subr.bf16.mxu0 0
  %1376 = vmatpush1.bf16.msra.mxu0 0
  %1377 = vmatprep.subr.bf16.mxu0 0
  %1378 = vmatpush1.bf16.msra.mxu0 0
  %1379 = vmatprep.subr.bf16.mxu0 0
  %1380 = vmatpush1.bf16.msra.mxu0 0
  %1381 = vmatprep.subr.bf16.mxu0 0
  %1382 = vmatpush1.bf16.msra.mxu0 0
  %1383 = vmatprep.subr.bf16.mxu0 0
  %1384 = vmatpush1.bf16.msra.mxu0 0
  %1385 = vmatprep.subr.bf16.mxu0 0
  %1386 = vmatpush1.bf16.msra.mxu0 0
  %1387 = vmatprep.subr.bf16.mxu0 0
  %1388 = vmatpush1.bf16.msra.mxu0 0
  %1389 = vmatprep.subr.bf16.mxu0 0
  %1390 = vmatpush1.bf16.msra.mxu0 0
  %1391 = vmatprep.subr.bf16.mxu0 0
  %1392 = vmatpush1.bf16.msra.mxu0 0
  %1393 = vmatprep.subr.bf16.mxu0 0
  %1394 = vmatpush1.bf16.msra.mxu0 0
  %1395 = vmatprep.subr.bf16.mxu0 0
  %1396 = vmatpush1.bf16.msra.mxu0 0
  %1397 = vmatprep.mubr.bf16.mxu0 0
  %1398 = vmatmul.mubr.bf16.gmra.mrb[0].mxu0 %v289
  %v1399 = vpop.f32.mrb[0].mxu0
  %v1400 = vadd.f32 %v1360, %v1399
  %v1401 = vpop.f32.mrb[0].mxu0
  %v1402 = vpop.f32.mrb[0].mxu0
  %v1403 = vadd.f32 %v1360, %v1402
  %v1404 = vpop.f32.mrb[0].mxu0
  %1405 = vmatprep.mubr.bf16.mxu0 0
  %1406 = vmatmul.mubr.bf16.gmra.mrb[0].mxu0 %v292
  %v1407 = vpop.f32.mrb[0].mxu0
  %v1408 = vadd.f32 %v1360, %v1407
  %v1409 = vpop.f32.mrb[0].mxu0
  %v1410 = vpop.f32.mrb[0].mxu0
  %v1411 = vadd.f32 %v1360, %v1410
  %v1412 = vpop.f32.mrb[0].mxu0
  %1413 = vmatprep.mubr.bf16.mxu0 0
  %1414 = vmatmul.mubr.bf16.gmra.mrb[0].mxu0 %v295
  %v1415 = vpop.f32.mrb[0].mxu0
  %v1416 = vadd.f32 %v1360, %v1415
  %v1417 = vpop.f32.mrb[0].mxu0
  %v1418 = vpop.f32.mrb[0].mxu0
  %v1419 = vadd.f32 %v1360, %v1418
  %v1420 = vpop.f32.mrb[0].mxu0
  %1421 = vmatprep.mubr.bf16.mxu0 0
  %1422 = vmatmul.mubr.bf16.gmra.mrb[0].mxu0 %v298
  %v1423 = vpop.f32.mrb[0].mxu0
  %v1424 = vadd.f32 %v1360, %v1423
  %v1425 = vpop.f32.mrb[0].mxu0
  %v1426 = vpop.f32.mrb[0].mxu0
  %v1427 = vadd.f32 %v1360, %v1426
  %v1428 = vpop.f32.mrb[0].mxu0
  %1429 = vmatprep.mubr.bf16.mxu0 0
  %1430 = vmatmul.mubr.bf16.gmra.mrb[0].mxu0 %v301
  %v1431 = vpop.f32.mrb[0].mxu0
  %v1432 = vadd.f32 %v1360, %v1431
  %v1433 = vpop.f32.mrb[0].mxu0
  %v1434 = vpop.f32.mrb[0].mxu0
  %v1435 = vadd.f32 %v1360, %v1434
  %v1436 = vpop.f32.mrb[0].mxu0
  %1437 = vmatprep.mubr.bf16.mxu0 0
  %1438 = vmatmul.mubr.bf16.gmra.mrb[0].mxu0 %v304
  %v1439 = vpop.f32.mrb[0].mxu0
  %v1440 = vadd.f32 %v1360, %v1439
  %v1441 = vpop.f32.mrb[0].mxu0
  %v1442 = vpop.f32.mrb[0].mxu0
  %v1443 = vadd.f32 %v1360, %v1442
  %v1444 = vpop.f32.mrb[0].mxu0
  %1445 = vmatprep.mubr.bf16.mxu0 0
  %1446 = vmatmul.mubr.bf16.gmra.mrb[0].mxu0 %v307
  %v1447 = vpop.f32.mrb[0].mxu0
  %v1448 = vadd.f32 %v1360, %v1447
  %v1449 = vpop.f32.mrb[0].mxu0
  %v1450 = vpop.f32.mrb[0].mxu0
  %v1451 = vadd.f32 %v1360, %v1450
  %v1452 = vpop.f32.mrb[0].mxu0
  %1453 = vmatprep.mubr.bf16.mxu0 0
  %1454 = vmatmul.mubr.bf16.gmra.mrb[0].mxu0 %v310
  %v1455 = vpop.f32.mrb[0].mxu0
  %v1456 = vadd.f32 %v1360, %v1455
  %v1457 = vpop.f32.mrb[0].mxu0
  %v1458 = vpop.f32.mrb[0].mxu0
  %v1459 = vadd.f32 %v1360, %v1458
  %v1460 = vpop.f32.mrb[0].mxu0
  %1461 = vdwg.mxu0
  %s1462 = scalar_lea.vmem %s1, 384
  %v1463 = vld [vmem:[%s1462] sm:$0xf]
  %v1464 = vld [vmem:[%s1462 + $0x4] sm:$0xf]
  %v1465 = vld [vmem:[%s1462 + $0x8] sm:$0xf]
  %v1466 = vld [vmem:[%s1462 + $0xc] sm:$0xf]
  %v1467 = vld [vmem:[%s1462 + $0x10] sm:$0xf]
  %v1468 = vld [vmem:[%s1462 + $0x14] sm:$0xf]
  %v1469 = vld [vmem:[%s1462 + $0x18] sm:$0xf]
  %v1470 = vld [vmem:[%s1462 + $0x1c] sm:$0xf]
  %v1471 = vld [vmem:[%s1462 + $0x20] sm:$0xf]
  %v1472 = vld [vmem:[%s1462 + $0x24] sm:$0xf]
  %v1473 = vld [vmem:[%s1462 + $0x28] sm:$0xf]
  %v1474 = vld [vmem:[%s1462 + $0x2c] sm:$0xf]
  %v1475 = vld [vmem:[%s1462 + $0x30] sm:$0xf]
  %v1476 = vld [vmem:[%s1462 + $0x34] sm:$0xf]
  %v1477 = vld [vmem:[%s1462 + $0x38] sm:$0xf]
  %v1478 = vld [vmem:[%s1462 + $0x3c] sm:$0xf]
  %v1479 = vunpack.c.l.bf16 %v1463
  %v1480 = vunpack.c.l.bf16 %v1464
  %v1481 = vunpack.c.l.bf16 %v1465
  %v1482 = vunpack.c.l.bf16 %v1466
  %v1483 = vunpack.c.l.bf16 %v1467
  %v1484 = vunpack.c.l.bf16 %v1468
  %v1485 = vunpack.c.l.bf16 %v1469
  %v1486 = vunpack.c.l.bf16 %v1470
  %v1487 = vunpack.c.l.bf16 %v1471
  %v1488 = vunpack.c.l.bf16 %v1472
  %v1489 = vunpack.c.l.bf16 %v1473
  %v1490 = vunpack.c.l.bf16 %v1474
  %v1491 = vunpack.c.l.bf16 %v1475
  %v1492 = vunpack.c.l.bf16 %v1476
  %v1493 = vunpack.c.l.bf16 %v1477
  %v1494 = vunpack.c.l.bf16 %v1478
  %v1495 = vmul.f32 %v1400, %v1479
  %v1496 = vmul.f32 %v1403, %v1480
  %v1497 = vmul.f32 %v1408, %v1481
  %v1498 = vmul.f32 %v1411, %v1482
  %v1499 = vmul.f32 %v1416, %v1483
  %v1500 = vmul.f32 %v1419, %v1484
  %v1501 = vmul.f32 %v1424, %v1485
  %v1502 = vmul.f32 %v1427, %v1486
  %v1503 = vmul.f32 %v1432, %v1487
  %v1504 = vmul.f32 %v1435, %v1488
  %v1505 = vmul.f32 %v1440, %v1489
  %v1506 = vmul.f32 %v1443, %v1490
  %v1507 = vmul.f32 %v1448, %v1491
  %v1508 = vmul.f32 %v1451, %v1492
  %v1509 = vmul.f32 %v1456, %v1493
  %v1510 = vmul.f32 %v1459, %v1494
  %v1511 = vadd.f32 %v1336, %v1495
  %v1512 = vadd.f32 %v1337, %v1496
  %v1513 = vadd.f32 %v1338, %v1497
  %v1514 = vadd.f32 %v1339, %v1498
  %v1515 = vadd.f32 %v1340, %v1499
  %v1516 = vadd.f32 %v1341, %v1500
  %v1517 = vadd.f32 %v1342, %v1501
  %v1518 = vadd.f32 %v1343, %v1502
  %v1519 = vadd.f32 %v1344, %v1503
  %v1520 = vadd.f32 %v1345, %v1504
  %v1521 = vadd.f32 %v1346, %v1505
  %v1522 = vadd.f32 %v1347, %v1506
  %v1523 = vadd.f32 %v1348, %v1507
  %v1524 = vadd.f32 %v1349, %v1508
  %v1525 = vadd.f32 %v1350, %v1509
  %v1526 = vadd.f32 %v1351, %v1510
  %s1527 = scalar_lea.vmem %s4, 7
  %v1528 = vld [vmem:[%s1527] sm:$0x1]
  %s1529 = scalar_lea.vmem %s5, 7
  %v1530 = vld [vmem:[%s1529] sm:$0x1]
  %v1532 = vlaneseq
  %v1533 = vshrl.u32 %v1532, 7
  %v1534 = vsub.s32 0, %v1533
  %v1535 = vrot.slane %v1530, %v1534
  %v1538 = vsel %vm312, %v1528, 0
  %1540 = vmatprep.subr.bf16.mxu0 0
  %1541 = vmatpush1.bf16.msra.mxu0 %v1538
  %1542 = vmatprep.subr.bf16.mxu0 0
  %1543 = vmatpush1.bf16.msra.mxu0 0
  %1544 = vmatprep.subr.bf16.mxu0 0
  %1545 = vmatpush1.bf16.msra.mxu0 0
  %1546 = vmatprep.subr.bf16.mxu0 0
  %1547 = vmatpush1.bf16.msra.mxu0 0
  %1548 = vmatprep.subr.bf16.mxu0 0
  %1549 = vmatpush1.bf16.msra.mxu0 0
  %1550 = vmatprep.subr.bf16.mxu0 0
  %1551 = vmatpush1.bf16.msra.mxu0 0
  %1552 = vmatprep.subr.bf16.mxu0 0
  %1553 = vmatpush1.bf16.msra.mxu0 0
  %1554 = vmatprep.subr.bf16.mxu0 0
  %1555 = vmatpush1.bf16.msra.mxu0 0
  %1556 = vmatprep.subr.bf16.mxu0 0
  %1557 = vmatpush1.bf16.msra.mxu0 0
  %1558 = vmatprep.subr.bf16.mxu0 0
  %1559 = vmatpush1.bf16.msra.mxu0 0
  %1560 = vmatprep.subr.bf16.mxu0 0
  %1561 = vmatpush1.bf16.msra.mxu0 0
  %1562 = vmatprep.subr.bf16.mxu0 0
  %1563 = vmatpush1.bf16.msra.mxu0 0
  %1564 = vmatprep.subr.bf16.mxu0 0
  %1565 = vmatpush1.bf16.msra.mxu0 0
  %1566 = vmatprep.subr.bf16.mxu0 0
  %1567 = vmatpush1.bf16.msra.mxu0 0
  %1568 = vmatprep.subr.bf16.mxu0 0
  %1569 = vmatpush1.bf16.msra.mxu0 0
  %1570 = vmatprep.subr.bf16.mxu0 0
  %1571 = vmatpush1.bf16.msra.mxu0 0
  %1572 = vmatprep.mubr.bf16.mxu0 0
  %1573 = vmatmul.mubr.bf16.gmra.mrb[0].mxu0 %v289
  %v1574 = vpop.f32.mrb[0].mxu0
  %v1575 = vadd.f32 %v1535, %v1574
  %v1576 = vpop.f32.mrb[0].mxu0
  %v1577 = vpop.f32.mrb[0].mxu0
  %v1578 = vadd.f32 %v1535, %v1577
  %v1579 = vpop.f32.mrb[0].mxu0
  %1580 = vmatprep.mubr.bf16.mxu0 0
  %1581 = vmatmul.mubr.bf16.gmra.mrb[0].mxu0 %v292
  %v1582 = vpop.f32.mrb[0].mxu0
  %v1583 = vadd.f32 %v1535, %v1582
  %v1584 = vpop.f32.mrb[0].mxu0
  %v1585 = vpop.f32.mrb[0].mxu0
  %v1586 = vadd.f32 %v1535, %v1585
  %v1587 = vpop.f32.mrb[0].mxu0
  %1588 = vmatprep.mubr.bf16.mxu0 0
  %1589 = vmatmul.mubr.bf16.gmra.mrb[0].mxu0 %v295
  %v1590 = vpop.f32.mrb[0].mxu0
  %v1591 = vadd.f32 %v1535, %v1590
  %v1592 = vpop.f32.mrb[0].mxu0
  %v1593 = vpop.f32.mrb[0].mxu0
  %v1594 = vadd.f32 %v1535, %v1593
  %v1595 = vpop.f32.mrb[0].mxu0
  %1596 = vmatprep.mubr.bf16.mxu0 0
  %1597 = vmatmul.mubr.bf16.gmra.mrb[0].mxu0 %v298
  %v1598 = vpop.f32.mrb[0].mxu0
  %v1599 = vadd.f32 %v1535, %v1598
  %v1600 = vpop.f32.mrb[0].mxu0
  %v1601 = vpop.f32.mrb[0].mxu0
  %v1602 = vadd.f32 %v1535, %v1601
  %v1603 = vpop.f32.mrb[0].mxu0
  %1604 = vmatprep.mubr.bf16.mxu0 0
  %1605 = vmatmul.mubr.bf16.gmra.mrb[0].mxu0 %v301
  %v1606 = vpop.f32.mrb[0].mxu0
  %v1607 = vadd.f32 %v1535, %v1606
  %v1608 = vpop.f32.mrb[0].mxu0
  %v1609 = vpop.f32.mrb[0].mxu0
  %v1610 = vadd.f32 %v1535, %v1609
  %v1611 = vpop.f32.mrb[0].mxu0
  %1612 = vmatprep.mubr.bf16.mxu0 0
  %1613 = vmatmul.mubr.bf16.gmra.mrb[0].mxu0 %v304
  %v1614 = vpop.f32.mrb[0].mxu0
  %v1615 = vadd.f32 %v1535, %v1614
  %v1616 = vpop.f32.mrb[0].mxu0
  %v1617 = vpop.f32.mrb[0].mxu0
  %v1618 = vadd.f32 %v1535, %v1617
  %v1619 = vpop.f32.mrb[0].mxu0
  %1620 = vmatprep.mubr.bf16.mxu0 0
  %1621 = vmatmul.mubr.bf16.gmra.mrb[0].mxu0 %v307
  %v1622 = vpop.f32.mrb[0].mxu0
  %v1623 = vadd.f32 %v1535, %v1622
  %v1624 = vpop.f32.mrb[0].mxu0
  %v1625 = vpop.f32.mrb[0].mxu0
  %v1626 = vadd.f32 %v1535, %v1625
  %v1627 = vpop.f32.mrb[0].mxu0
  %1628 = vmatprep.mubr.bf16.mxu0 0
  %1629 = vmatmul.mubr.bf16.gmra.mrb[0].mxu0 %v310
  %v1630 = vpop.f32.mrb[0].mxu0
  %v1631 = vadd.f32 %v1535, %v1630
  %v1632 = vpop.f32.mrb[0].mxu0
  %v1633 = vpop.f32.mrb[0].mxu0
  %v1634 = vadd.f32 %v1535, %v1633
  %v1635 = vpop.f32.mrb[0].mxu0
  %1636 = vdwg.mxu0
  %s1637 = scalar_lea.vmem %s1, 448
  %v1638 = vld [vmem:[%s1637] sm:$0xf]
  %v1639 = vld [vmem:[%s1637 + $0x4] sm:$0xf]
  %v1640 = vld [vmem:[%s1637 + $0x8] sm:$0xf]
  %v1641 = vld [vmem:[%s1637 + $0xc] sm:$0xf]
  %v1642 = vld [vmem:[%s1637 + $0x10] sm:$0xf]
  %v1643 = vld [vmem:[%s1637 + $0x14] sm:$0xf]
  %v1644 = vld [vmem:[%s1637 + $0x18] sm:$0xf]
  %v1645 = vld [vmem:[%s1637 + $0x1c] sm:$0xf]
  %v1646 = vld [vmem:[%s1637 + $0x20] sm:$0xf]
  %v1647 = vld [vmem:[%s1637 + $0x24] sm:$0xf]
  %v1648 = vld [vmem:[%s1637 + $0x28] sm:$0xf]
  %v1649 = vld [vmem:[%s1637 + $0x2c] sm:$0xf]
  %v1650 = vld [vmem:[%s1637 + $0x30] sm:$0xf]
  %v1651 = vld [vmem:[%s1637 + $0x34] sm:$0xf]
  %v1652 = vld [vmem:[%s1637 + $0x38] sm:$0xf]
  %v1653 = vld [vmem:[%s1637 + $0x3c] sm:$0xf]
  %v1654 = vunpack.c.l.bf16 %v1638
  %v1655 = vunpack.c.l.bf16 %v1639
  %v1656 = vunpack.c.l.bf16 %v1640
  %v1657 = vunpack.c.l.bf16 %v1641
  %v1658 = vunpack.c.l.bf16 %v1642
  %v1659 = vunpack.c.l.bf16 %v1643
  %v1660 = vunpack.c.l.bf16 %v1644
  %v1661 = vunpack.c.l.bf16 %v1645
  %v1662 = vunpack.c.l.bf16 %v1646
  %v1663 = vunpack.c.l.bf16 %v1647
  %v1664 = vunpack.c.l.bf16 %v1648
  %v1665 = vunpack.c.l.bf16 %v1649
  %v1666 = vunpack.c.l.bf16 %v1650
  %v1667 = vunpack.c.l.bf16 %v1651
  %v1668 = vunpack.c.l.bf16 %v1652
  %v1669 = vunpack.c.l.bf16 %v1653
  %v1670 = vmul.f32 %v1575, %v1654
  %v1671 = vmul.f32 %v1578, %v1655
  %v1672 = vmul.f32 %v1583, %v1656
  %v1673 = vmul.f32 %v1586, %v1657
  %v1674 = vmul.f32 %v1591, %v1658
  %v1675 = vmul.f32 %v1594, %v1659
  %v1676 = vmul.f32 %v1599, %v1660
  %v1677 = vmul.f32 %v1602, %v1661
  %v1678 = vmul.f32 %v1607, %v1662
  %v1679 = vmul.f32 %v1610, %v1663
  %v1680 = vmul.f32 %v1615, %v1664
  %v1681 = vmul.f32 %v1618, %v1665
  %v1682 = vmul.f32 %v1623, %v1666
  %v1683 = vmul.f32 %v1626, %v1667
  %v1684 = vmul.f32 %v1631, %v1668
  %v1685 = vmul.f32 %v1634, %v1669
  %v1686 = vadd.f32 %v1511, %v1670
  %v1687 = vadd.f32 %v1512, %v1671
  %v1688 = vadd.f32 %v1513, %v1672
  %v1689 = vadd.f32 %v1514, %v1673
  %v1690 = vadd.f32 %v1515, %v1674
  %v1691 = vadd.f32 %v1516, %v1675
  %v1692 = vadd.f32 %v1517, %v1676
  %v1693 = vadd.f32 %v1518, %v1677
  %v1694 = vadd.f32 %v1519, %v1678
  %v1695 = vadd.f32 %v1520, %v1679
  %v1696 = vadd.f32 %v1521, %v1680
  %v1697 = vadd.f32 %v1522, %v1681
  %v1698 = vadd.f32 %v1523, %v1682
  %v1699 = vadd.f32 %v1524, %v1683
  %v1700 = vadd.f32 %v1525, %v1684
  %v1701 = vadd.f32 %v1526, %v1685
  %s1702 = scalar_lea.vmem %s4, 8
  %v1703 = vld [vmem:[%s1702] sm:$0x1]
  %s1704 = scalar_lea.vmem %s5, 8
  %v1705 = vld [vmem:[%s1704] sm:$0x1]
  %v1707 = vlaneseq
  %v1708 = vshrl.u32 %v1707, 7
  %v1709 = vsub.s32 0, %v1708
  %v1710 = vrot.slane %v1705, %v1709
  %v1713 = vsel %vm312, %v1703, 0
  %1715 = vmatprep.subr.bf16.mxu0 0
  %1716 = vmatpush1.bf16.msra.mxu0 %v1713
  %1717 = vmatprep.subr.bf16.mxu0 0
  %1718 = vmatpush1.bf16.msra.mxu0 0
  %1719 = vmatprep.subr.bf16.mxu0 0
  %1720 = vmatpush1.bf16.msra.mxu0 0
  %1721 = vmatprep.subr.bf16.mxu0 0
  %1722 = vmatpush1.bf16.msra.mxu0 0
  %1723 = vmatprep.subr.bf16.mxu0 0
  %1724 = vmatpush1.bf16.msra.mxu0 0
  %1725 = vmatprep.subr.bf16.mxu0 0
  %1726 = vmatpush1.bf16.msra.mxu0 0
  %1727 = vmatprep.subr.bf16.mxu0 0
  %1728 = vmatpush1.bf16.msra.mxu0 0
  %1729 = vmatprep.subr.bf16.mxu0 0
  %1730 = vmatpush1.bf16.msra.mxu0 0
  %1731 = vmatprep.subr.bf16.mxu0 0
  %1732 = vmatpush1.bf16.msra.mxu0 0
  %1733 = vmatprep.subr.bf16.mxu0 0
  %1734 = vmatpush1.bf16.msra.mxu0 0
  %1735 = vmatprep.subr.bf16.mxu0 0
  %1736 = vmatpush1.bf16.msra.mxu0 0
  %1737 = vmatprep.subr.bf16.mxu0 0
  %1738 = vmatpush1.bf16.msra.mxu0 0
  %1739 = vmatprep.subr.bf16.mxu0 0
  %1740 = vmatpush1.bf16.msra.mxu0 0
  %1741 = vmatprep.subr.bf16.mxu0 0
  %1742 = vmatpush1.bf16.msra.mxu0 0
  %1743 = vmatprep.subr.bf16.mxu0 0
  %1744 = vmatpush1.bf16.msra.mxu0 0
  %1745 = vmatprep.subr.bf16.mxu0 0
  %1746 = vmatpush1.bf16.msra.mxu0 0
  %1747 = vmatprep.mubr.bf16.mxu0 0
  %1748 = vmatmul.mubr.bf16.gmra.mrb[0].mxu0 %v289
  %v1749 = vpop.f32.mrb[0].mxu0
  %v1750 = vadd.f32 %v1710, %v1749
  %v1751 = vpop.f32.mrb[0].mxu0
  %v1752 = vpop.f32.mrb[0].mxu0
  %v1753 = vadd.f32 %v1710, %v1752
  %v1754 = vpop.f32.mrb[0].mxu0
  %1755 = vmatprep.mubr.bf16.mxu0 0
  %1756 = vmatmul.mubr.bf16.gmra.mrb[0].mxu0 %v292
  %v1757 = vpop.f32.mrb[0].mxu0
  %v1758 = vadd.f32 %v1710, %v1757
  %v1759 = vpop.f32.mrb[0].mxu0
  %v1760 = vpop.f32.mrb[0].mxu0
  %v1761 = vadd.f32 %v1710, %v1760
  %v1762 = vpop.f32.mrb[0].mxu0
  %1763 = vmatprep.mubr.bf16.mxu0 0
  %1764 = vmatmul.mubr.bf16.gmra.mrb[0].mxu0 %v295
  %v1765 = vpop.f32.mrb[0].mxu0
  %v1766 = vadd.f32 %v1710, %v1765
  %v1767 = vpop.f32.mrb[0].mxu0
  %v1768 = vpop.f32.mrb[0].mxu0
  %v1769 = vadd.f32 %v1710, %v1768
  %v1770 = vpop.f32.mrb[0].mxu0
  %1771 = vmatprep.mubr.bf16.mxu0 0
  %1772 = vmatmul.mubr.bf16.gmra.mrb[0].mxu0 %v298
  %v1773 = vpop.f32.mrb[0].mxu0
  %v1774 = vadd.f32 %v1710, %v1773
  %v1775 = vpop.f32.mrb[0].mxu0
  %v1776 = vpop.f32.mrb[0].mxu0
  %v1777 = vadd.f32 %v1710, %v1776
  %v1778 = vpop.f32.mrb[0].mxu0
  %1779 = vmatprep.mubr.bf16.mxu0 0
  %1780 = vmatmul.mubr.bf16.gmra.mrb[0].mxu0 %v301
  %v1781 = vpop.f32.mrb[0].mxu0
  %v1782 = vadd.f32 %v1710, %v1781
  %v1783 = vpop.f32.mrb[0].mxu0
  %v1784 = vpop.f32.mrb[0].mxu0
  %v1785 = vadd.f32 %v1710, %v1784
  %v1786 = vpop.f32.mrb[0].mxu0
  %1787 = vmatprep.mubr.bf16.mxu0 0
  %1788 = vmatmul.mubr.bf16.gmra.mrb[0].mxu0 %v304
  %v1789 = vpop.f32.mrb[0].mxu0
  %v1790 = vadd.f32 %v1710, %v1789
  %v1791 = vpop.f32.mrb[0].mxu0
  %v1792 = vpop.f32.mrb[0].mxu0
  %v1793 = vadd.f32 %v1710, %v1792
  %v1794 = vpop.f32.mrb[0].mxu0
  %1795 = vmatprep.mubr.bf16.mxu0 0
  %1796 = vmatmul.mubr.bf16.gmra.mrb[0].mxu0 %v307
  %v1797 = vpop.f32.mrb[0].mxu0
  %v1798 = vadd.f32 %v1710, %v1797
  %v1799 = vpop.f32.mrb[0].mxu0
  %v1800 = vpop.f32.mrb[0].mxu0
  %v1801 = vadd.f32 %v1710, %v1800
  %v1802 = vpop.f32.mrb[0].mxu0
  %1803 = vmatprep.mubr.bf16.mxu0 0
  %1804 = vmatmul.mubr.bf16.gmra.mrb[0].mxu0 %v310
  %v1805 = vpop.f32.mrb[0].mxu0
  %v1806 = vadd.f32 %v1710, %v1805
  %v1807 = vpop.f32.mrb[0].mxu0
  %v1808 = vpop.f32.mrb[0].mxu0
  %v1809 = vadd.f32 %v1710, %v1808
  %v1810 = vpop.f32.mrb[0].mxu0
  %1811 = vdwg.mxu0
  %s1812 = scalar_lea.vmem %s1, 512
  %v1813 = vld [vmem:[%s1812] sm:$0xf]
  %v1814 = vld [vmem:[%s1812 + $0x4] sm:$0xf]
  %v1815 = vld [vmem:[%s1812 + $0x8] sm:$0xf]
  %v1816 = vld [vmem:[%s1812 + $0xc] sm:$0xf]
  %v1817 = vld [vmem:[%s1812 + $0x10] sm:$0xf]
  %v1818 = vld [vmem:[%s1812 + $0x14] sm:$0xf]
  %v1819 = vld [vmem:[%s1812 + $0x18] sm:$0xf]
  %v1820 = vld [vmem:[%s1812 + $0x1c] sm:$0xf]
  %v1821 = vld [vmem:[%s1812 + $0x20] sm:$0xf]
  %v1822 = vld [vmem:[%s1812 + $0x24] sm:$0xf]
  %v1823 = vld [vmem:[%s1812 + $0x28] sm:$0xf]
  %v1824 = vld [vmem:[%s1812 + $0x2c] sm:$0xf]
  %v1825 = vld [vmem:[%s1812 + $0x30] sm:$0xf]
  %v1826 = vld [vmem:[%s1812 + $0x34] sm:$0xf]
  %v1827 = vld [vmem:[%s1812 + $0x38] sm:$0xf]
  %v1828 = vld [vmem:[%s1812 + $0x3c] sm:$0xf]
  %v1829 = vunpack.c.l.bf16 %v1813
  %v1830 = vunpack.c.l.bf16 %v1814
  %v1831 = vunpack.c.l.bf16 %v1815
  %v1832 = vunpack.c.l.bf16 %v1816
  %v1833 = vunpack.c.l.bf16 %v1817
  %v1834 = vunpack.c.l.bf16 %v1818
  %v1835 = vunpack.c.l.bf16 %v1819
  %v1836 = vunpack.c.l.bf16 %v1820
  %v1837 = vunpack.c.l.bf16 %v1821
  %v1838 = vunpack.c.l.bf16 %v1822
  %v1839 = vunpack.c.l.bf16 %v1823
  %v1840 = vunpack.c.l.bf16 %v1824
  %v1841 = vunpack.c.l.bf16 %v1825
  %v1842 = vunpack.c.l.bf16 %v1826
  %v1843 = vunpack.c.l.bf16 %v1827
  %v1844 = vunpack.c.l.bf16 %v1828
  %v1845 = vmul.f32 %v1750, %v1829
  %v1846 = vmul.f32 %v1753, %v1830
  %v1847 = vmul.f32 %v1758, %v1831
  %v1848 = vmul.f32 %v1761, %v1832
  %v1849 = vmul.f32 %v1766, %v1833
  %v1850 = vmul.f32 %v1769, %v1834
  %v1851 = vmul.f32 %v1774, %v1835
  %v1852 = vmul.f32 %v1777, %v1836
  %v1853 = vmul.f32 %v1782, %v1837
  %v1854 = vmul.f32 %v1785, %v1838
  %v1855 = vmul.f32 %v1790, %v1839
  %v1856 = vmul.f32 %v1793, %v1840
  %v1857 = vmul.f32 %v1798, %v1841
  %v1858 = vmul.f32 %v1801, %v1842
  %v1859 = vmul.f32 %v1806, %v1843
  %v1860 = vmul.f32 %v1809, %v1844
  %v1861 = vadd.f32 %v1686, %v1845
  %v1862 = vadd.f32 %v1687, %v1846
  %v1863 = vadd.f32 %v1688, %v1847
  %v1864 = vadd.f32 %v1689, %v1848
  %v1865 = vadd.f32 %v1690, %v1849
  %v1866 = vadd.f32 %v1691, %v1850
  %v1867 = vadd.f32 %v1692, %v1851
  %v1868 = vadd.f32 %v1693, %v1852
  %v1869 = vadd.f32 %v1694, %v1853
  %v1870 = vadd.f32 %v1695, %v1854
  %v1871 = vadd.f32 %v1696, %v1855
  %v1872 = vadd.f32 %v1697, %v1856
  %v1873 = vadd.f32 %v1698, %v1857
  %v1874 = vadd.f32 %v1699, %v1858
  %v1875 = vadd.f32 %v1700, %v1859
  %v1876 = vadd.f32 %v1701, %v1860
  %s1877 = scalar_lea.vmem %s4, 9
  %v1878 = vld [vmem:[%s1877] sm:$0x1]
  %s1879 = scalar_lea.vmem %s5, 9
  %v1880 = vld [vmem:[%s1879] sm:$0x1]
  %v1882 = vlaneseq
  %v1883 = vshrl.u32 %v1882, 7
  %v1884 = vsub.s32 0, %v1883
  %v1885 = vrot.slane %v1880, %v1884
  %v1888 = vsel %vm312, %v1878, 0
  %1890 = vmatprep.subr.bf16.mxu0 0
  %1891 = vmatpush1.bf16.msra.mxu0 %v1888
  %1892 = vmatprep.subr.bf16.mxu0 0
  %1893 = vmatpush1.bf16.msra.mxu0 0
  %1894 = vmatprep.subr.bf16.mxu0 0
  %1895 = vmatpush1.bf16.msra.mxu0 0
  %1896 = vmatprep.subr.bf16.mxu0 0
  %1897 = vmatpush1.bf16.msra.mxu0 0
  %1898 = vmatprep.subr.bf16.mxu0 0
  %1899 = vmatpush1.bf16.msra.mxu0 0
  %1900 = vmatprep.subr.bf16.mxu0 0
  %1901 = vmatpush1.bf16.msra.mxu0 0
  %1902 = vmatprep.subr.bf16.mxu0 0
  %1903 = vmatpush1.bf16.msra.mxu0 0
  %1904 = vmatprep.subr.bf16.mxu0 0
  %1905 = vmatpush1.bf16.msra.mxu0 0
  %1906 = vmatprep.subr.bf16.mxu0 0
  %1907 = vmatpush1.bf16.msra.mxu0 0
  %1908 = vmatprep.subr.bf16.mxu0 0
  %1909 = vmatpush1.bf16.msra.mxu0 0
  %1910 = vmatprep.subr.bf16.mxu0 0
  %1911 = vmatpush1.bf16.msra.mxu0 0
  %1912 = vmatprep.subr.bf16.mxu0 0
  %1913 = vmatpush1.bf16.msra.mxu0 0
  %1914 = vmatprep.subr.bf16.mxu0 0
  %1915 = vmatpush1.bf16.msra.mxu0 0
  %1916 = vmatprep.subr.bf16.mxu0 0
  %1917 = vmatpush1.bf16.msra.mxu0 0
  %1918 = vmatprep.subr.bf16.mxu0 0
  %1919 = vmatpush1.bf16.msra.mxu0 0
  %1920 = vmatprep.subr.bf16.mxu0 0
  %1921 = vmatpush1.bf16.msra.mxu0 0
  %1922 = vmatprep.mubr.bf16.mxu0 0
  %1923 = vmatmul.mubr.bf16.gmra.mrb[0].mxu0 %v289
  %v1924 = vpop.f32.mrb[0].mxu0
  %v1925 = vadd.f32 %v1885, %v1924
  %v1926 = vpop.f32.mrb[0].mxu0
  %v1927 = vpop.f32.mrb[0].mxu0
  %v1928 = vadd.f32 %v1885, %v1927
  %v1929 = vpop.f32.mrb[0].mxu0
  %1930 = vmatprep.mubr.bf16.mxu0 0
  %1931 = vmatmul.mubr.bf16.gmra.mrb[0].mxu0 %v292
  %v1932 = vpop.f32.mrb[0].mxu0
  %v1933 = vadd.f32 %v1885, %v1932
  %v1934 = vpop.f32.mrb[0].mxu0
  %v1935 = vpop.f32.mrb[0].mxu0
  %v1936 = vadd.f32 %v1885, %v1935
  %v1937 = vpop.f32.mrb[0].mxu0
  %1938 = vmatprep.mubr.bf16.mxu0 0
  %1939 = vmatmul.mubr.bf16.gmra.mrb[0].mxu0 %v295
  %v1940 = vpop.f32.mrb[0].mxu0
  %v1941 = vadd.f32 %v1885, %v1940
  %v1942 = vpop.f32.mrb[0].mxu0
  %v1943 = vpop.f32.mrb[0].mxu0
  %v1944 = vadd.f32 %v1885, %v1943
  %v1945 = vpop.f32.mrb[0].mxu0
  %1946 = vmatprep.mubr.bf16.mxu0 0
  %1947 = vmatmul.mubr.bf16.gmra.mrb[0].mxu0 %v298
  %v1948 = vpop.f32.mrb[0].mxu0
  %v1949 = vadd.f32 %v1885, %v1948
  %v1950 = vpop.f32.mrb[0].mxu0
  %v1951 = vpop.f32.mrb[0].mxu0
  %v1952 = vadd.f32 %v1885, %v1951
  %v1953 = vpop.f32.mrb[0].mxu0
  %1954 = vmatprep.mubr.bf16.mxu0 0
  %1955 = vmatmul.mubr.bf16.gmra.mrb[0].mxu0 %v301
  %v1956 = vpop.f32.mrb[0].mxu0
  %v1957 = vadd.f32 %v1885, %v1956
  %v1958 = vpop.f32.mrb[0].mxu0
  %v1959 = vpop.f32.mrb[0].mxu0
  %v1960 = vadd.f32 %v1885, %v1959
  %v1961 = vpop.f32.mrb[0].mxu0
  %1962 = vmatprep.mubr.bf16.mxu0 0
  %1963 = vmatmul.mubr.bf16.gmra.mrb[0].mxu0 %v304
  %v1964 = vpop.f32.mrb[0].mxu0
  %v1965 = vadd.f32 %v1885, %v1964
  %v1966 = vpop.f32.mrb[0].mxu0
  %v1967 = vpop.f32.mrb[0].mxu0
  %v1968 = vadd.f32 %v1885, %v1967
  %v1969 = vpop.f32.mrb[0].mxu0
  %1970 = vmatprep.mubr.bf16.mxu0 0
  %1971 = vmatmul.mubr.bf16.gmra.mrb[0].mxu0 %v307
  %v1972 = vpop.f32.mrb[0].mxu0
  %v1973 = vadd.f32 %v1885, %v1972
  %v1974 = vpop.f32.mrb[0].mxu0
  %v1975 = vpop.f32.mrb[0].mxu0
  %v1976 = vadd.f32 %v1885, %v1975
  %v1977 = vpop.f32.mrb[0].mxu0
  %1978 = vmatprep.mubr.bf16.mxu0 0
  %1979 = vmatmul.mubr.bf16.gmra.mrb[0].mxu0 %v310
  %v1980 = vpop.f32.mrb[0].mxu0
  %v1981 = vadd.f32 %v1885, %v1980
  %v1982 = vpop.f32.mrb[0].mxu0
  %v1983 = vpop.f32.mrb[0].mxu0
  %v1984 = vadd.f32 %v1885, %v1983
  %v1985 = vpop.f32.mrb[0].mxu0
  %1986 = vdwg.mxu0
  %s1987 = scalar_lea.vmem %s1, 576
  %v1988 = vld [vmem:[%s1987] sm:$0xf]
  %v1989 = vld [vmem:[%s1987 + $0x4] sm:$0xf]
  %v1990 = vld [vmem:[%s1987 + $0x8] sm:$0xf]
  %v1991 = vld [vmem:[%s1987 + $0xc] sm:$0xf]
  %v1992 = vld [vmem:[%s1987 + $0x10] sm:$0xf]
  %v1993 = vld [vmem:[%s1987 + $0x14] sm:$0xf]
  %v1994 = vld [vmem:[%s1987 + $0x18] sm:$0xf]
  %v1995 = vld [vmem:[%s1987 + $0x1c] sm:$0xf]
  %v1996 = vld [vmem:[%s1987 + $0x20] sm:$0xf]
  %v1997 = vld [vmem:[%s1987 + $0x24] sm:$0xf]
  %v1998 = vld [vmem:[%s1987 + $0x28] sm:$0xf]
  %v1999 = vld [vmem:[%s1987 + $0x2c] sm:$0xf]
  %v2000 = vld [vmem:[%s1987 + $0x30] sm:$0xf]
  %v2001 = vld [vmem:[%s1987 + $0x34] sm:$0xf]
  %v2002 = vld [vmem:[%s1987 + $0x38] sm:$0xf]
  %v2003 = vld [vmem:[%s1987 + $0x3c] sm:$0xf]
  %v2004 = vunpack.c.l.bf16 %v1988
  %v2005 = vunpack.c.l.bf16 %v1989
  %v2006 = vunpack.c.l.bf16 %v1990
  %v2007 = vunpack.c.l.bf16 %v1991
  %v2008 = vunpack.c.l.bf16 %v1992
  %v2009 = vunpack.c.l.bf16 %v1993
  %v2010 = vunpack.c.l.bf16 %v1994
  %v2011 = vunpack.c.l.bf16 %v1995
  %v2012 = vunpack.c.l.bf16 %v1996
  %v2013 = vunpack.c.l.bf16 %v1997
  %v2014 = vunpack.c.l.bf16 %v1998
  %v2015 = vunpack.c.l.bf16 %v1999
  %v2016 = vunpack.c.l.bf16 %v2000
  %v2017 = vunpack.c.l.bf16 %v2001
  %v2018 = vunpack.c.l.bf16 %v2002
  %v2019 = vunpack.c.l.bf16 %v2003
  %v2020 = vmul.f32 %v1925, %v2004
  %v2021 = vmul.f32 %v1928, %v2005
  %v2022 = vmul.f32 %v1933, %v2006
  %v2023 = vmul.f32 %v1936, %v2007
  %v2024 = vmul.f32 %v1941, %v2008
  %v2025 = vmul.f32 %v1944, %v2009
  %v2026 = vmul.f32 %v1949, %v2010
  %v2027 = vmul.f32 %v1952, %v2011
  %v2028 = vmul.f32 %v1957, %v2012
  %v2029 = vmul.f32 %v1960, %v2013
  %v2030 = vmul.f32 %v1965, %v2014
  %v2031 = vmul.f32 %v1968, %v2015
  %v2032 = vmul.f32 %v1973, %v2016
  %v2033 = vmul.f32 %v1976, %v2017
  %v2034 = vmul.f32 %v1981, %v2018
  %v2035 = vmul.f32 %v1984, %v2019
  %v2036 = vadd.f32 %v1861, %v2020
  %v2037 = vadd.f32 %v1862, %v2021
  %v2038 = vadd.f32 %v1863, %v2022
  %v2039 = vadd.f32 %v1864, %v2023
  %v2040 = vadd.f32 %v1865, %v2024
  %v2041 = vadd.f32 %v1866, %v2025
  %v2042 = vadd.f32 %v1867, %v2026
  %v2043 = vadd.f32 %v1868, %v2027
  %v2044 = vadd.f32 %v1869, %v2028
  %v2045 = vadd.f32 %v1870, %v2029
  %v2046 = vadd.f32 %v1871, %v2030
  %v2047 = vadd.f32 %v1872, %v2031
  %v2048 = vadd.f32 %v1873, %v2032
  %v2049 = vadd.f32 %v1874, %v2033
  %v2050 = vadd.f32 %v1875, %v2034
  %v2051 = vadd.f32 %v1876, %v2035
  %s2052 = scalar_lea.vmem %s4, 10
  %v2053 = vld [vmem:[%s2052] sm:$0x1]
  %s2054 = scalar_lea.vmem %s5, 10
  %v2055 = vld [vmem:[%s2054] sm:$0x1]
  %v2057 = vlaneseq
  %v2058 = vshrl.u32 %v2057, 7
  %v2059 = vsub.s32 0, %v2058
  %v2060 = vrot.slane %v2055, %v2059
  %v2063 = vsel %vm312, %v2053, 0
  %2065 = vmatprep.subr.bf16.mxu0 0
  %2066 = vmatpush1.bf16.msra.mxu0 %v2063
  %2067 = vmatprep.subr.bf16.mxu0 0
  %2068 = vmatpush1.bf16.msra.mxu0 0
  %2069 = vmatprep.subr.bf16.mxu0 0
  %2070 = vmatpush1.bf16.msra.mxu0 0
  %2071 = vmatprep.subr.bf16.mxu0 0
  %2072 = vmatpush1.bf16.msra.mxu0 0
  %2073 = vmatprep.subr.bf16.mxu0 0
  %2074 = vmatpush1.bf16.msra.mxu0 0
  %2075 = vmatprep.subr.bf16.mxu0 0
  %2076 = vmatpush1.bf16.msra.mxu0 0
  %2077 = vmatprep.subr.bf16.mxu0 0
  %2078 = vmatpush1.bf16.msra.mxu0 0
  %2079 = vmatprep.subr.bf16.mxu0 0
  %2080 = vmatpush1.bf16.msra.mxu0 0
  %2081 = vmatprep.subr.bf16.mxu0 0
  %2082 = vmatpush1.bf16.msra.mxu0 0
  %2083 = vmatprep.subr.bf16.mxu0 0
  %2084 = vmatpush1.bf16.msra.mxu0 0
  %2085 = vmatprep.subr.bf16.mxu0 0
  %2086 = vmatpush1.bf16.msra.mxu0 0
  %2087 = vmatprep.subr.bf16.mxu0 0
  %2088 = vmatpush1.bf16.msra.mxu0 0
  %2089 = vmatprep.subr.bf16.mxu0 0
  %2090 = vmatpush1.bf16.msra.mxu0 0
  %2091 = vmatprep.subr.bf16.mxu0 0
  %2092 = vmatpush1.bf16.msra.mxu0 0
  %2093 = vmatprep.subr.bf16.mxu0 0
  %2094 = vmatpush1.bf16.msra.mxu0 0
  %2095 = vmatprep.subr.bf16.mxu0 0
  %2096 = vmatpush1.bf16.msra.mxu0 0
  %2097 = vmatprep.mubr.bf16.mxu0 0
  %2098 = vmatmul.mubr.bf16.gmra.mrb[0].mxu0 %v289
  %v2099 = vpop.f32.mrb[0].mxu0
  %v2100 = vadd.f32 %v2060, %v2099
  %v2101 = vpop.f32.mrb[0].mxu0
  %v2102 = vpop.f32.mrb[0].mxu0
  %v2103 = vadd.f32 %v2060, %v2102
  %v2104 = vpop.f32.mrb[0].mxu0
  %2105 = vmatprep.mubr.bf16.mxu0 0
  %2106 = vmatmul.mubr.bf16.gmra.mrb[0].mxu0 %v292
  %v2107 = vpop.f32.mrb[0].mxu0
  %v2108 = vadd.f32 %v2060, %v2107
  %v2109 = vpop.f32.mrb[0].mxu0
  %v2110 = vpop.f32.mrb[0].mxu0
  %v2111 = vadd.f32 %v2060, %v2110
  %v2112 = vpop.f32.mrb[0].mxu0
  %2113 = vmatprep.mubr.bf16.mxu0 0
  %2114 = vmatmul.mubr.bf16.gmra.mrb[0].mxu0 %v295
  %v2115 = vpop.f32.mrb[0].mxu0
  %v2116 = vadd.f32 %v2060, %v2115
  %v2117 = vpop.f32.mrb[0].mxu0
  %v2118 = vpop.f32.mrb[0].mxu0
  %v2119 = vadd.f32 %v2060, %v2118
  %v2120 = vpop.f32.mrb[0].mxu0
  %2121 = vmatprep.mubr.bf16.mxu0 0
  %2122 = vmatmul.mubr.bf16.gmra.mrb[0].mxu0 %v298
  %v2123 = vpop.f32.mrb[0].mxu0
  %v2124 = vadd.f32 %v2060, %v2123
  %v2125 = vpop.f32.mrb[0].mxu0
  %v2126 = vpop.f32.mrb[0].mxu0
  %v2127 = vadd.f32 %v2060, %v2126
  %v2128 = vpop.f32.mrb[0].mxu0
  %2129 = vmatprep.mubr.bf16.mxu0 0
  %2130 = vmatmul.mubr.bf16.gmra.mrb[0].mxu0 %v301
  %v2131 = vpop.f32.mrb[0].mxu0
  %v2132 = vadd.f32 %v2060, %v2131
  %v2133 = vpop.f32.mrb[0].mxu0
  %v2134 = vpop.f32.mrb[0].mxu0
  %v2135 = vadd.f32 %v2060, %v2134
  %v2136 = vpop.f32.mrb[0].mxu0
  %2137 = vmatprep.mubr.bf16.mxu0 0
  %2138 = vmatmul.mubr.bf16.gmra.mrb[0].mxu0 %v304
  %v2139 = vpop.f32.mrb[0].mxu0
  %v2140 = vadd.f32 %v2060, %v2139
  %v2141 = vpop.f32.mrb[0].mxu0
  %v2142 = vpop.f32.mrb[0].mxu0
  %v2143 = vadd.f32 %v2060, %v2142
  %v2144 = vpop.f32.mrb[0].mxu0
  %2145 = vmatprep.mubr.bf16.mxu0 0
  %2146 = vmatmul.mubr.bf16.gmra.mrb[0].mxu0 %v307
  %v2147 = vpop.f32.mrb[0].mxu0
  %v2148 = vadd.f32 %v2060, %v2147
  %v2149 = vpop.f32.mrb[0].mxu0
  %v2150 = vpop.f32.mrb[0].mxu0
  %v2151 = vadd.f32 %v2060, %v2150
  %v2152 = vpop.f32.mrb[0].mxu0
  %2153 = vmatprep.mubr.bf16.mxu0 0
  %2154 = vmatmul.mubr.bf16.gmra.mrb[0].mxu0 %v310
  %v2155 = vpop.f32.mrb[0].mxu0
  %v2156 = vadd.f32 %v2060, %v2155
  %v2157 = vpop.f32.mrb[0].mxu0
  %v2158 = vpop.f32.mrb[0].mxu0
  %v2159 = vadd.f32 %v2060, %v2158
  %v2160 = vpop.f32.mrb[0].mxu0
  %2161 = vdwg.mxu0
  %s2162 = scalar_lea.vmem %s1, 640
  %v2163 = vld [vmem:[%s2162] sm:$0xf]
  %v2164 = vld [vmem:[%s2162 + $0x4] sm:$0xf]
  %v2165 = vld [vmem:[%s2162 + $0x8] sm:$0xf]
  %v2166 = vld [vmem:[%s2162 + $0xc] sm:$0xf]
  %v2167 = vld [vmem:[%s2162 + $0x10] sm:$0xf]
  %v2168 = vld [vmem:[%s2162 + $0x14] sm:$0xf]
  %v2169 = vld [vmem:[%s2162 + $0x18] sm:$0xf]
  %v2170 = vld [vmem:[%s2162 + $0x1c] sm:$0xf]
  %v2171 = vld [vmem:[%s2162 + $0x20] sm:$0xf]
  %v2172 = vld [vmem:[%s2162 + $0x24] sm:$0xf]
  %v2173 = vld [vmem:[%s2162 + $0x28] sm:$0xf]
  %v2174 = vld [vmem:[%s2162 + $0x2c] sm:$0xf]
  %v2175 = vld [vmem:[%s2162 + $0x30] sm:$0xf]
  %v2176 = vld [vmem:[%s2162 + $0x34] sm:$0xf]
  %v2177 = vld [vmem:[%s2162 + $0x38] sm:$0xf]
  %v2178 = vld [vmem:[%s2162 + $0x3c] sm:$0xf]
  %v2179 = vunpack.c.l.bf16 %v2163
  %v2180 = vunpack.c.l.bf16 %v2164
  %v2181 = vunpack.c.l.bf16 %v2165
  %v2182 = vunpack.c.l.bf16 %v2166
  %v2183 = vunpack.c.l.bf16 %v2167
  %v2184 = vunpack.c.l.bf16 %v2168
  %v2185 = vunpack.c.l.bf16 %v2169
  %v2186 = vunpack.c.l.bf16 %v2170
  %v2187 = vunpack.c.l.bf16 %v2171
  %v2188 = vunpack.c.l.bf16 %v2172
  %v2189 = vunpack.c.l.bf16 %v2173
  %v2190 = vunpack.c.l.bf16 %v2174
  %v2191 = vunpack.c.l.bf16 %v2175
  %v2192 = vunpack.c.l.bf16 %v2176
  %v2193 = vunpack.c.l.bf16 %v2177
  %v2194 = vunpack.c.l.bf16 %v2178
  %v2195 = vmul.f32 %v2100, %v2179
  %v2196 = vmul.f32 %v2103, %v2180
  %v2197 = vmul.f32 %v2108, %v2181
  %v2198 = vmul.f32 %v2111, %v2182
  %v2199 = vmul.f32 %v2116, %v2183
  %v2200 = vmul.f32 %v2119, %v2184
  %v2201 = vmul.f32 %v2124, %v2185
  %v2202 = vmul.f32 %v2127, %v2186
  %v2203 = vmul.f32 %v2132, %v2187
  %v2204 = vmul.f32 %v2135, %v2188
  %v2205 = vmul.f32 %v2140, %v2189
  %v2206 = vmul.f32 %v2143, %v2190
  %v2207 = vmul.f32 %v2148, %v2191
  %v2208 = vmul.f32 %v2151, %v2192
  %v2209 = vmul.f32 %v2156, %v2193
  %v2210 = vmul.f32 %v2159, %v2194
  %v2211 = vadd.f32 %v2036, %v2195
  %v2212 = vadd.f32 %v2037, %v2196
  %v2213 = vadd.f32 %v2038, %v2197
  %v2214 = vadd.f32 %v2039, %v2198
  %v2215 = vadd.f32 %v2040, %v2199
  %v2216 = vadd.f32 %v2041, %v2200
  %v2217 = vadd.f32 %v2042, %v2201
  %v2218 = vadd.f32 %v2043, %v2202
  %v2219 = vadd.f32 %v2044, %v2203
  %v2220 = vadd.f32 %v2045, %v2204
  %v2221 = vadd.f32 %v2046, %v2205
  %v2222 = vadd.f32 %v2047, %v2206
  %v2223 = vadd.f32 %v2048, %v2207
  %v2224 = vadd.f32 %v2049, %v2208
  %v2225 = vadd.f32 %v2050, %v2209
  %v2226 = vadd.f32 %v2051, %v2210
  %s2227 = scalar_lea.vmem %s4, 11
  %v2228 = vld [vmem:[%s2227] sm:$0x1]
  %s2229 = scalar_lea.vmem %s5, 11
  %v2230 = vld [vmem:[%s2229] sm:$0x1]
  %v2232 = vlaneseq
  %v2233 = vshrl.u32 %v2232, 7
  %v2234 = vsub.s32 0, %v2233
  %v2235 = vrot.slane %v2230, %v2234
  %v2238 = vsel %vm312, %v2228, 0
  %2240 = vmatprep.subr.bf16.mxu0 0
  %2241 = vmatpush1.bf16.msra.mxu0 %v2238
  %2242 = vmatprep.subr.bf16.mxu0 0
  %2243 = vmatpush1.bf16.msra.mxu0 0
  %2244 = vmatprep.subr.bf16.mxu0 0
  %2245 = vmatpush1.bf16.msra.mxu0 0
  %2246 = vmatprep.subr.bf16.mxu0 0
  %2247 = vmatpush1.bf16.msra.mxu0 0
  %2248 = vmatprep.subr.bf16.mxu0 0
  %2249 = vmatpush1.bf16.msra.mxu0 0
  %2250 = vmatprep.subr.bf16.mxu0 0
  %2251 = vmatpush1.bf16.msra.mxu0 0
  %2252 = vmatprep.subr.bf16.mxu0 0
  %2253 = vmatpush1.bf16.msra.mxu0 0
  %2254 = vmatprep.subr.bf16.mxu0 0
  %2255 = vmatpush1.bf16.msra.mxu0 0
  %2256 = vmatprep.subr.bf16.mxu0 0
  %2257 = vmatpush1.bf16.msra.mxu0 0
  %2258 = vmatprep.subr.bf16.mxu0 0
  %2259 = vmatpush1.bf16.msra.mxu0 0
  %2260 = vmatprep.subr.bf16.mxu0 0
  %2261 = vmatpush1.bf16.msra.mxu0 0
  %2262 = vmatprep.subr.bf16.mxu0 0
  %2263 = vmatpush1.bf16.msra.mxu0 0
  %2264 = vmatprep.subr.bf16.mxu0 0
  %2265 = vmatpush1.bf16.msra.mxu0 0
  %2266 = vmatprep.subr.bf16.mxu0 0
  %2267 = vmatpush1.bf16.msra.mxu0 0
  %2268 = vmatprep.subr.bf16.mxu0 0
  %2269 = vmatpush1.bf16.msra.mxu0 0
  %2270 = vmatprep.subr.bf16.mxu0 0
  %2271 = vmatpush1.bf16.msra.mxu0 0
  %2272 = vmatprep.mubr.bf16.mxu0 0
  %2273 = vmatmul.mubr.bf16.gmra.mrb[0].mxu0 %v289
  %v2274 = vpop.f32.mrb[0].mxu0
  %v2275 = vadd.f32 %v2235, %v2274
  %v2276 = vpop.f32.mrb[0].mxu0
  %v2277 = vpop.f32.mrb[0].mxu0
  %v2278 = vadd.f32 %v2235, %v2277
  %v2279 = vpop.f32.mrb[0].mxu0
  %2280 = vmatprep.mubr.bf16.mxu0 0
  %2281 = vmatmul.mubr.bf16.gmra.mrb[0].mxu0 %v292
  %v2282 = vpop.f32.mrb[0].mxu0
  %v2283 = vadd.f32 %v2235, %v2282
  %v2284 = vpop.f32.mrb[0].mxu0
  %v2285 = vpop.f32.mrb[0].mxu0
  %v2286 = vadd.f32 %v2235, %v2285
  %v2287 = vpop.f32.mrb[0].mxu0
  %2288 = vmatprep.mubr.bf16.mxu0 0
  %2289 = vmatmul.mubr.bf16.gmra.mrb[0].mxu0 %v295
  %v2290 = vpop.f32.mrb[0].mxu0
  %v2291 = vadd.f32 %v2235, %v2290
  %v2292 = vpop.f32.mrb[0].mxu0
  %v2293 = vpop.f32.mrb[0].mxu0
  %v2294 = vadd.f32 %v2235, %v2293
  %v2295 = vpop.f32.mrb[0].mxu0
  %2296 = vmatprep.mubr.bf16.mxu0 0
  %2297 = vmatmul.mubr.bf16.gmra.mrb[0].mxu0 %v298
  %v2298 = vpop.f32.mrb[0].mxu0
  %v2299 = vadd.f32 %v2235, %v2298
  %v2300 = vpop.f32.mrb[0].mxu0
  %v2301 = vpop.f32.mrb[0].mxu0
  %v2302 = vadd.f32 %v2235, %v2301
  %v2303 = vpop.f32.mrb[0].mxu0
  %2304 = vmatprep.mubr.bf16.mxu0 0
  %2305 = vmatmul.mubr.bf16.gmra.mrb[0].mxu0 %v301
  %v2306 = vpop.f32.mrb[0].mxu0
  %v2307 = vadd.f32 %v2235, %v2306
  %v2308 = vpop.f32.mrb[0].mxu0
  %v2309 = vpop.f32.mrb[0].mxu0
  %v2310 = vadd.f32 %v2235, %v2309
  %v2311 = vpop.f32.mrb[0].mxu0
  %2312 = vmatprep.mubr.bf16.mxu0 0
  %2313 = vmatmul.mubr.bf16.gmra.mrb[0].mxu0 %v304
  %v2314 = vpop.f32.mrb[0].mxu0
  %v2315 = vadd.f32 %v2235, %v2314
  %v2316 = vpop.f32.mrb[0].mxu0
  %v2317 = vpop.f32.mrb[0].mxu0
  %v2318 = vadd.f32 %v2235, %v2317
  %v2319 = vpop.f32.mrb[0].mxu0
  %2320 = vmatprep.mubr.bf16.mxu0 0
  %2321 = vmatmul.mubr.bf16.gmra.mrb[0].mxu0 %v307
  %v2322 = vpop.f32.mrb[0].mxu0
  %v2323 = vadd.f32 %v2235, %v2322
  %v2324 = vpop.f32.mrb[0].mxu0
  %v2325 = vpop.f32.mrb[0].mxu0
  %v2326 = vadd.f32 %v2235, %v2325
  %v2327 = vpop.f32.mrb[0].mxu0
  %2328 = vmatprep.mubr.bf16.mxu0 0
  %2329 = vmatmul.mubr.bf16.gmra.mrb[0].mxu0 %v310
  %v2330 = vpop.f32.mrb[0].mxu0
  %v2331 = vadd.f32 %v2235, %v2330
  %v2332 = vpop.f32.mrb[0].mxu0
  %v2333 = vpop.f32.mrb[0].mxu0
  %v2334 = vadd.f32 %v2235, %v2333
  %v2335 = vpop.f32.mrb[0].mxu0
  %2336 = vdwg.mxu0
  %s2337 = scalar_lea.vmem %s1, 704
  %v2338 = vld [vmem:[%s2337] sm:$0xf]
  %v2339 = vld [vmem:[%s2337 + $0x4] sm:$0xf]
  %v2340 = vld [vmem:[%s2337 + $0x8] sm:$0xf]
  %v2341 = vld [vmem:[%s2337 + $0xc] sm:$0xf]
  %v2342 = vld [vmem:[%s2337 + $0x10] sm:$0xf]
  %v2343 = vld [vmem:[%s2337 + $0x14] sm:$0xf]
  %v2344 = vld [vmem:[%s2337 + $0x18] sm:$0xf]
  %v2345 = vld [vmem:[%s2337 + $0x1c] sm:$0xf]
  %v2346 = vld [vmem:[%s2337 + $0x20] sm:$0xf]
  %v2347 = vld [vmem:[%s2337 + $0x24] sm:$0xf]
  %v2348 = vld [vmem:[%s2337 + $0x28] sm:$0xf]
  %v2349 = vld [vmem:[%s2337 + $0x2c] sm:$0xf]
  %v2350 = vld [vmem:[%s2337 + $0x30] sm:$0xf]
  %v2351 = vld [vmem:[%s2337 + $0x34] sm:$0xf]
  %v2352 = vld [vmem:[%s2337 + $0x38] sm:$0xf]
  %v2353 = vld [vmem:[%s2337 + $0x3c] sm:$0xf]
  %v2354 = vunpack.c.l.bf16 %v2338
  %v2355 = vunpack.c.l.bf16 %v2339
  %v2356 = vunpack.c.l.bf16 %v2340
  %v2357 = vunpack.c.l.bf16 %v2341
  %v2358 = vunpack.c.l.bf16 %v2342
  %v2359 = vunpack.c.l.bf16 %v2343
  %v2360 = vunpack.c.l.bf16 %v2344
  %v2361 = vunpack.c.l.bf16 %v2345
  %v2362 = vunpack.c.l.bf16 %v2346
  %v2363 = vunpack.c.l.bf16 %v2347
  %v2364 = vunpack.c.l.bf16 %v2348
  %v2365 = vunpack.c.l.bf16 %v2349
  %v2366 = vunpack.c.l.bf16 %v2350
  %v2367 = vunpack.c.l.bf16 %v2351
  %v2368 = vunpack.c.l.bf16 %v2352
  %v2369 = vunpack.c.l.bf16 %v2353
  %v2370 = vmul.f32 %v2275, %v2354
  %v2371 = vmul.f32 %v2278, %v2355
  %v2372 = vmul.f32 %v2283, %v2356
  %v2373 = vmul.f32 %v2286, %v2357
  %v2374 = vmul.f32 %v2291, %v2358
  %v2375 = vmul.f32 %v2294, %v2359
  %v2376 = vmul.f32 %v2299, %v2360
  %v2377 = vmul.f32 %v2302, %v2361
  %v2378 = vmul.f32 %v2307, %v2362
  %v2379 = vmul.f32 %v2310, %v2363
  %v2380 = vmul.f32 %v2315, %v2364
  %v2381 = vmul.f32 %v2318, %v2365
  %v2382 = vmul.f32 %v2323, %v2366
  %v2383 = vmul.f32 %v2326, %v2367
  %v2384 = vmul.f32 %v2331, %v2368
  %v2385 = vmul.f32 %v2334, %v2369
  %v2386 = vadd.f32 %v2211, %v2370
  %v2387 = vadd.f32 %v2212, %v2371
  %v2388 = vadd.f32 %v2213, %v2372
  %v2389 = vadd.f32 %v2214, %v2373
  %v2390 = vadd.f32 %v2215, %v2374
  %v2391 = vadd.f32 %v2216, %v2375
  %v2392 = vadd.f32 %v2217, %v2376
  %v2393 = vadd.f32 %v2218, %v2377
  %v2394 = vadd.f32 %v2219, %v2378
  %v2395 = vadd.f32 %v2220, %v2379
  %v2396 = vadd.f32 %v2221, %v2380
  %v2397 = vadd.f32 %v2222, %v2381
  %v2398 = vadd.f32 %v2223, %v2382
  %v2399 = vadd.f32 %v2224, %v2383
  %v2400 = vadd.f32 %v2225, %v2384
  %v2401 = vadd.f32 %v2226, %v2385
  %s2402 = scalar_lea.vmem %s4, 12
  %v2403 = vld [vmem:[%s2402] sm:$0x1]
  %s2404 = scalar_lea.vmem %s5, 12
  %v2405 = vld [vmem:[%s2404] sm:$0x1]
  %v2407 = vlaneseq
  %v2408 = vshrl.u32 %v2407, 7
  %v2409 = vsub.s32 0, %v2408
  %v2410 = vrot.slane %v2405, %v2409
  %v2413 = vsel %vm312, %v2403, 0
  %2415 = vmatprep.subr.bf16.mxu0 0
  %2416 = vmatpush1.bf16.msra.mxu0 %v2413
  %2417 = vmatprep.subr.bf16.mxu0 0
  %2418 = vmatpush1.bf16.msra.mxu0 0
  %2419 = vmatprep.subr.bf16.mxu0 0
  %2420 = vmatpush1.bf16.msra.mxu0 0
  %2421 = vmatprep.subr.bf16.mxu0 0
  %2422 = vmatpush1.bf16.msra.mxu0 0
  %2423 = vmatprep.subr.bf16.mxu0 0
  %2424 = vmatpush1.bf16.msra.mxu0 0
  %2425 = vmatprep.subr.bf16.mxu0 0
  %2426 = vmatpush1.bf16.msra.mxu0 0
  %2427 = vmatprep.subr.bf16.mxu0 0
  %2428 = vmatpush1.bf16.msra.mxu0 0
  %2429 = vmatprep.subr.bf16.mxu0 0
  %2430 = vmatpush1.bf16.msra.mxu0 0
  %2431 = vmatprep.subr.bf16.mxu0 0
  %2432 = vmatpush1.bf16.msra.mxu0 0
  %2433 = vmatprep.subr.bf16.mxu0 0
  %2434 = vmatpush1.bf16.msra.mxu0 0
  %2435 = vmatprep.subr.bf16.mxu0 0
  %2436 = vmatpush1.bf16.msra.mxu0 0
  %2437 = vmatprep.subr.bf16.mxu0 0
  %2438 = vmatpush1.bf16.msra.mxu0 0
  %2439 = vmatprep.subr.bf16.mxu0 0
  %2440 = vmatpush1.bf16.msra.mxu0 0
  %2441 = vmatprep.subr.bf16.mxu0 0
  %2442 = vmatpush1.bf16.msra.mxu0 0
  %2443 = vmatprep.subr.bf16.mxu0 0
  %2444 = vmatpush1.bf16.msra.mxu0 0
  %2445 = vmatprep.subr.bf16.mxu0 0
  %2446 = vmatpush1.bf16.msra.mxu0 0
  %2447 = vmatprep.mubr.bf16.mxu0 0
  %2448 = vmatmul.mubr.bf16.gmra.mrb[0].mxu0 %v289
  %v2449 = vpop.f32.mrb[0].mxu0
  %v2450 = vadd.f32 %v2410, %v2449
  %v2451 = vpop.f32.mrb[0].mxu0
  %v2452 = vpop.f32.mrb[0].mxu0
  %v2453 = vadd.f32 %v2410, %v2452
  %v2454 = vpop.f32.mrb[0].mxu0
  %2455 = vmatprep.mubr.bf16.mxu0 0
  %2456 = vmatmul.mubr.bf16.gmra.mrb[0].mxu0 %v292
  %v2457 = vpop.f32.mrb[0].mxu0
  %v2458 = vadd.f32 %v2410, %v2457
  %v2459 = vpop.f32.mrb[0].mxu0
  %v2460 = vpop.f32.mrb[0].mxu0
  %v2461 = vadd.f32 %v2410, %v2460
  %v2462 = vpop.f32.mrb[0].mxu0
  %2463 = vmatprep.mubr.bf16.mxu0 0
  %2464 = vmatmul.mubr.bf16.gmra.mrb[0].mxu0 %v295
  %v2465 = vpop.f32.mrb[0].mxu0
  %v2466 = vadd.f32 %v2410, %v2465
  %v2467 = vpop.f32.mrb[0].mxu0
  %v2468 = vpop.f32.mrb[0].mxu0
  %v2469 = vadd.f32 %v2410, %v2468
  %v2470 = vpop.f32.mrb[0].mxu0
  %2471 = vmatprep.mubr.bf16.mxu0 0
  %2472 = vmatmul.mubr.bf16.gmra.mrb[0].mxu0 %v298
  %v2473 = vpop.f32.mrb[0].mxu0
  %v2474 = vadd.f32 %v2410, %v2473
  %v2475 = vpop.f32.mrb[0].mxu0
  %v2476 = vpop.f32.mrb[0].mxu0
  %v2477 = vadd.f32 %v2410, %v2476
  %v2478 = vpop.f32.mrb[0].mxu0
  %2479 = vmatprep.mubr.bf16.mxu0 0
  %2480 = vmatmul.mubr.bf16.gmra.mrb[0].mxu0 %v301
  %v2481 = vpop.f32.mrb[0].mxu0
  %v2482 = vadd.f32 %v2410, %v2481
  %v2483 = vpop.f32.mrb[0].mxu0
  %v2484 = vpop.f32.mrb[0].mxu0
  %v2485 = vadd.f32 %v2410, %v2484
  %v2486 = vpop.f32.mrb[0].mxu0
  %2487 = vmatprep.mubr.bf16.mxu0 0
  %2488 = vmatmul.mubr.bf16.gmra.mrb[0].mxu0 %v304
  %v2489 = vpop.f32.mrb[0].mxu0
  %v2490 = vadd.f32 %v2410, %v2489
  %v2491 = vpop.f32.mrb[0].mxu0
  %v2492 = vpop.f32.mrb[0].mxu0
  %v2493 = vadd.f32 %v2410, %v2492
  %v2494 = vpop.f32.mrb[0].mxu0
  %2495 = vmatprep.mubr.bf16.mxu0 0
  %2496 = vmatmul.mubr.bf16.gmra.mrb[0].mxu0 %v307
  %v2497 = vpop.f32.mrb[0].mxu0
  %v2498 = vadd.f32 %v2410, %v2497
  %v2499 = vpop.f32.mrb[0].mxu0
  %v2500 = vpop.f32.mrb[0].mxu0
  %v2501 = vadd.f32 %v2410, %v2500
  %v2502 = vpop.f32.mrb[0].mxu0
  %2503 = vmatprep.mubr.bf16.mxu0 0
  %2504 = vmatmul.mubr.bf16.gmra.mrb[0].mxu0 %v310
  %v2505 = vpop.f32.mrb[0].mxu0
  %v2506 = vadd.f32 %v2410, %v2505
  %v2507 = vpop.f32.mrb[0].mxu0
  %v2508 = vpop.f32.mrb[0].mxu0
  %v2509 = vadd.f32 %v2410, %v2508
  %v2510 = vpop.f32.mrb[0].mxu0
  %2511 = vdwg.mxu0
  %s2512 = scalar_lea.vmem %s1, 768
  %v2513 = vld [vmem:[%s2512] sm:$0xf]
  %v2514 = vld [vmem:[%s2512 + $0x4] sm:$0xf]
  %v2515 = vld [vmem:[%s2512 + $0x8] sm:$0xf]
  %v2516 = vld [vmem:[%s2512 + $0xc] sm:$0xf]
  %v2517 = vld [vmem:[%s2512 + $0x10] sm:$0xf]
  %v2518 = vld [vmem:[%s2512 + $0x14] sm:$0xf]
  %v2519 = vld [vmem:[%s2512 + $0x18] sm:$0xf]
  %v2520 = vld [vmem:[%s2512 + $0x1c] sm:$0xf]
  %v2521 = vld [vmem:[%s2512 + $0x20] sm:$0xf]
  %v2522 = vld [vmem:[%s2512 + $0x24] sm:$0xf]
  %v2523 = vld [vmem:[%s2512 + $0x28] sm:$0xf]
  %v2524 = vld [vmem:[%s2512 + $0x2c] sm:$0xf]
  %v2525 = vld [vmem:[%s2512 + $0x30] sm:$0xf]
  %v2526 = vld [vmem:[%s2512 + $0x34] sm:$0xf]
  %v2527 = vld [vmem:[%s2512 + $0x38] sm:$0xf]
  %v2528 = vld [vmem:[%s2512 + $0x3c] sm:$0xf]
  %v2529 = vunpack.c.l.bf16 %v2513
  %v2530 = vunpack.c.l.bf16 %v2514
  %v2531 = vunpack.c.l.bf16 %v2515
  %v2532 = vunpack.c.l.bf16 %v2516
  %v2533 = vunpack.c.l.bf16 %v2517
  %v2534 = vunpack.c.l.bf16 %v2518
  %v2535 = vunpack.c.l.bf16 %v2519
  %v2536 = vunpack.c.l.bf16 %v2520
  %v2537 = vunpack.c.l.bf16 %v2521
  %v2538 = vunpack.c.l.bf16 %v2522
  %v2539 = vunpack.c.l.bf16 %v2523
  %v2540 = vunpack.c.l.bf16 %v2524
  %v2541 = vunpack.c.l.bf16 %v2525
  %v2542 = vunpack.c.l.bf16 %v2526
  %v2543 = vunpack.c.l.bf16 %v2527
  %v2544 = vunpack.c.l.bf16 %v2528
  %v2545 = vmul.f32 %v2450, %v2529
  %v2546 = vmul.f32 %v2453, %v2530
  %v2547 = vmul.f32 %v2458, %v2531
  %v2548 = vmul.f32 %v2461, %v2532
  %v2549 = vmul.f32 %v2466, %v2533
  %v2550 = vmul.f32 %v2469, %v2534
  %v2551 = vmul.f32 %v2474, %v2535
  %v2552 = vmul.f32 %v2477, %v2536
  %v2553 = vmul.f32 %v2482, %v2537
  %v2554 = vmul.f32 %v2485, %v2538
  %v2555 = vmul.f32 %v2490, %v2539
  %v2556 = vmul.f32 %v2493, %v2540
  %v2557 = vmul.f32 %v2498, %v2541
  %v2558 = vmul.f32 %v2501, %v2542
  %v2559 = vmul.f32 %v2506, %v2543
  %v2560 = vmul.f32 %v2509, %v2544
  %v2561 = vadd.f32 %v2386, %v2545
  %v2562 = vadd.f32 %v2387, %v2546
  %v2563 = vadd.f32 %v2388, %v2547
  %v2564 = vadd.f32 %v2389, %v2548
  %v2565 = vadd.f32 %v2390, %v2549
  %v2566 = vadd.f32 %v2391, %v2550
  %v2567 = vadd.f32 %v2392, %v2551
  %v2568 = vadd.f32 %v2393, %v2552
  %v2569 = vadd.f32 %v2394, %v2553
  %v2570 = vadd.f32 %v2395, %v2554
  %v2571 = vadd.f32 %v2396, %v2555
  %v2572 = vadd.f32 %v2397, %v2556
  %v2573 = vadd.f32 %v2398, %v2557
  %v2574 = vadd.f32 %v2399, %v2558
  %v2575 = vadd.f32 %v2400, %v2559
  %v2576 = vadd.f32 %v2401, %v2560
  %s2577 = scalar_lea.vmem %s4, 13
  %v2578 = vld [vmem:[%s2577] sm:$0x1]
  %s2579 = scalar_lea.vmem %s5, 13
  %v2580 = vld [vmem:[%s2579] sm:$0x1]
  %v2582 = vlaneseq
  %v2583 = vshrl.u32 %v2582, 7
  %v2584 = vsub.s32 0, %v2583
  %v2585 = vrot.slane %v2580, %v2584
  %v2588 = vsel %vm312, %v2578, 0
  %2590 = vmatprep.subr.bf16.mxu0 0
  %2591 = vmatpush1.bf16.msra.mxu0 %v2588
  %2592 = vmatprep.subr.bf16.mxu0 0
  %2593 = vmatpush1.bf16.msra.mxu0 0
  %2594 = vmatprep.subr.bf16.mxu0 0
  %2595 = vmatpush1.bf16.msra.mxu0 0
  %2596 = vmatprep.subr.bf16.mxu0 0
  %2597 = vmatpush1.bf16.msra.mxu0 0
  %2598 = vmatprep.subr.bf16.mxu0 0
  %2599 = vmatpush1.bf16.msra.mxu0 0
  %2600 = vmatprep.subr.bf16.mxu0 0
  %2601 = vmatpush1.bf16.msra.mxu0 0
  %2602 = vmatprep.subr.bf16.mxu0 0
  %2603 = vmatpush1.bf16.msra.mxu0 0
  %2604 = vmatprep.subr.bf16.mxu0 0
  %2605 = vmatpush1.bf16.msra.mxu0 0
  %2606 = vmatprep.subr.bf16.mxu0 0
  %2607 = vmatpush1.bf16.msra.mxu0 0
  %2608 = vmatprep.subr.bf16.mxu0 0
  %2609 = vmatpush1.bf16.msra.mxu0 0
  %2610 = vmatprep.subr.bf16.mxu0 0
  %2611 = vmatpush1.bf16.msra.mxu0 0
  %2612 = vmatprep.subr.bf16.mxu0 0
  %2613 = vmatpush1.bf16.msra.mxu0 0
  %2614 = vmatprep.subr.bf16.mxu0 0
  %2615 = vmatpush1.bf16.msra.mxu0 0
  %2616 = vmatprep.subr.bf16.mxu0 0
  %2617 = vmatpush1.bf16.msra.mxu0 0
  %2618 = vmatprep.subr.bf16.mxu0 0
  %2619 = vmatpush1.bf16.msra.mxu0 0
  %2620 = vmatprep.subr.bf16.mxu0 0
  %2621 = vmatpush1.bf16.msra.mxu0 0
  %2622 = vmatprep.mubr.bf16.mxu0 0
  %2623 = vmatmul.mubr.bf16.gmra.mrb[0].mxu0 %v289
  %v2624 = vpop.f32.mrb[0].mxu0
  %v2625 = vadd.f32 %v2585, %v2624
  %v2626 = vpop.f32.mrb[0].mxu0
  %v2627 = vpop.f32.mrb[0].mxu0
  %v2628 = vadd.f32 %v2585, %v2627
  %v2629 = vpop.f32.mrb[0].mxu0
  %2630 = vmatprep.mubr.bf16.mxu0 0
  %2631 = vmatmul.mubr.bf16.gmra.mrb[0].mxu0 %v292
  %v2632 = vpop.f32.mrb[0].mxu0
  %v2633 = vadd.f32 %v2585, %v2632
  %v2634 = vpop.f32.mrb[0].mxu0
  %v2635 = vpop.f32.mrb[0].mxu0
  %v2636 = vadd.f32 %v2585, %v2635
  %v2637 = vpop.f32.mrb[0].mxu0
  %2638 = vmatprep.mubr.bf16.mxu0 0
  %2639 = vmatmul.mubr.bf16.gmra.mrb[0].mxu0 %v295
  %v2640 = vpop.f32.mrb[0].mxu0
  %v2641 = vadd.f32 %v2585, %v2640
  %v2642 = vpop.f32.mrb[0].mxu0
  %v2643 = vpop.f32.mrb[0].mxu0
  %v2644 = vadd.f32 %v2585, %v2643
  %v2645 = vpop.f32.mrb[0].mxu0
  %2646 = vmatprep.mubr.bf16.mxu0 0
  %2647 = vmatmul.mubr.bf16.gmra.mrb[0].mxu0 %v298
  %v2648 = vpop.f32.mrb[0].mxu0
  %v2649 = vadd.f32 %v2585, %v2648
  %v2650 = vpop.f32.mrb[0].mxu0
  %v2651 = vpop.f32.mrb[0].mxu0
  %v2652 = vadd.f32 %v2585, %v2651
  %v2653 = vpop.f32.mrb[0].mxu0
  %2654 = vmatprep.mubr.bf16.mxu0 0
  %2655 = vmatmul.mubr.bf16.gmra.mrb[0].mxu0 %v301
  %v2656 = vpop.f32.mrb[0].mxu0
  %v2657 = vadd.f32 %v2585, %v2656
  %v2658 = vpop.f32.mrb[0].mxu0
  %v2659 = vpop.f32.mrb[0].mxu0
  %v2660 = vadd.f32 %v2585, %v2659
  %v2661 = vpop.f32.mrb[0].mxu0
  %2662 = vmatprep.mubr.bf16.mxu0 0
  %2663 = vmatmul.mubr.bf16.gmra.mrb[0].mxu0 %v304
  %v2664 = vpop.f32.mrb[0].mxu0
  %v2665 = vadd.f32 %v2585, %v2664
  %v2666 = vpop.f32.mrb[0].mxu0
  %v2667 = vpop.f32.mrb[0].mxu0
  %v2668 = vadd.f32 %v2585, %v2667
  %v2669 = vpop.f32.mrb[0].mxu0
  %2670 = vmatprep.mubr.bf16.mxu0 0
  %2671 = vmatmul.mubr.bf16.gmra.mrb[0].mxu0 %v307
  %v2672 = vpop.f32.mrb[0].mxu0
  %v2673 = vadd.f32 %v2585, %v2672
  %v2674 = vpop.f32.mrb[0].mxu0
  %v2675 = vpop.f32.mrb[0].mxu0
  %v2676 = vadd.f32 %v2585, %v2675
  %v2677 = vpop.f32.mrb[0].mxu0
  %2678 = vmatprep.mubr.bf16.mxu0 0
  %2679 = vmatmul.mubr.bf16.gmra.mrb[0].mxu0 %v310
  %v2680 = vpop.f32.mrb[0].mxu0
  %v2681 = vadd.f32 %v2585, %v2680
  %v2682 = vpop.f32.mrb[0].mxu0
  %v2683 = vpop.f32.mrb[0].mxu0
  %v2684 = vadd.f32 %v2585, %v2683
  %v2685 = vpop.f32.mrb[0].mxu0
  %2686 = vdwg.mxu0
  %s2687 = scalar_lea.vmem %s1, 832
  %v2688 = vld [vmem:[%s2687] sm:$0xf]
  %v2689 = vld [vmem:[%s2687 + $0x4] sm:$0xf]
  %v2690 = vld [vmem:[%s2687 + $0x8] sm:$0xf]
  %v2691 = vld [vmem:[%s2687 + $0xc] sm:$0xf]
  %v2692 = vld [vmem:[%s2687 + $0x10] sm:$0xf]
  %v2693 = vld [vmem:[%s2687 + $0x14] sm:$0xf]
  %v2694 = vld [vmem:[%s2687 + $0x18] sm:$0xf]
  %v2695 = vld [vmem:[%s2687 + $0x1c] sm:$0xf]
  %v2696 = vld [vmem:[%s2687 + $0x20] sm:$0xf]
  %v2697 = vld [vmem:[%s2687 + $0x24] sm:$0xf]
  %v2698 = vld [vmem:[%s2687 + $0x28] sm:$0xf]
  %v2699 = vld [vmem:[%s2687 + $0x2c] sm:$0xf]
  %v2700 = vld [vmem:[%s2687 + $0x30] sm:$0xf]
  %v2701 = vld [vmem:[%s2687 + $0x34] sm:$0xf]
  %v2702 = vld [vmem:[%s2687 + $0x38] sm:$0xf]
  %v2703 = vld [vmem:[%s2687 + $0x3c] sm:$0xf]
  %v2704 = vunpack.c.l.bf16 %v2688
  %v2705 = vunpack.c.l.bf16 %v2689
  %v2706 = vunpack.c.l.bf16 %v2690
  %v2707 = vunpack.c.l.bf16 %v2691
  %v2708 = vunpack.c.l.bf16 %v2692
  %v2709 = vunpack.c.l.bf16 %v2693
  %v2710 = vunpack.c.l.bf16 %v2694
  %v2711 = vunpack.c.l.bf16 %v2695
  %v2712 = vunpack.c.l.bf16 %v2696
  %v2713 = vunpack.c.l.bf16 %v2697
  %v2714 = vunpack.c.l.bf16 %v2698
  %v2715 = vunpack.c.l.bf16 %v2699
  %v2716 = vunpack.c.l.bf16 %v2700
  %v2717 = vunpack.c.l.bf16 %v2701
  %v2718 = vunpack.c.l.bf16 %v2702
  %v2719 = vunpack.c.l.bf16 %v2703
  %v2720 = vmul.f32 %v2625, %v2704
  %v2721 = vmul.f32 %v2628, %v2705
  %v2722 = vmul.f32 %v2633, %v2706
  %v2723 = vmul.f32 %v2636, %v2707
  %v2724 = vmul.f32 %v2641, %v2708
  %v2725 = vmul.f32 %v2644, %v2709
  %v2726 = vmul.f32 %v2649, %v2710
  %v2727 = vmul.f32 %v2652, %v2711
  %v2728 = vmul.f32 %v2657, %v2712
  %v2729 = vmul.f32 %v2660, %v2713
  %v2730 = vmul.f32 %v2665, %v2714
  %v2731 = vmul.f32 %v2668, %v2715
  %v2732 = vmul.f32 %v2673, %v2716
  %v2733 = vmul.f32 %v2676, %v2717
  %v2734 = vmul.f32 %v2681, %v2718
  %v2735 = vmul.f32 %v2684, %v2719
  %v2736 = vadd.f32 %v2561, %v2720
  %v2737 = vadd.f32 %v2562, %v2721
  %v2738 = vadd.f32 %v2563, %v2722
  %v2739 = vadd.f32 %v2564, %v2723
  %v2740 = vadd.f32 %v2565, %v2724
  %v2741 = vadd.f32 %v2566, %v2725
  %v2742 = vadd.f32 %v2567, %v2726
  %v2743 = vadd.f32 %v2568, %v2727
  %v2744 = vadd.f32 %v2569, %v2728
  %v2745 = vadd.f32 %v2570, %v2729
  %v2746 = vadd.f32 %v2571, %v2730
  %v2747 = vadd.f32 %v2572, %v2731
  %v2748 = vadd.f32 %v2573, %v2732
  %v2749 = vadd.f32 %v2574, %v2733
  %v2750 = vadd.f32 %v2575, %v2734
  %v2751 = vadd.f32 %v2576, %v2735
  %s2752 = scalar_lea.vmem %s4, 14
  %v2753 = vld [vmem:[%s2752] sm:$0x1]
  %s2754 = scalar_lea.vmem %s5, 14
  %v2755 = vld [vmem:[%s2754] sm:$0x1]
  %v2757 = vlaneseq
  %v2758 = vshrl.u32 %v2757, 7
  %v2759 = vsub.s32 0, %v2758
  %v2760 = vrot.slane %v2755, %v2759
  %v2763 = vsel %vm312, %v2753, 0
  %2765 = vmatprep.subr.bf16.mxu0 0
  %2766 = vmatpush1.bf16.msra.mxu0 %v2763
  %2767 = vmatprep.subr.bf16.mxu0 0
  %2768 = vmatpush1.bf16.msra.mxu0 0
  %2769 = vmatprep.subr.bf16.mxu0 0
  %2770 = vmatpush1.bf16.msra.mxu0 0
  %2771 = vmatprep.subr.bf16.mxu0 0
  %2772 = vmatpush1.bf16.msra.mxu0 0
  %2773 = vmatprep.subr.bf16.mxu0 0
  %2774 = vmatpush1.bf16.msra.mxu0 0
  %2775 = vmatprep.subr.bf16.mxu0 0
  %2776 = vmatpush1.bf16.msra.mxu0 0
  %2777 = vmatprep.subr.bf16.mxu0 0
  %2778 = vmatpush1.bf16.msra.mxu0 0
  %2779 = vmatprep.subr.bf16.mxu0 0
  %2780 = vmatpush1.bf16.msra.mxu0 0
  %2781 = vmatprep.subr.bf16.mxu0 0
  %2782 = vmatpush1.bf16.msra.mxu0 0
  %2783 = vmatprep.subr.bf16.mxu0 0
  %2784 = vmatpush1.bf16.msra.mxu0 0
  %2785 = vmatprep.subr.bf16.mxu0 0
  %2786 = vmatpush1.bf16.msra.mxu0 0
  %2787 = vmatprep.subr.bf16.mxu0 0
  %2788 = vmatpush1.bf16.msra.mxu0 0
  %2789 = vmatprep.subr.bf16.mxu0 0
  %2790 = vmatpush1.bf16.msra.mxu0 0
  %2791 = vmatprep.subr.bf16.mxu0 0
  %2792 = vmatpush1.bf16.msra.mxu0 0
  %2793 = vmatprep.subr.bf16.mxu0 0
  %2794 = vmatpush1.bf16.msra.mxu0 0
  %2795 = vmatprep.subr.bf16.mxu0 0
  %2796 = vmatpush1.bf16.msra.mxu0 0
  %2797 = vmatprep.mubr.bf16.mxu0 0
  %2798 = vmatmul.mubr.bf16.gmra.mrb[0].mxu0 %v289
  %v2799 = vpop.f32.mrb[0].mxu0
  %v2800 = vadd.f32 %v2760, %v2799
  %v2801 = vpop.f32.mrb[0].mxu0
  %v2802 = vpop.f32.mrb[0].mxu0
  %v2803 = vadd.f32 %v2760, %v2802
  %v2804 = vpop.f32.mrb[0].mxu0
  %2805 = vmatprep.mubr.bf16.mxu0 0
  %2806 = vmatmul.mubr.bf16.gmra.mrb[0].mxu0 %v292
  %v2807 = vpop.f32.mrb[0].mxu0
  %v2808 = vadd.f32 %v2760, %v2807
  %v2809 = vpop.f32.mrb[0].mxu0
  %v2810 = vpop.f32.mrb[0].mxu0
  %v2811 = vadd.f32 %v2760, %v2810
  %v2812 = vpop.f32.mrb[0].mxu0
  %2813 = vmatprep.mubr.bf16.mxu0 0
  %2814 = vmatmul.mubr.bf16.gmra.mrb[0].mxu0 %v295
  %v2815 = vpop.f32.mrb[0].mxu0
  %v2816 = vadd.f32 %v2760, %v2815
  %v2817 = vpop.f32.mrb[0].mxu0
  %v2818 = vpop.f32.mrb[0].mxu0
  %v2819 = vadd.f32 %v2760, %v2818
  %v2820 = vpop.f32.mrb[0].mxu0
  %2821 = vmatprep.mubr.bf16.mxu0 0
  %2822 = vmatmul.mubr.bf16.gmra.mrb[0].mxu0 %v298
  %v2823 = vpop.f32.mrb[0].mxu0
  %v2824 = vadd.f32 %v2760, %v2823
  %v2825 = vpop.f32.mrb[0].mxu0
  %v2826 = vpop.f32.mrb[0].mxu0
  %v2827 = vadd.f32 %v2760, %v2826
  %v2828 = vpop.f32.mrb[0].mxu0
  %2829 = vmatprep.mubr.bf16.mxu0 0
  %2830 = vmatmul.mubr.bf16.gmra.mrb[0].mxu0 %v301
  %v2831 = vpop.f32.mrb[0].mxu0
  %v2832 = vadd.f32 %v2760, %v2831
  %v2833 = vpop.f32.mrb[0].mxu0
  %v2834 = vpop.f32.mrb[0].mxu0
  %v2835 = vadd.f32 %v2760, %v2834
  %v2836 = vpop.f32.mrb[0].mxu0
  %2837 = vmatprep.mubr.bf16.mxu0 0
  %2838 = vmatmul.mubr.bf16.gmra.mrb[0].mxu0 %v304
  %v2839 = vpop.f32.mrb[0].mxu0
  %v2840 = vadd.f32 %v2760, %v2839
  %v2841 = vpop.f32.mrb[0].mxu0
  %v2842 = vpop.f32.mrb[0].mxu0
  %v2843 = vadd.f32 %v2760, %v2842
  %v2844 = vpop.f32.mrb[0].mxu0
  %2845 = vmatprep.mubr.bf16.mxu0 0
  %2846 = vmatmul.mubr.bf16.gmra.mrb[0].mxu0 %v307
  %v2847 = vpop.f32.mrb[0].mxu0
  %v2848 = vadd.f32 %v2760, %v2847
  %v2849 = vpop.f32.mrb[0].mxu0
  %v2850 = vpop.f32.mrb[0].mxu0
  %v2851 = vadd.f32 %v2760, %v2850
  %v2852 = vpop.f32.mrb[0].mxu0
  %2853 = vmatprep.mubr.bf16.mxu0 0
  %2854 = vmatmul.mubr.bf16.gmra.mrb[0].mxu0 %v310
  %v2855 = vpop.f32.mrb[0].mxu0
  %v2856 = vadd.f32 %v2760, %v2855
  %v2857 = vpop.f32.mrb[0].mxu0
  %v2858 = vpop.f32.mrb[0].mxu0
  %v2859 = vadd.f32 %v2760, %v2858
  %v2860 = vpop.f32.mrb[0].mxu0
  %2861 = vdwg.mxu0
  %s2862 = scalar_lea.vmem %s1, 896
  %v2863 = vld [vmem:[%s2862] sm:$0xf]
  %v2864 = vld [vmem:[%s2862 + $0x4] sm:$0xf]
  %v2865 = vld [vmem:[%s2862 + $0x8] sm:$0xf]
  %v2866 = vld [vmem:[%s2862 + $0xc] sm:$0xf]
  %v2867 = vld [vmem:[%s2862 + $0x10] sm:$0xf]
  %v2868 = vld [vmem:[%s2862 + $0x14] sm:$0xf]
  %v2869 = vld [vmem:[%s2862 + $0x18] sm:$0xf]
  %v2870 = vld [vmem:[%s2862 + $0x1c] sm:$0xf]
  %v2871 = vld [vmem:[%s2862 + $0x20] sm:$0xf]
  %v2872 = vld [vmem:[%s2862 + $0x24] sm:$0xf]
  %v2873 = vld [vmem:[%s2862 + $0x28] sm:$0xf]
  %v2874 = vld [vmem:[%s2862 + $0x2c] sm:$0xf]
  %v2875 = vld [vmem:[%s2862 + $0x30] sm:$0xf]
  %v2876 = vld [vmem:[%s2862 + $0x34] sm:$0xf]
  %v2877 = vld [vmem:[%s2862 + $0x38] sm:$0xf]
  %v2878 = vld [vmem:[%s2862 + $0x3c] sm:$0xf]
  %v2879 = vunpack.c.l.bf16 %v2863
  %v2880 = vunpack.c.l.bf16 %v2864
  %v2881 = vunpack.c.l.bf16 %v2865
  %v2882 = vunpack.c.l.bf16 %v2866
  %v2883 = vunpack.c.l.bf16 %v2867
  %v2884 = vunpack.c.l.bf16 %v2868
  %v2885 = vunpack.c.l.bf16 %v2869
  %v2886 = vunpack.c.l.bf16 %v2870
  %v2887 = vunpack.c.l.bf16 %v2871
  %v2888 = vunpack.c.l.bf16 %v2872
  %v2889 = vunpack.c.l.bf16 %v2873
  %v2890 = vunpack.c.l.bf16 %v2874
  %v2891 = vunpack.c.l.bf16 %v2875
  %v2892 = vunpack.c.l.bf16 %v2876
  %v2893 = vunpack.c.l.bf16 %v2877
  %v2894 = vunpack.c.l.bf16 %v2878
  %v2895 = vmul.f32 %v2800, %v2879
  %v2896 = vmul.f32 %v2803, %v2880
  %v2897 = vmul.f32 %v2808, %v2881
  %v2898 = vmul.f32 %v2811, %v2882
  %v2899 = vmul.f32 %v2816, %v2883
  %v2900 = vmul.f32 %v2819, %v2884
  %v2901 = vmul.f32 %v2824, %v2885
  %v2902 = vmul.f32 %v2827, %v2886
  %v2903 = vmul.f32 %v2832, %v2887
  %v2904 = vmul.f32 %v2835, %v2888
  %v2905 = vmul.f32 %v2840, %v2889
  %v2906 = vmul.f32 %v2843, %v2890
  %v2907 = vmul.f32 %v2848, %v2891
  %v2908 = vmul.f32 %v2851, %v2892
  %v2909 = vmul.f32 %v2856, %v2893
  %v2910 = vmul.f32 %v2859, %v2894
  %v2911 = vadd.f32 %v2736, %v2895
  %v2912 = vadd.f32 %v2737, %v2896
  %v2913 = vadd.f32 %v2738, %v2897
  %v2914 = vadd.f32 %v2739, %v2898
  %v2915 = vadd.f32 %v2740, %v2899
  %v2916 = vadd.f32 %v2741, %v2900
  %v2917 = vadd.f32 %v2742, %v2901
  %v2918 = vadd.f32 %v2743, %v2902
  %v2919 = vadd.f32 %v2744, %v2903
  %v2920 = vadd.f32 %v2745, %v2904
  %v2921 = vadd.f32 %v2746, %v2905
  %v2922 = vadd.f32 %v2747, %v2906
  %v2923 = vadd.f32 %v2748, %v2907
  %v2924 = vadd.f32 %v2749, %v2908
  %v2925 = vadd.f32 %v2750, %v2909
  %v2926 = vadd.f32 %v2751, %v2910
  %s2927 = scalar_lea.vmem %s4, 15
  %v2928 = vld [vmem:[%s2927] sm:$0x1]
  %s2929 = scalar_lea.vmem %s5, 15
  %v2930 = vld [vmem:[%s2929] sm:$0x1]
  %v2932 = vlaneseq
  %v2933 = vshrl.u32 %v2932, 7
  %v2934 = vsub.s32 0, %v2933
  %v2935 = vrot.slane %v2930, %v2934
  %v2938 = vsel %vm312, %v2928, 0
  %2940 = vmatprep.subr.bf16.mxu0 0
  %2941 = vmatpush1.bf16.msra.mxu0 %v2938
  %2942 = vmatprep.subr.bf16.mxu0 0
  %2943 = vmatpush1.bf16.msra.mxu0 0
  %2944 = vmatprep.subr.bf16.mxu0 0
  %2945 = vmatpush1.bf16.msra.mxu0 0
  %2946 = vmatprep.subr.bf16.mxu0 0
  %2947 = vmatpush1.bf16.msra.mxu0 0
  %2948 = vmatprep.subr.bf16.mxu0 0
  %2949 = vmatpush1.bf16.msra.mxu0 0
  %2950 = vmatprep.subr.bf16.mxu0 0
  %2951 = vmatpush1.bf16.msra.mxu0 0
  %2952 = vmatprep.subr.bf16.mxu0 0
  %2953 = vmatpush1.bf16.msra.mxu0 0
  %2954 = vmatprep.subr.bf16.mxu0 0
  %2955 = vmatpush1.bf16.msra.mxu0 0
  %2956 = vmatprep.subr.bf16.mxu0 0
  %2957 = vmatpush1.bf16.msra.mxu0 0
  %2958 = vmatprep.subr.bf16.mxu0 0
  %2959 = vmatpush1.bf16.msra.mxu0 0
  %2960 = vmatprep.subr.bf16.mxu0 0
  %2961 = vmatpush1.bf16.msra.mxu0 0
  %2962 = vmatprep.subr.bf16.mxu0 0
  %2963 = vmatpush1.bf16.msra.mxu0 0
  %2964 = vmatprep.subr.bf16.mxu0 0
  %2965 = vmatpush1.bf16.msra.mxu0 0
  %2966 = vmatprep.subr.bf16.mxu0 0
  %2967 = vmatpush1.bf16.msra.mxu0 0
  %2968 = vmatprep.subr.bf16.mxu0 0
  %2969 = vmatpush1.bf16.msra.mxu0 0
  %2970 = vmatprep.subr.bf16.mxu0 0
  %2971 = vmatpush1.bf16.msra.mxu0 0
  %2972 = vmatprep.mubr.bf16.mxu0 0
  %2973 = vmatmul.mubr.bf16.gmra.mrb[0].mxu0 %v289
  %v2974 = vpop.f32.mrb[0].mxu0
  %v2975 = vadd.f32 %v2935, %v2974
  %v2976 = vpop.f32.mrb[0].mxu0
  %v2977 = vpop.f32.mrb[0].mxu0
  %v2978 = vadd.f32 %v2935, %v2977
  %v2979 = vpop.f32.mrb[0].mxu0
  %2980 = vmatprep.mubr.bf16.mxu0 0
  %2981 = vmatmul.mubr.bf16.gmra.mrb[0].mxu0 %v292
  %v2982 = vpop.f32.mrb[0].mxu0
  %v2983 = vadd.f32 %v2935, %v2982
  %v2984 = vpop.f32.mrb[0].mxu0
  %v2985 = vpop.f32.mrb[0].mxu0
  %v2986 = vadd.f32 %v2935, %v2985
  %v2987 = vpop.f32.mrb[0].mxu0
  %2988 = vmatprep.mubr.bf16.mxu0 0
  %2989 = vmatmul.mubr.bf16.gmra.mrb[0].mxu0 %v295
  %v2990 = vpop.f32.mrb[0].mxu0
  %v2991 = vadd.f32 %v2935, %v2990
  %v2992 = vpop.f32.mrb[0].mxu0
  %v2993 = vpop.f32.mrb[0].mxu0
  %v2994 = vadd.f32 %v2935, %v2993
  %v2995 = vpop.f32.mrb[0].mxu0
  %2996 = vmatprep.mubr.bf16.mxu0 0
  %2997 = vmatmul.mubr.bf16.gmra.mrb[0].mxu0 %v298
  %v2998 = vpop.f32.mrb[0].mxu0
  %v2999 = vadd.f32 %v2935, %v2998
  %v3000 = vpop.f32.mrb[0].mxu0
  %v3001 = vpop.f32.mrb[0].mxu0
  %v3002 = vadd.f32 %v2935, %v3001
  %v3003 = vpop.f32.mrb[0].mxu0
  %3004 = vmatprep.mubr.bf16.mxu0 0
  %3005 = vmatmul.mubr.bf16.gmra.mrb[0].mxu0 %v301
  %v3006 = vpop.f32.mrb[0].mxu0
  %v3007 = vadd.f32 %v2935, %v3006
  %v3008 = vpop.f32.mrb[0].mxu0
  %v3009 = vpop.f32.mrb[0].mxu0
  %v3010 = vadd.f32 %v2935, %v3009
  %v3011 = vpop.f32.mrb[0].mxu0
  %3012 = vmatprep.mubr.bf16.mxu0 0
  %3013 = vmatmul.mubr.bf16.gmra.mrb[0].mxu0 %v304
  %v3014 = vpop.f32.mrb[0].mxu0
  %v3015 = vadd.f32 %v2935, %v3014
  %v3016 = vpop.f32.mrb[0].mxu0
  %v3017 = vpop.f32.mrb[0].mxu0
  %v3018 = vadd.f32 %v2935, %v3017
  %v3019 = vpop.f32.mrb[0].mxu0
  %3020 = vmatprep.mubr.bf16.mxu0 0
  %3021 = vmatmul.mubr.bf16.gmra.mrb[0].mxu0 %v307
  %v3022 = vpop.f32.mrb[0].mxu0
  %v3023 = vadd.f32 %v2935, %v3022
  %v3024 = vpop.f32.mrb[0].mxu0
  %v3025 = vpop.f32.mrb[0].mxu0
  %v3026 = vadd.f32 %v2935, %v3025
  %v3027 = vpop.f32.mrb[0].mxu0
  %3028 = vmatprep.mubr.bf16.mxu0 0
  %3029 = vmatmul.mubr.bf16.gmra.mrb[0].mxu0 %v310
  %v3030 = vpop.f32.mrb[0].mxu0
  %v3031 = vadd.f32 %v2935, %v3030
  %v3032 = vpop.f32.mrb[0].mxu0
  %v3033 = vpop.f32.mrb[0].mxu0
  %v3034 = vadd.f32 %v2935, %v3033
  %v3035 = vpop.f32.mrb[0].mxu0
  %3036 = vdwg.mxu0
  %s3037 = scalar_lea.vmem %s1, 960
  %v3038 = vld [vmem:[%s3037] sm:$0xf]
  %v3039 = vld [vmem:[%s3037 + $0x4] sm:$0xf]
  %v3040 = vld [vmem:[%s3037 + $0x8] sm:$0xf]
  %v3041 = vld [vmem:[%s3037 + $0xc] sm:$0xf]
  %v3042 = vld [vmem:[%s3037 + $0x10] sm:$0xf]
  %v3043 = vld [vmem:[%s3037 + $0x14] sm:$0xf]
  %v3044 = vld [vmem:[%s3037 + $0x18] sm:$0xf]
  %v3045 = vld [vmem:[%s3037 + $0x1c] sm:$0xf]
  %v3046 = vld [vmem:[%s3037 + $0x20] sm:$0xf]
  %v3047 = vld [vmem:[%s3037 + $0x24] sm:$0xf]
  %v3048 = vld [vmem:[%s3037 + $0x28] sm:$0xf]
  %v3049 = vld [vmem:[%s3037 + $0x2c] sm:$0xf]
  %v3050 = vld [vmem:[%s3037 + $0x30] sm:$0xf]
  %v3051 = vld [vmem:[%s3037 + $0x34] sm:$0xf]
  %v3052 = vld [vmem:[%s3037 + $0x38] sm:$0xf]
  %v3053 = vld [vmem:[%s3037 + $0x3c] sm:$0xf]
  %v3054 = vunpack.c.l.bf16 %v3038
  %v3055 = vunpack.c.l.bf16 %v3039
  %v3056 = vunpack.c.l.bf16 %v3040
  %v3057 = vunpack.c.l.bf16 %v3041
  %v3058 = vunpack.c.l.bf16 %v3042
  %v3059 = vunpack.c.l.bf16 %v3043
  %v3060 = vunpack.c.l.bf16 %v3044
  %v3061 = vunpack.c.l.bf16 %v3045
  %v3062 = vunpack.c.l.bf16 %v3046
  %v3063 = vunpack.c.l.bf16 %v3047
  %v3064 = vunpack.c.l.bf16 %v3048
  %v3065 = vunpack.c.l.bf16 %v3049
  %v3066 = vunpack.c.l.bf16 %v3050
  %v3067 = vunpack.c.l.bf16 %v3051
  %v3068 = vunpack.c.l.bf16 %v3052
  %v3069 = vunpack.c.l.bf16 %v3053
  %v3070 = vmul.f32 %v2975, %v3054
  %v3071 = vmul.f32 %v2978, %v3055
  %v3072 = vmul.f32 %v2983, %v3056
  %v3073 = vmul.f32 %v2986, %v3057
  %v3074 = vmul.f32 %v2991, %v3058
  %v3075 = vmul.f32 %v2994, %v3059
  %v3076 = vmul.f32 %v2999, %v3060
  %v3077 = vmul.f32 %v3002, %v3061
  %v3078 = vmul.f32 %v3007, %v3062
  %v3079 = vmul.f32 %v3010, %v3063
  %v3080 = vmul.f32 %v3015, %v3064
  %v3081 = vmul.f32 %v3018, %v3065
  %v3082 = vmul.f32 %v3023, %v3066
  %v3083 = vmul.f32 %v3026, %v3067
  %v3084 = vmul.f32 %v3031, %v3068
  %v3085 = vmul.f32 %v3034, %v3069
  %v3086 = vadd.f32 %v2911, %v3070
  %v3087 = vadd.f32 %v2912, %v3071
  %v3088 = vadd.f32 %v2913, %v3072
  %v3089 = vadd.f32 %v2914, %v3073
  %v3090 = vadd.f32 %v2915, %v3074
  %v3091 = vadd.f32 %v2916, %v3075
  %v3092 = vadd.f32 %v2917, %v3076
  %v3093 = vadd.f32 %v2918, %v3077
  %v3094 = vadd.f32 %v2919, %v3078
  %v3095 = vadd.f32 %v2920, %v3079
  %v3096 = vadd.f32 %v2921, %v3080
  %v3097 = vadd.f32 %v2922, %v3081
  %v3098 = vadd.f32 %v2923, %v3082
  %v3099 = vadd.f32 %v2924, %v3083
  %v3100 = vadd.f32 %v2925, %v3084
  %v3101 = vadd.f32 %v2926, %v3085
  %s3102 = scalar_lea.vmem %s4, 16
  %v3103 = vld [vmem:[%s3102] sm:$0x1]
  %s3104 = scalar_lea.vmem %s5, 16
  %v3105 = vld [vmem:[%s3104] sm:$0x1]
  %v3107 = vlaneseq
  %v3108 = vshrl.u32 %v3107, 7
  %v3109 = vsub.s32 0, %v3108
  %v3110 = vrot.slane %v3105, %v3109
  %v3113 = vsel %vm312, %v3103, 0
  %3115 = vmatprep.subr.bf16.mxu0 0
  %3116 = vmatpush1.bf16.msra.mxu0 %v3113
  %3117 = vmatprep.subr.bf16.mxu0 0
  %3118 = vmatpush1.bf16.msra.mxu0 0
  %3119 = vmatprep.subr.bf16.mxu0 0
  %3120 = vmatpush1.bf16.msra.mxu0 0
  %3121 = vmatprep.subr.bf16.mxu0 0
  %3122 = vmatpush1.bf16.msra.mxu0 0
  %3123 = vmatprep.subr.bf16.mxu0 0
  %3124 = vmatpush1.bf16.msra.mxu0 0
  %3125 = vmatprep.subr.bf16.mxu0 0
  %3126 = vmatpush1.bf16.msra.mxu0 0
  %3127 = vmatprep.subr.bf16.mxu0 0
  %3128 = vmatpush1.bf16.msra.mxu0 0
  %3129 = vmatprep.subr.bf16.mxu0 0
  %3130 = vmatpush1.bf16.msra.mxu0 0
  %3131 = vmatprep.subr.bf16.mxu0 0
  %3132 = vmatpush1.bf16.msra.mxu0 0
  %3133 = vmatprep.subr.bf16.mxu0 0
  %3134 = vmatpush1.bf16.msra.mxu0 0
  %3135 = vmatprep.subr.bf16.mxu0 0
  %3136 = vmatpush1.bf16.msra.mxu0 0
  %3137 = vmatprep.subr.bf16.mxu0 0
  %3138 = vmatpush1.bf16.msra.mxu0 0
  %3139 = vmatprep.subr.bf16.mxu0 0
  %3140 = vmatpush1.bf16.msra.mxu0 0
  %3141 = vmatprep.subr.bf16.mxu0 0
  %3142 = vmatpush1.bf16.msra.mxu0 0
  %3143 = vmatprep.subr.bf16.mxu0 0
  %3144 = vmatpush1.bf16.msra.mxu0 0
  %3145 = vmatprep.subr.bf16.mxu0 0
  %3146 = vmatpush1.bf16.msra.mxu0 0
  %3147 = vmatprep.mubr.bf16.mxu0 0
  %3148 = vmatmul.mubr.bf16.gmra.mrb[0].mxu0 %v289
  %v3149 = vpop.f32.mrb[0].mxu0
  %v3150 = vadd.f32 %v3110, %v3149
  %v3151 = vpop.f32.mrb[0].mxu0
  %v3152 = vpop.f32.mrb[0].mxu0
  %v3153 = vadd.f32 %v3110, %v3152
  %v3154 = vpop.f32.mrb[0].mxu0
  %3155 = vmatprep.mubr.bf16.mxu0 0
  %3156 = vmatmul.mubr.bf16.gmra.mrb[0].mxu0 %v292
  %v3157 = vpop.f32.mrb[0].mxu0
  %v3158 = vadd.f32 %v3110, %v3157
  %v3159 = vpop.f32.mrb[0].mxu0
  %v3160 = vpop.f32.mrb[0].mxu0
  %v3161 = vadd.f32 %v3110, %v3160
  %v3162 = vpop.f32.mrb[0].mxu0
  %3163 = vmatprep.mubr.bf16.mxu0 0
  %3164 = vmatmul.mubr.bf16.gmra.mrb[0].mxu0 %v295
  %v3165 = vpop.f32.mrb[0].mxu0
  %v3166 = vadd.f32 %v3110, %v3165
  %v3167 = vpop.f32.mrb[0].mxu0
  %v3168 = vpop.f32.mrb[0].mxu0
  %v3169 = vadd.f32 %v3110, %v3168
  %v3170 = vpop.f32.mrb[0].mxu0
  %3171 = vmatprep.mubr.bf16.mxu0 0
  %3172 = vmatmul.mubr.bf16.gmra.mrb[0].mxu0 %v298
  %v3173 = vpop.f32.mrb[0].mxu0
  %v3174 = vadd.f32 %v3110, %v3173
  %v3175 = vpop.f32.mrb[0].mxu0
  %v3176 = vpop.f32.mrb[0].mxu0
  %v3177 = vadd.f32 %v3110, %v3176
  %v3178 = vpop.f32.mrb[0].mxu0
  %3179 = vmatprep.mubr.bf16.mxu0 0
  %3180 = vmatmul.mubr.bf16.gmra.mrb[0].mxu0 %v301
  %v3181 = vpop.f32.mrb[0].mxu0
  %v3182 = vadd.f32 %v3110, %v3181
  %v3183 = vpop.f32.mrb[0].mxu0
  %v3184 = vpop.f32.mrb[0].mxu0
  %v3185 = vadd.f32 %v3110, %v3184
  %v3186 = vpop.f32.mrb[0].mxu0
  %3187 = vmatprep.mubr.bf16.mxu0 0
  %3188 = vmatmul.mubr.bf16.gmra.mrb[0].mxu0 %v304
  %v3189 = vpop.f32.mrb[0].mxu0
  %v3190 = vadd.f32 %v3110, %v3189
  %v3191 = vpop.f32.mrb[0].mxu0
  %v3192 = vpop.f32.mrb[0].mxu0
  %v3193 = vadd.f32 %v3110, %v3192
  %v3194 = vpop.f32.mrb[0].mxu0
  %3195 = vmatprep.mubr.bf16.mxu0 0
  %3196 = vmatmul.mubr.bf16.gmra.mrb[0].mxu0 %v307
  %v3197 = vpop.f32.mrb[0].mxu0
  %v3198 = vadd.f32 %v3110, %v3197
  %v3199 = vpop.f32.mrb[0].mxu0
  %v3200 = vpop.f32.mrb[0].mxu0
  %v3201 = vadd.f32 %v3110, %v3200
  %v3202 = vpop.f32.mrb[0].mxu0
  %3203 = vmatprep.mubr.bf16.mxu0 0
  %3204 = vmatmul.mubr.bf16.gmra.mrb[0].mxu0 %v310
  %v3205 = vpop.f32.mrb[0].mxu0
  %v3206 = vadd.f32 %v3110, %v3205
  %v3207 = vpop.f32.mrb[0].mxu0
  %v3208 = vpop.f32.mrb[0].mxu0
  %v3209 = vadd.f32 %v3110, %v3208
  %v3210 = vpop.f32.mrb[0].mxu0
  %3211 = vdwg.mxu0
  %s3212 = scalar_lea.vmem %s1, 1024
  %v3213 = vld [vmem:[%s3212] sm:$0xf]
  %v3214 = vld [vmem:[%s3212 + $0x4] sm:$0xf]
  %v3215 = vld [vmem:[%s3212 + $0x8] sm:$0xf]
  %v3216 = vld [vmem:[%s3212 + $0xc] sm:$0xf]
  %v3217 = vld [vmem:[%s3212 + $0x10] sm:$0xf]
  %v3218 = vld [vmem:[%s3212 + $0x14] sm:$0xf]
  %v3219 = vld [vmem:[%s3212 + $0x18] sm:$0xf]
  %v3220 = vld [vmem:[%s3212 + $0x1c] sm:$0xf]
  %v3221 = vld [vmem:[%s3212 + $0x20] sm:$0xf]
  %v3222 = vld [vmem:[%s3212 + $0x24] sm:$0xf]
  %v3223 = vld [vmem:[%s3212 + $0x28] sm:$0xf]
  %v3224 = vld [vmem:[%s3212 + $0x2c] sm:$0xf]
  %v3225 = vld [vmem:[%s3212 + $0x30] sm:$0xf]
  %v3226 = vld [vmem:[%s3212 + $0x34] sm:$0xf]
  %v3227 = vld [vmem:[%s3212 + $0x38] sm:$0xf]
  %v3228 = vld [vmem:[%s3212 + $0x3c] sm:$0xf]
  %v3229 = vunpack.c.l.bf16 %v3213
  %v3230 = vunpack.c.l.bf16 %v3214
  %v3231 = vunpack.c.l.bf16 %v3215
  %v3232 = vunpack.c.l.bf16 %v3216
  %v3233 = vunpack.c.l.bf16 %v3217
  %v3234 = vunpack.c.l.bf16 %v3218
  %v3235 = vunpack.c.l.bf16 %v3219
  %v3236 = vunpack.c.l.bf16 %v3220
  %v3237 = vunpack.c.l.bf16 %v3221
  %v3238 = vunpack.c.l.bf16 %v3222
  %v3239 = vunpack.c.l.bf16 %v3223
  %v3240 = vunpack.c.l.bf16 %v3224
  %v3241 = vunpack.c.l.bf16 %v3225
  %v3242 = vunpack.c.l.bf16 %v3226
  %v3243 = vunpack.c.l.bf16 %v3227
  %v3244 = vunpack.c.l.bf16 %v3228
  %v3245 = vmul.f32 %v3150, %v3229
  %v3246 = vmul.f32 %v3153, %v3230
  %v3247 = vmul.f32 %v3158, %v3231
  %v3248 = vmul.f32 %v3161, %v3232
  %v3249 = vmul.f32 %v3166, %v3233
  %v3250 = vmul.f32 %v3169, %v3234
  %v3251 = vmul.f32 %v3174, %v3235
  %v3252 = vmul.f32 %v3177, %v3236
  %v3253 = vmul.f32 %v3182, %v3237
  %v3254 = vmul.f32 %v3185, %v3238
  %v3255 = vmul.f32 %v3190, %v3239
  %v3256 = vmul.f32 %v3193, %v3240
  %v3257 = vmul.f32 %v3198, %v3241
  %v3258 = vmul.f32 %v3201, %v3242
  %v3259 = vmul.f32 %v3206, %v3243
  %v3260 = vmul.f32 %v3209, %v3244
  %v3261 = vadd.f32 %v3086, %v3245
  %v3262 = vadd.f32 %v3087, %v3246
  %v3263 = vadd.f32 %v3088, %v3247
  %v3264 = vadd.f32 %v3089, %v3248
  %v3265 = vadd.f32 %v3090, %v3249
  %v3266 = vadd.f32 %v3091, %v3250
  %v3267 = vadd.f32 %v3092, %v3251
  %v3268 = vadd.f32 %v3093, %v3252
  %v3269 = vadd.f32 %v3094, %v3253
  %v3270 = vadd.f32 %v3095, %v3254
  %v3271 = vadd.f32 %v3096, %v3255
  %v3272 = vadd.f32 %v3097, %v3256
  %v3273 = vadd.f32 %v3098, %v3257
  %v3274 = vadd.f32 %v3099, %v3258
  %v3275 = vadd.f32 %v3100, %v3259
  %v3276 = vadd.f32 %v3101, %v3260
  %s3277 = scalar_lea.vmem %s4, 17
  %v3278 = vld [vmem:[%s3277] sm:$0x1]
  %s3279 = scalar_lea.vmem %s5, 17
  %v3280 = vld [vmem:[%s3279] sm:$0x1]
  %v3282 = vlaneseq
  %v3283 = vshrl.u32 %v3282, 7
  %v3284 = vsub.s32 0, %v3283
  %v3285 = vrot.slane %v3280, %v3284
  %v3288 = vsel %vm312, %v3278, 0
  %3290 = vmatprep.subr.bf16.mxu0 0
  %3291 = vmatpush1.bf16.msra.mxu0 %v3288
  %3292 = vmatprep.subr.bf16.mxu0 0
  %3293 = vmatpush1.bf16.msra.mxu0 0
  %3294 = vmatprep.subr.bf16.mxu0 0
  %3295 = vmatpush1.bf16.msra.mxu0 0
  %3296 = vmatprep.subr.bf16.mxu0 0
  %3297 = vmatpush1.bf16.msra.mxu0 0
  %3298 = vmatprep.subr.bf16.mxu0 0
  %3299 = vmatpush1.bf16.msra.mxu0 0
  %3300 = vmatprep.subr.bf16.mxu0 0
  %3301 = vmatpush1.bf16.msra.mxu0 0
  %3302 = vmatprep.subr.bf16.mxu0 0
  %3303 = vmatpush1.bf16.msra.mxu0 0
  %3304 = vmatprep.subr.bf16.mxu0 0
  %3305 = vmatpush1.bf16.msra.mxu0 0
  %3306 = vmatprep.subr.bf16.mxu0 0
  %3307 = vmatpush1.bf16.msra.mxu0 0
  %3308 = vmatprep.subr.bf16.mxu0 0
  %3309 = vmatpush1.bf16.msra.mxu0 0
  %3310 = vmatprep.subr.bf16.mxu0 0
  %3311 = vmatpush1.bf16.msra.mxu0 0
  %3312 = vmatprep.subr.bf16.mxu0 0
  %3313 = vmatpush1.bf16.msra.mxu0 0
  %3314 = vmatprep.subr.bf16.mxu0 0
  %3315 = vmatpush1.bf16.msra.mxu0 0
  %3316 = vmatprep.subr.bf16.mxu0 0
  %3317 = vmatpush1.bf16.msra.mxu0 0
  %3318 = vmatprep.subr.bf16.mxu0 0
  %3319 = vmatpush1.bf16.msra.mxu0 0
  %3320 = vmatprep.subr.bf16.mxu0 0
  %3321 = vmatpush1.bf16.msra.mxu0 0
  %3322 = vmatprep.mubr.bf16.mxu0 0
  %3323 = vmatmul.mubr.bf16.gmra.mrb[0].mxu0 %v289
  %v3324 = vpop.f32.mrb[0].mxu0
  %v3325 = vadd.f32 %v3285, %v3324
  %v3326 = vpop.f32.mrb[0].mxu0
  %v3327 = vpop.f32.mrb[0].mxu0
  %v3328 = vadd.f32 %v3285, %v3327
  %v3329 = vpop.f32.mrb[0].mxu0
  %3330 = vmatprep.mubr.bf16.mxu0 0
  %3331 = vmatmul.mubr.bf16.gmra.mrb[0].mxu0 %v292
  %v3332 = vpop.f32.mrb[0].mxu0
  %v3333 = vadd.f32 %v3285, %v3332
  %v3334 = vpop.f32.mrb[0].mxu0
  %v3335 = vpop.f32.mrb[0].mxu0
  %v3336 = vadd.f32 %v3285, %v3335
  %v3337 = vpop.f32.mrb[0].mxu0
  %3338 = vmatprep.mubr.bf16.mxu0 0
  %3339 = vmatmul.mubr.bf16.gmra.mrb[0].mxu0 %v295
  %v3340 = vpop.f32.mrb[0].mxu0
  %v3341 = vadd.f32 %v3285, %v3340
  %v3342 = vpop.f32.mrb[0].mxu0
  %v3343 = vpop.f32.mrb[0].mxu0
  %v3344 = vadd.f32 %v3285, %v3343
  %v3345 = vpop.f32.mrb[0].mxu0
  %3346 = vmatprep.mubr.bf16.mxu0 0
  %3347 = vmatmul.mubr.bf16.gmra.mrb[0].mxu0 %v298
  %v3348 = vpop.f32.mrb[0].mxu0
  %v3349 = vadd.f32 %v3285, %v3348
  %v3350 = vpop.f32.mrb[0].mxu0
  %v3351 = vpop.f32.mrb[0].mxu0
  %v3352 = vadd.f32 %v3285, %v3351
  %v3353 = vpop.f32.mrb[0].mxu0
  %3354 = vmatprep.mubr.bf16.mxu0 0
  %3355 = vmatmul.mubr.bf16.gmra.mrb[0].mxu0 %v301
  %v3356 = vpop.f32.mrb[0].mxu0
  %v3357 = vadd.f32 %v3285, %v3356
  %v3358 = vpop.f32.mrb[0].mxu0
  %v3359 = vpop.f32.mrb[0].mxu0
  %v3360 = vadd.f32 %v3285, %v3359
  %v3361 = vpop.f32.mrb[0].mxu0
  %3362 = vmatprep.mubr.bf16.mxu0 0
  %3363 = vmatmul.mubr.bf16.gmra.mrb[0].mxu0 %v304
  %v3364 = vpop.f32.mrb[0].mxu0
  %v3365 = vadd.f32 %v3285, %v3364
  %v3366 = vpop.f32.mrb[0].mxu0
  %v3367 = vpop.f32.mrb[0].mxu0
  %v3368 = vadd.f32 %v3285, %v3367
  %v3369 = vpop.f32.mrb[0].mxu0
  %3370 = vmatprep.mubr.bf16.mxu0 0
  %3371 = vmatmul.mubr.bf16.gmra.mrb[0].mxu0 %v307
  %v3372 = vpop.f32.mrb[0].mxu0
  %v3373 = vadd.f32 %v3285, %v3372
  %v3374 = vpop.f32.mrb[0].mxu0
  %v3375 = vpop.f32.mrb[0].mxu0
  %v3376 = vadd.f32 %v3285, %v3375
  %v3377 = vpop.f32.mrb[0].mxu0
  %3378 = vmatprep.mubr.bf16.mxu0 0
  %3379 = vmatmul.mubr.bf16.gmra.mrb[0].mxu0 %v310
  %v3380 = vpop.f32.mrb[0].mxu0
  %v3381 = vadd.f32 %v3285, %v3380
  %v3382 = vpop.f32.mrb[0].mxu0
  %v3383 = vpop.f32.mrb[0].mxu0
  %v3384 = vadd.f32 %v3285, %v3383
  %v3385 = vpop.f32.mrb[0].mxu0
  %3386 = vdwg.mxu0
  %s3387 = scalar_lea.vmem %s1, 1088
  %v3388 = vld [vmem:[%s3387] sm:$0xf]
  %v3389 = vld [vmem:[%s3387 + $0x4] sm:$0xf]
  %v3390 = vld [vmem:[%s3387 + $0x8] sm:$0xf]
  %v3391 = vld [vmem:[%s3387 + $0xc] sm:$0xf]
  %v3392 = vld [vmem:[%s3387 + $0x10] sm:$0xf]
  %v3393 = vld [vmem:[%s3387 + $0x14] sm:$0xf]
  %v3394 = vld [vmem:[%s3387 + $0x18] sm:$0xf]
  %v3395 = vld [vmem:[%s3387 + $0x1c] sm:$0xf]
  %v3396 = vld [vmem:[%s3387 + $0x20] sm:$0xf]
  %v3397 = vld [vmem:[%s3387 + $0x24] sm:$0xf]
  %v3398 = vld [vmem:[%s3387 + $0x28] sm:$0xf]
  %v3399 = vld [vmem:[%s3387 + $0x2c] sm:$0xf]
  %v3400 = vld [vmem:[%s3387 + $0x30] sm:$0xf]
  %v3401 = vld [vmem:[%s3387 + $0x34] sm:$0xf]
  %v3402 = vld [vmem:[%s3387 + $0x38] sm:$0xf]
  %v3403 = vld [vmem:[%s3387 + $0x3c] sm:$0xf]
  %v3404 = vunpack.c.l.bf16 %v3388
  %v3405 = vunpack.c.l.bf16 %v3389
  %v3406 = vunpack.c.l.bf16 %v3390
  %v3407 = vunpack.c.l.bf16 %v3391
  %v3408 = vunpack.c.l.bf16 %v3392
  %v3409 = vunpack.c.l.bf16 %v3393
  %v3410 = vunpack.c.l.bf16 %v3394
  %v3411 = vunpack.c.l.bf16 %v3395
  %v3412 = vunpack.c.l.bf16 %v3396
  %v3413 = vunpack.c.l.bf16 %v3397
  %v3414 = vunpack.c.l.bf16 %v3398
  %v3415 = vunpack.c.l.bf16 %v3399
  %v3416 = vunpack.c.l.bf16 %v3400
  %v3417 = vunpack.c.l.bf16 %v3401
  %v3418 = vunpack.c.l.bf16 %v3402
  %v3419 = vunpack.c.l.bf16 %v3403
  %v3420 = vmul.f32 %v3325, %v3404
  %v3421 = vmul.f32 %v3328, %v3405
  %v3422 = vmul.f32 %v3333, %v3406
  %v3423 = vmul.f32 %v3336, %v3407
  %v3424 = vmul.f32 %v3341, %v3408
  %v3425 = vmul.f32 %v3344, %v3409
  %v3426 = vmul.f32 %v3349, %v3410
  %v3427 = vmul.f32 %v3352, %v3411
  %v3428 = vmul.f32 %v3357, %v3412
  %v3429 = vmul.f32 %v3360, %v3413
  %v3430 = vmul.f32 %v3365, %v3414
  %v3431 = vmul.f32 %v3368, %v3415
  %v3432 = vmul.f32 %v3373, %v3416
  %v3433 = vmul.f32 %v3376, %v3417
  %v3434 = vmul.f32 %v3381, %v3418
  %v3435 = vmul.f32 %v3384, %v3419
  %v3436 = vadd.f32 %v3261, %v3420
  %v3437 = vadd.f32 %v3262, %v3421
  %v3438 = vadd.f32 %v3263, %v3422
  %v3439 = vadd.f32 %v3264, %v3423
  %v3440 = vadd.f32 %v3265, %v3424
  %v3441 = vadd.f32 %v3266, %v3425
  %v3442 = vadd.f32 %v3267, %v3426
  %v3443 = vadd.f32 %v3268, %v3427
  %v3444 = vadd.f32 %v3269, %v3428
  %v3445 = vadd.f32 %v3270, %v3429
  %v3446 = vadd.f32 %v3271, %v3430
  %v3447 = vadd.f32 %v3272, %v3431
  %v3448 = vadd.f32 %v3273, %v3432
  %v3449 = vadd.f32 %v3274, %v3433
  %v3450 = vadd.f32 %v3275, %v3434
  %v3451 = vadd.f32 %v3276, %v3435
  %s3452 = scalar_lea.vmem %s4, 18
  %v3453 = vld [vmem:[%s3452] sm:$0x1]
  %s3454 = scalar_lea.vmem %s5, 18
  %v3455 = vld [vmem:[%s3454] sm:$0x1]
  %v3457 = vlaneseq
  %v3458 = vshrl.u32 %v3457, 7
  %v3459 = vsub.s32 0, %v3458
  %v3460 = vrot.slane %v3455, %v3459
  %v3463 = vsel %vm312, %v3453, 0
  %3465 = vmatprep.subr.bf16.mxu0 0
  %3466 = vmatpush1.bf16.msra.mxu0 %v3463
  %3467 = vmatprep.subr.bf16.mxu0 0
  %3468 = vmatpush1.bf16.msra.mxu0 0
  %3469 = vmatprep.subr.bf16.mxu0 0
  %3470 = vmatpush1.bf16.msra.mxu0 0
  %3471 = vmatprep.subr.bf16.mxu0 0
  %3472 = vmatpush1.bf16.msra.mxu0 0
  %3473 = vmatprep.subr.bf16.mxu0 0
  %3474 = vmatpush1.bf16.msra.mxu0 0
  %3475 = vmatprep.subr.bf16.mxu0 0
  %3476 = vmatpush1.bf16.msra.mxu0 0
  %3477 = vmatprep.subr.bf16.mxu0 0
  %3478 = vmatpush1.bf16.msra.mxu0 0
  %3479 = vmatprep.subr.bf16.mxu0 0
  %3480 = vmatpush1.bf16.msra.mxu0 0
  %3481 = vmatprep.subr.bf16.mxu0 0
  %3482 = vmatpush1.bf16.msra.mxu0 0
  %3483 = vmatprep.subr.bf16.mxu0 0
  %3484 = vmatpush1.bf16.msra.mxu0 0
  %3485 = vmatprep.subr.bf16.mxu0 0
  %3486 = vmatpush1.bf16.msra.mxu0 0
  %3487 = vmatprep.subr.bf16.mxu0 0
  %3488 = vmatpush1.bf16.msra.mxu0 0
  %3489 = vmatprep.subr.bf16.mxu0 0
  %3490 = vmatpush1.bf16.msra.mxu0 0
  %3491 = vmatprep.subr.bf16.mxu0 0
  %3492 = vmatpush1.bf16.msra.mxu0 0
  %3493 = vmatprep.subr.bf16.mxu0 0
  %3494 = vmatpush1.bf16.msra.mxu0 0
  %3495 = vmatprep.subr.bf16.mxu0 0
  %3496 = vmatpush1.bf16.msra.mxu0 0
  %3497 = vmatprep.mubr.bf16.mxu0 0
  %3498 = vmatmul.mubr.bf16.gmra.mrb[0].mxu0 %v289
  %v3499 = vpop.f32.mrb[0].mxu0
  %v3500 = vadd.f32 %v3460, %v3499
  %v3501 = vpop.f32.mrb[0].mxu0
  %v3502 = vpop.f32.mrb[0].mxu0
  %v3503 = vadd.f32 %v3460, %v3502
  %v3504 = vpop.f32.mrb[0].mxu0
  %3505 = vmatprep.mubr.bf16.mxu0 0
  %3506 = vmatmul.mubr.bf16.gmra.mrb[0].mxu0 %v292
  %v3507 = vpop.f32.mrb[0].mxu0
  %v3508 = vadd.f32 %v3460, %v3507
  %v3509 = vpop.f32.mrb[0].mxu0
  %v3510 = vpop.f32.mrb[0].mxu0
  %v3511 = vadd.f32 %v3460, %v3510
  %v3512 = vpop.f32.mrb[0].mxu0
  %3513 = vmatprep.mubr.bf16.mxu0 0
  %3514 = vmatmul.mubr.bf16.gmra.mrb[0].mxu0 %v295
  %v3515 = vpop.f32.mrb[0].mxu0
  %v3516 = vadd.f32 %v3460, %v3515
  %v3517 = vpop.f32.mrb[0].mxu0
  %v3518 = vpop.f32.mrb[0].mxu0
  %v3519 = vadd.f32 %v3460, %v3518
  %v3520 = vpop.f32.mrb[0].mxu0
  %3521 = vmatprep.mubr.bf16.mxu0 0
  %3522 = vmatmul.mubr.bf16.gmra.mrb[0].mxu0 %v298
  %v3523 = vpop.f32.mrb[0].mxu0
  %v3524 = vadd.f32 %v3460, %v3523
  %v3525 = vpop.f32.mrb[0].mxu0
  %v3526 = vpop.f32.mrb[0].mxu0
  %v3527 = vadd.f32 %v3460, %v3526
  %v3528 = vpop.f32.mrb[0].mxu0
  %3529 = vmatprep.mubr.bf16.mxu0 0
  %3530 = vmatmul.mubr.bf16.gmra.mrb[0].mxu0 %v301
  %v3531 = vpop.f32.mrb[0].mxu0
  %v3532 = vadd.f32 %v3460, %v3531
  %v3533 = vpop.f32.mrb[0].mxu0
  %v3534 = vpop.f32.mrb[0].mxu0
  %v3535 = vadd.f32 %v3460, %v3534
  %v3536 = vpop.f32.mrb[0].mxu0
  %3537 = vmatprep.mubr.bf16.mxu0 0
  %3538 = vmatmul.mubr.bf16.gmra.mrb[0].mxu0 %v304
  %v3539 = vpop.f32.mrb[0].mxu0
  %v3540 = vadd.f32 %v3460, %v3539
  %v3541 = vpop.f32.mrb[0].mxu0
  %v3542 = vpop.f32.mrb[0].mxu0
  %v3543 = vadd.f32 %v3460, %v3542
  %v3544 = vpop.f32.mrb[0].mxu0
  %3545 = vmatprep.mubr.bf16.mxu0 0
  %3546 = vmatmul.mubr.bf16.gmra.mrb[0].mxu0 %v307
  %v3547 = vpop.f32.mrb[0].mxu0
  %v3548 = vadd.f32 %v3460, %v3547
  %v3549 = vpop.f32.mrb[0].mxu0
  %v3550 = vpop.f32.mrb[0].mxu0
  %v3551 = vadd.f32 %v3460, %v3550
  %v3552 = vpop.f32.mrb[0].mxu0
  %3553 = vmatprep.mubr.bf16.mxu0 0
  %3554 = vmatmul.mubr.bf16.gmra.mrb[0].mxu0 %v310
  %v3555 = vpop.f32.mrb[0].mxu0
  %v3556 = vadd.f32 %v3460, %v3555
  %v3557 = vpop.f32.mrb[0].mxu0
  %v3558 = vpop.f32.mrb[0].mxu0
  %v3559 = vadd.f32 %v3460, %v3558
  %v3560 = vpop.f32.mrb[0].mxu0
  %3561 = vdwg.mxu0
  %s3562 = scalar_lea.vmem %s1, 1152
  %v3563 = vld [vmem:[%s3562] sm:$0xf]
  %v3564 = vld [vmem:[%s3562 + $0x4] sm:$0xf]
  %v3565 = vld [vmem:[%s3562 + $0x8] sm:$0xf]
  %v3566 = vld [vmem:[%s3562 + $0xc] sm:$0xf]
  %v3567 = vld [vmem:[%s3562 + $0x10] sm:$0xf]
  %v3568 = vld [vmem:[%s3562 + $0x14] sm:$0xf]
  %v3569 = vld [vmem:[%s3562 + $0x18] sm:$0xf]
  %v3570 = vld [vmem:[%s3562 + $0x1c] sm:$0xf]
  %v3571 = vld [vmem:[%s3562 + $0x20] sm:$0xf]
  %v3572 = vld [vmem:[%s3562 + $0x24] sm:$0xf]
  %v3573 = vld [vmem:[%s3562 + $0x28] sm:$0xf]
  %v3574 = vld [vmem:[%s3562 + $0x2c] sm:$0xf]
  %v3575 = vld [vmem:[%s3562 + $0x30] sm:$0xf]
  %v3576 = vld [vmem:[%s3562 + $0x34] sm:$0xf]
  %v3577 = vld [vmem:[%s3562 + $0x38] sm:$0xf]
  %v3578 = vld [vmem:[%s3562 + $0x3c] sm:$0xf]
  %v3579 = vunpack.c.l.bf16 %v3563
  %v3580 = vunpack.c.l.bf16 %v3564
  %v3581 = vunpack.c.l.bf16 %v3565
  %v3582 = vunpack.c.l.bf16 %v3566
  %v3583 = vunpack.c.l.bf16 %v3567
  %v3584 = vunpack.c.l.bf16 %v3568
  %v3585 = vunpack.c.l.bf16 %v3569
  %v3586 = vunpack.c.l.bf16 %v3570
  %v3587 = vunpack.c.l.bf16 %v3571
  %v3588 = vunpack.c.l.bf16 %v3572
  %v3589 = vunpack.c.l.bf16 %v3573
  %v3590 = vunpack.c.l.bf16 %v3574
  %v3591 = vunpack.c.l.bf16 %v3575
  %v3592 = vunpack.c.l.bf16 %v3576
  %v3593 = vunpack.c.l.bf16 %v3577
  %v3594 = vunpack.c.l.bf16 %v3578
  %v3595 = vmul.f32 %v3500, %v3579
  %v3596 = vmul.f32 %v3503, %v3580
  %v3597 = vmul.f32 %v3508, %v3581
  %v3598 = vmul.f32 %v3511, %v3582
  %v3599 = vmul.f32 %v3516, %v3583
  %v3600 = vmul.f32 %v3519, %v3584
  %v3601 = vmul.f32 %v3524, %v3585
  %v3602 = vmul.f32 %v3527, %v3586
  %v3603 = vmul.f32 %v3532, %v3587
  %v3604 = vmul.f32 %v3535, %v3588
  %v3605 = vmul.f32 %v3540, %v3589
  %v3606 = vmul.f32 %v3543, %v3590
  %v3607 = vmul.f32 %v3548, %v3591
  %v3608 = vmul.f32 %v3551, %v3592
  %v3609 = vmul.f32 %v3556, %v3593
  %v3610 = vmul.f32 %v3559, %v3594
  %v3611 = vadd.f32 %v3436, %v3595
  %v3612 = vadd.f32 %v3437, %v3596
  %v3613 = vadd.f32 %v3438, %v3597
  %v3614 = vadd.f32 %v3439, %v3598
  %v3615 = vadd.f32 %v3440, %v3599
  %v3616 = vadd.f32 %v3441, %v3600
  %v3617 = vadd.f32 %v3442, %v3601
  %v3618 = vadd.f32 %v3443, %v3602
  %v3619 = vadd.f32 %v3444, %v3603
  %v3620 = vadd.f32 %v3445, %v3604
  %v3621 = vadd.f32 %v3446, %v3605
  %v3622 = vadd.f32 %v3447, %v3606
  %v3623 = vadd.f32 %v3448, %v3607
  %v3624 = vadd.f32 %v3449, %v3608
  %v3625 = vadd.f32 %v3450, %v3609
  %v3626 = vadd.f32 %v3451, %v3610
  %s3627 = scalar_lea.vmem %s4, 19
  %v3628 = vld [vmem:[%s3627] sm:$0x1]
  %s3629 = scalar_lea.vmem %s5, 19
  %v3630 = vld [vmem:[%s3629] sm:$0x1]
  %v3632 = vlaneseq
  %v3633 = vshrl.u32 %v3632, 7
  %v3634 = vsub.s32 0, %v3633
  %v3635 = vrot.slane %v3630, %v3634
  %v3638 = vsel %vm312, %v3628, 0
  %3640 = vmatprep.subr.bf16.mxu0 0
  %3641 = vmatpush1.bf16.msra.mxu0 %v3638
  %3642 = vmatprep.subr.bf16.mxu0 0
  %3643 = vmatpush1.bf16.msra.mxu0 0
  %3644 = vmatprep.subr.bf16.mxu0 0
  %3645 = vmatpush1.bf16.msra.mxu0 0
  %3646 = vmatprep.subr.bf16.mxu0 0
  %3647 = vmatpush1.bf16.msra.mxu0 0
  %3648 = vmatprep.subr.bf16.mxu0 0
  %3649 = vmatpush1.bf16.msra.mxu0 0
  %3650 = vmatprep.subr.bf16.mxu0 0
  %3651 = vmatpush1.bf16.msra.mxu0 0
  %3652 = vmatprep.subr.bf16.mxu0 0
  %3653 = vmatpush1.bf16.msra.mxu0 0
  %3654 = vmatprep.subr.bf16.mxu0 0
  %3655 = vmatpush1.bf16.msra.mxu0 0
  %3656 = vmatprep.subr.bf16.mxu0 0
  %3657 = vmatpush1.bf16.msra.mxu0 0
  %3658 = vmatprep.subr.bf16.mxu0 0
  %3659 = vmatpush1.bf16.msra.mxu0 0
  %3660 = vmatprep.subr.bf16.mxu0 0
  %3661 = vmatpush1.bf16.msra.mxu0 0
  %3662 = vmatprep.subr.bf16.mxu0 0
  %3663 = vmatpush1.bf16.msra.mxu0 0
  %3664 = vmatprep.subr.bf16.mxu0 0
  %3665 = vmatpush1.bf16.msra.mxu0 0
  %3666 = vmatprep.subr.bf16.mxu0 0
  %3667 = vmatpush1.bf16.msra.mxu0 0
  %3668 = vmatprep.subr.bf16.mxu0 0
  %3669 = vmatpush1.bf16.msra.mxu0 0
  %3670 = vmatprep.subr.bf16.mxu0 0
  %3671 = vmatpush1.bf16.msra.mxu0 0
  %3672 = vmatprep.mubr.bf16.mxu0 0
  %3673 = vmatmul.mubr.bf16.gmra.mrb[0].mxu0 %v289
  %v3674 = vpop.f32.mrb[0].mxu0
  %v3675 = vadd.f32 %v3635, %v3674
  %v3676 = vpop.f32.mrb[0].mxu0
  %v3677 = vpop.f32.mrb[0].mxu0
  %v3678 = vadd.f32 %v3635, %v3677
  %v3679 = vpop.f32.mrb[0].mxu0
  %3680 = vmatprep.mubr.bf16.mxu0 0
  %3681 = vmatmul.mubr.bf16.gmra.mrb[0].mxu0 %v292
  %v3682 = vpop.f32.mrb[0].mxu0
  %v3683 = vadd.f32 %v3635, %v3682
  %v3684 = vpop.f32.mrb[0].mxu0
  %v3685 = vpop.f32.mrb[0].mxu0
  %v3686 = vadd.f32 %v3635, %v3685
  %v3687 = vpop.f32.mrb[0].mxu0
  %3688 = vmatprep.mubr.bf16.mxu0 0
  %3689 = vmatmul.mubr.bf16.gmra.mrb[0].mxu0 %v295
  %v3690 = vpop.f32.mrb[0].mxu0
  %v3691 = vadd.f32 %v3635, %v3690
  %v3692 = vpop.f32.mrb[0].mxu0
  %v3693 = vpop.f32.mrb[0].mxu0
  %v3694 = vadd.f32 %v3635, %v3693
  %v3695 = vpop.f32.mrb[0].mxu0
  %3696 = vmatprep.mubr.bf16.mxu0 0
  %3697 = vmatmul.mubr.bf16.gmra.mrb[0].mxu0 %v298
  %v3698 = vpop.f32.mrb[0].mxu0
  %v3699 = vadd.f32 %v3635, %v3698
  %v3700 = vpop.f32.mrb[0].mxu0
  %v3701 = vpop.f32.mrb[0].mxu0
  %v3702 = vadd.f32 %v3635, %v3701
  %v3703 = vpop.f32.mrb[0].mxu0
  %3704 = vmatprep.mubr.bf16.mxu0 0
  %3705 = vmatmul.mubr.bf16.gmra.mrb[0].mxu0 %v301
  %v3706 = vpop.f32.mrb[0].mxu0
  %v3707 = vadd.f32 %v3635, %v3706
  %v3708 = vpop.f32.mrb[0].mxu0
  %v3709 = vpop.f32.mrb[0].mxu0
  %v3710 = vadd.f32 %v3635, %v3709
  %v3711 = vpop.f32.mrb[0].mxu0
  %3712 = vmatprep.mubr.bf16.mxu0 0
  %3713 = vmatmul.mubr.bf16.gmra.mrb[0].mxu0 %v304
  %v3714 = vpop.f32.mrb[0].mxu0
  %v3715 = vadd.f32 %v3635, %v3714
  %v3716 = vpop.f32.mrb[0].mxu0
  %v3717 = vpop.f32.mrb[0].mxu0
  %v3718 = vadd.f32 %v3635, %v3717
  %v3719 = vpop.f32.mrb[0].mxu0
  %3720 = vmatprep.mubr.bf16.mxu0 0
  %3721 = vmatmul.mubr.bf16.gmra.mrb[0].mxu0 %v307
  %v3722 = vpop.f32.mrb[0].mxu0
  %v3723 = vadd.f32 %v3635, %v3722
  %v3724 = vpop.f32.mrb[0].mxu0
  %v3725 = vpop.f32.mrb[0].mxu0
  %v3726 = vadd.f32 %v3635, %v3725
  %v3727 = vpop.f32.mrb[0].mxu0
  %3728 = vmatprep.mubr.bf16.mxu0 0
  %3729 = vmatmul.mubr.bf16.gmra.mrb[0].mxu0 %v310
  %v3730 = vpop.f32.mrb[0].mxu0
  %v3731 = vadd.f32 %v3635, %v3730
  %v3732 = vpop.f32.mrb[0].mxu0
  %v3733 = vpop.f32.mrb[0].mxu0
  %v3734 = vadd.f32 %v3635, %v3733
  %v3735 = vpop.f32.mrb[0].mxu0
  %3736 = vdwg.mxu0
  %s3737 = scalar_lea.vmem %s1, 1216
  %v3738 = vld [vmem:[%s3737] sm:$0xf]
  %v3739 = vld [vmem:[%s3737 + $0x4] sm:$0xf]
  %v3740 = vld [vmem:[%s3737 + $0x8] sm:$0xf]
  %v3741 = vld [vmem:[%s3737 + $0xc] sm:$0xf]
  %v3742 = vld [vmem:[%s3737 + $0x10] sm:$0xf]
  %v3743 = vld [vmem:[%s3737 + $0x14] sm:$0xf]
  %v3744 = vld [vmem:[%s3737 + $0x18] sm:$0xf]
  %v3745 = vld [vmem:[%s3737 + $0x1c] sm:$0xf]
  %v3746 = vld [vmem:[%s3737 + $0x20] sm:$0xf]
  %v3747 = vld [vmem:[%s3737 + $0x24] sm:$0xf]
  %v3748 = vld [vmem:[%s3737 + $0x28] sm:$0xf]
  %v3749 = vld [vmem:[%s3737 + $0x2c] sm:$0xf]
  %v3750 = vld [vmem:[%s3737 + $0x30] sm:$0xf]
  %v3751 = vld [vmem:[%s3737 + $0x34] sm:$0xf]
  %v3752 = vld [vmem:[%s3737 + $0x38] sm:$0xf]
  %v3753 = vld [vmem:[%s3737 + $0x3c] sm:$0xf]
  %v3754 = vunpack.c.l.bf16 %v3738
  %v3755 = vunpack.c.l.bf16 %v3739
  %v3756 = vunpack.c.l.bf16 %v3740
  %v3757 = vunpack.c.l.bf16 %v3741
  %v3758 = vunpack.c.l.bf16 %v3742
  %v3759 = vunpack.c.l.bf16 %v3743
  %v3760 = vunpack.c.l.bf16 %v3744
  %v3761 = vunpack.c.l.bf16 %v3745
  %v3762 = vunpack.c.l.bf16 %v3746
  %v3763 = vunpack.c.l.bf16 %v3747
  %v3764 = vunpack.c.l.bf16 %v3748
  %v3765 = vunpack.c.l.bf16 %v3749
  %v3766 = vunpack.c.l.bf16 %v3750
  %v3767 = vunpack.c.l.bf16 %v3751
  %v3768 = vunpack.c.l.bf16 %v3752
  %v3769 = vunpack.c.l.bf16 %v3753
  %v3770 = vmul.f32 %v3675, %v3754
  %v3771 = vmul.f32 %v3678, %v3755
  %v3772 = vmul.f32 %v3683, %v3756
  %v3773 = vmul.f32 %v3686, %v3757
  %v3774 = vmul.f32 %v3691, %v3758
  %v3775 = vmul.f32 %v3694, %v3759
  %v3776 = vmul.f32 %v3699, %v3760
  %v3777 = vmul.f32 %v3702, %v3761
  %v3778 = vmul.f32 %v3707, %v3762
  %v3779 = vmul.f32 %v3710, %v3763
  %v3780 = vmul.f32 %v3715, %v3764
  %v3781 = vmul.f32 %v3718, %v3765
  %v3782 = vmul.f32 %v3723, %v3766
  %v3783 = vmul.f32 %v3726, %v3767
  %v3784 = vmul.f32 %v3731, %v3768
  %v3785 = vmul.f32 %v3734, %v3769
  %v3786 = vadd.f32 %v3611, %v3770
  %v3787 = vadd.f32 %v3612, %v3771
  %v3788 = vadd.f32 %v3613, %v3772
  %v3789 = vadd.f32 %v3614, %v3773
  %v3790 = vadd.f32 %v3615, %v3774
  %v3791 = vadd.f32 %v3616, %v3775
  %v3792 = vadd.f32 %v3617, %v3776
  %v3793 = vadd.f32 %v3618, %v3777
  %v3794 = vadd.f32 %v3619, %v3778
  %v3795 = vadd.f32 %v3620, %v3779
  %v3796 = vadd.f32 %v3621, %v3780
  %v3797 = vadd.f32 %v3622, %v3781
  %v3798 = vadd.f32 %v3623, %v3782
  %v3799 = vadd.f32 %v3624, %v3783
  %v3800 = vadd.f32 %v3625, %v3784
  %v3801 = vadd.f32 %v3626, %v3785
  %s3802 = scalar_lea.vmem %s4, 20
  %v3803 = vld [vmem:[%s3802] sm:$0x1]
  %s3804 = scalar_lea.vmem %s5, 20
  %v3805 = vld [vmem:[%s3804] sm:$0x1]
  %v3807 = vlaneseq
  %v3808 = vshrl.u32 %v3807, 7
  %v3809 = vsub.s32 0, %v3808
  %v3810 = vrot.slane %v3805, %v3809
  %v3813 = vsel %vm312, %v3803, 0
  %3815 = vmatprep.subr.bf16.mxu0 0
  %3816 = vmatpush1.bf16.msra.mxu0 %v3813
  %3817 = vmatprep.subr.bf16.mxu0 0
  %3818 = vmatpush1.bf16.msra.mxu0 0
  %3819 = vmatprep.subr.bf16.mxu0 0
  %3820 = vmatpush1.bf16.msra.mxu0 0
  %3821 = vmatprep.subr.bf16.mxu0 0
  %3822 = vmatpush1.bf16.msra.mxu0 0
  %3823 = vmatprep.subr.bf16.mxu0 0
  %3824 = vmatpush1.bf16.msra.mxu0 0
  %3825 = vmatprep.subr.bf16.mxu0 0
  %3826 = vmatpush1.bf16.msra.mxu0 0
  %3827 = vmatprep.subr.bf16.mxu0 0
  %3828 = vmatpush1.bf16.msra.mxu0 0
  %3829 = vmatprep.subr.bf16.mxu0 0
  %3830 = vmatpush1.bf16.msra.mxu0 0
  %3831 = vmatprep.subr.bf16.mxu0 0
  %3832 = vmatpush1.bf16.msra.mxu0 0
  %3833 = vmatprep.subr.bf16.mxu0 0
  %3834 = vmatpush1.bf16.msra.mxu0 0
  %3835 = vmatprep.subr.bf16.mxu0 0
  %3836 = vmatpush1.bf16.msra.mxu0 0
  %3837 = vmatprep.subr.bf16.mxu0 0
  %3838 = vmatpush1.bf16.msra.mxu0 0
  %3839 = vmatprep.subr.bf16.mxu0 0
  %3840 = vmatpush1.bf16.msra.mxu0 0
  %3841 = vmatprep.subr.bf16.mxu0 0
  %3842 = vmatpush1.bf16.msra.mxu0 0
  %3843 = vmatprep.subr.bf16.mxu0 0
  %3844 = vmatpush1.bf16.msra.mxu0 0
  %3845 = vmatprep.subr.bf16.mxu0 0
  %3846 = vmatpush1.bf16.msra.mxu0 0
  %3847 = vmatprep.mubr.bf16.mxu0 0
  %3848 = vmatmul.mubr.bf16.gmra.mrb[0].mxu0 %v289
  %v3849 = vpop.f32.mrb[0].mxu0
  %v3850 = vadd.f32 %v3810, %v3849
  %v3851 = vpop.f32.mrb[0].mxu0
  %v3852 = vpop.f32.mrb[0].mxu0
  %v3853 = vadd.f32 %v3810, %v3852
  %v3854 = vpop.f32.mrb[0].mxu0
  %3855 = vmatprep.mubr.bf16.mxu0 0
  %3856 = vmatmul.mubr.bf16.gmra.mrb[0].mxu0 %v292
  %v3857 = vpop.f32.mrb[0].mxu0
  %v3858 = vadd.f32 %v3810, %v3857
  %v3859 = vpop.f32.mrb[0].mxu0
  %v3860 = vpop.f32.mrb[0].mxu0
  %v3861 = vadd.f32 %v3810, %v3860
  %v3862 = vpop.f32.mrb[0].mxu0
  %3863 = vmatprep.mubr.bf16.mxu0 0
  %3864 = vmatmul.mubr.bf16.gmra.mrb[0].mxu0 %v295
  %v3865 = vpop.f32.mrb[0].mxu0
  %v3866 = vadd.f32 %v3810, %v3865
  %v3867 = vpop.f32.mrb[0].mxu0
  %v3868 = vpop.f32.mrb[0].mxu0
  %v3869 = vadd.f32 %v3810, %v3868
  %v3870 = vpop.f32.mrb[0].mxu0
  %3871 = vmatprep.mubr.bf16.mxu0 0
  %3872 = vmatmul.mubr.bf16.gmra.mrb[0].mxu0 %v298
  %v3873 = vpop.f32.mrb[0].mxu0
  %v3874 = vadd.f32 %v3810, %v3873
  %v3875 = vpop.f32.mrb[0].mxu0
  %v3876 = vpop.f32.mrb[0].mxu0
  %v3877 = vadd.f32 %v3810, %v3876
  %v3878 = vpop.f32.mrb[0].mxu0
  %3879 = vmatprep.mubr.bf16.mxu0 0
  %3880 = vmatmul.mubr.bf16.gmra.mrb[0].mxu0 %v301
  %v3881 = vpop.f32.mrb[0].mxu0
  %v3882 = vadd.f32 %v3810, %v3881
  %v3883 = vpop.f32.mrb[0].mxu0
  %v3884 = vpop.f32.mrb[0].mxu0
  %v3885 = vadd.f32 %v3810, %v3884
  %v3886 = vpop.f32.mrb[0].mxu0
  %3887 = vmatprep.mubr.bf16.mxu0 0
  %3888 = vmatmul.mubr.bf16.gmra.mrb[0].mxu0 %v304
  %v3889 = vpop.f32.mrb[0].mxu0
  %v3890 = vadd.f32 %v3810, %v3889
  %v3891 = vpop.f32.mrb[0].mxu0
  %v3892 = vpop.f32.mrb[0].mxu0
  %v3893 = vadd.f32 %v3810, %v3892
  %v3894 = vpop.f32.mrb[0].mxu0
  %3895 = vmatprep.mubr.bf16.mxu0 0
  %3896 = vmatmul.mubr.bf16.gmra.mrb[0].mxu0 %v307
  %v3897 = vpop.f32.mrb[0].mxu0
  %v3898 = vadd.f32 %v3810, %v3897
  %v3899 = vpop.f32.mrb[0].mxu0
  %v3900 = vpop.f32.mrb[0].mxu0
  %v3901 = vadd.f32 %v3810, %v3900
  %v3902 = vpop.f32.mrb[0].mxu0
  %3903 = vmatprep.mubr.bf16.mxu0 0
  %3904 = vmatmul.mubr.bf16.gmra.mrb[0].mxu0 %v310
  %v3905 = vpop.f32.mrb[0].mxu0
  %v3906 = vadd.f32 %v3810, %v3905
  %v3907 = vpop.f32.mrb[0].mxu0
  %v3908 = vpop.f32.mrb[0].mxu0
  %v3909 = vadd.f32 %v3810, %v3908
  %v3910 = vpop.f32.mrb[0].mxu0
  %3911 = vdwg.mxu0
  %s3912 = scalar_lea.vmem %s1, 1280
  %v3913 = vld [vmem:[%s3912] sm:$0xf]
  %v3914 = vld [vmem:[%s3912 + $0x4] sm:$0xf]
  %v3915 = vld [vmem:[%s3912 + $0x8] sm:$0xf]
  %v3916 = vld [vmem:[%s3912 + $0xc] sm:$0xf]
  %v3917 = vld [vmem:[%s3912 + $0x10] sm:$0xf]
  %v3918 = vld [vmem:[%s3912 + $0x14] sm:$0xf]
  %v3919 = vld [vmem:[%s3912 + $0x18] sm:$0xf]
  %v3920 = vld [vmem:[%s3912 + $0x1c] sm:$0xf]
  %v3921 = vld [vmem:[%s3912 + $0x20] sm:$0xf]
  %v3922 = vld [vmem:[%s3912 + $0x24] sm:$0xf]
  %v3923 = vld [vmem:[%s3912 + $0x28] sm:$0xf]
  %v3924 = vld [vmem:[%s3912 + $0x2c] sm:$0xf]
  %v3925 = vld [vmem:[%s3912 + $0x30] sm:$0xf]
  %v3926 = vld [vmem:[%s3912 + $0x34] sm:$0xf]
  %v3927 = vld [vmem:[%s3912 + $0x38] sm:$0xf]
  %v3928 = vld [vmem:[%s3912 + $0x3c] sm:$0xf]
  %v3929 = vunpack.c.l.bf16 %v3913
  %v3930 = vunpack.c.l.bf16 %v3914
  %v3931 = vunpack.c.l.bf16 %v3915
  %v3932 = vunpack.c.l.bf16 %v3916
  %v3933 = vunpack.c.l.bf16 %v3917
  %v3934 = vunpack.c.l.bf16 %v3918
  %v3935 = vunpack.c.l.bf16 %v3919
  %v3936 = vunpack.c.l.bf16 %v3920
  %v3937 = vunpack.c.l.bf16 %v3921
  %v3938 = vunpack.c.l.bf16 %v3922
  %v3939 = vunpack.c.l.bf16 %v3923
  %v3940 = vunpack.c.l.bf16 %v3924
  %v3941 = vunpack.c.l.bf16 %v3925
  %v3942 = vunpack.c.l.bf16 %v3926
  %v3943 = vunpack.c.l.bf16 %v3927
  %v3944 = vunpack.c.l.bf16 %v3928
  %v3945 = vmul.f32 %v3850, %v3929
  %v3946 = vmul.f32 %v3853, %v3930
  %v3947 = vmul.f32 %v3858, %v3931
  %v3948 = vmul.f32 %v3861, %v3932
  %v3949 = vmul.f32 %v3866, %v3933
  %v3950 = vmul.f32 %v3869, %v3934
  %v3951 = vmul.f32 %v3874, %v3935
  %v3952 = vmul.f32 %v3877, %v3936
  %v3953 = vmul.f32 %v3882, %v3937
  %v3954 = vmul.f32 %v3885, %v3938
  %v3955 = vmul.f32 %v3890, %v3939
  %v3956 = vmul.f32 %v3893, %v3940
  %v3957 = vmul.f32 %v3898, %v3941
  %v3958 = vmul.f32 %v3901, %v3942
  %v3959 = vmul.f32 %v3906, %v3943
  %v3960 = vmul.f32 %v3909, %v3944
  %v3961 = vadd.f32 %v3786, %v3945
  %v3962 = vadd.f32 %v3787, %v3946
  %v3963 = vadd.f32 %v3788, %v3947
  %v3964 = vadd.f32 %v3789, %v3948
  %v3965 = vadd.f32 %v3790, %v3949
  %v3966 = vadd.f32 %v3791, %v3950
  %v3967 = vadd.f32 %v3792, %v3951
  %v3968 = vadd.f32 %v3793, %v3952
  %v3969 = vadd.f32 %v3794, %v3953
  %v3970 = vadd.f32 %v3795, %v3954
  %v3971 = vadd.f32 %v3796, %v3955
  %v3972 = vadd.f32 %v3797, %v3956
  %v3973 = vadd.f32 %v3798, %v3957
  %v3974 = vadd.f32 %v3799, %v3958
  %v3975 = vadd.f32 %v3800, %v3959
  %v3976 = vadd.f32 %v3801, %v3960
  %s3977 = scalar_lea.vmem %s4, 21
  %v3978 = vld [vmem:[%s3977] sm:$0x1]
  %s3979 = scalar_lea.vmem %s5, 21
  %v3980 = vld [vmem:[%s3979] sm:$0x1]
  %v3982 = vlaneseq
  %v3983 = vshrl.u32 %v3982, 7
  %v3984 = vsub.s32 0, %v3983
  %v3985 = vrot.slane %v3980, %v3984
  %v3988 = vsel %vm312, %v3978, 0
  %3990 = vmatprep.subr.bf16.mxu0 0
  %3991 = vmatpush1.bf16.msra.mxu0 %v3988
  %3992 = vmatprep.subr.bf16.mxu0 0
  %3993 = vmatpush1.bf16.msra.mxu0 0
  %3994 = vmatprep.subr.bf16.mxu0 0
  %3995 = vmatpush1.bf16.msra.mxu0 0
  %3996 = vmatprep.subr.bf16.mxu0 0
  %3997 = vmatpush1.bf16.msra.mxu0 0
  %3998 = vmatprep.subr.bf16.mxu0 0
  %3999 = vmatpush1.bf16.msra.mxu0 0
  %4000 = vmatprep.subr.bf16.mxu0 0
  %4001 = vmatpush1.bf16.msra.mxu0 0
  %4002 = vmatprep.subr.bf16.mxu0 0
  %4003 = vmatpush1.bf16.msra.mxu0 0
  %4004 = vmatprep.subr.bf16.mxu0 0
  %4005 = vmatpush1.bf16.msra.mxu0 0
  %4006 = vmatprep.subr.bf16.mxu0 0
  %4007 = vmatpush1.bf16.msra.mxu0 0
  %4008 = vmatprep.subr.bf16.mxu0 0
  %4009 = vmatpush1.bf16.msra.mxu0 0
  %4010 = vmatprep.subr.bf16.mxu0 0
  %4011 = vmatpush1.bf16.msra.mxu0 0
  %4012 = vmatprep.subr.bf16.mxu0 0
  %4013 = vmatpush1.bf16.msra.mxu0 0
  %4014 = vmatprep.subr.bf16.mxu0 0
  %4015 = vmatpush1.bf16.msra.mxu0 0
  %4016 = vmatprep.subr.bf16.mxu0 0
  %4017 = vmatpush1.bf16.msra.mxu0 0
  %4018 = vmatprep.subr.bf16.mxu0 0
  %4019 = vmatpush1.bf16.msra.mxu0 0
  %4020 = vmatprep.subr.bf16.mxu0 0
  %4021 = vmatpush1.bf16.msra.mxu0 0
  %4022 = vmatprep.mubr.bf16.mxu0 0
  %4023 = vmatmul.mubr.bf16.gmra.mrb[0].mxu0 %v289
  %v4024 = vpop.f32.mrb[0].mxu0
  %v4025 = vadd.f32 %v3985, %v4024
  %v4026 = vpop.f32.mrb[0].mxu0
  %v4027 = vpop.f32.mrb[0].mxu0
  %v4028 = vadd.f32 %v3985, %v4027
  %v4029 = vpop.f32.mrb[0].mxu0
  %4030 = vmatprep.mubr.bf16.mxu0 0
  %4031 = vmatmul.mubr.bf16.gmra.mrb[0].mxu0 %v292
  %v4032 = vpop.f32.mrb[0].mxu0
  %v4033 = vadd.f32 %v3985, %v4032
  %v4034 = vpop.f32.mrb[0].mxu0
  %v4035 = vpop.f32.mrb[0].mxu0
  %v4036 = vadd.f32 %v3985, %v4035
  %v4037 = vpop.f32.mrb[0].mxu0
  %4038 = vmatprep.mubr.bf16.mxu0 0
  %4039 = vmatmul.mubr.bf16.gmra.mrb[0].mxu0 %v295
  %v4040 = vpop.f32.mrb[0].mxu0
  %v4041 = vadd.f32 %v3985, %v4040
  %v4042 = vpop.f32.mrb[0].mxu0
  %v4043 = vpop.f32.mrb[0].mxu0
  %v4044 = vadd.f32 %v3985, %v4043
  %v4045 = vpop.f32.mrb[0].mxu0
  %4046 = vmatprep.mubr.bf16.mxu0 0
  %4047 = vmatmul.mubr.bf16.gmra.mrb[0].mxu0 %v298
  %v4048 = vpop.f32.mrb[0].mxu0
  %v4049 = vadd.f32 %v3985, %v4048
  %v4050 = vpop.f32.mrb[0].mxu0
  %v4051 = vpop.f32.mrb[0].mxu0
  %v4052 = vadd.f32 %v3985, %v4051
  %v4053 = vpop.f32.mrb[0].mxu0
  %4054 = vmatprep.mubr.bf16.mxu0 0
  %4055 = vmatmul.mubr.bf16.gmra.mrb[0].mxu0 %v301
  %v4056 = vpop.f32.mrb[0].mxu0
  %v4057 = vadd.f32 %v3985, %v4056
  %v4058 = vpop.f32.mrb[0].mxu0
  %v4059 = vpop.f32.mrb[0].mxu0
  %v4060 = vadd.f32 %v3985, %v4059
  %v4061 = vpop.f32.mrb[0].mxu0
  %4062 = vmatprep.mubr.bf16.mxu0 0
  %4063 = vmatmul.mubr.bf16.gmra.mrb[0].mxu0 %v304
  %v4064 = vpop.f32.mrb[0].mxu0
  %v4065 = vadd.f32 %v3985, %v4064
  %v4066 = vpop.f32.mrb[0].mxu0
  %v4067 = vpop.f32.mrb[0].mxu0
  %v4068 = vadd.f32 %v3985, %v4067
  %v4069 = vpop.f32.mrb[0].mxu0
  %4070 = vmatprep.mubr.bf16.mxu0 0
  %4071 = vmatmul.mubr.bf16.gmra.mrb[0].mxu0 %v307
  %v4072 = vpop.f32.mrb[0].mxu0
  %v4073 = vadd.f32 %v3985, %v4072
  %v4074 = vpop.f32.mrb[0].mxu0
  %v4075 = vpop.f32.mrb[0].mxu0
  %v4076 = vadd.f32 %v3985, %v4075
  %v4077 = vpop.f32.mrb[0].mxu0
  %4078 = vmatprep.mubr.bf16.mxu0 0
  %4079 = vmatmul.mubr.bf16.gmra.mrb[0].mxu0 %v310
  %v4080 = vpop.f32.mrb[0].mxu0
  %v4081 = vadd.f32 %v3985, %v4080
  %v4082 = vpop.f32.mrb[0].mxu0
  %v4083 = vpop.f32.mrb[0].mxu0
  %v4084 = vadd.f32 %v3985, %v4083
  %v4085 = vpop.f32.mrb[0].mxu0
  %4086 = vdwg.mxu0
  %s4087 = scalar_lea.vmem %s1, 1344
  %v4088 = vld [vmem:[%s4087] sm:$0xf]
  %v4089 = vld [vmem:[%s4087 + $0x4] sm:$0xf]
  %v4090 = vld [vmem:[%s4087 + $0x8] sm:$0xf]
  %v4091 = vld [vmem:[%s4087 + $0xc] sm:$0xf]
  %v4092 = vld [vmem:[%s4087 + $0x10] sm:$0xf]
  %v4093 = vld [vmem:[%s4087 + $0x14] sm:$0xf]
  %v4094 = vld [vmem:[%s4087 + $0x18] sm:$0xf]
  %v4095 = vld [vmem:[%s4087 + $0x1c] sm:$0xf]
  %v4096 = vld [vmem:[%s4087 + $0x20] sm:$0xf]
  %v4097 = vld [vmem:[%s4087 + $0x24] sm:$0xf]
  %v4098 = vld [vmem:[%s4087 + $0x28] sm:$0xf]
  %v4099 = vld [vmem:[%s4087 + $0x2c] sm:$0xf]
  %v4100 = vld [vmem:[%s4087 + $0x30] sm:$0xf]
  %v4101 = vld [vmem:[%s4087 + $0x34] sm:$0xf]
  %v4102 = vld [vmem:[%s4087 + $0x38] sm:$0xf]
  %v4103 = vld [vmem:[%s4087 + $0x3c] sm:$0xf]
  %v4104 = vunpack.c.l.bf16 %v4088
  %v4105 = vunpack.c.l.bf16 %v4089
  %v4106 = vunpack.c.l.bf16 %v4090
  %v4107 = vunpack.c.l.bf16 %v4091
  %v4108 = vunpack.c.l.bf16 %v4092
  %v4109 = vunpack.c.l.bf16 %v4093
  %v4110 = vunpack.c.l.bf16 %v4094
  %v4111 = vunpack.c.l.bf16 %v4095
  %v4112 = vunpack.c.l.bf16 %v4096
  %v4113 = vunpack.c.l.bf16 %v4097
  %v4114 = vunpack.c.l.bf16 %v4098
  %v4115 = vunpack.c.l.bf16 %v4099
  %v4116 = vunpack.c.l.bf16 %v4100
  %v4117 = vunpack.c.l.bf16 %v4101
  %v4118 = vunpack.c.l.bf16 %v4102
  %v4119 = vunpack.c.l.bf16 %v4103
  %v4120 = vmul.f32 %v4025, %v4104
  %v4121 = vmul.f32 %v4028, %v4105
  %v4122 = vmul.f32 %v4033, %v4106
  %v4123 = vmul.f32 %v4036, %v4107
  %v4124 = vmul.f32 %v4041, %v4108
  %v4125 = vmul.f32 %v4044, %v4109
  %v4126 = vmul.f32 %v4049, %v4110
  %v4127 = vmul.f32 %v4052, %v4111
  %v4128 = vmul.f32 %v4057, %v4112
  %v4129 = vmul.f32 %v4060, %v4113
  %v4130 = vmul.f32 %v4065, %v4114
  %v4131 = vmul.f32 %v4068, %v4115
  %v4132 = vmul.f32 %v4073, %v4116
  %v4133 = vmul.f32 %v4076, %v4117
  %v4134 = vmul.f32 %v4081, %v4118
  %v4135 = vmul.f32 %v4084, %v4119
  %v4136 = vadd.f32 %v3961, %v4120
  %v4137 = vadd.f32 %v3962, %v4121
  %v4138 = vadd.f32 %v3963, %v4122
  %v4139 = vadd.f32 %v3964, %v4123
  %v4140 = vadd.f32 %v3965, %v4124
  %v4141 = vadd.f32 %v3966, %v4125
  %v4142 = vadd.f32 %v3967, %v4126
  %v4143 = vadd.f32 %v3968, %v4127
  %v4144 = vadd.f32 %v3969, %v4128
  %v4145 = vadd.f32 %v3970, %v4129
  %v4146 = vadd.f32 %v3971, %v4130
  %v4147 = vadd.f32 %v3972, %v4131
  %v4148 = vadd.f32 %v3973, %v4132
  %v4149 = vadd.f32 %v3974, %v4133
  %v4150 = vadd.f32 %v3975, %v4134
  %v4151 = vadd.f32 %v3976, %v4135
  %s4152 = scalar_lea.vmem %s4, 22
  %v4153 = vld [vmem:[%s4152] sm:$0x1]
  %s4154 = scalar_lea.vmem %s5, 22
  %v4155 = vld [vmem:[%s4154] sm:$0x1]
  %v4157 = vlaneseq
  %v4158 = vshrl.u32 %v4157, 7
  %v4159 = vsub.s32 0, %v4158
  %v4160 = vrot.slane %v4155, %v4159
  %v4163 = vsel %vm312, %v4153, 0
  %4165 = vmatprep.subr.bf16.mxu0 0
  %4166 = vmatpush1.bf16.msra.mxu0 %v4163
  %4167 = vmatprep.subr.bf16.mxu0 0
  %4168 = vmatpush1.bf16.msra.mxu0 0
  %4169 = vmatprep.subr.bf16.mxu0 0
  %4170 = vmatpush1.bf16.msra.mxu0 0
  %4171 = vmatprep.subr.bf16.mxu0 0
  %4172 = vmatpush1.bf16.msra.mxu0 0
  %4173 = vmatprep.subr.bf16.mxu0 0
  %4174 = vmatpush1.bf16.msra.mxu0 0
  %4175 = vmatprep.subr.bf16.mxu0 0
  %4176 = vmatpush1.bf16.msra.mxu0 0
  %4177 = vmatprep.subr.bf16.mxu0 0
  %4178 = vmatpush1.bf16.msra.mxu0 0
  %4179 = vmatprep.subr.bf16.mxu0 0
  %4180 = vmatpush1.bf16.msra.mxu0 0
  %4181 = vmatprep.subr.bf16.mxu0 0
  %4182 = vmatpush1.bf16.msra.mxu0 0
  %4183 = vmatprep.subr.bf16.mxu0 0
  %4184 = vmatpush1.bf16.msra.mxu0 0
  %4185 = vmatprep.subr.bf16.mxu0 0
  %4186 = vmatpush1.bf16.msra.mxu0 0
  %4187 = vmatprep.subr.bf16.mxu0 0
  %4188 = vmatpush1.bf16.msra.mxu0 0
  %4189 = vmatprep.subr.bf16.mxu0 0
  %4190 = vmatpush1.bf16.msra.mxu0 0
  %4191 = vmatprep.subr.bf16.mxu0 0
  %4192 = vmatpush1.bf16.msra.mxu0 0
  %4193 = vmatprep.subr.bf16.mxu0 0
  %4194 = vmatpush1.bf16.msra.mxu0 0
  %4195 = vmatprep.subr.bf16.mxu0 0
  %4196 = vmatpush1.bf16.msra.mxu0 0
  %4197 = vmatprep.mubr.bf16.mxu0 0
  %4198 = vmatmul.mubr.bf16.gmra.mrb[0].mxu0 %v289
  %v4199 = vpop.f32.mrb[0].mxu0
  %v4200 = vadd.f32 %v4160, %v4199
  %v4201 = vpop.f32.mrb[0].mxu0
  %v4202 = vpop.f32.mrb[0].mxu0
  %v4203 = vadd.f32 %v4160, %v4202
  %v4204 = vpop.f32.mrb[0].mxu0
  %4205 = vmatprep.mubr.bf16.mxu0 0
  %4206 = vmatmul.mubr.bf16.gmra.mrb[0].mxu0 %v292
  %v4207 = vpop.f32.mrb[0].mxu0
  %v4208 = vadd.f32 %v4160, %v4207
  %v4209 = vpop.f32.mrb[0].mxu0
  %v4210 = vpop.f32.mrb[0].mxu0
  %v4211 = vadd.f32 %v4160, %v4210
  %v4212 = vpop.f32.mrb[0].mxu0
  %4213 = vmatprep.mubr.bf16.mxu0 0
  %4214 = vmatmul.mubr.bf16.gmra.mrb[0].mxu0 %v295
  %v4215 = vpop.f32.mrb[0].mxu0
  %v4216 = vadd.f32 %v4160, %v4215
  %v4217 = vpop.f32.mrb[0].mxu0
  %v4218 = vpop.f32.mrb[0].mxu0
  %v4219 = vadd.f32 %v4160, %v4218
  %v4220 = vpop.f32.mrb[0].mxu0
  %4221 = vmatprep.mubr.bf16.mxu0 0
  %4222 = vmatmul.mubr.bf16.gmra.mrb[0].mxu0 %v298
  %v4223 = vpop.f32.mrb[0].mxu0
  %v4224 = vadd.f32 %v4160, %v4223
  %v4225 = vpop.f32.mrb[0].mxu0
  %v4226 = vpop.f32.mrb[0].mxu0
  %v4227 = vadd.f32 %v4160, %v4226
  %v4228 = vpop.f32.mrb[0].mxu0
  %4229 = vmatprep.mubr.bf16.mxu0 0
  %4230 = vmatmul.mubr.bf16.gmra.mrb[0].mxu0 %v301
  %v4231 = vpop.f32.mrb[0].mxu0
  %v4232 = vadd.f32 %v4160, %v4231
  %v4233 = vpop.f32.mrb[0].mxu0
  %v4234 = vpop.f32.mrb[0].mxu0
  %v4235 = vadd.f32 %v4160, %v4234
  %v4236 = vpop.f32.mrb[0].mxu0
  %4237 = vmatprep.mubr.bf16.mxu0 0
  %4238 = vmatmul.mubr.bf16.gmra.mrb[0].mxu0 %v304
  %v4239 = vpop.f32.mrb[0].mxu0
  %v4240 = vadd.f32 %v4160, %v4239
  %v4241 = vpop.f32.mrb[0].mxu0
  %v4242 = vpop.f32.mrb[0].mxu0
  %v4243 = vadd.f32 %v4160, %v4242
  %v4244 = vpop.f32.mrb[0].mxu0
  %4245 = vmatprep.mubr.bf16.mxu0 0
  %4246 = vmatmul.mubr.bf16.gmra.mrb[0].mxu0 %v307
  %v4247 = vpop.f32.mrb[0].mxu0
  %v4248 = vadd.f32 %v4160, %v4247
  %v4249 = vpop.f32.mrb[0].mxu0
  %v4250 = vpop.f32.mrb[0].mxu0
  %v4251 = vadd.f32 %v4160, %v4250
  %v4252 = vpop.f32.mrb[0].mxu0
  %4253 = vmatprep.mubr.bf16.mxu0 0
  %4254 = vmatmul.mubr.bf16.gmra.mrb[0].mxu0 %v310
  %v4255 = vpop.f32.mrb[0].mxu0
  %v4256 = vadd.f32 %v4160, %v4255
  %v4257 = vpop.f32.mrb[0].mxu0
  %v4258 = vpop.f32.mrb[0].mxu0
  %v4259 = vadd.f32 %v4160, %v4258
  %v4260 = vpop.f32.mrb[0].mxu0
  %4261 = vdwg.mxu0
  %s4262 = scalar_lea.vmem %s1, 1408
  %v4263 = vld [vmem:[%s4262] sm:$0xf]
  %v4264 = vld [vmem:[%s4262 + $0x4] sm:$0xf]
  %v4265 = vld [vmem:[%s4262 + $0x8] sm:$0xf]
  %v4266 = vld [vmem:[%s4262 + $0xc] sm:$0xf]
  %v4267 = vld [vmem:[%s4262 + $0x10] sm:$0xf]
  %v4268 = vld [vmem:[%s4262 + $0x14] sm:$0xf]
  %v4269 = vld [vmem:[%s4262 + $0x18] sm:$0xf]
  %v4270 = vld [vmem:[%s4262 + $0x1c] sm:$0xf]
  %v4271 = vld [vmem:[%s4262 + $0x20] sm:$0xf]
  %v4272 = vld [vmem:[%s4262 + $0x24] sm:$0xf]
  %v4273 = vld [vmem:[%s4262 + $0x28] sm:$0xf]
  %v4274 = vld [vmem:[%s4262 + $0x2c] sm:$0xf]
  %v4275 = vld [vmem:[%s4262 + $0x30] sm:$0xf]
  %v4276 = vld [vmem:[%s4262 + $0x34] sm:$0xf]
  %v4277 = vld [vmem:[%s4262 + $0x38] sm:$0xf]
  %v4278 = vld [vmem:[%s4262 + $0x3c] sm:$0xf]
  %v4279 = vunpack.c.l.bf16 %v4263
  %v4280 = vunpack.c.l.bf16 %v4264
  %v4281 = vunpack.c.l.bf16 %v4265
  %v4282 = vunpack.c.l.bf16 %v4266
  %v4283 = vunpack.c.l.bf16 %v4267
  %v4284 = vunpack.c.l.bf16 %v4268
  %v4285 = vunpack.c.l.bf16 %v4269
  %v4286 = vunpack.c.l.bf16 %v4270
  %v4287 = vunpack.c.l.bf16 %v4271
  %v4288 = vunpack.c.l.bf16 %v4272
  %v4289 = vunpack.c.l.bf16 %v4273
  %v4290 = vunpack.c.l.bf16 %v4274
  %v4291 = vunpack.c.l.bf16 %v4275
  %v4292 = vunpack.c.l.bf16 %v4276
  %v4293 = vunpack.c.l.bf16 %v4277
  %v4294 = vunpack.c.l.bf16 %v4278
  %v4295 = vmul.f32 %v4200, %v4279
  %v4296 = vmul.f32 %v4203, %v4280
  %v4297 = vmul.f32 %v4208, %v4281
  %v4298 = vmul.f32 %v4211, %v4282
  %v4299 = vmul.f32 %v4216, %v4283
  %v4300 = vmul.f32 %v4219, %v4284
  %v4301 = vmul.f32 %v4224, %v4285
  %v4302 = vmul.f32 %v4227, %v4286
  %v4303 = vmul.f32 %v4232, %v4287
  %v4304 = vmul.f32 %v4235, %v4288
  %v4305 = vmul.f32 %v4240, %v4289
  %v4306 = vmul.f32 %v4243, %v4290
  %v4307 = vmul.f32 %v4248, %v4291
  %v4308 = vmul.f32 %v4251, %v4292
  %v4309 = vmul.f32 %v4256, %v4293
  %v4310 = vmul.f32 %v4259, %v4294
  %v4311 = vadd.f32 %v4136, %v4295
  %v4312 = vadd.f32 %v4137, %v4296
  %v4313 = vadd.f32 %v4138, %v4297
  %v4314 = vadd.f32 %v4139, %v4298
  %v4315 = vadd.f32 %v4140, %v4299
  %v4316 = vadd.f32 %v4141, %v4300
  %v4317 = vadd.f32 %v4142, %v4301
  %v4318 = vadd.f32 %v4143, %v4302
  %v4319 = vadd.f32 %v4144, %v4303
  %v4320 = vadd.f32 %v4145, %v4304
  %v4321 = vadd.f32 %v4146, %v4305
  %v4322 = vadd.f32 %v4147, %v4306
  %v4323 = vadd.f32 %v4148, %v4307
  %v4324 = vadd.f32 %v4149, %v4308
  %v4325 = vadd.f32 %v4150, %v4309
  %v4326 = vadd.f32 %v4151, %v4310
  %s4327 = scalar_lea.vmem %s4, 23
  %v4328 = vld [vmem:[%s4327] sm:$0x1]
  %s4329 = scalar_lea.vmem %s5, 23
  %v4330 = vld [vmem:[%s4329] sm:$0x1]
  %v4332 = vlaneseq
  %v4333 = vshrl.u32 %v4332, 7
  %v4334 = vsub.s32 0, %v4333
  %v4335 = vrot.slane %v4330, %v4334
  %v4338 = vsel %vm312, %v4328, 0
  %4340 = vmatprep.subr.bf16.mxu0 0
  %4341 = vmatpush1.bf16.msra.mxu0 %v4338
  %4342 = vmatprep.subr.bf16.mxu0 0
  %4343 = vmatpush1.bf16.msra.mxu0 0
  %4344 = vmatprep.subr.bf16.mxu0 0
  %4345 = vmatpush1.bf16.msra.mxu0 0
  %4346 = vmatprep.subr.bf16.mxu0 0
  %4347 = vmatpush1.bf16.msra.mxu0 0
  %4348 = vmatprep.subr.bf16.mxu0 0
  %4349 = vmatpush1.bf16.msra.mxu0 0
  %4350 = vmatprep.subr.bf16.mxu0 0
  %4351 = vmatpush1.bf16.msra.mxu0 0
  %4352 = vmatprep.subr.bf16.mxu0 0
  %4353 = vmatpush1.bf16.msra.mxu0 0
  %4354 = vmatprep.subr.bf16.mxu0 0
  %4355 = vmatpush1.bf16.msra.mxu0 0
  %4356 = vmatprep.subr.bf16.mxu0 0
  %4357 = vmatpush1.bf16.msra.mxu0 0
  %4358 = vmatprep.subr.bf16.mxu0 0
  %4359 = vmatpush1.bf16.msra.mxu0 0
  %4360 = vmatprep.subr.bf16.mxu0 0
  %4361 = vmatpush1.bf16.msra.mxu0 0
  %4362 = vmatprep.subr.bf16.mxu0 0
  %4363 = vmatpush1.bf16.msra.mxu0 0
  %4364 = vmatprep.subr.bf16.mxu0 0
  %4365 = vmatpush1.bf16.msra.mxu0 0
  %4366 = vmatprep.subr.bf16.mxu0 0
  %4367 = vmatpush1.bf16.msra.mxu0 0
  %4368 = vmatprep.subr.bf16.mxu0 0
  %4369 = vmatpush1.bf16.msra.mxu0 0
  %4370 = vmatprep.subr.bf16.mxu0 0
  %4371 = vmatpush1.bf16.msra.mxu0 0
  %4372 = vmatprep.mubr.bf16.mxu0 0
  %4373 = vmatmul.mubr.bf16.gmra.mrb[0].mxu0 %v289
  %v4374 = vpop.f32.mrb[0].mxu0
  %v4375 = vadd.f32 %v4335, %v4374
  %v4376 = vpop.f32.mrb[0].mxu0
  %v4377 = vpop.f32.mrb[0].mxu0
  %v4378 = vadd.f32 %v4335, %v4377
  %v4379 = vpop.f32.mrb[0].mxu0
  %4380 = vmatprep.mubr.bf16.mxu0 0
  %4381 = vmatmul.mubr.bf16.gmra.mrb[0].mxu0 %v292
  %v4382 = vpop.f32.mrb[0].mxu0
  %v4383 = vadd.f32 %v4335, %v4382
  %v4384 = vpop.f32.mrb[0].mxu0
  %v4385 = vpop.f32.mrb[0].mxu0
  %v4386 = vadd.f32 %v4335, %v4385
  %v4387 = vpop.f32.mrb[0].mxu0
  %4388 = vmatprep.mubr.bf16.mxu0 0
  %4389 = vmatmul.mubr.bf16.gmra.mrb[0].mxu0 %v295
  %v4390 = vpop.f32.mrb[0].mxu0
  %v4391 = vadd.f32 %v4335, %v4390
  %v4392 = vpop.f32.mrb[0].mxu0
  %v4393 = vpop.f32.mrb[0].mxu0
  %v4394 = vadd.f32 %v4335, %v4393
  %v4395 = vpop.f32.mrb[0].mxu0
  %4396 = vmatprep.mubr.bf16.mxu0 0
  %4397 = vmatmul.mubr.bf16.gmra.mrb[0].mxu0 %v298
  %v4398 = vpop.f32.mrb[0].mxu0
  %v4399 = vadd.f32 %v4335, %v4398
  %v4400 = vpop.f32.mrb[0].mxu0
  %v4401 = vpop.f32.mrb[0].mxu0
  %v4402 = vadd.f32 %v4335, %v4401
  %v4403 = vpop.f32.mrb[0].mxu0
  %4404 = vmatprep.mubr.bf16.mxu0 0
  %4405 = vmatmul.mubr.bf16.gmra.mrb[0].mxu0 %v301
  %v4406 = vpop.f32.mrb[0].mxu0
  %v4407 = vadd.f32 %v4335, %v4406
  %v4408 = vpop.f32.mrb[0].mxu0
  %v4409 = vpop.f32.mrb[0].mxu0
  %v4410 = vadd.f32 %v4335, %v4409
  %v4411 = vpop.f32.mrb[0].mxu0
  %4412 = vmatprep.mubr.bf16.mxu0 0
  %4413 = vmatmul.mubr.bf16.gmra.mrb[0].mxu0 %v304
  %v4414 = vpop.f32.mrb[0].mxu0
  %v4415 = vadd.f32 %v4335, %v4414
  %v4416 = vpop.f32.mrb[0].mxu0
  %v4417 = vpop.f32.mrb[0].mxu0
  %v4418 = vadd.f32 %v4335, %v4417
  %v4419 = vpop.f32.mrb[0].mxu0
  %4420 = vmatprep.mubr.bf16.mxu0 0
  %4421 = vmatmul.mubr.bf16.gmra.mrb[0].mxu0 %v307
  %v4422 = vpop.f32.mrb[0].mxu0
  %v4423 = vadd.f32 %v4335, %v4422
  %v4424 = vpop.f32.mrb[0].mxu0
  %v4425 = vpop.f32.mrb[0].mxu0
  %v4426 = vadd.f32 %v4335, %v4425
  %v4427 = vpop.f32.mrb[0].mxu0
  %4428 = vmatprep.mubr.bf16.mxu0 0
  %4429 = vmatmul.mubr.bf16.gmra.mrb[0].mxu0 %v310
  %v4430 = vpop.f32.mrb[0].mxu0
  %v4431 = vadd.f32 %v4335, %v4430
  %v4432 = vpop.f32.mrb[0].mxu0
  %v4433 = vpop.f32.mrb[0].mxu0
  %v4434 = vadd.f32 %v4335, %v4433
  %v4435 = vpop.f32.mrb[0].mxu0
  %4436 = vdwg.mxu0
  %s4437 = scalar_lea.vmem %s1, 1472
  %v4438 = vld [vmem:[%s4437] sm:$0xf]
  %v4439 = vld [vmem:[%s4437 + $0x4] sm:$0xf]
  %v4440 = vld [vmem:[%s4437 + $0x8] sm:$0xf]
  %v4441 = vld [vmem:[%s4437 + $0xc] sm:$0xf]
  %v4442 = vld [vmem:[%s4437 + $0x10] sm:$0xf]
  %v4443 = vld [vmem:[%s4437 + $0x14] sm:$0xf]
  %v4444 = vld [vmem:[%s4437 + $0x18] sm:$0xf]
  %v4445 = vld [vmem:[%s4437 + $0x1c] sm:$0xf]
  %v4446 = vld [vmem:[%s4437 + $0x20] sm:$0xf]
  %v4447 = vld [vmem:[%s4437 + $0x24] sm:$0xf]
  %v4448 = vld [vmem:[%s4437 + $0x28] sm:$0xf]
  %v4449 = vld [vmem:[%s4437 + $0x2c] sm:$0xf]
  %v4450 = vld [vmem:[%s4437 + $0x30] sm:$0xf]
  %v4451 = vld [vmem:[%s4437 + $0x34] sm:$0xf]
  %v4452 = vld [vmem:[%s4437 + $0x38] sm:$0xf]
  %v4453 = vld [vmem:[%s4437 + $0x3c] sm:$0xf]
  %v4454 = vunpack.c.l.bf16 %v4438
  %v4455 = vunpack.c.l.bf16 %v4439
  %v4456 = vunpack.c.l.bf16 %v4440
  %v4457 = vunpack.c.l.bf16 %v4441
  %v4458 = vunpack.c.l.bf16 %v4442
  %v4459 = vunpack.c.l.bf16 %v4443
  %v4460 = vunpack.c.l.bf16 %v4444
  %v4461 = vunpack.c.l.bf16 %v4445
  %v4462 = vunpack.c.l.bf16 %v4446
  %v4463 = vunpack.c.l.bf16 %v4447
  %v4464 = vunpack.c.l.bf16 %v4448
  %v4465 = vunpack.c.l.bf16 %v4449
  %v4466 = vunpack.c.l.bf16 %v4450
  %v4467 = vunpack.c.l.bf16 %v4451
  %v4468 = vunpack.c.l.bf16 %v4452
  %v4469 = vunpack.c.l.bf16 %v4453
  %v4470 = vmul.f32 %v4375, %v4454
  %v4471 = vmul.f32 %v4378, %v4455
  %v4472 = vmul.f32 %v4383, %v4456
  %v4473 = vmul.f32 %v4386, %v4457
  %v4474 = vmul.f32 %v4391, %v4458
  %v4475 = vmul.f32 %v4394, %v4459
  %v4476 = vmul.f32 %v4399, %v4460
  %v4477 = vmul.f32 %v4402, %v4461
  %v4478 = vmul.f32 %v4407, %v4462
  %v4479 = vmul.f32 %v4410, %v4463
  %v4480 = vmul.f32 %v4415, %v4464
  %v4481 = vmul.f32 %v4418, %v4465
  %v4482 = vmul.f32 %v4423, %v4466
  %v4483 = vmul.f32 %v4426, %v4467
  %v4484 = vmul.f32 %v4431, %v4468
  %v4485 = vmul.f32 %v4434, %v4469
  %v4486 = vadd.f32 %v4311, %v4470
  %v4487 = vadd.f32 %v4312, %v4471
  %v4488 = vadd.f32 %v4313, %v4472
  %v4489 = vadd.f32 %v4314, %v4473
  %v4490 = vadd.f32 %v4315, %v4474
  %v4491 = vadd.f32 %v4316, %v4475
  %v4492 = vadd.f32 %v4317, %v4476
  %v4493 = vadd.f32 %v4318, %v4477
  %v4494 = vadd.f32 %v4319, %v4478
  %v4495 = vadd.f32 %v4320, %v4479
  %v4496 = vadd.f32 %v4321, %v4480
  %v4497 = vadd.f32 %v4322, %v4481
  %v4498 = vadd.f32 %v4323, %v4482
  %v4499 = vadd.f32 %v4324, %v4483
  %v4500 = vadd.f32 %v4325, %v4484
  %v4501 = vadd.f32 %v4326, %v4485
  %s4502 = scalar_lea.vmem %s4, 24
  %v4503 = vld [vmem:[%s4502] sm:$0x1]
  %s4504 = scalar_lea.vmem %s5, 24
  %v4505 = vld [vmem:[%s4504] sm:$0x1]
  %v4507 = vlaneseq
  %v4508 = vshrl.u32 %v4507, 7
  %v4509 = vsub.s32 0, %v4508
  %v4510 = vrot.slane %v4505, %v4509
  %v4513 = vsel %vm312, %v4503, 0
  %4515 = vmatprep.subr.bf16.mxu0 0
  %4516 = vmatpush1.bf16.msra.mxu0 %v4513
  %4517 = vmatprep.subr.bf16.mxu0 0
  %4518 = vmatpush1.bf16.msra.mxu0 0
  %4519 = vmatprep.subr.bf16.mxu0 0
  %4520 = vmatpush1.bf16.msra.mxu0 0
  %4521 = vmatprep.subr.bf16.mxu0 0
  %4522 = vmatpush1.bf16.msra.mxu0 0
  %4523 = vmatprep.subr.bf16.mxu0 0
  %4524 = vmatpush1.bf16.msra.mxu0 0
  %4525 = vmatprep.subr.bf16.mxu0 0
  %4526 = vmatpush1.bf16.msra.mxu0 0
  %4527 = vmatprep.subr.bf16.mxu0 0
  %4528 = vmatpush1.bf16.msra.mxu0 0
  %4529 = vmatprep.subr.bf16.mxu0 0
  %4530 = vmatpush1.bf16.msra.mxu0 0
  %4531 = vmatprep.subr.bf16.mxu0 0
  %4532 = vmatpush1.bf16.msra.mxu0 0
  %4533 = vmatprep.subr.bf16.mxu0 0
  %4534 = vmatpush1.bf16.msra.mxu0 0
  %4535 = vmatprep.subr.bf16.mxu0 0
  %4536 = vmatpush1.bf16.msra.mxu0 0
  %4537 = vmatprep.subr.bf16.mxu0 0
  %4538 = vmatpush1.bf16.msra.mxu0 0
  %4539 = vmatprep.subr.bf16.mxu0 0
  %4540 = vmatpush1.bf16.msra.mxu0 0
  %4541 = vmatprep.subr.bf16.mxu0 0
  %4542 = vmatpush1.bf16.msra.mxu0 0
  %4543 = vmatprep.subr.bf16.mxu0 0
  %4544 = vmatpush1.bf16.msra.mxu0 0
  %4545 = vmatprep.subr.bf16.mxu0 0
  %4546 = vmatpush1.bf16.msra.mxu0 0
  %4547 = vmatprep.mubr.bf16.mxu0 0
  %4548 = vmatmul.mubr.bf16.gmra.mrb[0].mxu0 %v289
  %v4549 = vpop.f32.mrb[0].mxu0
  %v4550 = vadd.f32 %v4510, %v4549
  %v4551 = vpop.f32.mrb[0].mxu0
  %v4552 = vpop.f32.mrb[0].mxu0
  %v4553 = vadd.f32 %v4510, %v4552
  %v4554 = vpop.f32.mrb[0].mxu0
  %4555 = vmatprep.mubr.bf16.mxu0 0
  %4556 = vmatmul.mubr.bf16.gmra.mrb[0].mxu0 %v292
  %v4557 = vpop.f32.mrb[0].mxu0
  %v4558 = vadd.f32 %v4510, %v4557
  %v4559 = vpop.f32.mrb[0].mxu0
  %v4560 = vpop.f32.mrb[0].mxu0
  %v4561 = vadd.f32 %v4510, %v4560
  %v4562 = vpop.f32.mrb[0].mxu0
  %4563 = vmatprep.mubr.bf16.mxu0 0
  %4564 = vmatmul.mubr.bf16.gmra.mrb[0].mxu0 %v295
  %v4565 = vpop.f32.mrb[0].mxu0
  %v4566 = vadd.f32 %v4510, %v4565
  %v4567 = vpop.f32.mrb[0].mxu0
  %v4568 = vpop.f32.mrb[0].mxu0
  %v4569 = vadd.f32 %v4510, %v4568
  %v4570 = vpop.f32.mrb[0].mxu0
  %4571 = vmatprep.mubr.bf16.mxu0 0
  %4572 = vmatmul.mubr.bf16.gmra.mrb[0].mxu0 %v298
  %v4573 = vpop.f32.mrb[0].mxu0
  %v4574 = vadd.f32 %v4510, %v4573
  %v4575 = vpop.f32.mrb[0].mxu0
  %v4576 = vpop.f32.mrb[0].mxu0
  %v4577 = vadd.f32 %v4510, %v4576
  %v4578 = vpop.f32.mrb[0].mxu0
  %4579 = vmatprep.mubr.bf16.mxu0 0
  %4580 = vmatmul.mubr.bf16.gmra.mrb[0].mxu0 %v301
  %v4581 = vpop.f32.mrb[0].mxu0
  %v4582 = vadd.f32 %v4510, %v4581
  %v4583 = vpop.f32.mrb[0].mxu0
  %v4584 = vpop.f32.mrb[0].mxu0
  %v4585 = vadd.f32 %v4510, %v4584
  %v4586 = vpop.f32.mrb[0].mxu0
  %4587 = vmatprep.mubr.bf16.mxu0 0
  %4588 = vmatmul.mubr.bf16.gmra.mrb[0].mxu0 %v304
  %v4589 = vpop.f32.mrb[0].mxu0
  %v4590 = vadd.f32 %v4510, %v4589
  %v4591 = vpop.f32.mrb[0].mxu0
  %v4592 = vpop.f32.mrb[0].mxu0
  %v4593 = vadd.f32 %v4510, %v4592
  %v4594 = vpop.f32.mrb[0].mxu0
  %4595 = vmatprep.mubr.bf16.mxu0 0
  %4596 = vmatmul.mubr.bf16.gmra.mrb[0].mxu0 %v307
  %v4597 = vpop.f32.mrb[0].mxu0
  %v4598 = vadd.f32 %v4510, %v4597
  %v4599 = vpop.f32.mrb[0].mxu0
  %v4600 = vpop.f32.mrb[0].mxu0
  %v4601 = vadd.f32 %v4510, %v4600
  %v4602 = vpop.f32.mrb[0].mxu0
  %4603 = vmatprep.mubr.bf16.mxu0 0
  %4604 = vmatmul.mubr.bf16.gmra.mrb[0].mxu0 %v310
  %v4605 = vpop.f32.mrb[0].mxu0
  %v4606 = vadd.f32 %v4510, %v4605
  %v4607 = vpop.f32.mrb[0].mxu0
  %v4608 = vpop.f32.mrb[0].mxu0
  %v4609 = vadd.f32 %v4510, %v4608
  %v4610 = vpop.f32.mrb[0].mxu0
  %4611 = vdwg.mxu0
  %s4612 = scalar_lea.vmem %s1, 1536
  %v4613 = vld [vmem:[%s4612] sm:$0xf]
  %v4614 = vld [vmem:[%s4612 + $0x4] sm:$0xf]
  %v4615 = vld [vmem:[%s4612 + $0x8] sm:$0xf]
  %v4616 = vld [vmem:[%s4612 + $0xc] sm:$0xf]
  %v4617 = vld [vmem:[%s4612 + $0x10] sm:$0xf]
  %v4618 = vld [vmem:[%s4612 + $0x14] sm:$0xf]
  %v4619 = vld [vmem:[%s4612 + $0x18] sm:$0xf]
  %v4620 = vld [vmem:[%s4612 + $0x1c] sm:$0xf]
  %v4621 = vld [vmem:[%s4612 + $0x20] sm:$0xf]
  %v4622 = vld [vmem:[%s4612 + $0x24] sm:$0xf]
  %v4623 = vld [vmem:[%s4612 + $0x28] sm:$0xf]
  %v4624 = vld [vmem:[%s4612 + $0x2c] sm:$0xf]
  %v4625 = vld [vmem:[%s4612 + $0x30] sm:$0xf]
  %v4626 = vld [vmem:[%s4612 + $0x34] sm:$0xf]
  %v4627 = vld [vmem:[%s4612 + $0x38] sm:$0xf]
  %v4628 = vld [vmem:[%s4612 + $0x3c] sm:$0xf]
  %v4629 = vunpack.c.l.bf16 %v4613
  %v4630 = vunpack.c.l.bf16 %v4614
  %v4631 = vunpack.c.l.bf16 %v4615
  %v4632 = vunpack.c.l.bf16 %v4616
  %v4633 = vunpack.c.l.bf16 %v4617
  %v4634 = vunpack.c.l.bf16 %v4618
  %v4635 = vunpack.c.l.bf16 %v4619
  %v4636 = vunpack.c.l.bf16 %v4620
  %v4637 = vunpack.c.l.bf16 %v4621
  %v4638 = vunpack.c.l.bf16 %v4622
  %v4639 = vunpack.c.l.bf16 %v4623
  %v4640 = vunpack.c.l.bf16 %v4624
  %v4641 = vunpack.c.l.bf16 %v4625
  %v4642 = vunpack.c.l.bf16 %v4626
  %v4643 = vunpack.c.l.bf16 %v4627
  %v4644 = vunpack.c.l.bf16 %v4628
  %v4645 = vmul.f32 %v4550, %v4629
  %v4646 = vmul.f32 %v4553, %v4630
  %v4647 = vmul.f32 %v4558, %v4631
  %v4648 = vmul.f32 %v4561, %v4632
  %v4649 = vmul.f32 %v4566, %v4633
  %v4650 = vmul.f32 %v4569, %v4634
  %v4651 = vmul.f32 %v4574, %v4635
  %v4652 = vmul.f32 %v4577, %v4636
  %v4653 = vmul.f32 %v4582, %v4637
  %v4654 = vmul.f32 %v4585, %v4638
  %v4655 = vmul.f32 %v4590, %v4639
  %v4656 = vmul.f32 %v4593, %v4640
  %v4657 = vmul.f32 %v4598, %v4641
  %v4658 = vmul.f32 %v4601, %v4642
  %v4659 = vmul.f32 %v4606, %v4643
  %v4660 = vmul.f32 %v4609, %v4644
  %v4661 = vadd.f32 %v4486, %v4645
  %v4662 = vadd.f32 %v4487, %v4646
  %v4663 = vadd.f32 %v4488, %v4647
  %v4664 = vadd.f32 %v4489, %v4648
  %v4665 = vadd.f32 %v4490, %v4649
  %v4666 = vadd.f32 %v4491, %v4650
  %v4667 = vadd.f32 %v4492, %v4651
  %v4668 = vadd.f32 %v4493, %v4652
  %v4669 = vadd.f32 %v4494, %v4653
  %v4670 = vadd.f32 %v4495, %v4654
  %v4671 = vadd.f32 %v4496, %v4655
  %v4672 = vadd.f32 %v4497, %v4656
  %v4673 = vadd.f32 %v4498, %v4657
  %v4674 = vadd.f32 %v4499, %v4658
  %v4675 = vadd.f32 %v4500, %v4659
  %v4676 = vadd.f32 %v4501, %v4660
  %v4677 = vpack.c.bf16 %v4662, %v4661
  %v4678 = vpack.c.bf16 %v4664, %v4663
  %v4679 = vpack.c.bf16 %v4666, %v4665
  %v4680 = vpack.c.bf16 %v4668, %v4667
  %v4681 = vpack.c.bf16 %v4670, %v4669
  %v4682 = vpack.c.bf16 %v4672, %v4671
  %v4683 = vpack.c.bf16 %v4674, %v4673
  %v4684 = vpack.c.bf16 %v4676, %v4675
  %v4685 = vld [vmem:[%s6] sm:$0x3]
  %v4686 = vld [vmem:[%s7] sm:$0x1]
  %v4688 = vlaneseq
  %v4689 = vshrl.u32 %v4688, 7
  %v4690 = vsub.s32 0, %v4689
  %v4691 = vrot.slane %v4686, %v4690
  %vm4693 = vcmask 23552
  %v4695 = vsel %vm4693, %v4677, 0
  %v4698 = vsel %vm4693, %v4678, 0
  %v4701 = vsel %vm4693, %v4679, 0
  %v4704 = vsel %vm4693, %v4680, 0
  %v4707 = vsel %vm4693, %v4681, 0
  %v4710 = vsel %vm4693, %v4682, 0
  %v4713 = vsel %vm4693, %v4683, 0
  %v4716 = vsel %vm4693, %v4684, 0
  %vm4718 = vcmask 1041408
  %v4719 = vsel %vm312, 4294967295, 65535
  %v4720 = vsel %vm4718, %v4719, 0
  %v4722 = vand.u32 %v4685, %v4720
  %4724 = vmatprep.subr.bf16.mxu0 0
  %4725 = vmatpush1.bf16.msra.mxu0 %v4722
  %4726 = vmatprep.subr.bf16.mxu0 0
  %4727 = vmatpush1.bf16.msra.mxu0 0
  %4728 = vmatprep.subr.bf16.mxu0 0
  %4729 = vmatpush1.bf16.msra.mxu0 0
  %4730 = vmatprep.subr.bf16.mxu0 0
  %4731 = vmatpush1.bf16.msra.mxu0 0
  %4732 = vmatprep.subr.bf16.mxu0 0
  %4733 = vmatpush1.bf16.msra.mxu0 0
  %4734 = vmatprep.subr.bf16.mxu0 0
  %4735 = vmatpush1.bf16.msra.mxu0 0
  %4736 = vmatprep.subr.bf16.mxu0 0
  %4737 = vmatpush1.bf16.msra.mxu0 0
  %4738 = vmatprep.subr.bf16.mxu0 0
  %4739 = vmatpush1.bf16.msra.mxu0 0
  %4740 = vmatprep.subr.bf16.mxu0 0
  %4741 = vmatpush1.bf16.msra.mxu0 0
  %4742 = vmatprep.subr.bf16.mxu0 0
  %4743 = vmatpush1.bf16.msra.mxu0 0
  %4744 = vmatprep.subr.bf16.mxu0 0
  %4745 = vmatpush1.bf16.msra.mxu0 0
  %4746 = vmatprep.subr.bf16.mxu0 0
  %4747 = vmatpush1.bf16.msra.mxu0 0
  %4748 = vmatprep.subr.bf16.mxu0 0
  %4749 = vmatpush1.bf16.msra.mxu0 0
  %4750 = vmatprep.subr.bf16.mxu0 0
  %4751 = vmatpush1.bf16.msra.mxu0 0
  %4752 = vmatprep.subr.bf16.mxu0 0
  %4753 = vmatpush1.bf16.msra.mxu0 0
  %4754 = vmatprep.subr.bf16.mxu0 0
  %4755 = vmatpush1.bf16.msra.mxu0 0
  %4756 = vmatprep.mubr.bf16.mxu0 0
  %4757 = vmatmul.mubr.bf16.gmra.mrb[0].mxu0 %v4695
  %v4758 = vpop.f32.mrb[0].mxu0
  %v4759 = vadd.f32 %v4691, %v4758
  %v4760 = vpop.f32.mrb[0].mxu0
  %v4761 = vpop.f32.mrb[0].mxu0
  %v4762 = vadd.f32 %v4691, %v4761
  %v4763 = vpop.f32.mrb[0].mxu0
  %4764 = vmatprep.mubr.bf16.mxu0 0
  %4765 = vmatmul.mubr.bf16.gmra.mrb[0].mxu0 %v4698
  %v4766 = vpop.f32.mrb[0].mxu0
  %v4767 = vadd.f32 %v4691, %v4766
  %v4768 = vpop.f32.mrb[0].mxu0
  %v4769 = vpop.f32.mrb[0].mxu0
  %v4770 = vadd.f32 %v4691, %v4769
  %v4771 = vpop.f32.mrb[0].mxu0
  %4772 = vmatprep.mubr.bf16.mxu0 0
  %4773 = vmatmul.mubr.bf16.gmra.mrb[0].mxu0 %v4701
  %v4774 = vpop.f32.mrb[0].mxu0
  %v4775 = vadd.f32 %v4691, %v4774
  %v4776 = vpop.f32.mrb[0].mxu0
  %v4777 = vpop.f32.mrb[0].mxu0
  %v4778 = vadd.f32 %v4691, %v4777
  %v4779 = vpop.f32.mrb[0].mxu0
  %4780 = vmatprep.mubr.bf16.mxu0 0
  %4781 = vmatmul.mubr.bf16.gmra.mrb[0].mxu0 %v4704
  %v4782 = vpop.f32.mrb[0].mxu0
  %v4783 = vadd.f32 %v4691, %v4782
  %v4784 = vpop.f32.mrb[0].mxu0
  %v4785 = vpop.f32.mrb[0].mxu0
  %v4786 = vadd.f32 %v4691, %v4785
  %v4787 = vpop.f32.mrb[0].mxu0
  %4788 = vmatprep.mubr.bf16.mxu0 0
  %4789 = vmatmul.mubr.bf16.gmra.mrb[0].mxu0 %v4707
  %v4790 = vpop.f32.mrb[0].mxu0
  %v4791 = vadd.f32 %v4691, %v4790
  %v4792 = vpop.f32.mrb[0].mxu0
  %v4793 = vpop.f32.mrb[0].mxu0
  %v4794 = vadd.f32 %v4691, %v4793
  %v4795 = vpop.f32.mrb[0].mxu0
  %4796 = vmatprep.mubr.bf16.mxu0 0
  %4797 = vmatmul.mubr.bf16.gmra.mrb[0].mxu0 %v4710
  %v4798 = vpop.f32.mrb[0].mxu0
  %v4799 = vadd.f32 %v4691, %v4798
  %v4800 = vpop.f32.mrb[0].mxu0
  %v4801 = vpop.f32.mrb[0].mxu0
  %v4802 = vadd.f32 %v4691, %v4801
  %v4803 = vpop.f32.mrb[0].mxu0
  %4804 = vmatprep.mubr.bf16.mxu0 0
  %4805 = vmatmul.mubr.bf16.gmra.mrb[0].mxu0 %v4713
  %v4806 = vpop.f32.mrb[0].mxu0
  %v4807 = vadd.f32 %v4691, %v4806
  %v4808 = vpop.f32.mrb[0].mxu0
  %v4809 = vpop.f32.mrb[0].mxu0
  %v4810 = vadd.f32 %v4691, %v4809
  %v4811 = vpop.f32.mrb[0].mxu0
  %4812 = vmatprep.mubr.bf16.mxu0 0
  %4813 = vmatmul.mubr.bf16.gmra.mrb[0].mxu0 %v4716
  %v4814 = vpop.f32.mrb[0].mxu0
  %v4815 = vadd.f32 %v4691, %v4814
  %v4816 = vpop.f32.mrb[0].mxu0
  %v4817 = vpop.f32.mrb[0].mxu0
  %v4818 = vadd.f32 %v4691, %v4817
  %v4819 = vpop.f32.mrb[0].mxu0
  %4820 = vdwg.mxu0
  %v4821 = vmax.f32 %v4759, 0.0
  %v4822 = vmax.f32 %v4762, 0.0
  %v4823 = vmax.f32 %v4767, 0.0
  %v4824 = vmax.f32 %v4770, 0.0
  %v4825 = vmax.f32 %v4775, 0.0
  %v4826 = vmax.f32 %v4778, 0.0
  %v4827 = vmax.f32 %v4783, 0.0
  %v4828 = vmax.f32 %v4786, 0.0
  %v4829 = vmax.f32 %v4791, 0.0
  %v4830 = vmax.f32 %v4794, 0.0
  %v4831 = vmax.f32 %v4799, 0.0
  %v4832 = vmax.f32 %v4802, 0.0
  %v4833 = vmax.f32 %v4807, 0.0
  %v4834 = vmax.f32 %v4810, 0.0
  %v4835 = vmax.f32 %v4815, 0.0
  %v4836 = vmax.f32 %v4818, 0.0
  %vm4837 = vcmask 130048
  %4838 = vst.msk [vmem:[%s9] sm:$0xff] %vm4837, %v4821
  %4839 = vst.msk [vmem:[%s9 + $0x8] sm:$0xff] %vm4837, %v4822
  %4840 = vst.msk [vmem:[%s9 + $0x10] sm:$0xff] %vm4837, %v4823
  %4841 = vst.msk [vmem:[%s9 + $0x18] sm:$0xff] %vm4837, %v4824
  %4842 = vst.msk [vmem:[%s9 + $0x20] sm:$0xff] %vm4837, %v4825
  %4843 = vst.msk [vmem:[%s9 + $0x28] sm:$0xff] %vm4837, %v4826
  %4844 = vst.msk [vmem:[%s9 + $0x30] sm:$0xff] %vm4837, %v4827
  %4845 = vst.msk [vmem:[%s9 + $0x38] sm:$0xff] %vm4837, %v4828
  %4846 = vst.msk [vmem:[%s9 + $0x40] sm:$0xff] %vm4837, %v4829
  %4847 = vst.msk [vmem:[%s9 + $0x48] sm:$0xff] %vm4837, %v4830
  %4848 = vst.msk [vmem:[%s9 + $0x50] sm:$0xff] %vm4837, %v4831
  %4849 = vst.msk [vmem:[%s9 + $0x58] sm:$0xff] %vm4837, %v4832
  %4850 = vst.msk [vmem:[%s9 + $0x60] sm:$0xff] %vm4837, %v4833
  %4851 = vst.msk [vmem:[%s9 + $0x68] sm:$0xff] %vm4837, %v4834
  %4852 = vst.msk [vmem:[%s9 + $0x70] sm:$0xff] %vm4837, %v4835
  %4853 = vst.msk [vmem:[%s9 + $0x78] sm:$0xff] %vm4837, %v4836
  // Predicated region
  $region34: #{coarse_encoder_fwd.9} parent=0 // pred_check
    _
  $region35: #{coarse_encoder_fwd.9} parent=0 // pred_check_branch
    %4855 = sbr.rel (0) target = $region37
  $region36: #{coarse_encoder_fwd.9} parent=0 // pred_region
    _
  $region37: #{coarse_encoder_fwd.9} parent=0 // pred_fallthru
    _
  // Predicated region
  $region38: #{coarse_encoder_fwd.9} parent=0 // pred_check
    _
  $region39: #{coarse_encoder_fwd.9} parent=0 // pred_check_branch
    %4857 = sbr.rel (0) target = $region41
  $region40: #{coarse_encoder_fwd.9} parent=0 // pred_region
    _
  $region41: #{coarse_encoder_fwd.9} parent=0 // pred_fallthru
    _
  // Predicated region
  $region42: #{coarse_encoder_fwd.9} parent=0 // pred_check
    _
  $region43: #{coarse_encoder_fwd.9} parent=0 // pred_check_branch
    %4859 = sbr.rel (0) target = $region45
  $region44: #{coarse_encoder_fwd.9} parent=0 // pred_region
    _
  $region45: #{coarse_encoder_fwd.9} parent=0 // pred_fallthru
    _
  // Predicated region
  $region46: #{coarse_encoder_fwd.9} parent=0 // pred_check
    _
  $region47: #{coarse_encoder_fwd.9} parent=0 // pred_check_branch
    %4861 = sbr.rel (0) target = $region49
  $region48: #{coarse_encoder_fwd.9} parent=0 // pred_region
    _
  $region49: #{coarse_encoder_fwd.9} parent=0 // pred_fallthru
    _

// kernel: coarse_encoder_fwd.11
$region0: #{coarse_encoder_fwd.11}
  #allocation0 [shape = 'u32[]', space=smem, size = 0x4, offset = 0x4, fixed_abs, tag = 'smem constant byte address 0x4 - core index']
  #allocation1 [shape = 'u32[144,128]{1,0:T(1,128)}', space=vmem, size = 0x12000, scoped, tag = 'internal scratch']
  %s0 = inlined_call_operand.vmem [shape: bf16[8,36], index: 0, kind: input, shape index: {}]
  %s1 = inlined_call_operand.vmem [shape: bf16[9,8,32], index: 1, kind: input, shape index: {}]
  %s2 = inlined_call_operand.vmem [shape: bf16[36,8], index: 2, kind: input, shape index: {}]
  %s3 = inlined_call_operand.vmem [shape: f32[1,8], index: 3, kind: input, shape index: {}]
  %s4 = inlined_call_operand.vmem [shape: bf16[9,8,32], index: 4, kind: input, shape index: {}]
  %s5 = inlined_call_operand.vmem [shape: f32[9,1,32], index: 5, kind: input, shape index: {}]
  %s6 = inlined_call_operand.vmem [shape: bf16[32,64], index: 6, kind: input, shape index: {}]
  %s7 = inlined_call_operand.vmem [shape: f32[1,64], index: 7, kind: input, shape index: {}]
  %s8 = inlined_call_operand.vmem [shape: f32[8,8], index: 8, kind: output, shape index: {0}]
  %s9 = inlined_call_operand.vmem [shape: f32[8,64], index: 9, kind: output, shape index: {1}]
  %10 = xla_tuple %s8, %s9
  %s11 = sld [smem:[#allocation0]]
  $region50: #{coarse_encoder_fwd.11} parent=0
    _
  %s13 = ssub.s32 1, %s11
  %s14 = scalar_select 0, %s13, %s11
  // Predicated region
  $region2: #{coarse_encoder_fwd.11} parent=0 // pred_check
    _
  $region3: #{coarse_encoder_fwd.11} parent=0 // pred_check_branch
    %16 = sbr.rel (0) target = $region5
  $region4: #{coarse_encoder_fwd.11} parent=0 // pred_region
    _
  $region5: #{coarse_encoder_fwd.11} parent=0 // pred_fallthru
    _
  // Predicated region
  $region6: #{coarse_encoder_fwd.11} parent=0 // pred_check
    _
  $region7: #{coarse_encoder_fwd.11} parent=0 // pred_check_branch
    %18 = sbr.rel (0) target = $region9
  $region8: #{coarse_encoder_fwd.11} parent=0 // pred_region
    _
  $region9: #{coarse_encoder_fwd.11} parent=0 // pred_fallthru
    _
  // Predicated region
  $region10: #{coarse_encoder_fwd.11} parent=0 // pred_check
    _
  $region11: #{coarse_encoder_fwd.11} parent=0 // pred_check_branch
    %20 = sbr.rel (0) target = $region13
  $region12: #{coarse_encoder_fwd.11} parent=0 // pred_region
    _
  $region13: #{coarse_encoder_fwd.11} parent=0 // pred_fallthru
    _
  // Predicated region
  $region14: #{coarse_encoder_fwd.11} parent=0 // pred_check
    _
  $region15: #{coarse_encoder_fwd.11} parent=0 // pred_check_branch
    %22 = sbr.rel (0) target = $region17
  $region16: #{coarse_encoder_fwd.11} parent=0 // pred_region
    _
  $region17: #{coarse_encoder_fwd.11} parent=0 // pred_fallthru
    _
  // Predicated region
  $region18: #{coarse_encoder_fwd.11} parent=0 // pred_check
    _
  $region19: #{coarse_encoder_fwd.11} parent=0 // pred_check_branch
    %24 = sbr.rel (0) target = $region21
  $region20: #{coarse_encoder_fwd.11} parent=0 // pred_region
    _
  $region21: #{coarse_encoder_fwd.11} parent=0 // pred_fallthru
    _
  // Predicated region
  $region22: #{coarse_encoder_fwd.11} parent=0 // pred_check
    _
  $region23: #{coarse_encoder_fwd.11} parent=0 // pred_check_branch
    %26 = sbr.rel (0) target = $region25
  $region24: #{coarse_encoder_fwd.11} parent=0 // pred_region
    _
  $region25: #{coarse_encoder_fwd.11} parent=0 // pred_fallthru
    _
  // Predicated region
  $region26: #{coarse_encoder_fwd.11} parent=0 // pred_check
    _
  $region27: #{coarse_encoder_fwd.11} parent=0 // pred_check_branch
    %28 = sbr.rel (0) target = $region29
  $region28: #{coarse_encoder_fwd.11} parent=0 // pred_region
    _
  $region29: #{coarse_encoder_fwd.11} parent=0 // pred_fallthru
    _
  // Predicated region
  $region30: #{coarse_encoder_fwd.11} parent=0 // pred_check
    _
  $region31: #{coarse_encoder_fwd.11} parent=0 // pred_check_branch
    %30 = sbr.rel (0) target = $region33
  $region32: #{coarse_encoder_fwd.11} parent=0 // pred_region
    _
  $region33: #{coarse_encoder_fwd.11} parent=0 // pred_fallthru
    _
  %v32 = vld [vmem:[%s0] sm:$0xf]
  %v33 = vld [vmem:[%s2] sm:$0xf]
  %v34 = vld [vmem:[%s2 + $0x4] sm:$0xf]
  %v35 = vld [vmem:[%s2 + $0x8] sm:$0xf]
  %v36 = vld [vmem:[%s2 + $0xc] sm:$0xf]
  %v37 = vld [vmem:[%s2 + $0x10] sm:$0x3]
  %v38 = vld [vmem:[%s3] sm:$0x1]
  %v40 = vlaneseq
  %v41 = vshrl.u32 %v40, 7
  %v42 = vsub.s32 0, %v41
  %v43 = vrot.slane %v38, %v42
  %v50 = vunpack.c.l.b16 %v33
  %v51 = vunpack.c.l.b16 %v34
  %v52 = vunpack.c.l.b16 %v35
  %v53 = vunpack.c.l.b16 %v36
  %v54 = vunpack.c.l.b16 %v37
  %v55 = vpack.c.b16 %v51, %v50
  %v56 = vpack.c.b16 %v53, %v52
  %v57 = vpack.c.b16 %v54, %v54
  %vm60 = vcmask 293888
  %v62 = vsel %vm60, %v32, 0
  %vm64 = vcmask 1041408
  %v66 = vsel %vm64, %v57, 0
  %68 = vmatprep.subr.bf16.mxu0 0
  %69 = vmatpush1.bf16.msra.mxu0 %v55
  %70 = vmatprep.subr.bf16.mxu0 0
  %71 = vmatpush1.bf16.msra.mxu0 %v56
  %72 = vmatprep.subr.bf16.mxu0 0
  %73 = vmatpush1.bf16.msra.mxu0 %v66
  %74 = vmatprep.subr.bf16.mxu0 0
  %75 = vmatpush1.bf16.msra.mxu0 0
  %76 = vmatprep.subr.bf16.mxu0 0
  %77 = vmatpush1.bf16.msra.mxu0 0
  %78 = vmatprep.subr.bf16.mxu0 0
  %79 = vmatpush1.bf16.msra.mxu0 0
  %80 = vmatprep.subr.bf16.mxu0 0
  %81 = vmatpush1.bf16.msra.mxu0 0
  %82 = vmatprep.subr.bf16.mxu0 0
  %83 = vmatpush1.bf16.msra.mxu0 0
  %84 = vmatprep.subr.bf16.mxu0 0
  %85 = vmatpush1.bf16.msra.mxu0 0
  %86 = vmatprep.subr.bf16.mxu0 0
  %87 = vmatpush1.bf16.msra.mxu0 0
  %88 = vmatprep.subr.bf16.mxu0 0
  %89 = vmatpush1.bf16.msra.mxu0 0
  %90 = vmatprep.subr.bf16.mxu0 0
  %91 = vmatpush1.bf16.msra.mxu0 0
  %92 = vmatprep.subr.bf16.mxu0 0
  %93 = vmatpush1.bf16.msra.mxu0 0
  %94 = vmatprep.subr.bf16.mxu0 0
  %95 = vmatpush1.bf16.msra.mxu0 0
  %96 = vmatprep.subr.bf16.mxu0 0
  %97 = vmatpush1.bf16.msra.mxu0 0
  %98 = vmatprep.subr.bf16.mxu0 0
  %99 = vmatpush1.bf16.msra.mxu0 0
  %100 = vmatprep.mubr.bf16.mxu0 0
  %101 = vmatmul.mubr.bf16.gmra.mrb[0].mxu0 %v62
  %v102 = vpop.f32.mrb[0].mxu0
  %v103 = vadd.f32 %v43, %v102
  %v104 = vpop.f32.mrb[0].mxu0
  %v105 = vpop.f32.mrb[0].mxu0
  %v106 = vpop.f32.mrb[0].mxu0
  %107 = vdwg.mxu0
  %v108 = vmax.f32 %v103, 0.0
  %vm109 = vcmask 64512
  %110 = vst.msk [vmem:[%s8] sm:$0xff] %vm109, %v108
  %v111 = vpack.c.bf16 %v108, %v108
  %v112 = vld [vmem:[%s4] sm:$0xf]
  %v113 = vld [vmem:[%s5] sm:$0x1]
  %v115 = vlaneseq
  %v116 = vshrl.u32 %v115, 7
  %v117 = vsub.s32 0, %v116
  %v118 = vrot.slane %v113, %v117
  %v121 = vsel %vm109, %v111, 0
  %vm123 = vcmask 1043456
  %v125 = vsel %vm123, %v112, 0
  %127 = vmatprep.subr.bf16.mxu0 0
  %128 = vmatpush1.bf16.msra.mxu0 %v125
  %129 = vmatprep.subr.bf16.mxu0 0
  %130 = vmatpush1.bf16.msra.mxu0 0
  %131 = vmatprep.subr.bf16.mxu0 0
  %132 = vmatpush1.bf16.msra.mxu0 0
  %133 = vmatprep.subr.bf16.mxu0 0
  %134 = vmatpush1.bf16.msra.mxu0 0
  %135 = vmatprep.subr.bf16.mxu0 0
  %136 = vmatpush1.bf16.msra.mxu0 0
  %137 = vmatprep.subr.bf16.mxu0 0
  %138 = vmatpush1.bf16.msra.mxu0 0
  %139 = vmatprep.subr.bf16.mxu0 0
  %140 = vmatpush1.bf16.msra.mxu0 0
  %141 = vmatprep.subr.bf16.mxu0 0
  %142 = vmatpush1.bf16.msra.mxu0 0
  %143 = vmatprep.subr.bf16.mxu0 0
  %144 = vmatpush1.bf16.msra.mxu0 0
  %145 = vmatprep.subr.bf16.mxu0 0
  %146 = vmatpush1.bf16.msra.mxu0 0
  %147 = vmatprep.subr.bf16.mxu0 0
  %148 = vmatpush1.bf16.msra.mxu0 0
  %149 = vmatprep.subr.bf16.mxu0 0
  %150 = vmatpush1.bf16.msra.mxu0 0
  %151 = vmatprep.subr.bf16.mxu0 0
  %152 = vmatpush1.bf16.msra.mxu0 0
  %153 = vmatprep.subr.bf16.mxu0 0
  %154 = vmatpush1.bf16.msra.mxu0 0
  %155 = vmatprep.subr.bf16.mxu0 0
  %156 = vmatpush1.bf16.msra.mxu0 0
  %157 = vmatprep.subr.bf16.mxu0 0
  %158 = vmatpush1.bf16.msra.mxu0 0
  %159 = vmatprep.mubr.bf16.mxu0 0
  %160 = vmatmul.mubr.bf16.gmra.mrb[0].mxu0 %v121
  %v161 = vpop.f32.mrb[0].mxu0
  %v162 = vadd.f32 %v118, %v161
  %v163 = vpop.f32.mrb[0].mxu0
  %v164 = vpop.f32.mrb[0].mxu0
  %v165 = vpop.f32.mrb[0].mxu0
  %166 = vdwg.mxu0
  %v167 = vld [vmem:[%s1] sm:$0xf]
  %v168 = vunpack.c.l.bf16 %v167
  %v169 = vmul.f32 %v162, %v168
  %v170 = vadd.f32 %v169, 0.0
  %s171 = scalar_lea.vmem %s4, 4
  %v172 = vld [vmem:[%s171] sm:$0xf]
  %s173 = scalar_lea.vmem %s5, 1
  %v174 = vld [vmem:[%s173] sm:$0x1]
  %v176 = vlaneseq
  %v177 = vshrl.u32 %v176, 7
  %v178 = vsub.s32 0, %v177
  %v179 = vrot.slane %v174, %v178
  %v182 = vsel %vm123, %v172, 0
  %184 = vmatprep.subr.bf16.mxu0 0
  %185 = vmatpush1.bf16.msra.mxu0 %v182
  %186 = vmatprep.subr.bf16.mxu0 0
  %187 = vmatpush1.bf16.msra.mxu0 0
  %188 = vmatprep.subr.bf16.mxu0 0
  %189 = vmatpush1.bf16.msra.mxu0 0
  %190 = vmatprep.subr.bf16.mxu0 0
  %191 = vmatpush1.bf16.msra.mxu0 0
  %192 = vmatprep.subr.bf16.mxu0 0
  %193 = vmatpush1.bf16.msra.mxu0 0
  %194 = vmatprep.subr.bf16.mxu0 0
  %195 = vmatpush1.bf16.msra.mxu0 0
  %196 = vmatprep.subr.bf16.mxu0 0
  %197 = vmatpush1.bf16.msra.mxu0 0
  %198 = vmatprep.subr.bf16.mxu0 0
  %199 = vmatpush1.bf16.msra.mxu0 0
  %200 = vmatprep.subr.bf16.mxu0 0
  %201 = vmatpush1.bf16.msra.mxu0 0
  %202 = vmatprep.subr.bf16.mxu0 0
  %203 = vmatpush1.bf16.msra.mxu0 0
  %204 = vmatprep.subr.bf16.mxu0 0
  %205 = vmatpush1.bf16.msra.mxu0 0
  %206 = vmatprep.subr.bf16.mxu0 0
  %207 = vmatpush1.bf16.msra.mxu0 0
  %208 = vmatprep.subr.bf16.mxu0 0
  %209 = vmatpush1.bf16.msra.mxu0 0
  %210 = vmatprep.subr.bf16.mxu0 0
  %211 = vmatpush1.bf16.msra.mxu0 0
  %212 = vmatprep.subr.bf16.mxu0 0
  %213 = vmatpush1.bf16.msra.mxu0 0
  %214 = vmatprep.subr.bf16.mxu0 0
  %215 = vmatpush1.bf16.msra.mxu0 0
  %216 = vmatprep.mubr.bf16.mxu0 0
  %217 = vmatmul.mubr.bf16.gmra.mrb[0].mxu0 %v121
  %v218 = vpop.f32.mrb[0].mxu0
  %v219 = vadd.f32 %v179, %v218
  %v220 = vpop.f32.mrb[0].mxu0
  %v221 = vpop.f32.mrb[0].mxu0
  %v222 = vpop.f32.mrb[0].mxu0
  %223 = vdwg.mxu0
  %s224 = scalar_lea.vmem %s1, 4
  %v225 = vld [vmem:[%s224] sm:$0xf]
  %v226 = vunpack.c.l.bf16 %v225
  %v227 = vmul.f32 %v219, %v226
  %v228 = vadd.f32 %v170, %v227
  %s229 = scalar_lea.vmem %s4, 8
  %v230 = vld [vmem:[%s229] sm:$0xf]
  %s231 = scalar_lea.vmem %s5, 2
  %v232 = vld [vmem:[%s231] sm:$0x1]
  %v234 = vlaneseq
  %v235 = vshrl.u32 %v234, 7
  %v236 = vsub.s32 0, %v235
  %v237 = vrot.slane %v232, %v236
  %v240 = vsel %vm123, %v230, 0
  %242 = vmatprep.subr.bf16.mxu0 0
  %243 = vmatpush1.bf16.msra.mxu0 %v240
  %244 = vmatprep.subr.bf16.mxu0 0
  %245 = vmatpush1.bf16.msra.mxu0 0
  %246 = vmatprep.subr.bf16.mxu0 0
  %247 = vmatpush1.bf16.msra.mxu0 0
  %248 = vmatprep.subr.bf16.mxu0 0
  %249 = vmatpush1.bf16.msra.mxu0 0
  %250 = vmatprep.subr.bf16.mxu0 0
  %251 = vmatpush1.bf16.msra.mxu0 0
  %252 = vmatprep.subr.bf16.mxu0 0
  %253 = vmatpush1.bf16.msra.mxu0 0
  %254 = vmatprep.subr.bf16.mxu0 0
  %255 = vmatpush1.bf16.msra.mxu0 0
  %256 = vmatprep.subr.bf16.mxu0 0
  %257 = vmatpush1.bf16.msra.mxu0 0
  %258 = vmatprep.subr.bf16.mxu0 0
  %259 = vmatpush1.bf16.msra.mxu0 0
  %260 = vmatprep.subr.bf16.mxu0 0
  %261 = vmatpush1.bf16.msra.mxu0 0
  %262 = vmatprep.subr.bf16.mxu0 0
  %263 = vmatpush1.bf16.msra.mxu0 0
  %264 = vmatprep.subr.bf16.mxu0 0
  %265 = vmatpush1.bf16.msra.mxu0 0
  %266 = vmatprep.subr.bf16.mxu0 0
  %267 = vmatpush1.bf16.msra.mxu0 0
  %268 = vmatprep.subr.bf16.mxu0 0
  %269 = vmatpush1.bf16.msra.mxu0 0
  %270 = vmatprep.subr.bf16.mxu0 0
  %271 = vmatpush1.bf16.msra.mxu0 0
  %272 = vmatprep.subr.bf16.mxu0 0
  %273 = vmatpush1.bf16.msra.mxu0 0
  %274 = vmatprep.mubr.bf16.mxu0 0
  %275 = vmatmul.mubr.bf16.gmra.mrb[0].mxu0 %v121
  %v276 = vpop.f32.mrb[0].mxu0
  %v277 = vadd.f32 %v237, %v276
  %v278 = vpop.f32.mrb[0].mxu0
  %v279 = vpop.f32.mrb[0].mxu0
  %v280 = vpop.f32.mrb[0].mxu0
  %281 = vdwg.mxu0
  %s282 = scalar_lea.vmem %s1, 8
  %v283 = vld [vmem:[%s282] sm:$0xf]
  %v284 = vunpack.c.l.bf16 %v283
  %v285 = vmul.f32 %v277, %v284
  %v286 = vadd.f32 %v228, %v285
  %s287 = scalar_lea.vmem %s4, 12
  %v288 = vld [vmem:[%s287] sm:$0xf]
  %s289 = scalar_lea.vmem %s5, 3
  %v290 = vld [vmem:[%s289] sm:$0x1]
  %v292 = vlaneseq
  %v293 = vshrl.u32 %v292, 7
  %v294 = vsub.s32 0, %v293
  %v295 = vrot.slane %v290, %v294
  %v298 = vsel %vm123, %v288, 0
  %300 = vmatprep.subr.bf16.mxu0 0
  %301 = vmatpush1.bf16.msra.mxu0 %v298
  %302 = vmatprep.subr.bf16.mxu0 0
  %303 = vmatpush1.bf16.msra.mxu0 0
  %304 = vmatprep.subr.bf16.mxu0 0
  %305 = vmatpush1.bf16.msra.mxu0 0
  %306 = vmatprep.subr.bf16.mxu0 0
  %307 = vmatpush1.bf16.msra.mxu0 0
  %308 = vmatprep.subr.bf16.mxu0 0
  %309 = vmatpush1.bf16.msra.mxu0 0
  %310 = vmatprep.subr.bf16.mxu0 0
  %311 = vmatpush1.bf16.msra.mxu0 0
  %312 = vmatprep.subr.bf16.mxu0 0
  %313 = vmatpush1.bf16.msra.mxu0 0
  %314 = vmatprep.subr.bf16.mxu0 0
  %315 = vmatpush1.bf16.msra.mxu0 0
  %316 = vmatprep.subr.bf16.mxu0 0
  %317 = vmatpush1.bf16.msra.mxu0 0
  %318 = vmatprep.subr.bf16.mxu0 0
  %319 = vmatpush1.bf16.msra.mxu0 0
  %320 = vmatprep.subr.bf16.mxu0 0
  %321 = vmatpush1.bf16.msra.mxu0 0
  %322 = vmatprep.subr.bf16.mxu0 0
  %323 = vmatpush1.bf16.msra.mxu0 0
  %324 = vmatprep.subr.bf16.mxu0 0
  %325 = vmatpush1.bf16.msra.mxu0 0
  %326 = vmatprep.subr.bf16.mxu0 0
  %327 = vmatpush1.bf16.msra.mxu0 0
  %328 = vmatprep.subr.bf16.mxu0 0
  %329 = vmatpush1.bf16.msra.mxu0 0
  %330 = vmatprep.subr.bf16.mxu0 0
  %331 = vmatpush1.bf16.msra.mxu0 0
  %332 = vmatprep.mubr.bf16.mxu0 0
  %333 = vmatmul.mubr.bf16.gmra.mrb[0].mxu0 %v121
  %v334 = vpop.f32.mrb[0].mxu0
  %v335 = vadd.f32 %v295, %v334
  %v336 = vpop.f32.mrb[0].mxu0
  %v337 = vpop.f32.mrb[0].mxu0
  %v338 = vpop.f32.mrb[0].mxu0
  %339 = vdwg.mxu0
  %s340 = scalar_lea.vmem %s1, 12
  %v341 = vld [vmem:[%s340] sm:$0xf]
  %v342 = vunpack.c.l.bf16 %v341
  %v343 = vmul.f32 %v335, %v342
  %v344 = vadd.f32 %v286, %v343
  %s345 = scalar_lea.vmem %s4, 16
  %v346 = vld [vmem:[%s345] sm:$0xf]
  %s347 = scalar_lea.vmem %s5, 4
  %v348 = vld [vmem:[%s347] sm:$0x1]
  %v350 = vlaneseq
  %v351 = vshrl.u32 %v350, 7
  %v352 = vsub.s32 0, %v351
  %v353 = vrot.slane %v348, %v352
  %v356 = vsel %vm123, %v346, 0
  %358 = vmatprep.subr.bf16.mxu0 0
  %359 = vmatpush1.bf16.msra.mxu0 %v356
  %360 = vmatprep.subr.bf16.mxu0 0
  %361 = vmatpush1.bf16.msra.mxu0 0
  %362 = vmatprep.subr.bf16.mxu0 0
  %363 = vmatpush1.bf16.msra.mxu0 0
  %364 = vmatprep.subr.bf16.mxu0 0
  %365 = vmatpush1.bf16.msra.mxu0 0
  %366 = vmatprep.subr.bf16.mxu0 0
  %367 = vmatpush1.bf16.msra.mxu0 0
  %368 = vmatprep.subr.bf16.mxu0 0
  %369 = vmatpush1.bf16.msra.mxu0 0
  %370 = vmatprep.subr.bf16.mxu0 0
  %371 = vmatpush1.bf16.msra.mxu0 0
  %372 = vmatprep.subr.bf16.mxu0 0
  %373 = vmatpush1.bf16.msra.mxu0 0
  %374 = vmatprep.subr.bf16.mxu0 0
  %375 = vmatpush1.bf16.msra.mxu0 0
  %376 = vmatprep.subr.bf16.mxu0 0
  %377 = vmatpush1.bf16.msra.mxu0 0
  %378 = vmatprep.subr.bf16.mxu0 0
  %379 = vmatpush1.bf16.msra.mxu0 0
  %380 = vmatprep.subr.bf16.mxu0 0
  %381 = vmatpush1.bf16.msra.mxu0 0
  %382 = vmatprep.subr.bf16.mxu0 0
  %383 = vmatpush1.bf16.msra.mxu0 0
  %384 = vmatprep.subr.bf16.mxu0 0
  %385 = vmatpush1.bf16.msra.mxu0 0
  %386 = vmatprep.subr.bf16.mxu0 0
  %387 = vmatpush1.bf16.msra.mxu0 0
  %388 = vmatprep.subr.bf16.mxu0 0
  %389 = vmatpush1.bf16.msra.mxu0 0
  %390 = vmatprep.mubr.bf16.mxu0 0
  %391 = vmatmul.mubr.bf16.gmra.mrb[0].mxu0 %v121
  %v392 = vpop.f32.mrb[0].mxu0
  %v393 = vadd.f32 %v353, %v392
  %v394 = vpop.f32.mrb[0].mxu0
  %v395 = vpop.f32.mrb[0].mxu0
  %v396 = vpop.f32.mrb[0].mxu0
  %397 = vdwg.mxu0
  %s398 = scalar_lea.vmem %s1, 16
  %v399 = vld [vmem:[%s398] sm:$0xf]
  %v400 = vunpack.c.l.bf16 %v399
  %v401 = vmul.f32 %v393, %v400
  %v402 = vadd.f32 %v344, %v401
  %s403 = scalar_lea.vmem %s4, 20
  %v404 = vld [vmem:[%s403] sm:$0xf]
  %s405 = scalar_lea.vmem %s5, 5
  %v406 = vld [vmem:[%s405] sm:$0x1]
  %v408 = vlaneseq
  %v409 = vshrl.u32 %v408, 7
  %v410 = vsub.s32 0, %v409
  %v411 = vrot.slane %v406, %v410
  %v414 = vsel %vm123, %v404, 0
  %416 = vmatprep.subr.bf16.mxu0 0
  %417 = vmatpush1.bf16.msra.mxu0 %v414
  %418 = vmatprep.subr.bf16.mxu0 0
  %419 = vmatpush1.bf16.msra.mxu0 0
  %420 = vmatprep.subr.bf16.mxu0 0
  %421 = vmatpush1.bf16.msra.mxu0 0
  %422 = vmatprep.subr.bf16.mxu0 0
  %423 = vmatpush1.bf16.msra.mxu0 0
  %424 = vmatprep.subr.bf16.mxu0 0
  %425 = vmatpush1.bf16.msra.mxu0 0
  %426 = vmatprep.subr.bf16.mxu0 0
  %427 = vmatpush1.bf16.msra.mxu0 0
  %428 = vmatprep.subr.bf16.mxu0 0
  %429 = vmatpush1.bf16.msra.mxu0 0
  %430 = vmatprep.subr.bf16.mxu0 0
  %431 = vmatpush1.bf16.msra.mxu0 0
  %432 = vmatprep.subr.bf16.mxu0 0
  %433 = vmatpush1.bf16.msra.mxu0 0
  %434 = vmatprep.subr.bf16.mxu0 0
  %435 = vmatpush1.bf16.msra.mxu0 0
  %436 = vmatprep.subr.bf16.mxu0 0
  %437 = vmatpush1.bf16.msra.mxu0 0
  %438 = vmatprep.subr.bf16.mxu0 0
  %439 = vmatpush1.bf16.msra.mxu0 0
  %440 = vmatprep.subr.bf16.mxu0 0
  %441 = vmatpush1.bf16.msra.mxu0 0
  %442 = vmatprep.subr.bf16.mxu0 0
  %443 = vmatpush1.bf16.msra.mxu0 0
  %444 = vmatprep.subr.bf16.mxu0 0
  %445 = vmatpush1.bf16.msra.mxu0 0
  %446 = vmatprep.subr.bf16.mxu0 0
  %447 = vmatpush1.bf16.msra.mxu0 0
  %448 = vmatprep.mubr.bf16.mxu0 0
  %449 = vmatmul.mubr.bf16.gmra.mrb[0].mxu0 %v121
  %v450 = vpop.f32.mrb[0].mxu0
  %v451 = vadd.f32 %v411, %v450
  %v452 = vpop.f32.mrb[0].mxu0
  %v453 = vpop.f32.mrb[0].mxu0
  %v454 = vpop.f32.mrb[0].mxu0
  %455 = vdwg.mxu0
  %s456 = scalar_lea.vmem %s1, 20
  %v457 = vld [vmem:[%s456] sm:$0xf]
  %v458 = vunpack.c.l.bf16 %v457
  %v459 = vmul.f32 %v451, %v458
  %v460 = vadd.f32 %v402, %v459
  %s461 = scalar_lea.vmem %s4, 24
  %v462 = vld [vmem:[%s461] sm:$0xf]
  %s463 = scalar_lea.vmem %s5, 6
  %v464 = vld [vmem:[%s463] sm:$0x1]
  %v466 = vlaneseq
  %v467 = vshrl.u32 %v466, 7
  %v468 = vsub.s32 0, %v467
  %v469 = vrot.slane %v464, %v468
  %v472 = vsel %vm123, %v462, 0
  %474 = vmatprep.subr.bf16.mxu0 0
  %475 = vmatpush1.bf16.msra.mxu0 %v472
  %476 = vmatprep.subr.bf16.mxu0 0
  %477 = vmatpush1.bf16.msra.mxu0 0
  %478 = vmatprep.subr.bf16.mxu0 0
  %479 = vmatpush1.bf16.msra.mxu0 0
  %480 = vmatprep.subr.bf16.mxu0 0
  %481 = vmatpush1.bf16.msra.mxu0 0
  %482 = vmatprep.subr.bf16.mxu0 0
  %483 = vmatpush1.bf16.msra.mxu0 0
  %484 = vmatprep.subr.bf16.mxu0 0
  %485 = vmatpush1.bf16.msra.mxu0 0
  %486 = vmatprep.subr.bf16.mxu0 0
  %487 = vmatpush1.bf16.msra.mxu0 0
  %488 = vmatprep.subr.bf16.mxu0 0
  %489 = vmatpush1.bf16.msra.mxu0 0
  %490 = vmatprep.subr.bf16.mxu0 0
  %491 = vmatpush1.bf16.msra.mxu0 0
  %492 = vmatprep.subr.bf16.mxu0 0
  %493 = vmatpush1.bf16.msra.mxu0 0
  %494 = vmatprep.subr.bf16.mxu0 0
  %495 = vmatpush1.bf16.msra.mxu0 0
  %496 = vmatprep.subr.bf16.mxu0 0
  %497 = vmatpush1.bf16.msra.mxu0 0
  %498 = vmatprep.subr.bf16.mxu0 0
  %499 = vmatpush1.bf16.msra.mxu0 0
  %500 = vmatprep.subr.bf16.mxu0 0
  %501 = vmatpush1.bf16.msra.mxu0 0
  %502 = vmatprep.subr.bf16.mxu0 0
  %503 = vmatpush1.bf16.msra.mxu0 0
  %504 = vmatprep.subr.bf16.mxu0 0
  %505 = vmatpush1.bf16.msra.mxu0 0
  %506 = vmatprep.mubr.bf16.mxu0 0
  %507 = vmatmul.mubr.bf16.gmra.mrb[0].mxu0 %v121
  %v508 = vpop.f32.mrb[0].mxu0
  %v509 = vadd.f32 %v469, %v508
  %v510 = vpop.f32.mrb[0].mxu0
  %v511 = vpop.f32.mrb[0].mxu0
  %v512 = vpop.f32.mrb[0].mxu0
  %513 = vdwg.mxu0
  %s514 = scalar_lea.vmem %s1, 24
  %v515 = vld [vmem:[%s514] sm:$0xf]
  %v516 = vunpack.c.l.bf16 %v515
  %v517 = vmul.f32 %v509, %v516
  %v518 = vadd.f32 %v460, %v517
  %s519 = scalar_lea.vmem %s4, 28
  %v520 = vld [vmem:[%s519] sm:$0xf]
  %s521 = scalar_lea.vmem %s5, 7
  %v522 = vld [vmem:[%s521] sm:$0x1]
  %v524 = vlaneseq
  %v525 = vshrl.u32 %v524, 7
  %v526 = vsub.s32 0, %v525
  %v527 = vrot.slane %v522, %v526
  %v530 = vsel %vm123, %v520, 0
  %532 = vmatprep.subr.bf16.mxu0 0
  %533 = vmatpush1.bf16.msra.mxu0 %v530
  %534 = vmatprep.subr.bf16.mxu0 0
  %535 = vmatpush1.bf16.msra.mxu0 0
  %536 = vmatprep.subr.bf16.mxu0 0
  %537 = vmatpush1.bf16.msra.mxu0 0
  %538 = vmatprep.subr.bf16.mxu0 0
  %539 = vmatpush1.bf16.msra.mxu0 0
  %540 = vmatprep.subr.bf16.mxu0 0
  %541 = vmatpush1.bf16.msra.mxu0 0
  %542 = vmatprep.subr.bf16.mxu0 0
  %543 = vmatpush1.bf16.msra.mxu0 0
  %544 = vmatprep.subr.bf16.mxu0 0
  %545 = vmatpush1.bf16.msra.mxu0 0
  %546 = vmatprep.subr.bf16.mxu0 0
  %547 = vmatpush1.bf16.msra.mxu0 0
  %548 = vmatprep.subr.bf16.mxu0 0
  %549 = vmatpush1.bf16.msra.mxu0 0
  %550 = vmatprep.subr.bf16.mxu0 0
  %551 = vmatpush1.bf16.msra.mxu0 0
  %552 = vmatprep.subr.bf16.mxu0 0
  %553 = vmatpush1.bf16.msra.mxu0 0
  %554 = vmatprep.subr.bf16.mxu0 0
  %555 = vmatpush1.bf16.msra.mxu0 0
  %556 = vmatprep.subr.bf16.mxu0 0
  %557 = vmatpush1.bf16.msra.mxu0 0
  %558 = vmatprep.subr.bf16.mxu0 0
  %559 = vmatpush1.bf16.msra.mxu0 0
  %560 = vmatprep.subr.bf16.mxu0 0
  %561 = vmatpush1.bf16.msra.mxu0 0
  %562 = vmatprep.subr.bf16.mxu0 0
  %563 = vmatpush1.bf16.msra.mxu0 0
  %564 = vmatprep.mubr.bf16.mxu0 0
  %565 = vmatmul.mubr.bf16.gmra.mrb[0].mxu0 %v121
  %v566 = vpop.f32.mrb[0].mxu0
  %v567 = vadd.f32 %v527, %v566
  %v568 = vpop.f32.mrb[0].mxu0
  %v569 = vpop.f32.mrb[0].mxu0
  %v570 = vpop.f32.mrb[0].mxu0
  %571 = vdwg.mxu0
  %s572 = scalar_lea.vmem %s1, 28
  %v573 = vld [vmem:[%s572] sm:$0xf]
  %v574 = vunpack.c.l.bf16 %v573
  %v575 = vmul.f32 %v567, %v574
  %v576 = vadd.f32 %v518, %v575
  %s577 = scalar_lea.vmem %s4, 32
  %v578 = vld [vmem:[%s577] sm:$0xf]
  %s579 = scalar_lea.vmem %s5, 8
  %v580 = vld [vmem:[%s579] sm:$0x1]
  %v582 = vlaneseq
  %v583 = vshrl.u32 %v582, 7
  %v584 = vsub.s32 0, %v583
  %v585 = vrot.slane %v580, %v584
  %v588 = vsel %vm123, %v578, 0
  %590 = vmatprep.subr.bf16.mxu0 0
  %591 = vmatpush1.bf16.msra.mxu0 %v588
  %592 = vmatprep.subr.bf16.mxu0 0
  %593 = vmatpush1.bf16.msra.mxu0 0
  %594 = vmatprep.subr.bf16.mxu0 0
  %595 = vmatpush1.bf16.msra.mxu0 0
  %596 = vmatprep.subr.bf16.mxu0 0
  %597 = vmatpush1.bf16.msra.mxu0 0
  %598 = vmatprep.subr.bf16.mxu0 0
  %599 = vmatpush1.bf16.msra.mxu0 0
  %600 = vmatprep.subr.bf16.mxu0 0
  %601 = vmatpush1.bf16.msra.mxu0 0
  %602 = vmatprep.subr.bf16.mxu0 0
  %603 = vmatpush1.bf16.msra.mxu0 0
  %604 = vmatprep.subr.bf16.mxu0 0
  %605 = vmatpush1.bf16.msra.mxu0 0
  %606 = vmatprep.subr.bf16.mxu0 0
  %607 = vmatpush1.bf16.msra.mxu0 0
  %608 = vmatprep.subr.bf16.mxu0 0
  %609 = vmatpush1.bf16.msra.mxu0 0
  %610 = vmatprep.subr.bf16.mxu0 0
  %611 = vmatpush1.bf16.msra.mxu0 0
  %612 = vmatprep.subr.bf16.mxu0 0
  %613 = vmatpush1.bf16.msra.mxu0 0
  %614 = vmatprep.subr.bf16.mxu0 0
  %615 = vmatpush1.bf16.msra.mxu0 0
  %616 = vmatprep.subr.bf16.mxu0 0
  %617 = vmatpush1.bf16.msra.mxu0 0
  %618 = vmatprep.subr.bf16.mxu0 0
  %619 = vmatpush1.bf16.msra.mxu0 0
  %620 = vmatprep.subr.bf16.mxu0 0
  %621 = vmatpush1.bf16.msra.mxu0 0
  %622 = vmatprep.mubr.bf16.mxu0 0
  %623 = vmatmul.mubr.bf16.gmra.mrb[0].mxu0 %v121
  %v624 = vpop.f32.mrb[0].mxu0
  %v625 = vadd.f32 %v585, %v624
  %v626 = vpop.f32.mrb[0].mxu0
  %v627 = vpop.f32.mrb[0].mxu0
  %v628 = vpop.f32.mrb[0].mxu0
  %629 = vdwg.mxu0
  %s630 = scalar_lea.vmem %s1, 32
  %v631 = vld [vmem:[%s630] sm:$0xf]
  %v632 = vunpack.c.l.bf16 %v631
  %v633 = vmul.f32 %v625, %v632
  %v634 = vadd.f32 %v576, %v633
  %v635 = vpack.c.bf16 %v634, %v634
  %v636 = vld [vmem:[%s6] sm:$0xf]
  %v637 = vld [vmem:[%s6 + $0x4] sm:$0xf]
  %v638 = vld [vmem:[%s6 + $0x8] sm:$0xf]
  %v639 = vld [vmem:[%s6 + $0xc] sm:$0xf]
  %v640 = vld [vmem:[%s7] sm:$0x1]
  %v642 = vlaneseq
  %v643 = vshrl.u32 %v642, 7
  %v644 = vsub.s32 0, %v643
  %v645 = vrot.slane %v640, %v644
  %v651 = vunpack.c.l.b16 %v636
  %v652 = vunpack.c.l.b16 %v637
  %v653 = vunpack.c.l.b16 %v638
  %v654 = vunpack.c.l.b16 %v639
  %v655 = vpack.c.b16 %v652, %v651
  %v656 = vpack.c.b16 %v654, %v653
  %vm659 = vcmask 261120
  %v661 = vsel %vm659, %v635, 0
  %663 = vmatprep.subr.bf16.mxu0 0
  %664 = vmatpush1.bf16.msra.mxu0 %v655
  %665 = vmatprep.subr.bf16.mxu0 0
  %666 = vmatpush1.bf16.msra.mxu0 %v656
  %667 = vmatprep.subr.bf16.mxu0 0
  %668 = vmatpush1.bf16.msra.mxu0 0
  %669 = vmatprep.subr.bf16.mxu0 0
  %670 = vmatpush1.bf16.msra.mxu0 0
  %671 = vmatprep.subr.bf16.mxu0 0
  %672 = vmatpush1.bf16.msra.mxu0 0
  %673 = vmatprep.subr.bf16.mxu0 0
  %674 = vmatpush1.bf16.msra.mxu0 0
  %675 = vmatprep.subr.bf16.mxu0 0
  %676 = vmatpush1.bf16.msra.mxu0 0
  %677 = vmatprep.subr.bf16.mxu0 0
  %678 = vmatpush1.bf16.msra.mxu0 0
  %679 = vmatprep.subr.bf16.mxu0 0
  %680 = vmatpush1.bf16.msra.mxu0 0
  %681 = vmatprep.subr.bf16.mxu0 0
  %682 = vmatpush1.bf16.msra.mxu0 0
  %683 = vmatprep.subr.bf16.mxu0 0
  %684 = vmatpush1.bf16.msra.mxu0 0
  %685 = vmatprep.subr.bf16.mxu0 0
  %686 = vmatpush1.bf16.msra.mxu0 0
  %687 = vmatprep.subr.bf16.mxu0 0
  %688 = vmatpush1.bf16.msra.mxu0 0
  %689 = vmatprep.subr.bf16.mxu0 0
  %690 = vmatpush1.bf16.msra.mxu0 0
  %691 = vmatprep.subr.bf16.mxu0 0
  %692 = vmatpush1.bf16.msra.mxu0 0
  %693 = vmatprep.subr.bf16.mxu0 0
  %694 = vmatpush1.bf16.msra.mxu0 0
  %695 = vmatprep.mubr.bf16.mxu0 0
  %696 = vmatmul.mubr.bf16.gmra.mrb[0].mxu0 %v661
  %v697 = vpop.f32.mrb[0].mxu0
  %v698 = vadd.f32 %v645, %v697
  %v699 = vpop.f32.mrb[0].mxu0
  %v700 = vpop.f32.mrb[0].mxu0
  %v701 = vpop.f32.mrb[0].mxu0
  %702 = vdwg.mxu0
  %v703 = vmax.f32 %v698, 0.0
  %vm704 = vcmask 523264
  %705 = vst.msk [vmem:[%s9] sm:$0xff] %vm704, %v703
  // Predicated region
  $region34: #{coarse_encoder_fwd.11} parent=0 // pred_check
    _
  $region35: #{coarse_encoder_fwd.11} parent=0 // pred_check_branch
    %707 = sbr.rel (0) target = $region37
  $region36: #{coarse_encoder_fwd.11} parent=0 // pred_region
    _
  $region37: #{coarse_encoder_fwd.11} parent=0 // pred_fallthru
    _
  // Predicated region
  $region38: #{coarse_encoder_fwd.11} parent=0 // pred_check
    _
  $region39: #{coarse_encoder_fwd.11} parent=0 // pred_check_branch
    %709 = sbr.rel (0) target = $region41
  $region40: #{coarse_encoder_fwd.11} parent=0 // pred_region
    _
  $region41: #{coarse_encoder_fwd.11} parent=0 // pred_fallthru
    _
  // Predicated region
  $region42: #{coarse_encoder_fwd.11} parent=0 // pred_check
    _
  $region43: #{coarse_encoder_fwd.11} parent=0 // pred_check_branch
    %711 = sbr.rel (0) target = $region45
  $region44: #{coarse_encoder_fwd.11} parent=0 // pred_region
    _
  $region45: #{coarse_encoder_fwd.11} parent=0 // pred_fallthru
    _
  // Predicated region
  $region46: #{coarse_encoder_fwd.11} parent=0 // pred_check
    _
  $region47: #{coarse_encoder_fwd.11} parent=0 // pred_check_branch
    %713 = sbr.rel (0) target = $region49
  $region48: #{coarse_encoder_fwd.11} parent=0 // pred_region
    _
  $region49: #{coarse_encoder_fwd.11} parent=0 // pred_fallthru
    _

// kernel: coarse_encoder_fwd.16
$region0: #{coarse_encoder_fwd.16}
  #allocation0 [shape = 'u32[]', space=smem, size = 0x4, offset = 0x4, fixed_abs, tag = 'smem constant byte address 0x4 - core index']
  #allocation1 [shape = 'u32[144,128]{1,0:T(1,128)}', space=vmem, size = 0x12000, scoped, tag = 'internal scratch']
  %s0 = inlined_call_operand.vmem [shape: bf16[8,576], index: 0, kind: input, shape index: {}]
  %s1 = inlined_call_operand.vmem [shape: bf16[576,64], index: 1, kind: input, shape index: {}]
  %s2 = inlined_call_operand.vmem [shape: f32[1,64], index: 2, kind: input, shape index: {}]
  %s3 = inlined_call_operand.hbm [shape: f32[8,64], index: 3, kind: output, shape index: {}]
  %s4 = sld [smem:[#allocation0]]
  $region22: #{coarse_encoder_fwd.16} parent=0
    _
  %s6 = ssub.s32 1, %s4
  %s7 = scalar_select 0, %s6, %s4
  $region1: #{coarse_encoder_fwd.16} parent=0
    #allocation2 [shape = 'u8[4096]{0}', space=vmem, size = 0x1000, scoped, tag = 'output window, operand 0, single buffered']
    #allocation3 [shape = 's32[1]{0}', space=sflag, size = 0x4, scoped, tag = 'scoped memory for coarse_encoder_fwd.16']
    %8 = vsyncpa [#allocation3], 0
    // Predicated region
    $region2: #{coarse_encoder_fwd.16} parent=1 // pred_check
      _
    $region3: #{coarse_encoder_fwd.16} parent=1 // pred_check_branch
      %10 = sbr.rel (0) target = $region5
    $region4: #{coarse_encoder_fwd.16} parent=1 // pred_region
      _
    $region5: #{coarse_encoder_fwd.16} parent=1 // pred_fallthru
      _
    // Predicated region
    $region6: #{coarse_encoder_fwd.16} parent=1 // pred_check
      _
    $region7: #{coarse_encoder_fwd.16} parent=1 // pred_check_branch
      %12 = sbr.rel (0) target = $region9
    $region8: #{coarse_encoder_fwd.16} parent=1 // pred_region
      _
    $region9: #{coarse_encoder_fwd.16} parent=1 // pred_fallthru
      _
    // Predicated region
    $region10: #{coarse_encoder_fwd.16} parent=1 // pred_check
      _
    $region11: #{coarse_encoder_fwd.16} parent=1 // pred_check_branch
      %14 = sbr.rel (0) target = $region13
    $region12: #{coarse_encoder_fwd.16} parent=1 // pred_region
      _
    $region13: #{coarse_encoder_fwd.16} parent=1 // pred_fallthru
      _
    %v16 = vld [vmem:[%s0] sm:$0xff]
    %v17 = vld [vmem:[%s0 + $0x8] sm:$0xff]
    %v18 = vld [vmem:[%s0 + $0x10] sm:$0xf]
    %v19 = vld [vmem:[%s1] sm:$0xf]
    %v20 = vld [vmem:[%s1 + $0x4] sm:$0xf]
    %v21 = vld [vmem:[%s1 + $0x8] sm:$0xf]
    %v22 = vld [vmem:[%s1 + $0xc] sm:$0xf]
    %v23 = vld [vmem:[%s1 + $0x10] sm:$0xf]
    %v24 = vld [vmem:[%s1 + $0x14] sm:$0xf]
    %v25 = vld [vmem:[%s1 + $0x18] sm:$0xf]
    %v26 = vld [vmem:[%s1 + $0x1c] sm:$0xf]
    %v27 = vld [vmem:[%s1 + $0x20] sm:$0xf]
    %v28 = vld [vmem:[%s1 + $0x24] sm:$0xf]
    %v29 = vld [vmem:[%s1 + $0x28] sm:$0xf]
    %v30 = vld [vmem:[%s1 + $0x2c] sm:$0xf]
    %v31 = vld [vmem:[%s1 + $0x30] sm:$0xf]
    %v32 = vld [vmem:[%s1 + $0x34] sm:$0xf]
    %v33 = vld [vmem:[%s1 + $0x38] sm:$0xf]
    %v34 = vld [vmem:[%s1 + $0x3c] sm:$0xf]
    %v35 = vld [vmem:[%s1 + $0x40] sm:$0xf]
    %v36 = vld [vmem:[%s1 + $0x44] sm:$0xf]
    %v37 = vld [vmem:[%s1 + $0x48] sm:$0xf]
    %v38 = vld [vmem:[%s1 + $0x4c] sm:$0xf]
    %v39 = vld [vmem:[%s1 + $0x50] sm:$0xf]
    %v40 = vld [vmem:[%s1 + $0x54] sm:$0xf]
    %v41 = vld [vmem:[%s1 + $0x58] sm:$0xf]
    %v42 = vld [vmem:[%s1 + $0x5c] sm:$0xf]
    %v43 = vld [vmem:[%s1 + $0x60] sm:$0xf]
    %v44 = vld [vmem:[%s1 + $0x64] sm:$0xf]
    %v45 = vld [vmem:[%s1 + $0x68] sm:$0xf]
    %v46 = vld [vmem:[%s1 + $0x6c] sm:$0xf]
    %v47 = vld [vmem:[%s1 + $0x70] sm:$0xf]
    %v48 = vld [vmem:[%s1 + $0x74] sm:$0xf]
    %v49 = vld [vmem:[%s1 + $0x78] sm:$0xf]
    %v50 = vld [vmem:[%s1 + $0x7c] sm:$0xf]
    %v51 = vld [vmem:[%s1 + $0x80] sm:$0xf]
    %v52 = vld [vmem:[%s1 + $0x84] sm:$0xf]
    %v53 = vld [vmem:[%s1 + $0x88] sm:$0xf]
    %v54 = vld [vmem:[%s1 + $0x8c] sm:$0xf]
    %v55 = vld [vmem:[%s1 + $0x90] sm:$0xf]
    %v56 = vld [vmem:[%s1 + $0x94] sm:$0xf]
    %v57 = vld [vmem:[%s1 + $0x98] sm:$0xf]
    %v58 = vld [vmem:[%s1 + $0x9c] sm:$0xf]
    %v59 = vld [vmem:[%s1 + $0xa0] sm:$0xf]
    %v60 = vld [vmem:[%s1 + $0xa4] sm:$0xf]
    %v61 = vld [vmem:[%s1 + $0xa8] sm:$0xf]
    %v62 = vld [vmem:[%s1 + $0xac] sm:$0xf]
    %v63 = vld [vmem:[%s1 + $0xb0] sm:$0xf]
    %v64 = vld [vmem:[%s1 + $0xb4] sm:$0xf]
    %v65 = vld [vmem:[%s1 + $0xb8] sm:$0xf]
    %v66 = vld [vmem:[%s1 + $0xbc] sm:$0xf]
    %v67 = vld [vmem:[%s1 + $0xc0] sm:$0xf]
    %v68 = vld [vmem:[%s1 + $0xc4] sm:$0xf]
    %v69 = vld [vmem:[%s1 + $0xc8] sm:$0xf]
    %v70 = vld [vmem:[%s1 + $0xcc] sm:$0xf]
    %v71 = vld [vmem:[%s1 + $0xd0] sm:$0xf]
    %v72 = vld [vmem:[%s1 + $0xd4] sm:$0xf]
    %v73 = vld [vmem:[%s1 + $0xd8] sm:$0xf]
    %v74 = vld [vmem:[%s1 + $0xdc] sm:$0xf]
    %v75 = vld [vmem:[%s1 + $0xe0] sm:$0xf]
    %v76 = vld [vmem:[%s1 + $0xe4] sm:$0xf]
    %v77 = vld [vmem:[%s1 + $0xe8] sm:$0xf]
    %v78 = vld [vmem:[%s1 + $0xec] sm:$0xf]
    %v79 = vld [vmem:[%s1 + $0xf0] sm:$0xf]
    %v80 = vld [vmem:[%s1 + $0xf4] sm:$0xf]
    %v81 = vld [vmem:[%s1 + $0xf8] sm:$0xf]
    %v82 = vld [vmem:[%s1 + $0xfc] sm:$0xf]
    %v83 = vld [vmem:[%s1 + $0x100] sm:$0xf]
    %v84 = vld [vmem:[%s1 + $0x104] sm:$0xf]
    %v85 = vld [vmem:[%s1 + $0x108] sm:$0xf]
    %v86 = vld [vmem:[%s1 + $0x10c] sm:$0xf]
    %v87 = vld [vmem:[%s1 + $0x110] sm:$0xf]
    %v88 = vld [vmem:[%s1 + $0x114] sm:$0xf]
    %v89 = vld [vmem:[%s1 + $0x118] sm:$0xf]
    %v90 = vld [vmem:[%s1 + $0x11c] sm:$0xf]
    %v91 = vld [vmem:[%s2] sm:$0x1]
    %v93 = vlaneseq
    %v94 = vshrl.u32 %v93, 7
    %v95 = vsub.s32 0, %v94
    %v96 = vrot.slane %v91, %v95
    %v101 = vunpack.c.l.b16 %v16
    %v102 = vunpack.c.h.b16 %v16
    %v103 = vunpack.c.l.b16 %v17
    %v104 = vunpack.c.h.b16 %v17
    %v105 = vunpack.c.l.b16 %v18
    %v106 = vpack.c.b16 %v101, %v101
    %v107 = vpack.c.b16 %v102, %v102
    %v108 = vpack.c.b16 %v103, %v103
    %v109 = vpack.c.b16 %v104, %v104
    %v110 = vpack.c.b16 %v105, %v105
    %v187 = vunpack.c.l.b16 %v19
    %v188 = vunpack.c.l.b16 %v20
    %v189 = vunpack.c.l.b16 %v21
    %v190 = vunpack.c.l.b16 %v22
    %v191 = vunpack.c.l.b16 %v23
    %v192 = vunpack.c.l.b16 %v24
    %v193 = vunpack.c.l.b16 %v25
    %v194 = vunpack.c.l.b16 %v26
    %v195 = vunpack.c.l.b16 %v27
    %v196 = vunpack.c.l.b16 %v28
    %v197 = vunpack.c.l.b16 %v29
    %v198 = vunpack.c.l.b16 %v30
    %v199 = vunpack.c.l.b16 %v31
    %v200 = vunpack.c.l.b16 %v32
    %v201 = vunpack.c.l.b16 %v33
    %v202 = vunpack.c.l.b16 %v34
    %v203 = vunpack.c.l.b16 %v35
    %v204 = vunpack.c.l.b16 %v36
    %v205 = vunpack.c.l.b16 %v37
    %v206 = vunpack.c.l.b16 %v38
    %v207 = vunpack.c.l.b16 %v39
    %v208 = vunpack.c.l.b16 %v40
    %v209 = vunpack.c.l.b16 %v41
    %v210 = vunpack.c.l.b16 %v42
    %v211 = vunpack.c.l.b16 %v43
    %v212 = vunpack.c.l.b16 %v44
    %v213 = vunpack.c.l.b16 %v45
    %v214 = vunpack.c.l.b16 %v46
    %v215 = vunpack.c.l.b16 %v47
    %v216 = vunpack.c.l.b16 %v48
    %v217 = vunpack.c.l.b16 %v49
    %v218 = vunpack.c.l.b16 %v50
    %v219 = vunpack.c.l.b16 %v51
    %v220 = vunpack.c.l.b16 %v52
    %v221 = vunpack.c.l.b16 %v53
    %v222 = vunpack.c.l.b16 %v54
    %v223 = vunpack.c.l.b16 %v55
    %v224 = vunpack.c.l.b16 %v56
    %v225 = vunpack.c.l.b16 %v57
    %v226 = vunpack.c.l.b16 %v58
    %v227 = vunpack.c.l.b16 %v59
    %v228 = vunpack.c.l.b16 %v60
    %v229 = vunpack.c.l.b16 %v61
    %v230 = vunpack.c.l.b16 %v62
    %v231 = vunpack.c.l.b16 %v63
    %v232 = vunpack.c.l.b16 %v64
    %v233 = vunpack.c.l.b16 %v65
    %v234 = vunpack.c.l.b16 %v66
    %v235 = vunpack.c.l.b16 %v67
    %v236 = vunpack.c.l.b16 %v68
    %v237 = vunpack.c.l.b16 %v69
    %v238 = vunpack.c.l.b16 %v70
    %v239 = vunpack.c.l.b16 %v71
    %v240 = vunpack.c.l.b16 %v72
    %v241 = vunpack.c.l.b16 %v73
    %v242 = vunpack.c.l.b16 %v74
    %v243 = vunpack.c.l.b16 %v75
    %v244 = vunpack.c.l.b16 %v76
    %v245 = vunpack.c.l.b16 %v77
    %v246 = vunpack.c.l.b16 %v78
    %v247 = vunpack.c.l.b16 %v79
    %v248 = vunpack.c.l.b16 %v80
    %v249 = vunpack.c.l.b16 %v81
    %v250 = vunpack.c.l.b16 %v82
    %v251 = vunpack.c.l.b16 %v83
    %v252 = vunpack.c.l.b16 %v84
    %v253 = vunpack.c.l.b16 %v85
    %v254 = vunpack.c.l.b16 %v86
    %v255 = vunpack.c.l.b16 %v87
    %v256 = vunpack.c.l.b16 %v88
    %v257 = vunpack.c.l.b16 %v89
    %v258 = vunpack.c.l.b16 %v90
    %v259 = vpack.c.b16 %v188, %v187
    %v260 = vpack.c.b16 %v190, %v189
    %v261 = vpack.c.b16 %v192, %v191
    %v262 = vpack.c.b16 %v194, %v193
    %v263 = vpack.c.b16 %v196, %v195
    %v264 = vpack.c.b16 %v198, %v197
    %v265 = vpack.c.b16 %v200, %v199
    %v266 = vpack.c.b16 %v202, %v201
    %v267 = vpack.c.b16 %v204, %v203
    %v268 = vpack.c.b16 %v206, %v205
    %v269 = vpack.c.b16 %v208, %v207
    %v270 = vpack.c.b16 %v210, %v209
    %v271 = vpack.c.b16 %v212, %v211
    %v272 = vpack.c.b16 %v214, %v213
    %v273 = vpack.c.b16 %v216, %v215
    %v274 = vpack.c.b16 %v218, %v217
    %v275 = vpack.c.b16 %v220, %v219
    %v276 = vpack.c.b16 %v222, %v221
    %v277 = vpack.c.b16 %v224, %v223
    %v278 = vpack.c.b16 %v226, %v225
    %v279 = vpack.c.b16 %v228, %v227
    %v280 = vpack.c.b16 %v230, %v229
    %v281 = vpack.c.b16 %v232, %v231
    %v282 = vpack.c.b16 %v234, %v233
    %v283 = vpack.c.b16 %v236, %v235
    %v284 = vpack.c.b16 %v238, %v237
    %v285 = vpack.c.b16 %v240, %v239
    %v286 = vpack.c.b16 %v242, %v241
    %v287 = vpack.c.b16 %v244, %v243
    %v288 = vpack.c.b16 %v246, %v245
    %v289 = vpack.c.b16 %v248, %v247
    %v290 = vpack.c.b16 %v250, %v249
    %v291 = vpack.c.b16 %v252, %v251
    %v292 = vpack.c.b16 %v254, %v253
    %v293 = vpack.c.b16 %v256, %v255
    %v294 = vpack.c.b16 %v258, %v257
    %vm331 = vcmask 523264
    %v333 = vsel %vm331, %v110, 0
    %335 = vmatprep.subr.bf16.mxu0 0
    %336 = vmatpush1.bf16.msra.mxu0 %v259
    %337 = vmatprep.subr.bf16.mxu0 0
    %338 = vmatpush1.bf16.msra.mxu0 %v260
    %339 = vmatprep.subr.bf16.mxu0 0
    %340 = vmatpush1.bf16.msra.mxu0 %v261
    %341 = vmatprep.subr.bf16.mxu0 0
    %342 = vmatpush1.bf16.msra.mxu0 %v262
    %343 = vmatprep.subr.bf16.mxu0 0
    %344 = vmatpush1.bf16.msra.mxu0 %v263
    %345 = vmatprep.subr.bf16.mxu0 0
    %346 = vmatpush1.bf16.msra.mxu0 %v264
    %347 = vmatprep.subr.bf16.mxu0 0
    %348 = vmatpush1.bf16.msra.mxu0 %v265
    %349 = vmatprep.subr.bf16.mxu0 0
    %350 = vmatpush1.bf16.msra.mxu0 %v266
    %351 = vmatprep.subr.bf16.mxu0 0
    %352 = vmatpush1.bf16.msra.mxu0 %v267
    %353 = vmatprep.subr.bf16.mxu0 0
    %354 = vmatpush1.bf16.msra.mxu0 %v268
    %355 = vmatprep.subr.bf16.mxu0 0
    %356 = vmatpush1.bf16.msra.mxu0 %v269
    %357 = vmatprep.subr.bf16.mxu0 0
    %358 = vmatpush1.bf16.msra.mxu0 %v270
    %359 = vmatprep.subr.bf16.mxu0 0
    %360 = vmatpush1.bf16.msra.mxu0 %v271
    %361 = vmatprep.subr.bf16.mxu0 0
    %362 = vmatpush1.bf16.msra.mxu0 %v272
    %363 = vmatprep.subr.bf16.mxu0 0
    %364 = vmatpush1.bf16.msra.mxu0 %v273
    %365 = vmatprep.subr.bf16.mxu0 0
    %366 = vmatpush1.bf16.msra.mxu0 %v274
    %367 = vmatprep.mubr.bf16.mxu0 %v107
    %368 = vmatmul.mubr.bf16.gmra.mrb[0].mxu0 %v106
    %v369 = vpop.f32.mrb[0].mxu0
    %v370 = vadd.f32 %v96, %v369
    %v371 = vpop.f32.mrb[0].mxu0
    %v372 = vpop.f32.mrb[0].mxu0
    %v373 = vpop.f32.mrb[0].mxu0
    %374 = vdwg.mxu0
    %375 = vmatprep.subr.bf16.mxu0 0
    %376 = vmatpush1.bf16.msra.mxu0 %v275
    %377 = vmatprep.subr.bf16.mxu0 0
    %378 = vmatpush1.bf16.msra.mxu0 %v276
    %379 = vmatprep.subr.bf16.mxu0 0
    %380 = vmatpush1.bf16.msra.mxu0 %v277
    %381 = vmatprep.subr.bf16.mxu0 0
    %382 = vmatpush1.bf16.msra.mxu0 %v278
    %383 = vmatprep.subr.bf16.mxu0 0
    %384 = vmatpush1.bf16.msra.mxu0 %v279
    %385 = vmatprep.subr.bf16.mxu0 0
    %386 = vmatpush1.bf16.msra.mxu0 %v280
    %387 = vmatprep.subr.bf16.mxu0 0
    %388 = vmatpush1.bf16.msra.mxu0 %v281
    %389 = vmatprep.subr.bf16.mxu0 0
    %390 = vmatpush1.bf16.msra.mxu0 %v282
    %391 = vmatprep.subr.bf16.mxu0 0
    %392 = vmatpush1.bf16.msra.mxu0 %v283
    %393 = vmatprep.subr.bf16.mxu0 0
    %394 = vmatpush1.bf16.msra.mxu0 %v284
    %395 = vmatprep.subr.bf16.mxu0 0
    %396 = vmatpush1.bf16.msra.mxu0 %v285
    %397 = vmatprep.subr.bf16.mxu0 0
    %398 = vmatpush1.bf16.msra.mxu0 %v286
    %399 = vmatprep.subr.bf16.mxu0 0
    %400 = vmatpush1.bf16.msra.mxu0 %v287
    %401 = vmatprep.subr.bf16.mxu0 0
    %402 = vmatpush1.bf16.msra.mxu0 %v288
    %403 = vmatprep.subr.bf16.mxu0 0
    %404 = vmatpush1.bf16.msra.mxu0 %v289
    %405 = vmatprep.subr.bf16.mxu0 0
    %406 = vmatpush1.bf16.msra.mxu0 %v290
    %407 = vmatprep.mubr.bf16.mxu0 %v109
    %408 = vmatmul.mubr.bf16.gmra.mrb[0].mxu0 %v108
    %v409 = vpop.f32.mrb[0].mxu0
    %v410 = vadd.f32 %v370, %v409
    %v411 = vpop.f32.mrb[0].mxu0
    %v412 = vpop.f32.mrb[0].mxu0
    %v413 = vpop.f32.mrb[0].mxu0
    %414 = vdwg.mxu0
    %415 = vmatprep.subr.bf16.mxu0 0
    %416 = vmatpush1.bf16.msra.mxu0 %v291
    %417 = vmatprep.subr.bf16.mxu0 0
    %418 = vmatpush1.bf16.msra.mxu0 %v292
    %419 = vmatprep.subr.bf16.mxu0 0
    %420 = vmatpush1.bf16.msra.mxu0 %v293
    %421 = vmatprep.subr.bf16.mxu0 0
    %422 = vmatpush1.bf16.msra.mxu0 %v294
    %423 = vmatprep.subr.bf16.mxu0 0
    %424 = vmatpush1.bf16.msra.mxu0 0
    %425 = vmatprep.subr.bf16.mxu0 0
    %426 = vmatpush1.bf16.msra.mxu0 0
    %427 = vmatprep.subr.bf16.mxu0 0
    %428 = vmatpush1.bf16.msra.mxu0 0
    %429 = vmatprep.subr.bf16.mxu0 0
    %430 = vmatpush1.bf16.msra.mxu0 0
    %431 = vmatprep.subr.bf16.mxu0 0
    %432 = vmatpush1.bf16.msra.mxu0 0
    %433 = vmatprep.subr.bf16.mxu0 0
    %434 = vmatpush1.bf16.msra.mxu0 0
    %435 = vmatprep.subr.bf16.mxu0 0
    %436 = vmatpush1.bf16.msra.mxu0 0
    %437 = vmatprep.subr.bf16.mxu0 0
    %438 = vmatpush1.bf16.msra.mxu0 0
    %439 = vmatprep.subr.bf16.mxu0 0
    %440 = vmatpush1.bf16.msra.mxu0 0
    %441 = vmatprep.subr.bf16.mxu0 0
    %442 = vmatpush1.bf16.msra.mxu0 0
    %443 = vmatprep.subr.bf16.mxu0 0
    %444 = vmatpush1.bf16.msra.mxu0 0
    %445 = vmatprep.subr.bf16.mxu0 0
    %446 = vmatpush1.bf16.msra.mxu0 0
    %447 = vmatprep.mubr.bf16.mxu0 0
    %448 = vmatmul.mubr.bf16.gmra.mrb[0].mxu0 %v333
    %v449 = vpop.f32.mrb[0].mxu0
    %v450 = vadd.f32 %v410, %v449
    %v451 = vpop.f32.mrb[0].mxu0
    %v452 = vpop.f32.mrb[0].mxu0
    %v453 = vpop.f32.mrb[0].mxu0
    %454 = vdwg.mxu0
    %v455 = vmax.f32 %v450, 0.0
    %456 = vst.msk [vmem:[#allocation2] sm:$0xff] %vm331, %v455
    // Predicated region
    $region14: #{coarse_encoder_fwd.16} parent=1 // pred_check
      _
    $region15: #{coarse_encoder_fwd.16} parent=1 // pred_check_branch
      %458 = sbr.rel (0) target = $region17
    $region16: #{coarse_encoder_fwd.16} parent=1 // pred_region
      %s460 = ssub.s32 128, 128
      %461 = vsyncadd [#allocation3], %s460
      %s463 = sshll.u32 [#allocation2], 4
      %s464 = int_to_ptr.vmem [resolvable:$true] %s463
      %466 = dma.vmem_to_hbm [thread:$0]  %s464, 128, %s3, [#allocation3]
    $region17: #{coarse_encoder_fwd.16} parent=1 // pred_fallthru
      _
    // Predicated region
    $region18: #{coarse_encoder_fwd.16} parent=1 // pred_check
      _
    $region19: #{coarse_encoder_fwd.16} parent=1 // pred_check_branch
      %468 = sbr.rel (0) target = $region21
    $region20: #{coarse_encoder_fwd.16} parent=1 // pred_region
      %469 = dma.done [#allocation3], 128
    $region21: #{coarse_encoder_fwd.16} parent=1 // pred_fallthru
      _
    %470 = vsyncpa [#allocation3], 1

// kernel: coarse_encoder_fwd.14
$region0: #{coarse_encoder_fwd.14}
  #allocation0 [shape = 'u32[]', space=smem, size = 0x4, offset = 0x4, fixed_abs, tag = 'smem constant byte address 0x4 - core index']
  #allocation1 [shape = 'u32[144,128]{1,0:T(1,128)}', space=vmem, size = 0x12000, scoped, tag = 'internal scratch']
  %s0 = inlined_call_operand.vmem [shape: bf16[128,144], index: 0, kind: input, shape index: {}]
  %s1 = inlined_call_operand.vmem [shape: bf16[144,16], index: 1, kind: input, shape index: {}]
  %s2 = inlined_call_operand.vmem [shape: f32[1,16], index: 2, kind: input, shape index: {}]
  %s3 = inlined_call_operand.hbm [shape: f32[128,16], index: 3, kind: output, shape index: {}]
  %s4 = sld [smem:[#allocation0]]
  $region22: #{coarse_encoder_fwd.14} parent=0
    _
  %s6 = ssub.s32 1, %s4
  %s7 = scalar_select 0, %s6, %s4
  $region1: #{coarse_encoder_fwd.14} parent=0
    #allocation2 [shape = 'u8[65536]{0}', space=vmem, size = 0x10000, scoped, tag = 'output window, operand 0, single buffered']
    #allocation3 [shape = 's32[1]{0}', space=sflag, size = 0x4, scoped, tag = 'scoped memory for coarse_encoder_fwd.14']
    %8 = vsyncpa [#allocation3], 0
    // Predicated region
    $region2: #{coarse_encoder_fwd.14} parent=1 // pred_check
      _
    $region3: #{coarse_encoder_fwd.14} parent=1 // pred_check_branch
      %10 = sbr.rel (0) target = $region5
    $region4: #{coarse_encoder_fwd.14} parent=1 // pred_region
      _
    $region5: #{coarse_encoder_fwd.14} parent=1 // pred_fallthru
      _
    // Predicated region
    $region6: #{coarse_encoder_fwd.14} parent=1 // pred_check
      _
    $region7: #{coarse_encoder_fwd.14} parent=1 // pred_check_branch
      %12 = sbr.rel (0) target = $region9
    $region8: #{coarse_encoder_fwd.14} parent=1 // pred_region
      _
    $region9: #{coarse_encoder_fwd.14} parent=1 // pred_fallthru
      _
    // Predicated region
    $region10: #{coarse_encoder_fwd.14} parent=1 // pred_check
      _
    $region11: #{coarse_encoder_fwd.14} parent=1 // pred_check_branch
      %14 = sbr.rel (0) target = $region13
    $region12: #{coarse_encoder_fwd.14} parent=1 // pred_region
      _
    $region13: #{coarse_encoder_fwd.14} parent=1 // pred_fallthru
      _
    %v16 = vld [vmem:[%s0] sm:$0xff]
    %v17 = vld [vmem:[%s0 + $0x8] sm:$0xff]
    %v18 = vld [vmem:[%s0 + $0x10] sm:$0xff]
    %v19 = vld [vmem:[%s0 + $0x18] sm:$0xff]
    %v20 = vld [vmem:[%s0 + $0x20] sm:$0xff]
    %v21 = vld [vmem:[%s0 + $0x28] sm:$0xff]
    %v22 = vld [vmem:[%s0 + $0x30] sm:$0xff]
    %v23 = vld [vmem:[%s0 + $0x38] sm:$0xff]
    %v24 = vld [vmem:[%s0 + $0x40] sm:$0xff]
    %v25 = vld [vmem:[%s0 + $0x48] sm:$0xff]
    %v26 = vld [vmem:[%s0 + $0x50] sm:$0xff]
    %v27 = vld [vmem:[%s0 + $0x58] sm:$0xff]
    %v28 = vld [vmem:[%s0 + $0x60] sm:$0xff]
    %v29 = vld [vmem:[%s0 + $0x68] sm:$0xff]
    %v30 = vld [vmem:[%s0 + $0x70] sm:$0xff]
    %v31 = vld [vmem:[%s0 + $0x78] sm:$0xff]
    %v32 = vld [vmem:[%s1] sm:$0xf]
    %v33 = vld [vmem:[%s1 + $0x4] sm:$0xf]
    %v34 = vld [vmem:[%s1 + $0x8] sm:$0xf]
    %v35 = vld [vmem:[%s1 + $0xc] sm:$0xf]
    %v36 = vld [vmem:[%s1 + $0x10] sm:$0xf]
    %v37 = vld [vmem:[%s1 + $0x14] sm:$0xf]
    %v38 = vld [vmem:[%s1 + $0x18] sm:$0xf]
    %v39 = vld [vmem:[%s1 + $0x1c] sm:$0xf]
    %v40 = vld [vmem:[%s1 + $0x20] sm:$0xf]
    %v41 = vld [vmem:[%s1 + $0x24] sm:$0xf]
    %v42 = vld [vmem:[%s1 + $0x28] sm:$0xf]
    %v43 = vld [vmem:[%s1 + $0x2c] sm:$0xf]
    %v44 = vld [vmem:[%s1 + $0x30] sm:$0xf]
    %v45 = vld [vmem:[%s1 + $0x34] sm:$0xf]
    %v46 = vld [vmem:[%s1 + $0x38] sm:$0xf]
    %v47 = vld [vmem:[%s1 + $0x3c] sm:$0xf]
    %v48 = vld [vmem:[%s1 + $0x40] sm:$0xf]
    %v49 = vld [vmem:[%s1 + $0x44] sm:$0xf]
    %v50 = vld [vmem:[%s2] sm:$0x1]
    %v52 = vlaneseq
    %v53 = vshrl.u32 %v52, 7
    %v54 = vsub.s32 0, %v53
    %v55 = vrot.slane %v50, %v54
    %v73 = vunpack.c.l.b16 %v16
    %v74 = vunpack.c.h.b16 %v16
    %v75 = vunpack.c.l.b16 %v17
    %v76 = vunpack.c.h.b16 %v17
    %v77 = vunpack.c.l.b16 %v18
    %v78 = vunpack.c.h.b16 %v18
    %v79 = vunpack.c.l.b16 %v19
    %v80 = vunpack.c.h.b16 %v19
    %v81 = vunpack.c.l.b16 %v20
    %v82 = vunpack.c.h.b16 %v20
    %v83 = vunpack.c.l.b16 %v21
    %v84 = vunpack.c.h.b16 %v21
    %v85 = vunpack.c.l.b16 %v22
    %v86 = vunpack.c.h.b16 %v22
    %v87 = vunpack.c.l.b16 %v23
    %v88 = vunpack.c.h.b16 %v23
    %v89 = vunpack.c.l.b16 %v24
    %v90 = vunpack.c.h.b16 %v24
    %v91 = vunpack.c.l.b16 %v25
    %v92 = vunpack.c.h.b16 %v25
    %v93 = vunpack.c.l.b16 %v26
    %v94 = vunpack.c.h.b16 %v26
    %v95 = vunpack.c.l.b16 %v27
    %v96 = vunpack.c.h.b16 %v27
    %v97 = vunpack.c.l.b16 %v28
    %v98 = vunpack.c.h.b16 %v28
    %v99 = vunpack.c.l.b16 %v29
    %v100 = vunpack.c.h.b16 %v29
    %v101 = vunpack.c.l.b16 %v30
    %v102 = vunpack.c.h.b16 %v30
    %v103 = vunpack.c.l.b16 %v31
    %v104 = vunpack.c.h.b16 %v31
    %v105 = vpack.c.b16 %v75, %v73
    %v106 = vpack.c.b16 %v76, %v74
    %v107 = vpack.c.b16 %v79, %v77
    %v108 = vpack.c.b16 %v80, %v78
    %v109 = vpack.c.b16 %v83, %v81
    %v110 = vpack.c.b16 %v84, %v82
    %v111 = vpack.c.b16 %v87, %v85
    %v112 = vpack.c.b16 %v88, %v86
    %v113 = vpack.c.b16 %v91, %v89
    %v114 = vpack.c.b16 %v92, %v90
    %v115 = vpack.c.b16 %v95, %v93
    %v116 = vpack.c.b16 %v96, %v94
    %v117 = vpack.c.b16 %v99, %v97
    %v118 = vpack.c.b16 %v100, %v98
    %v119 = vpack.c.b16 %v103, %v101
    %v120 = vpack.c.b16 %v104, %v102
    %v147 = vunpack.c.l.b16 %v32
    %v148 = vunpack.c.l.b16 %v33
    %v149 = vunpack.c.l.b16 %v34
    %v150 = vunpack.c.l.b16 %v35
    %v151 = vunpack.c.l.b16 %v36
    %v152 = vunpack.c.l.b16 %v37
    %v153 = vunpack.c.l.b16 %v38
    %v154 = vunpack.c.l.b16 %v39
    %v155 = vunpack.c.l.b16 %v40
    %v156 = vunpack.c.l.b16 %v41
    %v157 = vunpack.c.l.b16 %v42
    %v158 = vunpack.c.l.b16 %v43
    %v159 = vunpack.c.l.b16 %v44
    %v160 = vunpack.c.l.b16 %v45
    %v161 = vunpack.c.l.b16 %v46
    %v162 = vunpack.c.l.b16 %v47
    %v163 = vunpack.c.l.b16 %v48
    %v164 = vunpack.c.l.b16 %v49
    %v165 = vpack.c.b16 %v148, %v147
    %v166 = vpack.c.b16 %v150, %v149
    %v167 = vpack.c.b16 %v152, %v151
    %v168 = vpack.c.b16 %v154, %v153
    %v169 = vpack.c.b16 %v156, %v155
    %v170 = vpack.c.b16 %v158, %v157
    %v171 = vpack.c.b16 %v160, %v159
    %v172 = vpack.c.b16 %v162, %v161
    %v173 = vpack.c.b16 %v164, %v163
    %vm183 = vcmask 130048
    %v185 = vsel %vm183, %v106, 0
    %v188 = vsel %vm183, %v108, 0
    %v191 = vsel %vm183, %v110, 0
    %v194 = vsel %vm183, %v112, 0
    %v197 = vsel %vm183, %v114, 0
    %v200 = vsel %vm183, %v116, 0
    %v203 = vsel %vm183, %v118, 0
    %v206 = vsel %vm183, %v120, 0
    %208 = vmatprep.subr.bf16.mxu0 0
    %209 = vmatpush1.bf16.msra.mxu0 %v165
    %210 = vmatprep.subr.bf16.mxu0 0
    %211 = vmatpush1.bf16.msra.mxu0 %v166
    %212 = vmatprep.subr.bf16.mxu0 0
    %213 = vmatpush1.bf16.msra.mxu0 %v167
    %214 = vmatprep.subr.bf16.mxu0 0
    %215 = vmatpush1.bf16.msra.mxu0 %v168
    %216 = vmatprep.subr.bf16.mxu0 0
    %217 = vmatpush1.bf16.msra.mxu0 %v169
    %218 = vmatprep.subr.bf16.mxu0 0
    %219 = vmatpush1.bf16.msra.mxu0 %v170
    %220 = vmatprep.subr.bf16.mxu0 0
    %221 = vmatpush1.bf16.msra.mxu0 %v171
    %222 = vmatprep.subr.bf16.mxu0 0
    %223 = vmatpush1.bf16.msra.mxu0 %v172
    %224 = vmatprep.subr.bf16.mxu0 0
    %225 = vmatpush1.bf16.msra.mxu0 %v173
    %226 = vmatprep.subr.bf16.mxu0 0
    %227 = vmatpush1.bf16.msra.mxu0 0
    %228 = vmatprep.subr.bf16.mxu0 0
    %229 = vmatpush1.bf16.msra.mxu0 0
    %230 = vmatprep.subr.bf16.mxu0 0
    %231 = vmatpush1.bf16.msra.mxu0 0
    %232 = vmatprep.subr.bf16.mxu0 0
    %233 = vmatpush1.bf16.msra.mxu0 0
    %234 = vmatprep.subr.bf16.mxu0 0
    %235 = vmatpush1.bf16.msra.mxu0 0
    %236 = vmatprep.subr.bf16.mxu0 0
    %237 = vmatpush1.bf16.msra.mxu0 0
    %238 = vmatprep.subr.bf16.mxu0 0
    %239 = vmatpush1.bf16.msra.mxu0 0
    %240 = vmatprep.mubr.bf16.mxu0 %v185
    %241 = vmatmul.mubr.bf16.gmra.mrb[0].mxu0 %v105
    %v242 = vpop.f32.mrb[0].mxu0
    %v243 = vadd.f32 %v55, %v242
    %v244 = vpop.f32.mrb[0].mxu0
    %v245 = vpop.f32.mrb[0].mxu0
    %v246 = vadd.f32 %v55, %v245
    %v247 = vpop.f32.mrb[0].mxu0
    %248 = vmatprep.mubr.bf16.mxu0 %v188
    %249 = vmatmul.mubr.bf16.gmra.mrb[0].mxu0 %v107
    %v250 = vpop.f32.mrb[0].mxu0
    %v251 = vadd.f32 %v55, %v250
    %v252 = vpop.f32.mrb[0].mxu0
    %v253 = vpop.f32.mrb[0].mxu0
    %v254 = vadd.f32 %v55, %v253
    %v255 = vpop.f32.mrb[0].mxu0
    %256 = vmatprep.mubr.bf16.mxu0 %v191
    %257 = vmatmul.mubr.bf16.gmra.mrb[0].mxu0 %v109
    %v258 = vpop.f32.mrb[0].mxu0
    %v259 = vadd.f32 %v55, %v258
    %v260 = vpop.f32.mrb[0].mxu0
    %v261 = vpop.f32.mrb[0].mxu0
    %v262 = vadd.f32 %v55, %v261
    %v263 = vpop.f32.mrb[0].mxu0
    %264 = vmatprep.mubr.bf16.mxu0 %v194
    %265 = vmatmul.mubr.bf16.gmra.mrb[0].mxu0 %v111
    %v266 = vpop.f32.mrb[0].mxu0
    %v267 = vadd.f32 %v55, %v266
    %v268 = vpop.f32.mrb[0].mxu0
    %v269 = vpop.f32.mrb[0].mxu0
    %v270 = vadd.f32 %v55, %v269
    %v271 = vpop.f32.mrb[0].mxu0
    %272 = vmatprep.mubr.bf16.mxu0 %v197
    %273 = vmatmul.mubr.bf16.gmra.mrb[0].mxu0 %v113
    %v274 = vpop.f32.mrb[0].mxu0
    %v275 = vadd.f32 %v55, %v274
    %v276 = vpop.f32.mrb[0].mxu0
    %v277 = vpop.f32.mrb[0].mxu0
    %v278 = vadd.f32 %v55, %v277
    %v279 = vpop.f32.mrb[0].mxu0
    %280 = vmatprep.mubr.bf16.mxu0 %v200
    %281 = vmatmul.mubr.bf16.gmra.mrb[0].mxu0 %v115
    %v282 = vpop.f32.mrb[0].mxu0
    %v283 = vadd.f32 %v55, %v282
    %v284 = vpop.f32.mrb[0].mxu0
    %v285 = vpop.f32.mrb[0].mxu0
    %v286 = vadd.f32 %v55, %v285
    %v287 = vpop.f32.mrb[0].mxu0
    %288 = vmatprep.mubr.bf16.mxu0 %v203
    %289 = vmatmul.mubr.bf16.gmra.mrb[0].mxu0 %v117
    %v290 = vpop.f32.mrb[0].mxu0
    %v291 = vadd.f32 %v55, %v290
    %v292 = vpop.f32.mrb[0].mxu0
    %v293 = vpop.f32.mrb[0].mxu0
    %v294 = vadd.f32 %v55, %v293
    %v295 = vpop.f32.mrb[0].mxu0
    %296 = vmatprep.mubr.bf16.mxu0 %v206
    %297 = vmatmul.mubr.bf16.gmra.mrb[0].mxu0 %v119
    %v298 = vpop.f32.mrb[0].mxu0
    %v299 = vadd.f32 %v55, %v298
    %v300 = vpop.f32.mrb[0].mxu0
    %v301 = vpop.f32.mrb[0].mxu0
    %v302 = vadd.f32 %v55, %v301
    %v303 = vpop.f32.mrb[0].mxu0
    %304 = vdwg.mxu0
    %v305 = vmax.f32 %v243, 0.0
    %v306 = vmax.f32 %v246, 0.0
    %v307 = vmax.f32 %v251, 0.0
    %v308 = vmax.f32 %v254, 0.0
    %v309 = vmax.f32 %v259, 0.0
    %v310 = vmax.f32 %v262, 0.0
    %v311 = vmax.f32 %v267, 0.0
    %v312 = vmax.f32 %v270, 0.0
    %v313 = vmax.f32 %v275, 0.0
    %v314 = vmax.f32 %v278, 0.0
    %v315 = vmax.f32 %v283, 0.0
    %v316 = vmax.f32 %v286, 0.0
    %v317 = vmax.f32 %v291, 0.0
    %v318 = vmax.f32 %v294, 0.0
    %v319 = vmax.f32 %v299, 0.0
    %v320 = vmax.f32 %v302, 0.0
    %321 = vst.msk [vmem:[#allocation2] sm:$0xff] %vm183, %v305
    %322 = vst.msk [vmem:[#allocation2 + $0x8] sm:$0xff] %vm183, %v306
    %323 = vst.msk [vmem:[#allocation2 + $0x10] sm:$0xff] %vm183, %v307
    %324 = vst.msk [vmem:[#allocation2 + $0x18] sm:$0xff] %vm183, %v308
    %325 = vst.msk [vmem:[#allocation2 + $0x20] sm:$0xff] %vm183, %v309
    %326 = vst.msk [vmem:[#allocation2 + $0x28] sm:$0xff] %vm183, %v310
    %327 = vst.msk [vmem:[#allocation2 + $0x30] sm:$0xff] %vm183, %v311
    %328 = vst.msk [vmem:[#allocation2 + $0x38] sm:$0xff] %vm183, %v312
    %329 = vst.msk [vmem:[#allocation2 + $0x40] sm:$0xff] %vm183, %v313
    %330 = vst.msk [vmem:[#allocation2 + $0x48] sm:$0xff] %vm183, %v314
    %331 = vst.msk [vmem:[#allocation2 + $0x50] sm:$0xff] %vm183, %v315
    %332 = vst.msk [vmem:[#allocation2 + $0x58] sm:$0xff] %vm183, %v316
    %333 = vst.msk [vmem:[#allocation2 + $0x60] sm:$0xff] %vm183, %v317
    %334 = vst.msk [vmem:[#allocation2 + $0x68] sm:$0xff] %vm183, %v318
    %335 = vst.msk [vmem:[#allocation2 + $0x70] sm:$0xff] %vm183, %v319
    %336 = vst.msk [vmem:[#allocation2 + $0x78] sm:$0xff] %vm183, %v320
    // Predicated region
    $region14: #{coarse_encoder_fwd.14} parent=1 // pred_check
      _
    $region15: #{coarse_encoder_fwd.14} parent=1 // pred_check_branch
      %338 = sbr.rel (0) target = $region17
    $region16: #{coarse_encoder_fwd.14} parent=1 // pred_region
      %s340 = ssub.s32 2048, 2048
      %341 = vsyncadd [#allocation3], %s340
      %s342 = sshll.u32 [#allocation2], 4
      %s343 = int_to_ptr.vmem [resolvable:$true] %s342
      %348 = dma.vmem_to_hbm [thread:$0]  %s343, 2048, %s3, [#allocation3], 128, 128, 8
    $region17: #{coarse_encoder_fwd.14} parent=1 // pred_fallthru
      _
    // Predicated region
    $region18: #{coarse_encoder_fwd.14} parent=1 // pred_check
      _
    $region19: #{coarse_encoder_fwd.14} parent=1 // pred_check_branch
      %350 = sbr.rel (0) target = $region21
    $region20: #{coarse_encoder_fwd.14} parent=1 // pred_region
      %351 = dma.done [#allocation3], 2048
    $region21: #{coarse_encoder_fwd.14} parent=1 // pred_fallthru
      _
    %352 = vsyncpa [#allocation3], 1

// kernel: coarse_encoder_fwd.15
$region0: #{coarse_encoder_fwd.15}
  #allocation0 [shape = 'u32[]', space=smem, size = 0x4, offset = 0x4, fixed_abs, tag = 'smem constant byte address 0x4 - core index']
  #allocation1 [shape = 'u32[144,128]{1,0:T(1,128)}', space=vmem, size = 0x12000, scoped, tag = 'internal scratch']
  %s0 = inlined_call_operand.vmem [shape: bf16[32,288], index: 0, kind: input, shape index: {}]
  %s1 = inlined_call_operand.vmem [shape: bf16[288,32], index: 1, kind: input, shape index: {}]
  %s2 = inlined_call_operand.vmem [shape: f32[1,32], index: 2, kind: input, shape index: {}]
  %s3 = inlined_call_operand.hbm [shape: f32[32,32], index: 3, kind: output, shape index: {}]
  %s4 = sld [smem:[#allocation0]]
  $region22: #{coarse_encoder_fwd.15} parent=0
    _
  %s6 = ssub.s32 1, %s4
  %s7 = scalar_select 0, %s6, %s4
  $region1: #{coarse_encoder_fwd.15} parent=0
    #allocation2 [shape = 'u8[16384]{0}', space=vmem, size = 0x4000, scoped, tag = 'output window, operand 0, single buffered']
    #allocation3 [shape = 's32[1]{0}', space=sflag, size = 0x4, scoped, tag = 'scoped memory for coarse_encoder_fwd.15']
    %8 = vsyncpa [#allocation3], 0
    // Predicated region
    $region2: #{coarse_encoder_fwd.15} parent=1 // pred_check
      _
    $region3: #{coarse_encoder_fwd.15} parent=1 // pred_check_branch
      %10 = sbr.rel (0) target = $region5
    $region4: #{coarse_encoder_fwd.15} parent=1 // pred_region
      _
    $region5: #{coarse_encoder_fwd.15} parent=1 // pred_fallthru
      _
    // Predicated region
    $region6: #{coarse_encoder_fwd.15} parent=1 // pred_check
      _
    $region7: #{coarse_encoder_fwd.15} parent=1 // pred_check_branch
      %12 = sbr.rel (0) target = $region9
    $region8: #{coarse_encoder_fwd.15} parent=1 // pred_region
      _
    $region9: #{coarse_encoder_fwd.15} parent=1 // pred_fallthru
      _
    // Predicated region
    $region10: #{coarse_encoder_fwd.15} parent=1 // pred_check
      _
    $region11: #{coarse_encoder_fwd.15} parent=1 // pred_check_branch
      %14 = sbr.rel (0) target = $region13
    $region12: #{coarse_encoder_fwd.15} parent=1 // pred_region
      _
    $region13: #{coarse_encoder_fwd.15} parent=1 // pred_fallthru
      _
    %v16 = vld [vmem:[%s0] sm:$0xff]
    %v17 = vld [vmem:[%s0 + $0x8] sm:$0xf]
    %v18 = vld [vmem:[%s0 + $0xc] sm:$0xff]
    %v19 = vld [vmem:[%s0 + $0x14] sm:$0xf]
    %v20 = vld [vmem:[%s0 + $0x18] sm:$0xff]
    %v21 = vld [vmem:[%s0 + $0x20] sm:$0xf]
    %v22 = vld [vmem:[%s0 + $0x24] sm:$0xff]
    %v23 = vld [vmem:[%s0 + $0x2c] sm:$0xf]
    %v24 = vld [vmem:[%s1] sm:$0xf]
    %v25 = vld [vmem:[%s1 + $0x4] sm:$0xf]
    %v26 = vld [vmem:[%s1 + $0x8] sm:$0xf]
    %v27 = vld [vmem:[%s1 + $0xc] sm:$0xf]
    %v28 = vld [vmem:[%s1 + $0x10] sm:$0xf]
    %v29 = vld [vmem:[%s1 + $0x14] sm:$0xf]
    %v30 = vld [vmem:[%s1 + $0x18] sm:$0xf]
    %v31 = vld [vmem:[%s1 + $0x1c] sm:$0xf]
    %v32 = vld [vmem:[%s1 + $0x20] sm:$0xf]
    %v33 = vld [vmem:[%s1 + $0x24] sm:$0xf]
    %v34 = vld [vmem:[%s1 + $0x28] sm:$0xf]
    %v35 = vld [vmem:[%s1 + $0x2c] sm:$0xf]
    %v36 = vld [vmem:[%s1 + $0x30] sm:$0xf]
    %v37 = vld [vmem:[%s1 + $0x34] sm:$0xf]
    %v38 = vld [vmem:[%s1 + $0x38] sm:$0xf]
    %v39 = vld [vmem:[%s1 + $0x3c] sm:$0xf]
    %v40 = vld [vmem:[%s1 + $0x40] sm:$0xf]
    %v41 = vld [vmem:[%s1 + $0x44] sm:$0xf]
    %v42 = vld [vmem:[%s1 + $0x48] sm:$0xf]
    %v43 = vld [vmem:[%s1 + $0x4c] sm:$0xf]
    %v44 = vld [vmem:[%s1 + $0x50] sm:$0xf]
    %v45 = vld [vmem:[%s1 + $0x54] sm:$0xf]
    %v46 = vld [vmem:[%s1 + $0x58] sm:$0xf]
    %v47 = vld [vmem:[%s1 + $0x5c] sm:$0xf]
    %v48 = vld [vmem:[%s1 + $0x60] sm:$0xf]
    %v49 = vld [vmem:[%s1 + $0x64] sm:$0xf]
    %v50 = vld [vmem:[%s1 + $0x68] sm:$0xf]
    %v51 = vld [vmem:[%s1 + $0x6c] sm:$0xf]
    %v52 = vld [vmem:[%s1 + $0x70] sm:$0xf]
    %v53 = vld [vmem:[%s1 + $0x74] sm:$0xf]
    %v54 = vld [vmem:[%s1 + $0x78] sm:$0xf]
    %v55 = vld [vmem:[%s1 + $0x7c] sm:$0xf]
    %v56 = vld [vmem:[%s1 + $0x80] sm:$0xf]
    %v57 = vld [vmem:[%s1 + $0x84] sm:$0xf]
    %v58 = vld [vmem:[%s1 + $0x88] sm:$0xf]
    %v59 = vld [vmem:[%s1 + $0x8c] sm:$0xf]
    %v60 = vld [vmem:[%s2] sm:$0x1]
    %v62 = vlaneseq
    %v63 = vshrl.u32 %v62, 7
    %v64 = vsub.s32 0, %v63
    %v65 = vrot.slane %v60, %v64
    %v75 = vunpack.c.l.b16 %v16
    %v76 = vunpack.c.h.b16 %v16
    %v77 = vunpack.c.l.b16 %v17
    %v78 = vunpack.c.l.b16 %v18
    %v79 = vunpack.c.h.b16 %v18
    %v80 = vunpack.c.l.b16 %v19
    %v81 = vunpack.c.l.b16 %v20
    %v82 = vunpack.c.h.b16 %v20
    %v83 = vunpack.c.l.b16 %v21
    %v84 = vunpack.c.l.b16 %v22
    %v85 = vunpack.c.h.b16 %v22
    %v86 = vunpack.c.l.b16 %v23
    %v87 = vpack.c.b16 %v78, %v75
    %v88 = vpack.c.b16 %v79, %v76
    %v89 = vpack.c.b16 %v80, %v77
    %v90 = vpack.c.b16 %v84, %v81
    %v91 = vpack.c.b16 %v85, %v82
    %v92 = vpack.c.b16 %v86, %v83
    %v133 = vunpack.c.l.b16 %v24
    %v134 = vunpack.c.l.b16 %v25
    %v135 = vunpack.c.l.b16 %v26
    %v136 = vunpack.c.l.b16 %v27
    %v137 = vunpack.c.l.b16 %v28
    %v138 = vunpack.c.l.b16 %v29
    %v139 = vunpack.c.l.b16 %v30
    %v140 = vunpack.c.l.b16 %v31
    %v141 = vunpack.c.l.b16 %v32
    %v142 = vunpack.c.l.b16 %v33
    %v143 = vunpack.c.l.b16 %v34
    %v144 = vunpack.c.l.b16 %v35
    %v145 = vunpack.c.l.b16 %v36
    %v146 = vunpack.c.l.b16 %v37
    %v147 = vunpack.c.l.b16 %v38
    %v148 = vunpack.c.l.b16 %v39
    %v149 = vunpack.c.l.b16 %v40
    %v150 = vunpack.c.l.b16 %v41
    %v151 = vunpack.c.l.b16 %v42
    %v152 = vunpack.c.l.b16 %v43
    %v153 = vunpack.c.l.b16 %v44
    %v154 = vunpack.c.l.b16 %v45
    %v155 = vunpack.c.l.b16 %v46
    %v156 = vunpack.c.l.b16 %v47
    %v157 = vunpack.c.l.b16 %v48
    %v158 = vunpack.c.l.b16 %v49
    %v159 = vunpack.c.l.b16 %v50
    %v160 = vunpack.c.l.b16 %v51
    %v161 = vunpack.c.l.b16 %v52
    %v162 = vunpack.c.l.b16 %v53
    %v163 = vunpack.c.l.b16 %v54
    %v164 = vunpack.c.l.b16 %v55
    %v165 = vunpack.c.l.b16 %v56
    %v166 = vunpack.c.l.b16 %v57
    %v167 = vunpack.c.l.b16 %v58
    %v168 = vunpack.c.l.b16 %v59
    %v169 = vpack.c.b16 %v134, %v133
    %v170 = vpack.c.b16 %v136, %v135
    %v171 = vpack.c.b16 %v138, %v137
    %v172 = vpack.c.b16 %v140, %v139
    %v173 = vpack.c.b16 %v142, %v141
    %v174 = vpack.c.b16 %v144, %v143
    %v175 = vpack.c.b16 %v146, %v145
    %v176 = vpack.c.b16 %v148, %v147
    %v177 = vpack.c.b16 %v150, %v149
    %v178 = vpack.c.b16 %v152, %v151
    %v179 = vpack.c.b16 %v154, %v153
    %v180 = vpack.c.b16 %v156, %v155
    %v181 = vpack.c.b16 %v158, %v157
    %v182 = vpack.c.b16 %v160, %v159
    %v183 = vpack.c.b16 %v162, %v161
    %v184 = vpack.c.b16 %v164, %v163
    %v185 = vpack.c.b16 %v166, %v165
    %v186 = vpack.c.b16 %v168, %v167
    %vm205 = vcmask 261120
    %v207 = vsel %vm205, %v89, 0
    %v210 = vsel %vm205, %v92, 0
    %212 = vmatprep.subr.bf16.mxu0 0
    %213 = vmatpush1.bf16.msra.mxu0 %v169
    %214 = vmatprep.subr.bf16.mxu0 0
    %215 = vmatpush1.bf16.msra.mxu0 %v170
    %216 = vmatprep.subr.bf16.mxu0 0
    %217 = vmatpush1.bf16.msra.mxu0 %v171
    %218 = vmatprep.subr.bf16.mxu0 0
    %219 = vmatpush1.bf16.msra.mxu0 %v172
    %220 = vmatprep.subr.bf16.mxu0 0
    %221 = vmatpush1.bf16.msra.mxu0 %v173
    %222 = vmatprep.subr.bf16.mxu0 0
    %223 = vmatpush1.bf16.msra.mxu0 %v174
    %224 = vmatprep.subr.bf16.mxu0 0
    %225 = vmatpush1.bf16.msra.mxu0 %v175
    %226 = vmatprep.subr.bf16.mxu0 0
    %227 = vmatpush1.bf16.msra.mxu0 %v176
    %228 = vmatprep.subr.bf16.mxu0 0
    %229 = vmatpush1.bf16.msra.mxu0 %v177
    %230 = vmatprep.subr.bf16.mxu0 0
    %231 = vmatpush1.bf16.msra.mxu0 %v178
    %232 = vmatprep.subr.bf16.mxu0 0
    %233 = vmatpush1.bf16.msra.mxu0 %v179
    %234 = vmatprep.subr.bf16.mxu0 0
    %235 = vmatpush1.bf16.msra.mxu0 %v180
    %236 = vmatprep.subr.bf16.mxu0 0
    %237 = vmatpush1.bf16.msra.mxu0 %v181
    %238 = vmatprep.subr.bf16.mxu0 0
    %239 = vmatpush1.bf16.msra.mxu0 %v182
    %240 = vmatprep.subr.bf16.mxu0 0
    %241 = vmatpush1.bf16.msra.mxu0 %v183
    %242 = vmatprep.subr.bf16.mxu0 0
    %243 = vmatpush1.bf16.msra.mxu0 %v184
    %244 = vmatprep.mubr.bf16.mxu0 %v88
    %245 = vmatmul.mubr.bf16.gmra.mrb[0].mxu0 %v87
    %v246 = vpop.f32.mrb[0].mxu0
    %v247 = vadd.f32 %v65, %v246
    %v248 = vpop.f32.mrb[0].mxu0
    %v249 = vpop.f32.mrb[0].mxu0
    %v250 = vadd.f32 %v65, %v249
    %v251 = vpop.f32.mrb[0].mxu0
    %252 = vmatprep.mubr.bf16.mxu0 %v91
    %253 = vmatmul.mubr.bf16.gmra.mrb[0].mxu0 %v90
    %v254 = vpop.f32.mrb[0].mxu0
    %v255 = vadd.f32 %v65, %v254
    %v256 = vpop.f32.mrb[0].mxu0
    %v257 = vpop.f32.mrb[0].mxu0
    %v258 = vadd.f32 %v65, %v257
    %v259 = vpop.f32.mrb[0].mxu0
    %260 = vdwg.mxu0
    %261 = vmatprep.subr.bf16.mxu0 0
    %262 = vmatpush1.bf16.msra.mxu0 %v185
    %263 = vmatprep.subr.bf16.mxu0 0
    %264 = vmatpush1.bf16.msra.mxu0 %v186
    %265 = vmatprep.subr.bf16.mxu0 0
    %266 = vmatpush1.bf16.msra.mxu0 0
    %267 = vmatprep.subr.bf16.mxu0 0
    %268 = vmatpush1.bf16.msra.mxu0 0
    %269 = vmatprep.subr.bf16.mxu0 0
    %270 = vmatpush1.bf16.msra.mxu0 0
    %271 = vmatprep.subr.bf16.mxu0 0
    %272 = vmatpush1.bf16.msra.mxu0 0
    %273 = vmatprep.subr.bf16.mxu0 0
    %274 = vmatpush1.bf16.msra.mxu0 0
    %275 = vmatprep.subr.bf16.mxu0 0
    %276 = vmatpush1.bf16.msra.mxu0 0
    %277 = vmatprep.subr.bf16.mxu0 0
    %278 = vmatpush1.bf16.msra.mxu0 0
    %279 = vmatprep.subr.bf16.mxu0 0
    %280 = vmatpush1.bf16.msra.mxu0 0
    %281 = vmatprep.subr.bf16.mxu0 0
    %282 = vmatpush1.bf16.msra.mxu0 0
    %283 = vmatprep.subr.bf16.mxu0 0
    %284 = vmatpush1.bf16.msra.mxu0 0
    %285 = vmatprep.subr.bf16.mxu0 0
    %286 = vmatpush1.bf16.msra.mxu0 0
    %287 = vmatprep.subr.bf16.mxu0 0
    %288 = vmatpush1.bf16.msra.mxu0 0
    %289 = vmatprep.subr.bf16.mxu0 0
    %290 = vmatpush1.bf16.msra.mxu0 0
    %291 = vmatprep.subr.bf16.mxu0 0
    %292 = vmatpush1.bf16.msra.mxu0 0
    %293 = vmatprep.mubr.bf16.mxu0 0
    %294 = vmatmul.mubr.bf16.gmra.mrb[0].mxu0 %v207
    %v295 = vpop.f32.mrb[0].mxu0
    %v296 = vadd.f32 %v247, %v295
    %v297 = vpop.f32.mrb[0].mxu0
    %v298 = vpop.f32.mrb[0].mxu0
    %v299 = vadd.f32 %v250, %v298
    %v300 = vpop.f32.mrb[0].mxu0
    %301 = vmatprep.mubr.bf16.mxu0 0
    %302 = vmatmul.mubr.bf16.gmra.mrb[0].mxu0 %v210
    %v303 = vpop.f32.mrb[0].mxu0
    %v304 = vadd.f32 %v255, %v303
    %v305 = vpop.f32.mrb[0].mxu0
    %v306 = vpop.f32.mrb[0].mxu0
    %v307 = vadd.f32 %v258, %v306
    %v308 = vpop.f32.mrb[0].mxu0
    %309 = vdwg.mxu0
    %v310 = vmax.f32 %v296, 0.0
    %v311 = vmax.f32 %v299, 0.0
    %v312 = vmax.f32 %v304, 0.0
    %v313 = vmax.f32 %v307, 0.0
    %314 = vst.msk [vmem:[#allocation2] sm:$0xff] %vm205, %v310
    %315 = vst.msk [vmem:[#allocation2 + $0x8] sm:$0xff] %vm205, %v311
    %316 = vst.msk [vmem:[#allocation2 + $0x10] sm:$0xff] %vm205, %v312
    %317 = vst.msk [vmem:[#allocation2 + $0x18] sm:$0xff] %vm205, %v313
    // Predicated region
    $region14: #{coarse_encoder_fwd.15} parent=1 // pred_check
      _
    $region15: #{coarse_encoder_fwd.15} parent=1 // pred_check_branch
      %319 = sbr.rel (0) target = $region17
    $region16: #{coarse_encoder_fwd.15} parent=1 // pred_region
      %s321 = ssub.s32 512, 512
      %322 = vsyncadd [#allocation3], %s321
      %s323 = sshll.u32 [#allocation2], 4
      %s324 = int_to_ptr.vmem [resolvable:$true] %s323
      %329 = dma.vmem_to_hbm [thread:$0]  %s324, 512, %s3, [#allocation3], 128, 128, 8
    $region17: #{coarse_encoder_fwd.15} parent=1 // pred_fallthru
      _
    // Predicated region
    $region18: #{coarse_encoder_fwd.15} parent=1 // pred_check
      _
    $region19: #{coarse_encoder_fwd.15} parent=1 // pred_check_branch
      %331 = sbr.rel (0) target = $region21
    $region20: #{coarse_encoder_fwd.15} parent=1 // pred_region
      %332 = dma.done [#allocation3], 512
    $region21: #{coarse_encoder_fwd.15} parent=1 // pred_fallthru
      _
    %333 = vsyncpa [#allocation3], 1

// kernel: coarse_encoder_fwd.12
$region0: #{coarse_encoder_fwd.12}
  #allocation0 [shape = 'u32[]', space=smem, size = 0x4, offset = 0x4, fixed_abs, tag = 'smem constant byte address 0x4 - core index']
  #allocation1 [shape = 'u32[144,128]{1,0:T(1,128)}', space=vmem, size = 0x12000, scoped, tag = 'internal scratch']
  %s0 = inlined_call_operand.vmem [shape: bf16[2,72], index: 0, kind: input, shape index: {}]
  %s1 = inlined_call_operand.vmem [shape: bf16[9,2,64], index: 1, kind: input, shape index: {}]
  %s2 = inlined_call_operand.vmem [shape: bf16[72,16], index: 2, kind: input, shape index: {}]
  %s3 = inlined_call_operand.vmem [shape: f32[1,16], index: 3, kind: input, shape index: {}]
  %s4 = inlined_call_operand.vmem [shape: bf16[9,16,64], index: 4, kind: input, shape index: {}]
  %s5 = inlined_call_operand.vmem [shape: f32[9,1,64], index: 5, kind: input, shape index: {}]
  %s6 = inlined_call_operand.vmem [shape: bf16[64,128], index: 6, kind: input, shape index: {}]
  %s7 = inlined_call_operand.vmem [shape: f32[1,128], index: 7, kind: input, shape index: {}]
  %s8 = inlined_call_operand.hbm [shape: f32[2,16], index: 8, kind: output, shape index: {0}]
  %s9 = inlined_call_operand.vmem [shape: f32[2,128], index: 9, kind: output, shape index: {1}]
  %10 = xla_tuple %s8, %s9
  %s11 = sld [smem:[#allocation0]]
  $region50: #{coarse_encoder_fwd.12} parent=0
    _
  %s13 = ssub.s32 1, %s11
  %s14 = scalar_select 0, %s13, %s11
  $region1: #{coarse_encoder_fwd.12} parent=0
    #allocation2 [shape = 'u8[1024]{0}', space=vmem, size = 0x400, scoped, tag = 'output window, operand 0, single buffered']
    #allocation3 [shape = 's32[1]{0}', space=sflag, size = 0x4, scoped, tag = 'scoped memory for coarse_encoder_fwd.12']
    %15 = vsyncpa [#allocation3], 0
    // Predicated region
    $region2: #{coarse_encoder_fwd.12} parent=1 // pred_check
      _
    $region3: #{coarse_encoder_fwd.12} parent=1 // pred_check_branch
      %17 = sbr.rel (0) target = $region5
    $region4: #{coarse_encoder_fwd.12} parent=1 // pred_region
      _
    $region5: #{coarse_encoder_fwd.12} parent=1 // pred_fallthru
      _
    // Predicated region
    $region6: #{coarse_encoder_fwd.12} parent=1 // pred_check
      _
    $region7: #{coarse_encoder_fwd.12} parent=1 // pred_check_branch
      %19 = sbr.rel (0) target = $region9
    $region8: #{coarse_encoder_fwd.12} parent=1 // pred_region
      _
    $region9: #{coarse_encoder_fwd.12} parent=1 // pred_fallthru
      _
    // Predicated region
    $region10: #{coarse_encoder_fwd.12} parent=1 // pred_check
      _
    $region11: #{coarse_encoder_fwd.12} parent=1 // pred_check_branch
      %21 = sbr.rel (0) target = $region13
    $region12: #{coarse_encoder_fwd.12} parent=1 // pred_region
      _
    $region13: #{coarse_encoder_fwd.12} parent=1 // pred_fallthru
      _
    // Predicated region
    $region14: #{coarse_encoder_fwd.12} parent=1 // pred_check
      _
    $region15: #{coarse_encoder_fwd.12} parent=1 // pred_check_branch
      %23 = sbr.rel (0) target = $region17
    $region16: #{coarse_encoder_fwd.12} parent=1 // pred_region
      _
    $region17: #{coarse_encoder_fwd.12} parent=1 // pred_fallthru
      _
    // Predicated region
    $region18: #{coarse_encoder_fwd.12} parent=1 // pred_check
      _
    $region19: #{coarse_encoder_fwd.12} parent=1 // pred_check_branch
      %25 = sbr.rel (0) target = $region21
    $region20: #{coarse_encoder_fwd.12} parent=1 // pred_region
      _
    $region21: #{coarse_encoder_fwd.12} parent=1 // pred_fallthru
      _
    // Predicated region
    $region22: #{coarse_encoder_fwd.12} parent=1 // pred_check
      _
    $region23: #{coarse_encoder_fwd.12} parent=1 // pred_check_branch
      %27 = sbr.rel (0) target = $region25
    $region24: #{coarse_encoder_fwd.12} parent=1 // pred_region
      _
    $region25: #{coarse_encoder_fwd.12} parent=1 // pred_fallthru
      _
    // Predicated region
    $region26: #{coarse_encoder_fwd.12} parent=1 // pred_check
      _
    $region27: #{coarse_encoder_fwd.12} parent=1 // pred_check_branch
      %29 = sbr.rel (0) target = $region29
    $region28: #{coarse_encoder_fwd.12} parent=1 // pred_region
      _
    $region29: #{coarse_encoder_fwd.12} parent=1 // pred_fallthru
      _
    // Predicated region
    $region30: #{coarse_encoder_fwd.12} parent=1 // pred_check
      _
    $region31: #{coarse_encoder_fwd.12} parent=1 // pred_check_branch
      %31 = sbr.rel (0) target = $region33
    $region32: #{coarse_encoder_fwd.12} parent=1 // pred_region
      _
    $region33: #{coarse_encoder_fwd.12} parent=1 // pred_fallthru
      _
    %v33 = vld [vmem:[%s0] sm:$0x1]
    %v34 = vld [vmem:[%s2] sm:$0xf]
    %v35 = vld [vmem:[%s2 + $0x4] sm:$0xf]
    %v36 = vld [vmem:[%s2 + $0x8] sm:$0xf]
    %v37 = vld [vmem:[%s2 + $0xc] sm:$0xf]
    %v38 = vld [vmem:[%s2 + $0x10] sm:$0xf]
    %v39 = vld [vmem:[%s2 + $0x14] sm:$0xf]
    %v40 = vld [vmem:[%s2 + $0x18] sm:$0xf]
    %v41 = vld [vmem:[%s2 + $0x1c] sm:$0xf]
    %v42 = vld [vmem:[%s2 + $0x20] sm:$0xf]
    %v43 = vld [vmem:[%s3] sm:$0x1]
    %v45 = vlaneseq
    %v46 = vshrl.u32 %v45, 7
    %v47 = vsub.s32 0, %v46
    %v48 = vrot.slane %v43, %v47
    %v59 = vunpack.c.l.b16 %v34
    %v60 = vunpack.c.l.b16 %v35
    %v61 = vunpack.c.l.b16 %v36
    %v62 = vunpack.c.l.b16 %v37
    %v63 = vunpack.c.l.b16 %v38
    %v64 = vunpack.c.l.b16 %v39
    %v65 = vunpack.c.l.b16 %v40
    %v66 = vunpack.c.l.b16 %v41
    %v67 = vunpack.c.l.b16 %v42
    %v68 = vpack.c.b16 %v60, %v59
    %v69 = vpack.c.b16 %v62, %v61
    %v70 = vpack.c.b16 %v64, %v63
    %v71 = vpack.c.b16 %v66, %v65
    %v72 = vpack.c.b16 %v67, %v67
    %vm77 = vcmask 588800
    %v79 = vsel %vm77, %v33, 0
    %vm81 = vcmask 1043456
    %v83 = vsel %vm81, %v72, 0
    %85 = vmatprep.subr.bf16.mxu0 0
    %86 = vmatpush1.bf16.msra.mxu0 %v68
    %87 = vmatprep.subr.bf16.mxu0 0
    %88 = vmatpush1.bf16.msra.mxu0 %v69
    %89 = vmatprep.subr.bf16.mxu0 0
    %90 = vmatpush1.bf16.msra.mxu0 %v70
    %91 = vmatprep.subr.bf16.mxu0 0
    %92 = vmatpush1.bf16.msra.mxu0 %v71
    %93 = vmatprep.subr.bf16.mxu0 0
    %94 = vmatpush1.bf16.msra.mxu0 %v83
    %95 = vmatprep.subr.bf16.mxu0 0
    %96 = vmatpush1.bf16.msra.mxu0 0
    %97 = vmatprep.subr.bf16.mxu0 0
    %98 = vmatpush1.bf16.msra.mxu0 0
    %99 = vmatprep.subr.bf16.mxu0 0
    %100 = vmatpush1.bf16.msra.mxu0 0
    %101 = vmatprep.subr.bf16.mxu0 0
    %102 = vmatpush1.bf16.msra.mxu0 0
    %103 = vmatprep.subr.bf16.mxu0 0
    %104 = vmatpush1.bf16.msra.mxu0 0
    %105 = vmatprep.subr.bf16.mxu0 0
    %106 = vmatpush1.bf16.msra.mxu0 0
    %107 = vmatprep.subr.bf16.mxu0 0
    %108 = vmatpush1.bf16.msra.mxu0 0
    %109 = vmatprep.subr.bf16.mxu0 0
    %110 = vmatpush1.bf16.msra.mxu0 0
    %111 = vmatprep.subr.bf16.mxu0 0
    %112 = vmatpush1.bf16.msra.mxu0 0
    %113 = vmatprep.subr.bf16.mxu0 0
    %114 = vmatpush1.bf16.msra.mxu0 0
    %115 = vmatprep.subr.bf16.mxu0 0
    %116 = vmatpush1.bf16.msra.mxu0 0
    %117 = vmatprep.mubr.bf16.mxu0 0
    %118 = vmatmul.mubr.bf16.gmra.mrb[0].mxu0 %v79
    %v119 = vpop.f32.mrb[0].mxu0
    %v120 = vadd.f32 %v48, %v119
    %v121 = vpop.f32.mrb[0].mxu0
    %v122 = vpop.f32.mrb[0].mxu0
    %v123 = vpop.f32.mrb[0].mxu0
    %124 = vdwg.mxu0
    %v125 = vmax.f32 %v120, 0.0
    %vm126 = vcmask 123904
    %127 = vst.msk [vmem:[#allocation2] sm:$0x3] %vm126, %v125
    %v128 = vpack.c.bf16 %v125, %v125
    %v129 = vld [vmem:[%s4] sm:$0xf]
    %v130 = vld [vmem:[%s4 + $0x4] sm:$0xf]
    %v131 = vld [vmem:[%s5] sm:$0x1]
    %v133 = vlaneseq
    %v134 = vshrl.u32 %v133, 7
    %v135 = vsub.s32 0, %v134
    %v136 = vrot.slane %v131, %v135
    %v140 = vunpack.c.l.b16 %v129
    %v141 = vunpack.c.l.b16 %v130
    %v142 = vpack.c.b16 %v141, %v140
    %vm144 = vcmask 130048
    %v146 = vsel %vm144, %v128, 0
    %148 = vmatprep.subr.bf16.mxu0 0
    %149 = vmatpush1.bf16.msra.mxu0 %v142
    %150 = vmatprep.subr.bf16.mxu0 0
    %151 = vmatpush1.bf16.msra.mxu0 0
    %152 = vmatprep.subr.bf16.mxu0 0
    %153 = vmatpush1.bf16.msra.mxu0 0
    %154 = vmatprep.subr.bf16.mxu0 0
    %155 = vmatpush1.bf16.msra.mxu0 0
    %156 = vmatprep.subr.bf16.mxu0 0
    %157 = vmatpush1.bf16.msra.mxu0 0
    %158 = vmatprep.subr.bf16.mxu0 0
    %159 = vmatpush1.bf16.msra.mxu0 0
    %160 = vmatprep.subr.bf16.mxu0 0
    %161 = vmatpush1.bf16.msra.mxu0 0
    %162 = vmatprep.subr.bf16.mxu0 0
    %163 = vmatpush1.bf16.msra.mxu0 0
    %164 = vmatprep.subr.bf16.mxu0 0
    %165 = vmatpush1.bf16.msra.mxu0 0
    %166 = vmatprep.subr.bf16.mxu0 0
    %167 = vmatpush1.bf16.msra.mxu0 0
    %168 = vmatprep.subr.bf16.mxu0 0
    %169 = vmatpush1.bf16.msra.mxu0 0
    %170 = vmatprep.subr.bf16.mxu0 0
    %171 = vmatpush1.bf16.msra.mxu0 0
    %172 = vmatprep.subr.bf16.mxu0 0
    %173 = vmatpush1.bf16.msra.mxu0 0
    %174 = vmatprep.subr.bf16.mxu0 0
    %175 = vmatpush1.bf16.msra.mxu0 0
    %176 = vmatprep.subr.bf16.mxu0 0
    %177 = vmatpush1.bf16.msra.mxu0 0
    %178 = vmatprep.subr.bf16.mxu0 0
    %179 = vmatpush1.bf16.msra.mxu0 0
    %180 = vmatprep.mubr.bf16.mxu0 0
    %181 = vmatmul.mubr.bf16.gmra.mrb[0].mxu0 %v146
    %v182 = vpop.f32.mrb[0].mxu0
    %v183 = vadd.f32 %v136, %v182
    %v184 = vpop.f32.mrb[0].mxu0
    %v185 = vpop.f32.mrb[0].mxu0
    %v186 = vpop.f32.mrb[0].mxu0
    %187 = vdwg.mxu0
    %v188 = vld [vmem:[%s1] sm:$0x1]
    %v189 = vunpack.c.l.bf16 %v188
    %v190 = vmul.f32 %v183, %v189
    %v191 = vadd.f32 %v190, 0.0
    %s192 = scalar_lea.vmem %s4, 8
    %v193 = vld [vmem:[%s192] sm:$0xf]
    %v194 = vld [vmem:[%s192 + $0x4] sm:$0xf]
    %s195 = scalar_lea.vmem %s5, 1
    %v196 = vld [vmem:[%s195] sm:$0x1]
    %v198 = vlaneseq
    %v199 = vshrl.u32 %v198, 7
    %v200 = vsub.s32 0, %v199
    %v201 = vrot.slane %v196, %v200
    %v205 = vunpack.c.l.b16 %v193
    %v206 = vunpack.c.l.b16 %v194
    %v207 = vpack.c.b16 %v206, %v205
    %209 = vmatprep.subr.bf16.mxu0 0
    %210 = vmatpush1.bf16.msra.mxu0 %v207
    %211 = vmatprep.subr.bf16.mxu0 0
    %212 = vmatpush1.bf16.msra.mxu0 0
    %213 = vmatprep.subr.bf16.mxu0 0
    %214 = vmatpush1.bf16.msra.mxu0 0
    %215 = vmatprep.subr.bf16.mxu0 0
    %216 = vmatpush1.bf16.msra.mxu0 0
    %217 = vmatprep.subr.bf16.mxu0 0
    %218 = vmatpush1.bf16.msra.mxu0 0
    %219 = vmatprep.subr.bf16.mxu0 0
    %220 = vmatpush1.bf16.msra.mxu0 0
    %221 = vmatprep.subr.bf16.mxu0 0
    %222 = vmatpush1.bf16.msra.mxu0 0
    %223 = vmatprep.subr.bf16.mxu0 0
    %224 = vmatpush1.bf16.msra.mxu0 0
    %225 = vmatprep.subr.bf16.mxu0 0
    %226 = vmatpush1.bf16.msra.mxu0 0
    %227 = vmatprep.subr.bf16.mxu0 0
    %228 = vmatpush1.bf16.msra.mxu0 0
    %229 = vmatprep.subr.bf16.mxu0 0
    %230 = vmatpush1.bf16.msra.mxu0 0
    %231 = vmatprep.subr.bf16.mxu0 0
    %232 = vmatpush1.bf16.msra.mxu0 0
    %233 = vmatprep.subr.bf16.mxu0 0
    %234 = vmatpush1.bf16.msra.mxu0 0
    %235 = vmatprep.subr.bf16.mxu0 0
    %236 = vmatpush1.bf16.msra.mxu0 0
    %237 = vmatprep.subr.bf16.mxu0 0
    %238 = vmatpush1.bf16.msra.mxu0 0
    %239 = vmatprep.subr.bf16.mxu0 0
    %240 = vmatpush1.bf16.msra.mxu0 0
    %241 = vmatprep.mubr.bf16.mxu0 0
    %242 = vmatmul.mubr.bf16.gmra.mrb[0].mxu0 %v146
    %v243 = vpop.f32.mrb[0].mxu0
    %v244 = vadd.f32 %v201, %v243
    %v245 = vpop.f32.mrb[0].mxu0
    %v246 = vpop.f32.mrb[0].mxu0
    %v247 = vpop.f32.mrb[0].mxu0
    %248 = vdwg.mxu0
    %s249 = scalar_lea.vmem %s1, 1
    %v250 = vld [vmem:[%s249] sm:$0x1]
    %v251 = vunpack.c.l.bf16 %v250
    %v252 = vmul.f32 %v244, %v251
    %v253 = vadd.f32 %v191, %v252
    %s254 = scalar_lea.vmem %s4, 16
    %v255 = vld [vmem:[%s254] sm:$0xf]
    %v256 = vld [vmem:[%s254 + $0x4] sm:$0xf]
    %s257 = scalar_lea.vmem %s5, 2
    %v258 = vld [vmem:[%s257] sm:$0x1]
    %v260 = vlaneseq
    %v261 = vshrl.u32 %v260, 7
    %v262 = vsub.s32 0, %v261
    %v263 = vrot.slane %v258, %v262
    %v267 = vunpack.c.l.b16 %v255
    %v268 = vunpack.c.l.b16 %v256
    %v269 = vpack.c.b16 %v268, %v267
    %271 = vmatprep.subr.bf16.mxu0 0
    %272 = vmatpush1.bf16.msra.mxu0 %v269
    %273 = vmatprep.subr.bf16.mxu0 0
    %274 = vmatpush1.bf16.msra.mxu0 0
    %275 = vmatprep.subr.bf16.mxu0 0
    %276 = vmatpush1.bf16.msra.mxu0 0
    %277 = vmatprep.subr.bf16.mxu0 0
    %278 = vmatpush1.bf16.msra.mxu0 0
    %279 = vmatprep.subr.bf16.mxu0 0
    %280 = vmatpush1.bf16.msra.mxu0 0
    %281 = vmatprep.subr.bf16.mxu0 0
    %282 = vmatpush1.bf16.msra.mxu0 0
    %283 = vmatprep.subr.bf16.mxu0 0
    %284 = vmatpush1.bf16.msra.mxu0 0
    %285 = vmatprep.subr.bf16.mxu0 0
    %286 = vmatpush1.bf16.msra.mxu0 0
    %287 = vmatprep.subr.bf16.mxu0 0
    %288 = vmatpush1.bf16.msra.mxu0 0
    %289 = vmatprep.subr.bf16.mxu0 0
    %290 = vmatpush1.bf16.msra.mxu0 0
    %291 = vmatprep.subr.bf16.mxu0 0
    %292 = vmatpush1.bf16.msra.mxu0 0
    %293 = vmatprep.subr.bf16.mxu0 0
    %294 = vmatpush1.bf16.msra.mxu0 0
    %295 = vmatprep.subr.bf16.mxu0 0
    %296 = vmatpush1.bf16.msra.mxu0 0
    %297 = vmatprep.subr.bf16.mxu0 0
    %298 = vmatpush1.bf16.msra.mxu0 0
    %299 = vmatprep.subr.bf16.mxu0 0
    %300 = vmatpush1.bf16.msra.mxu0 0
    %301 = vmatprep.subr.bf16.mxu0 0
    %302 = vmatpush1.bf16.msra.mxu0 0
    %303 = vmatprep.mubr.bf16.mxu0 0
    %304 = vmatmul.mubr.bf16.gmra.mrb[0].mxu0 %v146
    %v305 = vpop.f32.mrb[0].mxu0
    %v306 = vadd.f32 %v263, %v305
    %v307 = vpop.f32.mrb[0].mxu0
    %v308 = vpop.f32.mrb[0].mxu0
    %v309 = vpop.f32.mrb[0].mxu0
    %310 = vdwg.mxu0
    %s311 = scalar_lea.vmem %s1, 2
    %v312 = vld [vmem:[%s311] sm:$0x1]
    %v313 = vunpack.c.l.bf16 %v312
    %v314 = vmul.f32 %v306, %v313
    %v315 = vadd.f32 %v253, %v314
    %s316 = scalar_lea.vmem %s4, 24
    %v317 = vld [vmem:[%s316] sm:$0xf]
    %v318 = vld [vmem:[%s316 + $0x4] sm:$0xf]
    %s319 = scalar_lea.vmem %s5, 3
    %v320 = vld [vmem:[%s319] sm:$0x1]
    %v322 = vlaneseq
    %v323 = vshrl.u32 %v322, 7
    %v324 = vsub.s32 0, %v323
    %v325 = vrot.slane %v320, %v324
    %v329 = vunpack.c.l.b16 %v317
    %v330 = vunpack.c.l.b16 %v318
    %v331 = vpack.c.b16 %v330, %v329
    %333 = vmatprep.subr.bf16.mxu0 0
    %334 = vmatpush1.bf16.msra.mxu0 %v331
    %335 = vmatprep.subr.bf16.mxu0 0
    %336 = vmatpush1.bf16.msra.mxu0 0
    %337 = vmatprep.subr.bf16.mxu0 0
    %338 = vmatpush1.bf16.msra.mxu0 0
    %339 = vmatprep.subr.bf16.mxu0 0
    %340 = vmatpush1.bf16.msra.mxu0 0
    %341 = vmatprep.subr.bf16.mxu0 0
    %342 = vmatpush1.bf16.msra.mxu0 0
    %343 = vmatprep.subr.bf16.mxu0 0
    %344 = vmatpush1.bf16.msra.mxu0 0
    %345 = vmatprep.subr.bf16.mxu0 0
    %346 = vmatpush1.bf16.msra.mxu0 0
    %347 = vmatprep.subr.bf16.mxu0 0
    %348 = vmatpush1.bf16.msra.mxu0 0
    %349 = vmatprep.subr.bf16.mxu0 0
    %350 = vmatpush1.bf16.msra.mxu0 0
    %351 = vmatprep.subr.bf16.mxu0 0
    %352 = vmatpush1.bf16.msra.mxu0 0
    %353 = vmatprep.subr.bf16.mxu0 0
    %354 = vmatpush1.bf16.msra.mxu0 0
    %355 = vmatprep.subr.bf16.mxu0 0
    %356 = vmatpush1.bf16.msra.mxu0 0
    %357 = vmatprep.subr.bf16.mxu0 0
    %358 = vmatpush1.bf16.msra.mxu0 0
    %359 = vmatprep.subr.bf16.mxu0 0
    %360 = vmatpush1.bf16.msra.mxu0 0
    %361 = vmatprep.subr.bf16.mxu0 0
    %362 = vmatpush1.bf16.msra.mxu0 0
    %363 = vmatprep.subr.bf16.mxu0 0
    %364 = vmatpush1.bf16.msra.mxu0 0
    %365 = vmatprep.mubr.bf16.mxu0 0
    %366 = vmatmul.mubr.bf16.gmra.mrb[0].mxu0 %v146
    %v367 = vpop.f32.mrb[0].mxu0
    %v368 = vadd.f32 %v325, %v367
    %v369 = vpop.f32.mrb[0].mxu0
    %v370 = vpop.f32.mrb[0].mxu0
    %v371 = vpop.f32.mrb[0].mxu0
    %372 = vdwg.mxu0
    %s373 = scalar_lea.vmem %s1, 3
    %v374 = vld [vmem:[%s373] sm:$0x1]
    %v375 = vunpack.c.l.bf16 %v374
    %v376 = vmul.f32 %v368, %v375
    %v377 = vadd.f32 %v315, %v376
    %s378 = scalar_lea.vmem %s4, 32
    %v379 = vld [vmem:[%s378] sm:$0xf]
    %v380 = vld [vmem:[%s378 + $0x4] sm:$0xf]
    %s381 = scalar_lea.vmem %s5, 4
    %v382 = vld [vmem:[%s381] sm:$0x1]
    %v384 = vlaneseq
    %v385 = vshrl.u32 %v384, 7
    %v386 = vsub.s32 0, %v385
    %v387 = vrot.slane %v382, %v386
    %v391 = vunpack.c.l.b16 %v379
    %v392 = vunpack.c.l.b16 %v380
    %v393 = vpack.c.b16 %v392, %v391
    %395 = vmatprep.subr.bf16.mxu0 0
    %396 = vmatpush1.bf16.msra.mxu0 %v393
    %397 = vmatprep.subr.bf16.mxu0 0
    %398 = vmatpush1.bf16.msra.mxu0 0
    %399 = vmatprep.subr.bf16.mxu0 0
    %400 = vmatpush1.bf16.msra.mxu0 0
    %401 = vmatprep.subr.bf16.mxu0 0
    %402 = vmatpush1.bf16.msra.mxu0 0
    %403 = vmatprep.subr.bf16.mxu0 0
    %404 = vmatpush1.bf16.msra.mxu0 0
    %405 = vmatprep.subr.bf16.mxu0 0
    %406 = vmatpush1.bf16.msra.mxu0 0
    %407 = vmatprep.subr.bf16.mxu0 0
    %408 = vmatpush1.bf16.msra.mxu0 0
    %409 = vmatprep.subr.bf16.mxu0 0
    %410 = vmatpush1.bf16.msra.mxu0 0
    %411 = vmatprep.subr.bf16.mxu0 0
    %412 = vmatpush1.bf16.msra.mxu0 0
    %413 = vmatprep.subr.bf16.mxu0 0
    %414 = vmatpush1.bf16.msra.mxu0 0
    %415 = vmatprep.subr.bf16.mxu0 0
    %416 = vmatpush1.bf16.msra.mxu0 0
    %417 = vmatprep.subr.bf16.mxu0 0
    %418 = vmatpush1.bf16.msra.mxu0 0
    %419 = vmatprep.subr.bf16.mxu0 0
    %420 = vmatpush1.bf16.msra.mxu0 0
    %421 = vmatprep.subr.bf16.mxu0 0
    %422 = vmatpush1.bf16.msra.mxu0 0
    %423 = vmatprep.subr.bf16.mxu0 0
    %424 = vmatpush1.bf16.msra.mxu0 0
    %425 = vmatprep.subr.bf16.mxu0 0
    %426 = vmatpush1.bf16.msra.mxu0 0
    %427 = vmatprep.mubr.bf16.mxu0 0
    %428 = vmatmul.mubr.bf16.gmra.mrb[0].mxu0 %v146
    %v429 = vpop.f32.mrb[0].mxu0
    %v430 = vadd.f32 %v387, %v429
    %v431 = vpop.f32.mrb[0].mxu0
    %v432 = vpop.f32.mrb[0].mxu0
    %v433 = vpop.f32.mrb[0].mxu0
    %434 = vdwg.mxu0
    %s435 = scalar_lea.vmem %s1, 4
    %v436 = vld [vmem:[%s435] sm:$0x1]
    %v437 = vunpack.c.l.bf16 %v436
    %v438 = vmul.f32 %v430, %v437
    %v439 = vadd.f32 %v377, %v438
    %s440 = scalar_lea.vmem %s4, 40
    %v441 = vld [vmem:[%s440] sm:$0xf]
    %v442 = vld [vmem:[%s440 + $0x4] sm:$0xf]
    %s443 = scalar_lea.vmem %s5, 5
    %v444 = vld [vmem:[%s443] sm:$0x1]
    %v446 = vlaneseq
    %v447 = vshrl.u32 %v446, 7
    %v448 = vsub.s32 0, %v447
    %v449 = vrot.slane %v444, %v448
    %v453 = vunpack.c.l.b16 %v441
    %v454 = vunpack.c.l.b16 %v442
    %v455 = vpack.c.b16 %v454, %v453
    %457 = vmatprep.subr.bf16.mxu0 0
    %458 = vmatpush1.bf16.msra.mxu0 %v455
    %459 = vmatprep.subr.bf16.mxu0 0
    %460 = vmatpush1.bf16.msra.mxu0 0
    %461 = vmatprep.subr.bf16.mxu0 0
    %462 = vmatpush1.bf16.msra.mxu0 0
    %463 = vmatprep.subr.bf16.mxu0 0
    %464 = vmatpush1.bf16.msra.mxu0 0
    %465 = vmatprep.subr.bf16.mxu0 0
    %466 = vmatpush1.bf16.msra.mxu0 0
    %467 = vmatprep.subr.bf16.mxu0 0
    %468 = vmatpush1.bf16.msra.mxu0 0
    %469 = vmatprep.subr.bf16.mxu0 0
    %470 = vmatpush1.bf16.msra.mxu0 0
    %471 = vmatprep.subr.bf16.mxu0 0
    %472 = vmatpush1.bf16.msra.mxu0 0
    %473 = vmatprep.subr.bf16.mxu0 0
    %474 = vmatpush1.bf16.msra.mxu0 0
    %475 = vmatprep.subr.bf16.mxu0 0
    %476 = vmatpush1.bf16.msra.mxu0 0
    %477 = vmatprep.subr.bf16.mxu0 0
    %478 = vmatpush1.bf16.msra.mxu0 0
    %479 = vmatprep.subr.bf16.mxu0 0
    %480 = vmatpush1.bf16.msra.mxu0 0
    %481 = vmatprep.subr.bf16.mxu0 0
    %482 = vmatpush1.bf16.msra.mxu0 0
    %483 = vmatprep.subr.bf16.mxu0 0
    %484 = vmatpush1.bf16.msra.mxu0 0
    %485 = vmatprep.subr.bf16.mxu0 0
    %486 = vmatpush1.bf16.msra.mxu0 0
    %487 = vmatprep.subr.bf16.mxu0 0
    %488 = vmatpush1.bf16.msra.mxu0 0
    %489 = vmatprep.mubr.bf16.mxu0 0
    %490 = vmatmul.mubr.bf16.gmra.mrb[0].mxu0 %v146
    %v491 = vpop.f32.mrb[0].mxu0
    %v492 = vadd.f32 %v449, %v491
    %v493 = vpop.f32.mrb[0].mxu0
    %v494 = vpop.f32.mrb[0].mxu0
    %v495 = vpop.f32.mrb[0].mxu0
    %496 = vdwg.mxu0
    %s497 = scalar_lea.vmem %s1, 5
    %v498 = vld [vmem:[%s497] sm:$0x1]
    %v499 = vunpack.c.l.bf16 %v498
    %v500 = vmul.f32 %v492, %v499
    %v501 = vadd.f32 %v439, %v500
    %s502 = scalar_lea.vmem %s4, 48
    %v503 = vld [vmem:[%s502] sm:$0xf]
    %v504 = vld [vmem:[%s502 + $0x4] sm:$0xf]
    %s505 = scalar_lea.vmem %s5, 6
    %v506 = vld [vmem:[%s505] sm:$0x1]
    %v508 = vlaneseq
    %v509 = vshrl.u32 %v508, 7
    %v510 = vsub.s32 0, %v509
    %v511 = vrot.slane %v506, %v510
    %v515 = vunpack.c.l.b16 %v503
    %v516 = vunpack.c.l.b16 %v504
    %v517 = vpack.c.b16 %v516, %v515
    %519 = vmatprep.subr.bf16.mxu0 0
    %520 = vmatpush1.bf16.msra.mxu0 %v517
    %521 = vmatprep.subr.bf16.mxu0 0
    %522 = vmatpush1.bf16.msra.mxu0 0
    %523 = vmatprep.subr.bf16.mxu0 0
    %524 = vmatpush1.bf16.msra.mxu0 0
    %525 = vmatprep.subr.bf16.mxu0 0
    %526 = vmatpush1.bf16.msra.mxu0 0
    %527 = vmatprep.subr.bf16.mxu0 0
    %528 = vmatpush1.bf16.msra.mxu0 0
    %529 = vmatprep.subr.bf16.mxu0 0
    %530 = vmatpush1.bf16.msra.mxu0 0
    %531 = vmatprep.subr.bf16.mxu0 0
    %532 = vmatpush1.bf16.msra.mxu0 0
    %533 = vmatprep.subr.bf16.mxu0 0
    %534 = vmatpush1.bf16.msra.mxu0 0
    %535 = vmatprep.subr.bf16.mxu0 0
    %536 = vmatpush1.bf16.msra.mxu0 0
    %537 = vmatprep.subr.bf16.mxu0 0
    %538 = vmatpush1.bf16.msra.mxu0 0
    %539 = vmatprep.subr.bf16.mxu0 0
    %540 = vmatpush1.bf16.msra.mxu0 0
    %541 = vmatprep.subr.bf16.mxu0 0
    %542 = vmatpush1.bf16.msra.mxu0 0
    %543 = vmatprep.subr.bf16.mxu0 0
    %544 = vmatpush1.bf16.msra.mxu0 0
    %545 = vmatprep.subr.bf16.mxu0 0
    %546 = vmatpush1.bf16.msra.mxu0 0
    %547 = vmatprep.subr.bf16.mxu0 0
    %548 = vmatpush1.bf16.msra.mxu0 0
    %549 = vmatprep.subr.bf16.mxu0 0
    %550 = vmatpush1.bf16.msra.mxu0 0
    %551 = vmatprep.mubr.bf16.mxu0 0
    %552 = vmatmul.mubr.bf16.gmra.mrb[0].mxu0 %v146
    %v553 = vpop.f32.mrb[0].mxu0
    %v554 = vadd.f32 %v511, %v553
    %v555 = vpop.f32.mrb[0].mxu0
    %v556 = vpop.f32.mrb[0].mxu0
    %v557 = vpop.f32.mrb[0].mxu0
    %558 = vdwg.mxu0
    %s559 = scalar_lea.vmem %s1, 6
    %v560 = vld [vmem:[%s559] sm:$0x1]
    %v561 = vunpack.c.l.bf16 %v560
    %v562 = vmul.f32 %v554, %v561
    %v563 = vadd.f32 %v501, %v562
    %s564 = scalar_lea.vmem %s4, 56
    %v565 = vld [vmem:[%s564] sm:$0xf]
    %v566 = vld [vmem:[%s564 + $0x4] sm:$0xf]
    %s567 = scalar_lea.vmem %s5, 7
    %v568 = vld [vmem:[%s567] sm:$0x1]
    %v570 = vlaneseq
    %v571 = vshrl.u32 %v570, 7
    %v572 = vsub.s32 0, %v571
    %v573 = vrot.slane %v568, %v572
    %v577 = vunpack.c.l.b16 %v565
    %v578 = vunpack.c.l.b16 %v566
    %v579 = vpack.c.b16 %v578, %v577
    %581 = vmatprep.subr.bf16.mxu0 0
    %582 = vmatpush1.bf16.msra.mxu0 %v579
    %583 = vmatprep.subr.bf16.mxu0 0
    %584 = vmatpush1.bf16.msra.mxu0 0
    %585 = vmatprep.subr.bf16.mxu0 0
    %586 = vmatpush1.bf16.msra.mxu0 0
    %587 = vmatprep.subr.bf16.mxu0 0
    %588 = vmatpush1.bf16.msra.mxu0 0
    %589 = vmatprep.subr.bf16.mxu0 0
    %590 = vmatpush1.bf16.msra.mxu0 0
    %591 = vmatprep.subr.bf16.mxu0 0
    %592 = vmatpush1.bf16.msra.mxu0 0
    %593 = vmatprep.subr.bf16.mxu0 0
    %594 = vmatpush1.bf16.msra.mxu0 0
    %595 = vmatprep.subr.bf16.mxu0 0
    %596 = vmatpush1.bf16.msra.mxu0 0
    %597 = vmatprep.subr.bf16.mxu0 0
    %598 = vmatpush1.bf16.msra.mxu0 0
    %599 = vmatprep.subr.bf16.mxu0 0
    %600 = vmatpush1.bf16.msra.mxu0 0
    %601 = vmatprep.subr.bf16.mxu0 0
    %602 = vmatpush1.bf16.msra.mxu0 0
    %603 = vmatprep.subr.bf16.mxu0 0
    %604 = vmatpush1.bf16.msra.mxu0 0
    %605 = vmatprep.subr.bf16.mxu0 0
    %606 = vmatpush1.bf16.msra.mxu0 0
    %607 = vmatprep.subr.bf16.mxu0 0
    %608 = vmatpush1.bf16.msra.mxu0 0
    %609 = vmatprep.subr.bf16.mxu0 0
    %610 = vmatpush1.bf16.msra.mxu0 0
    %611 = vmatprep.subr.bf16.mxu0 0
    %612 = vmatpush1.bf16.msra.mxu0 0
    %613 = vmatprep.mubr.bf16.mxu0 0
    %614 = vmatmul.mubr.bf16.gmra.mrb[0].mxu0 %v146
    %v615 = vpop.f32.mrb[0].mxu0
    %v616 = vadd.f32 %v573, %v615
    %v617 = vpop.f32.mrb[0].mxu0
    %v618 = vpop.f32.mrb[0].mxu0
    %v619 = vpop.f32.mrb[0].mxu0
    %620 = vdwg.mxu0
    %s621 = scalar_lea.vmem %s1, 7
    %v622 = vld [vmem:[%s621] sm:$0x1]
    %v623 = vunpack.c.l.bf16 %v622
    %v624 = vmul.f32 %v616, %v623
    %v625 = vadd.f32 %v563, %v624
    %s626 = scalar_lea.vmem %s4, 64
    %v627 = vld [vmem:[%s626] sm:$0xf]
    %v628 = vld [vmem:[%s626 + $0x4] sm:$0xf]
    %s629 = scalar_lea.vmem %s5, 8
    %v630 = vld [vmem:[%s629] sm:$0x1]
    %v632 = vlaneseq
    %v633 = vshrl.u32 %v632, 7
    %v634 = vsub.s32 0, %v633
    %v635 = vrot.slane %v630, %v634
    %v639 = vunpack.c.l.b16 %v627
    %v640 = vunpack.c.l.b16 %v628
    %v641 = vpack.c.b16 %v640, %v639
    %643 = vmatprep.subr.bf16.mxu0 0
    %644 = vmatpush1.bf16.msra.mxu0 %v641
    %645 = vmatprep.subr.bf16.mxu0 0
    %646 = vmatpush1.bf16.msra.mxu0 0
    %647 = vmatprep.subr.bf16.mxu0 0
    %648 = vmatpush1.bf16.msra.mxu0 0
    %649 = vmatprep.subr.bf16.mxu0 0
    %650 = vmatpush1.bf16.msra.mxu0 0
    %651 = vmatprep.subr.bf16.mxu0 0
    %652 = vmatpush1.bf16.msra.mxu0 0
    %653 = vmatprep.subr.bf16.mxu0 0
    %654 = vmatpush1.bf16.msra.mxu0 0
    %655 = vmatprep.subr.bf16.mxu0 0
    %656 = vmatpush1.bf16.msra.mxu0 0
    %657 = vmatprep.subr.bf16.mxu0 0
    %658 = vmatpush1.bf16.msra.mxu0 0
    %659 = vmatprep.subr.bf16.mxu0 0
    %660 = vmatpush1.bf16.msra.mxu0 0
    %661 = vmatprep.subr.bf16.mxu0 0
    %662 = vmatpush1.bf16.msra.mxu0 0
    %663 = vmatprep.subr.bf16.mxu0 0
    %664 = vmatpush1.bf16.msra.mxu0 0
    %665 = vmatprep.subr.bf16.mxu0 0
    %666 = vmatpush1.bf16.msra.mxu0 0
    %667 = vmatprep.subr.bf16.mxu0 0
    %668 = vmatpush1.bf16.msra.mxu0 0
    %669 = vmatprep.subr.bf16.mxu0 0
    %670 = vmatpush1.bf16.msra.mxu0 0
    %671 = vmatprep.subr.bf16.mxu0 0
    %672 = vmatpush1.bf16.msra.mxu0 0
    %673 = vmatprep.subr.bf16.mxu0 0
    %674 = vmatpush1.bf16.msra.mxu0 0
    %675 = vmatprep.mubr.bf16.mxu0 0
    %676 = vmatmul.mubr.bf16.gmra.mrb[0].mxu0 %v146
    %v677 = vpop.f32.mrb[0].mxu0
    %v678 = vadd.f32 %v635, %v677
    %v679 = vpop.f32.mrb[0].mxu0
    %v680 = vpop.f32.mrb[0].mxu0
    %v681 = vpop.f32.mrb[0].mxu0
    %682 = vdwg.mxu0
    %s683 = scalar_lea.vmem %s1, 8
    %v684 = vld [vmem:[%s683] sm:$0x1]
    %v685 = vunpack.c.l.bf16 %v684
    %v686 = vmul.f32 %v678, %v685
    %v687 = vadd.f32 %v625, %v686
    %v688 = vpack.c.bf16 %v687, %v687
    %v689 = vld [vmem:[%s6] sm:$0xf]
    %v690 = vld [vmem:[%s6 + $0x4] sm:$0xf]
    %v691 = vld [vmem:[%s6 + $0x8] sm:$0xf]
    %v692 = vld [vmem:[%s6 + $0xc] sm:$0xf]
    %v693 = vld [vmem:[%s6 + $0x10] sm:$0xf]
    %v694 = vld [vmem:[%s6 + $0x14] sm:$0xf]
    %v695 = vld [vmem:[%s6 + $0x18] sm:$0xf]
    %v696 = vld [vmem:[%s6 + $0x1c] sm:$0xf]
    %v697 = vld [vmem:[%s7] sm:$0x1]
    %v699 = vlaneseq
    %v700 = vshrl.u32 %v699, 7
    %v701 = vsub.s32 0, %v700
    %v702 = vrot.slane %v697, %v701
    %v712 = vunpack.c.l.b16 %v689
    %v713 = vunpack.c.l.b16 %v690
    %v714 = vunpack.c.l.b16 %v691
    %v715 = vunpack.c.l.b16 %v692
    %v716 = vunpack.c.l.b16 %v693
    %v717 = vunpack.c.l.b16 %v694
    %v718 = vunpack.c.l.b16 %v695
    %v719 = vunpack.c.l.b16 %v696
    %v720 = vpack.c.b16 %v713, %v712
    %v721 = vpack.c.b16 %v715, %v714
    %v722 = vpack.c.b16 %v717, %v716
    %v723 = vpack.c.b16 %v719, %v718
    %vm728 = vcmask 523264
    %v730 = vsel %vm728, %v688, 0
    %732 = vmatprep.subr.bf16.mxu0 0
    %733 = vmatpush1.bf16.msra.mxu0 %v720
    %734 = vmatprep.subr.bf16.mxu0 0
    %735 = vmatpush1.bf16.msra.mxu0 %v721
    %736 = vmatprep.subr.bf16.mxu0 0
    %737 = vmatpush1.bf16.msra.mxu0 %v722
    %738 = vmatprep.subr.bf16.mxu0 0
    %739 = vmatpush1.bf16.msra.mxu0 %v723
    %740 = vmatprep.subr.bf16.mxu0 0
    %741 = vmatpush1.bf16.msra.mxu0 0
    %742 = vmatprep.subr.bf16.mxu0 0
    %743 = vmatpush1.bf16.msra.mxu0 0
    %744 = vmatprep.subr.bf16.mxu0 0
    %745 = vmatpush1.bf16.msra.mxu0 0
    %746 = vmatprep.subr.bf16.mxu0 0
    %747 = vmatpush1.bf16.msra.mxu0 0
    %748 = vmatprep.subr.bf16.mxu0 0
    %749 = vmatpush1.bf16.msra.mxu0 0
    %750 = vmatprep.subr.bf16.mxu0 0
    %751 = vmatpush1.bf16.msra.mxu0 0
    %752 = vmatprep.subr.bf16.mxu0 0
    %753 = vmatpush1.bf16.msra.mxu0 0
    %754 = vmatprep.subr.bf16.mxu0 0
    %755 = vmatpush1.bf16.msra.mxu0 0
    %756 = vmatprep.subr.bf16.mxu0 0
    %757 = vmatpush1.bf16.msra.mxu0 0
    %758 = vmatprep.subr.bf16.mxu0 0
    %759 = vmatpush1.bf16.msra.mxu0 0
    %760 = vmatprep.subr.bf16.mxu0 0
    %761 = vmatpush1.bf16.msra.mxu0 0
    %762 = vmatprep.subr.bf16.mxu0 0
    %763 = vmatpush1.bf16.msra.mxu0 0
    %764 = vmatprep.mubr.bf16.mxu0 0
    %765 = vmatmul.mubr.bf16.gmra.mrb[0].mxu0 %v730
    %v766 = vpop.f32.mrb[0].mxu0
    %v767 = vadd.f32 %v702, %v766
    %v768 = vpop.f32.mrb[0].mxu0
    %v769 = vpop.f32.mrb[0].mxu0
    %v770 = vpop.f32.mrb[0].mxu0
    %771 = vdwg.mxu0
    %v772 = vmax.f32 %v767, 0.0
    %773 = vst [vmem:[%s9] sm:$0x3] %v772
    // Predicated region
    $region34: #{coarse_encoder_fwd.12} parent=1 // pred_check
      _
    $region35: #{coarse_encoder_fwd.12} parent=1 // pred_check_branch
      %775 = sbr.rel (0) target = $region37
    $region36: #{coarse_encoder_fwd.12} parent=1 // pred_region
      %s777 = ssub.s32 32, 32
      %778 = vsyncadd [#allocation3], %s777
      %s780 = sshll.u32 [#allocation2], 4
      %s781 = int_to_ptr.vmem [resolvable:$true] %s780
      %783 = dma.vmem_to_hbm [thread:$0]  %s781, 32, %s8, [#allocation3]
    $region37: #{coarse_encoder_fwd.12} parent=1 // pred_fallthru
      _
    // Predicated region
    $region38: #{coarse_encoder_fwd.12} parent=1 // pred_check
      _
    $region39: #{coarse_encoder_fwd.12} parent=1 // pred_check_branch
      %785 = sbr.rel (0) target = $region41
    $region40: #{coarse_encoder_fwd.12} parent=1 // pred_region
      _
    $region41: #{coarse_encoder_fwd.12} parent=1 // pred_fallthru
      _
    // Predicated region
    $region42: #{coarse_encoder_fwd.12} parent=1 // pred_check
      _
    $region43: #{coarse_encoder_fwd.12} parent=1 // pred_check_branch
      %787 = sbr.rel (0) target = $region45
    $region44: #{coarse_encoder_fwd.12} parent=1 // pred_region
      %788 = dma.done [#allocation3], 32
    $region45: #{coarse_encoder_fwd.12} parent=1 // pred_fallthru
      _
    // Predicated region
    $region46: #{coarse_encoder_fwd.12} parent=1 // pred_check
      _
    $region47: #{coarse_encoder_fwd.12} parent=1 // pred_check_branch
      %790 = sbr.rel (0) target = $region49
    $region48: #{coarse_encoder_fwd.12} parent=1 // pred_region
      _
    $region49: #{coarse_encoder_fwd.12} parent=1 // pred_fallthru
      _
    %791 = vsyncpa [#allocation3], 1

// kernel: coarse_encoder_fwd.17
$region0: #{coarse_encoder_fwd.17}
  #allocation0 [shape = 'u32[]', space=smem, size = 0x4, offset = 0x4, fixed_abs, tag = 'smem constant byte address 0x4 - core index']
  #allocation1 [shape = 'u32[144,128]{1,0:T(1,128)}', space=vmem, size = 0x12000, scoped, tag = 'internal scratch']
  %s0 = inlined_call_operand.vmem [shape: bf16[2,1152], index: 0, kind: input, shape index: {}]
  %s1 = inlined_call_operand.vmem [shape: bf16[1152,128], index: 1, kind: input, shape index: {}]
  %s2 = inlined_call_operand.vmem [shape: f32[1,128], index: 2, kind: input, shape index: {}]
  %s3 = inlined_call_operand.hbm [shape: f32[2,128], index: 3, kind: output, shape index: {}]
  %s4 = sld [smem:[#allocation0]]
  $region22: #{coarse_encoder_fwd.17} parent=0
    _
  %s6 = ssub.s32 1, %s4
  %s7 = scalar_select 0, %s6, %s4
  $region1: #{coarse_encoder_fwd.17} parent=0
    #allocation2 [shape = 'u8[1024]{0}', space=vmem, size = 0x400, scoped, tag = 'output window, operand 0, single buffered']
    #allocation3 [shape = 's32[1]{0}', space=sflag, size = 0x4, scoped, tag = 'scoped memory for coarse_encoder_fwd.17']
    %8 = vsyncpa [#allocation3], 0
    // Predicated region
    $region2: #{coarse_encoder_fwd.17} parent=1 // pred_check
      _
    $region3: #{coarse_encoder_fwd.17} parent=1 // pred_check_branch
      %10 = sbr.rel (0) target = $region5
    $region4: #{coarse_encoder_fwd.17} parent=1 // pred_region
      _
    $region5: #{coarse_encoder_fwd.17} parent=1 // pred_fallthru
      _
    // Predicated region
    $region6: #{coarse_encoder_fwd.17} parent=1 // pred_check
      _
    $region7: #{coarse_encoder_fwd.17} parent=1 // pred_check_branch
      %12 = sbr.rel (0) target = $region9
    $region8: #{coarse_encoder_fwd.17} parent=1 // pred_region
      _
    $region9: #{coarse_encoder_fwd.17} parent=1 // pred_fallthru
      _
    // Predicated region
    $region10: #{coarse_encoder_fwd.17} parent=1 // pred_check
      _
    $region11: #{coarse_encoder_fwd.17} parent=1 // pred_check_branch
      %14 = sbr.rel (0) target = $region13
    $region12: #{coarse_encoder_fwd.17} parent=1 // pred_region
      _
    $region13: #{coarse_encoder_fwd.17} parent=1 // pred_fallthru
      _
    %v16 = vld [vmem:[%s0] sm:$0xff]
    %v17 = vld [vmem:[%s0 + $0x8] sm:$0x1]
    %v18 = vld [vmem:[%s1] sm:$0xf]
    %v19 = vld [vmem:[%s1 + $0x4] sm:$0xf]
    %v20 = vld [vmem:[%s1 + $0x8] sm:$0xf]
    %v21 = vld [vmem:[%s1 + $0xc] sm:$0xf]
    %v22 = vld [vmem:[%s1 + $0x10] sm:$0xf]
    %v23 = vld [vmem:[%s1 + $0x14] sm:$0xf]
    %v24 = vld [vmem:[%s1 + $0x18] sm:$0xf]
    %v25 = vld [vmem:[%s1 + $0x1c] sm:$0xf]
    %v26 = vld [vmem:[%s1 + $0x20] sm:$0xf]
    %v27 = vld [vmem:[%s1 + $0x24] sm:$0xf]
    %v28 = vld [vmem:[%s1 + $0x28] sm:$0xf]
    %v29 = vld [vmem:[%s1 + $0x2c] sm:$0xf]
    %v30 = vld [vmem:[%s1 + $0x30] sm:$0xf]
    %v31 = vld [vmem:[%s1 + $0x34] sm:$0xf]
    %v32 = vld [vmem:[%s1 + $0x38] sm:$0xf]
    %v33 = vld [vmem:[%s1 + $0x3c] sm:$0xf]
    %v34 = vld [vmem:[%s1 + $0x40] sm:$0xf]
    %v35 = vld [vmem:[%s1 + $0x44] sm:$0xf]
    %v36 = vld [vmem:[%s1 + $0x48] sm:$0xf]
    %v37 = vld [vmem:[%s1 + $0x4c] sm:$0xf]
    %v38 = vld [vmem:[%s1 + $0x50] sm:$0xf]
    %v39 = vld [vmem:[%s1 + $0x54] sm:$0xf]
    %v40 = vld [vmem:[%s1 + $0x58] sm:$0xf]
    %v41 = vld [vmem:[%s1 + $0x5c] sm:$0xf]
    %v42 = vld [vmem:[%s1 + $0x60] sm:$0xf]
    %v43 = vld [vmem:[%s1 + $0x64] sm:$0xf]
    %v44 = vld [vmem:[%s1 + $0x68] sm:$0xf]
    %v45 = vld [vmem:[%s1 + $0x6c] sm:$0xf]
    %v46 = vld [vmem:[%s1 + $0x70] sm:$0xf]
    %v47 = vld [vmem:[%s1 + $0x74] sm:$0xf]
    %v48 = vld [vmem:[%s1 + $0x78] sm:$0xf]
    %v49 = vld [vmem:[%s1 + $0x7c] sm:$0xf]
    %v50 = vld [vmem:[%s1 + $0x80] sm:$0xf]
    %v51 = vld [vmem:[%s1 + $0x84] sm:$0xf]
    %v52 = vld [vmem:[%s1 + $0x88] sm:$0xf]
    %v53 = vld [vmem:[%s1 + $0x8c] sm:$0xf]
    %v54 = vld [vmem:[%s1 + $0x90] sm:$0xf]
    %v55 = vld [vmem:[%s1 + $0x94] sm:$0xf]
    %v56 = vld [vmem:[%s1 + $0x98] sm:$0xf]
    %v57 = vld [vmem:[%s1 + $0x9c] sm:$0xf]
    %v58 = vld [vmem:[%s1 + $0xa0] sm:$0xf]
    %v59 = vld [vmem:[%s1 + $0xa4] sm:$0xf]
    %v60 = vld [vmem:[%s1 + $0xa8] sm:$0xf]
    %v61 = vld [vmem:[%s1 + $0xac] sm:$0xf]
    %v62 = vld [vmem:[%s1 + $0xb0] sm:$0xf]
    %v63 = vld [vmem:[%s1 + $0xb4] sm:$0xf]
    %v64 = vld [vmem:[%s1 + $0xb8] sm:$0xf]
    %v65 = vld [vmem:[%s1 + $0xbc] sm:$0xf]
    %v66 = vld [vmem:[%s1 + $0xc0] sm:$0xf]
    %v67 = vld [vmem:[%s1 + $0xc4] sm:$0xf]
    %v68 = vld [vmem:[%s1 + $0xc8] sm:$0xf]
    %v69 = vld [vmem:[%s1 + $0xcc] sm:$0xf]
    %v70 = vld [vmem:[%s1 + $0xd0] sm:$0xf]
    %v71 = vld [vmem:[%s1 + $0xd4] sm:$0xf]
    %v72 = vld [vmem:[%s1 + $0xd8] sm:$0xf]
    %v73 = vld [vmem:[%s1 + $0xdc] sm:$0xf]
    %v74 = vld [vmem:[%s1 + $0xe0] sm:$0xf]
    %v75 = vld [vmem:[%s1 + $0xe4] sm:$0xf]
    %v76 = vld [vmem:[%s1 + $0xe8] sm:$0xf]
    %v77 = vld [vmem:[%s1 + $0xec] sm:$0xf]
    %v78 = vld [vmem:[%s1 + $0xf0] sm:$0xf]
    %v79 = vld [vmem:[%s1 + $0xf4] sm:$0xf]
    %v80 = vld [vmem:[%s1 + $0xf8] sm:$0xf]
    %v81 = vld [vmem:[%s1 + $0xfc] sm:$0xf]
    %v82 = vld [vmem:[%s1 + $0x100] sm:$0xf]
    %v83 = vld [vmem:[%s1 + $0x104] sm:$0xf]
    %v84 = vld [vmem:[%s1 + $0x108] sm:$0xf]
    %v85 = vld [vmem:[%s1 + $0x10c] sm:$0xf]
    %v86 = vld [vmem:[%s1 + $0x110] sm:$0xf]
    %v87 = vld [vmem:[%s1 + $0x114] sm:$0xf]
    %v88 = vld [vmem:[%s1 + $0x118] sm:$0xf]
    %v89 = vld [vmem:[%s1 + $0x11c] sm:$0xf]
    %v90 = vld [vmem:[%s1 + $0x120] sm:$0xf]
    %v91 = vld [vmem:[%s1 + $0x124] sm:$0xf]
    %v92 = vld [vmem:[%s1 + $0x128] sm:$0xf]
    %v93 = vld [vmem:[%s1 + $0x12c] sm:$0xf]
    %v94 = vld [vmem:[%s1 + $0x130] sm:$0xf]
    %v95 = vld [vmem:[%s1 + $0x134] sm:$0xf]
    %v96 = vld [vmem:[%s1 + $0x138] sm:$0xf]
    %v97 = vld [vmem:[%s1 + $0x13c] sm:$0xf]
    %v98 = vld [vmem:[%s1 + $0x140] sm:$0xf]
    %v99 = vld [vmem:[%s1 + $0x144] sm:$0xf]
    %v100 = vld [vmem:[%s1 + $0x148] sm:$0xf]
    %v101 = vld [vmem:[%s1 + $0x14c] sm:$0xf]
    %v102 = vld [vmem:[%s1 + $0x150] sm:$0xf]
    %v103 = vld [vmem:[%s1 + $0x154] sm:$0xf]
    %v104 = vld [vmem:[%s1 + $0x158] sm:$0xf]
    %v105 = vld [vmem:[%s1 + $0x15c] sm:$0xf]
    %v106 = vld [vmem:[%s1 + $0x160] sm:$0xf]
    %v107 = vld [vmem:[%s1 + $0x164] sm:$0xf]
    %v108 = vld [vmem:[%s1 + $0x168] sm:$0xf]
    %v109 = vld [vmem:[%s1 + $0x16c] sm:$0xf]
    %v110 = vld [vmem:[%s1 + $0x170] sm:$0xf]
    %v111 = vld [vmem:[%s1 + $0x174] sm:$0xf]
    %v112 = vld [vmem:[%s1 + $0x178] sm:$0xf]
    %v113 = vld [vmem:[%s1 + $0x17c] sm:$0xf]
    %v114 = vld [vmem:[%s1 + $0x180] sm:$0xf]
    %v115 = vld [vmem:[%s1 + $0x184] sm:$0xf]
    %v116 = vld [vmem:[%s1 + $0x188] sm:$0xf]
    %v117 = vld [vmem:[%s1 + $0x18c] sm:$0xf]
    %v118 = vld [vmem:[%s1 + $0x190] sm:$0xf]
    %v119 = vld [vmem:[%s1 + $0x194] sm:$0xf]
    %v120 = vld [vmem:[%s1 + $0x198] sm:$0xf]
    %v121 = vld [vmem:[%s1 + $0x19c] sm:$0xf]
    %v122 = vld [vmem:[%s1 + $0x1a0] sm:$0xf]
    %v123 = vld [vmem:[%s1 + $0x1a4] sm:$0xf]
    %v124 = vld [vmem:[%s1 + $0x1a8] sm:$0xf]
    %v125 = vld [vmem:[%s1 + $0x1ac] sm:$0xf]
    %v126 = vld [vmem:[%s1 + $0x1b0] sm:$0xf]
    %v127 = vld [vmem:[%s1 + $0x1b4] sm:$0xf]
    %v128 = vld [vmem:[%s1 + $0x1b8] sm:$0xf]
    %v129 = vld [vmem:[%s1 + $0x1bc] sm:$0xf]
    %v130 = vld [vmem:[%s1 + $0x1c0] sm:$0xf]
    %v131 = vld [vmem:[%s1 + $0x1c4] sm:$0xf]
    %v132 = vld [vmem:[%s1 + $0x1c8] sm:$0xf]
    %v133 = vld [vmem:[%s1 + $0x1cc] sm:$0xf]
    %v134 = vld [vmem:[%s1 + $0x1d0] sm:$0xf]
    %v135 = vld [vmem:[%s1 + $0x1d4] sm:$0xf]
    %v136 = vld [vmem:[%s1 + $0x1d8] sm:$0xf]
    %v137 = vld [vmem:[%s1 + $0x1dc] sm:$0xf]
    %v138 = vld [vmem:[%s1 + $0x1e0] sm:$0xf]
    %v139 = vld [vmem:[%s1 + $0x1e4] sm:$0xf]
    %v140 = vld [vmem:[%s1 + $0x1e8] sm:$0xf]
    %v141 = vld [vmem:[%s1 + $0x1ec] sm:$0xf]
    %v142 = vld [vmem:[%s1 + $0x1f0] sm:$0xf]
    %v143 = vld [vmem:[%s1 + $0x1f4] sm:$0xf]
    %v144 = vld [vmem:[%s1 + $0x1f8] sm:$0xf]
    %v145 = vld [vmem:[%s1 + $0x1fc] sm:$0xf]
    %v146 = vld [vmem:[%s1 + $0x200] sm:$0xf]
    %v147 = vld [vmem:[%s1 + $0x204] sm:$0xf]
    %v148 = vld [vmem:[%s1 + $0x208] sm:$0xf]
    %v149 = vld [vmem:[%s1 + $0x20c] sm:$0xf]
    %v150 = vld [vmem:[%s1 + $0x210] sm:$0xf]
    %v151 = vld [vmem:[%s1 + $0x214] sm:$0xf]
    %v152 = vld [vmem:[%s1 + $0x218] sm:$0xf]
    %v153 = vld [vmem:[%s1 + $0x21c] sm:$0xf]
    %v154 = vld [vmem:[%s1 + $0x220] sm:$0xf]
    %v155 = vld [vmem:[%s1 + $0x224] sm:$0xf]
    %v156 = vld [vmem:[%s1 + $0x228] sm:$0xf]
    %v157 = vld [vmem:[%s1 + $0x22c] sm:$0xf]
    %v158 = vld [vmem:[%s1 + $0x230] sm:$0xf]
    %v159 = vld [vmem:[%s1 + $0x234] sm:$0xf]
    %v160 = vld [vmem:[%s1 + $0x238] sm:$0xf]
    %v161 = vld [vmem:[%s1 + $0x23c] sm:$0xf]
    %v162 = vld [vmem:[%s2] sm:$0x1]
    %v164 = vlaneseq
    %v165 = vshrl.u32 %v164, 7
    %v166 = vsub.s32 0, %v165
    %v167 = vrot.slane %v162, %v166
    %v171 = vcombine.high %v16, %v16
    %v173 = vunpack.c.l.s4 1966171168
    %v174 = vunpack.c.0.s8 %v173
    %v175 = vlaneseq
    %v176 = vshrl.u32 %v175, 7
    %v177 = vsub.s32 %v174, %v176
    %v178 = vrot.slane %v16, %v177
    %v180 = vunpack.c.l.s4 1966171168
    %v181 = vunpack.c.0.s8 %v180
    %v182 = vlaneseq
    %v183 = vshrl.u32 %v182, 7
    %v184 = vsub.s32 %v181, %v183
    %v185 = vrot.slane %v171, %v184
    %v186 = vcombine.high %v178, %v178
    %v187 = vcombine.high %v185, %v185
    %v189 = vunpack.c.l.s4 1966171168
    %v190 = vunpack.c.0.s8 %v189
    %v191 = vlaneseq
    %v192 = vshrl.u32 %v191, 7
    %v193 = vsub.s32 %v190, %v192
    %v194 = vrot.slane %v178, %v193
    %v196 = vunpack.c.l.s4 1966171168
    %v197 = vunpack.c.0.s8 %v196
    %v198 = vlaneseq
    %v199 = vshrl.u32 %v198, 7
    %v200 = vsub.s32 %v197, %v199
    %v201 = vrot.slane %v185, %v200
    %v203 = vunpack.c.l.s4 1966171168
    %v204 = vunpack.c.0.s8 %v203
    %v205 = vlaneseq
    %v206 = vshrl.u32 %v205, 7
    %v207 = vsub.s32 %v204, %v206
    %v208 = vrot.slane %v186, %v207
    %v210 = vunpack.c.l.s4 1966171168
    %v211 = vunpack.c.0.s8 %v210
    %v212 = vlaneseq
    %v213 = vshrl.u32 %v212, 7
    %v214 = vsub.s32 %v211, %v213
    %v215 = vrot.slane %v187, %v214
    %v216 = vcombine.high %v194, %v194
    %v217 = vcombine.high %v201, %v201
    %v218 = vcombine.high %v208, %v208
    %v219 = vcombine.high %v215, %v215
    %v221 = vunpack.c.l.s4 1966171168
    %v222 = vunpack.c.0.s8 %v221
    %v223 = vlaneseq
    %v224 = vshrl.u32 %v223, 7
    %v225 = vsub.s32 %v222, %v224
    %v226 = vrot.slane %v17, %v225
    %v228 = vunpack.c.l.s4 1966171168
    %v229 = vunpack.c.0.s8 %v228
    %v230 = vlaneseq
    %v231 = vshrl.u32 %v230, 7
    %v232 = vsub.s32 %v229, %v231
    %v233 = vrot.slane %v226, %v232
    %v387 = vunpack.c.l.b16 %v18
    %v388 = vunpack.c.l.b16 %v19
    %v389 = vunpack.c.l.b16 %v20
    %v390 = vunpack.c.l.b16 %v21
    %v391 = vunpack.c.l.b16 %v22
    %v392 = vunpack.c.l.b16 %v23
    %v393 = vunpack.c.l.b16 %v24
    %v394 = vunpack.c.l.b16 %v25
    %v395 = vunpack.c.l.b16 %v26
    %v396 = vunpack.c.l.b16 %v27
    %v397 = vunpack.c.l.b16 %v28
    %v398 = vunpack.c.l.b16 %v29
    %v399 = vunpack.c.l.b16 %v30
    %v400 = vunpack.c.l.b16 %v31
    %v401 = vunpack.c.l.b16 %v32
    %v402 = vunpack.c.l.b16 %v33
    %v403 = vunpack.c.l.b16 %v34
    %v404 = vunpack.c.l.b16 %v35
    %v405 = vunpack.c.l.b16 %v36
    %v406 = vunpack.c.l.b16 %v37
    %v407 = vunpack.c.l.b16 %v38
    %v408 = vunpack.c.l.b16 %v39
    %v409 = vunpack.c.l.b16 %v40
    %v410 = vunpack.c.l.b16 %v41
    %v411 = vunpack.c.l.b16 %v42
    %v412 = vunpack.c.l.b16 %v43
    %v413 = vunpack.c.l.b16 %v44
    %v414 = vunpack.c.l.b16 %v45
    %v415 = vunpack.c.l.b16 %v46
    %v416 = vunpack.c.l.b16 %v47
    %v417 = vunpack.c.l.b16 %v48
    %v418 = vunpack.c.l.b16 %v49
    %v419 = vunpack.c.l.b16 %v50
    %v420 = vunpack.c.l.b16 %v51
    %v421 = vunpack.c.l.b16 %v52
    %v422 = vunpack.c.l.b16 %v53
    %v423 = vunpack.c.l.b16 %v54
    %v424 = vunpack.c.l.b16 %v55
    %v425 = vunpack.c.l.b16 %v56
    %v426 = vunpack.c.l.b16 %v57
    %v427 = vunpack.c.l.b16 %v58
    %v428 = vunpack.c.l.b16 %v59
    %v429 = vunpack.c.l.b16 %v60
    %v430 = vunpack.c.l.b16 %v61
    %v431 = vunpack.c.l.b16 %v62
    %v432 = vunpack.c.l.b16 %v63
    %v433 = vunpack.c.l.b16 %v64
    %v434 = vunpack.c.l.b16 %v65
    %v435 = vunpack.c.l.b16 %v66
    %v436 = vunpack.c.l.b16 %v67
    %v437 = vunpack.c.l.b16 %v68
    %v438 = vunpack.c.l.b16 %v69
    %v439 = vunpack.c.l.b16 %v70
    %v440 = vunpack.c.l.b16 %v71
    %v441 = vunpack.c.l.b16 %v72
    %v442 = vunpack.c.l.b16 %v73
    %v443 = vunpack.c.l.b16 %v74
    %v444 = vunpack.c.l.b16 %v75
    %v445 = vunpack.c.l.b16 %v76
    %v446 = vunpack.c.l.b16 %v77
    %v447 = vunpack.c.l.b16 %v78
    %v448 = vunpack.c.l.b16 %v79
    %v449 = vunpack.c.l.b16 %v80
    %v450 = vunpack.c.l.b16 %v81
    %v451 = vunpack.c.l.b16 %v82
    %v452 = vunpack.c.l.b16 %v83
    %v453 = vunpack.c.l.b16 %v84
    %v454 = vunpack.c.l.b16 %v85
    %v455 = vunpack.c.l.b16 %v86
    %v456 = vunpack.c.l.b16 %v87
    %v457 = vunpack.c.l.b16 %v88
    %v458 = vunpack.c.l.b16 %v89
    %v459 = vunpack.c.l.b16 %v90
    %v460 = vunpack.c.l.b16 %v91
    %v461 = vunpack.c.l.b16 %v92
    %v462 = vunpack.c.l.b16 %v93
    %v463 = vunpack.c.l.b16 %v94
    %v464 = vunpack.c.l.b16 %v95
    %v465 = vunpack.c.l.b16 %v96
    %v466 = vunpack.c.l.b16 %v97
    %v467 = vunpack.c.l.b16 %v98
    %v468 = vunpack.c.l.b16 %v99
    %v469 = vunpack.c.l.b16 %v100
    %v470 = vunpack.c.l.b16 %v101
    %v471 = vunpack.c.l.b16 %v102
    %v472 = vunpack.c.l.b16 %v103
    %v473 = vunpack.c.l.b16 %v104
    %v474 = vunpack.c.l.b16 %v105
    %v475 = vunpack.c.l.b16 %v106
    %v476 = vunpack.c.l.b16 %v107
    %v477 = vunpack.c.l.b16 %v108
    %v478 = vunpack.c.l.b16 %v109
    %v479 = vunpack.c.l.b16 %v110
    %v480 = vunpack.c.l.b16 %v111
    %v481 = vunpack.c.l.b16 %v112
    %v482 = vunpack.c.l.b16 %v113
    %v483 = vunpack.c.l.b16 %v114
    %v484 = vunpack.c.l.b16 %v115
    %v485 = vunpack.c.l.b16 %v116
    %v486 = vunpack.c.l.b16 %v117
    %v487 = vunpack.c.l.b16 %v118
    %v488 = vunpack.c.l.b16 %v119
    %v489 = vunpack.c.l.b16 %v120
    %v490 = vunpack.c.l.b16 %v121
    %v491 = vunpack.c.l.b16 %v122
    %v492 = vunpack.c.l.b16 %v123
    %v493 = vunpack.c.l.b16 %v124
    %v494 = vunpack.c.l.b16 %v125
    %v495 = vunpack.c.l.b16 %v126
    %v496 = vunpack.c.l.b16 %v127
    %v497 = vunpack.c.l.b16 %v128
    %v498 = vunpack.c.l.b16 %v129
    %v499 = vunpack.c.l.b16 %v130
    %v500 = vunpack.c.l.b16 %v131
    %v501 = vunpack.c.l.b16 %v132
    %v502 = vunpack.c.l.b16 %v133
    %v503 = vunpack.c.l.b16 %v134
    %v504 = vunpack.c.l.b16 %v135
    %v505 = vunpack.c.l.b16 %v136
    %v506 = vunpack.c.l.b16 %v137
    %v507 = vunpack.c.l.b16 %v138
    %v508 = vunpack.c.l.b16 %v139
    %v509 = vunpack.c.l.b16 %v140
    %v510 = vunpack.c.l.b16 %v141
    %v511 = vunpack.c.l.b16 %v142
    %v512 = vunpack.c.l.b16 %v143
    %v513 = vunpack.c.l.b16 %v144
    %v514 = vunpack.c.l.b16 %v145
    %v515 = vunpack.c.l.b16 %v146
    %v516 = vunpack.c.l.b16 %v147
    %v517 = vunpack.c.l.b16 %v148
    %v518 = vunpack.c.l.b16 %v149
    %v519 = vunpack.c.l.b16 %v150
    %v520 = vunpack.c.l.b16 %v151
    %v521 = vunpack.c.l.b16 %v152
    %v522 = vunpack.c.l.b16 %v153
    %v523 = vunpack.c.l.b16 %v154
    %v524 = vunpack.c.l.b16 %v155
    %v525 = vunpack.c.l.b16 %v156
    %v526 = vunpack.c.l.b16 %v157
    %v527 = vunpack.c.l.b16 %v158
    %v528 = vunpack.c.l.b16 %v159
    %v529 = vunpack.c.l.b16 %v160
    %v530 = vunpack.c.l.b16 %v161
    %v531 = vpack.c.b16 %v388, %v387
    %v532 = vpack.c.b16 %v390, %v389
    %v533 = vpack.c.b16 %v392, %v391
    %v534 = vpack.c.b16 %v394, %v393
    %v535 = vpack.c.b16 %v396, %v395
    %v536 = vpack.c.b16 %v398, %v397
    %v537 = vpack.c.b16 %v400, %v399
    %v538 = vpack.c.b16 %v402, %v401
    %v539 = vpack.c.b16 %v404, %v403
    %v540 = vpack.c.b16 %v406, %v405
    %v541 = vpack.c.b16 %v408, %v407
    %v542 = vpack.c.b16 %v410, %v409
    %v543 = vpack.c.b16 %v412, %v411
    %v544 = vpack.c.b16 %v414, %v413
    %v545 = vpack.c.b16 %v416, %v415
    %v546 = vpack.c.b16 %v418, %v417
    %v547 = vpack.c.b16 %v420, %v419
    %v548 = vpack.c.b16 %v422, %v421
    %v549 = vpack.c.b16 %v424, %v423
    %v550 = vpack.c.b16 %v426, %v425
    %v551 = vpack.c.b16 %v428, %v427
    %v552 = vpack.c.b16 %v430, %v429
    %v553 = vpack.c.b16 %v432, %v431
    %v554 = vpack.c.b16 %v434, %v433
    %v555 = vpack.c.b16 %v436, %v435
    %v556 = vpack.c.b16 %v438, %v437
    %v557 = vpack.c.b16 %v440, %v439
    %v558 = vpack.c.b16 %v442, %v441
    %v559 = vpack.c.b16 %v444, %v443
    %v560 = vpack.c.b16 %v446, %v445
    %v561 = vpack.c.b16 %v448, %v447
    %v562 = vpack.c.b16 %v450, %v449
    %v563 = vpack.c.b16 %v452, %v451
    %v564 = vpack.c.b16 %v454, %v453
    %v565 = vpack.c.b16 %v456, %v455
    %v566 = vpack.c.b16 %v458, %v457
    %v567 = vpack.c.b16 %v460, %v459
    %v568 = vpack.c.b16 %v462, %v461
    %v569 = vpack.c.b16 %v464, %v463
    %v570 = vpack.c.b16 %v466, %v465
    %v571 = vpack.c.b16 %v468, %v467
    %v572 = vpack.c.b16 %v470, %v469
    %v573 = vpack.c.b16 %v472, %v471
    %v574 = vpack.c.b16 %v474, %v473
    %v575 = vpack.c.b16 %v476, %v475
    %v576 = vpack.c.b16 %v478, %v477
    %v577 = vpack.c.b16 %v480, %v479
    %v578 = vpack.c.b16 %v482, %v481
    %v579 = vpack.c.b16 %v484, %v483
    %v580 = vpack.c.b16 %v486, %v485
    %v581 = vpack.c.b16 %v488, %v487
    %v582 = vpack.c.b16 %v490, %v489
    %v583 = vpack.c.b16 %v492, %v491
    %v584 = vpack.c.b16 %v494, %v493
    %v585 = vpack.c.b16 %v496, %v495
    %v586 = vpack.c.b16 %v498, %v497
    %v587 = vpack.c.b16 %v500, %v499
    %v588 = vpack.c.b16 %v502, %v501
    %v589 = vpack.c.b16 %v504, %v503
    %v590 = vpack.c.b16 %v506, %v505
    %v591 = vpack.c.b16 %v508, %v507
    %v592 = vpack.c.b16 %v510, %v509
    %v593 = vpack.c.b16 %v512, %v511
    %v594 = vpack.c.b16 %v514, %v513
    %v595 = vpack.c.b16 %v516, %v515
    %v596 = vpack.c.b16 %v518, %v517
    %v597 = vpack.c.b16 %v520, %v519
    %v598 = vpack.c.b16 %v522, %v521
    %v599 = vpack.c.b16 %v524, %v523
    %v600 = vpack.c.b16 %v526, %v525
    %v601 = vpack.c.b16 %v528, %v527
    %v602 = vpack.c.b16 %v530, %v529
    %675 = vmatprep.subr.bf16.mxu0 0
    %676 = vmatpush1.bf16.msra.mxu0 %v531
    %677 = vmatprep.subr.bf16.mxu0 0
    %678 = vmatpush1.bf16.msra.mxu0 %v532
    %679 = vmatprep.subr.bf16.mxu0 0
    %680 = vmatpush1.bf16.msra.mxu0 %v533
    %681 = vmatprep.subr.bf16.mxu0 0
    %682 = vmatpush1.bf16.msra.mxu0 %v534
    %683 = vmatprep.subr.bf16.mxu0 0
    %684 = vmatpush1.bf16.msra.mxu0 %v535
    %685 = vmatprep.subr.bf16.mxu0 0
    %686 = vmatpush1.bf16.msra.mxu0 %v536
    %687 = vmatprep.subr.bf16.mxu0 0
    %688 = vmatpush1.bf16.msra.mxu0 %v537
    %689 = vmatprep.subr.bf16.mxu0 0
    %690 = vmatpush1.bf16.msra.mxu0 %v538
    %691 = vmatprep.subr.bf16.mxu0 0
    %692 = vmatpush1.bf16.msra.mxu0 %v539
    %693 = vmatprep.subr.bf16.mxu0 0
    %694 = vmatpush1.bf16.msra.mxu0 %v540
    %695 = vmatprep.subr.bf16.mxu0 0
    %696 = vmatpush1.bf16.msra.mxu0 %v541
    %697 = vmatprep.subr.bf16.mxu0 0
    %698 = vmatpush1.bf16.msra.mxu0 %v542
    %699 = vmatprep.subr.bf16.mxu0 0
    %700 = vmatpush1.bf16.msra.mxu0 %v543
    %701 = vmatprep.subr.bf16.mxu0 0
    %702 = vmatpush1.bf16.msra.mxu0 %v544
    %703 = vmatprep.subr.bf16.mxu0 0
    %704 = vmatpush1.bf16.msra.mxu0 %v545
    %705 = vmatprep.subr.bf16.mxu0 0
    %706 = vmatpush1.bf16.msra.mxu0 %v546
    %707 = vmatprep.mubr.bf16.mxu0 %v208
    %708 = vmatmul.mubr.bf16.gmra.mrb[0].mxu0 %v194
    %v709 = vpop.f32.mrb[0].mxu0
    %v710 = vadd.f32 %v167, %v709
    %v711 = vpop.f32.mrb[0].mxu0
    %v712 = vpop.f32.mrb[0].mxu0
    %v713 = vpop.f32.mrb[0].mxu0
    %714 = vdwg.mxu0
    %715 = vmatprep.subr.bf16.mxu0 0
    %716 = vmatpush1.bf16.msra.mxu0 %v547
    %717 = vmatprep.subr.bf16.mxu0 0
    %718 = vmatpush1.bf16.msra.mxu0 %v548
    %719 = vmatprep.subr.bf16.mxu0 0
    %720 = vmatpush1.bf16.msra.mxu0 %v549
    %721 = vmatprep.subr.bf16.mxu0 0
    %722 = vmatpush1.bf16.msra.mxu0 %v550
    %723 = vmatprep.subr.bf16.mxu0 0
    %724 = vmatpush1.bf16.msra.mxu0 %v551
    %725 = vmatprep.subr.bf16.mxu0 0
    %726 = vmatpush1.bf16.msra.mxu0 %v552
    %727 = vmatprep.subr.bf16.mxu0 0
    %728 = vmatpush1.bf16.msra.mxu0 %v553
    %729 = vmatprep.subr.bf16.mxu0 0
    %730 = vmatpush1.bf16.msra.mxu0 %v554
    %731 = vmatprep.subr.bf16.mxu0 0
    %732 = vmatpush1.bf16.msra.mxu0 %v555
    %733 = vmatprep.subr.bf16.mxu0 0
    %734 = vmatpush1.bf16.msra.mxu0 %v556
    %735 = vmatprep.subr.bf16.mxu0 0
    %736 = vmatpush1.bf16.msra.mxu0 %v557
    %737 = vmatprep.subr.bf16.mxu0 0
    %738 = vmatpush1.bf16.msra.mxu0 %v558
    %739 = vmatprep.subr.bf16.mxu0 0
    %740 = vmatpush1.bf16.msra.mxu0 %v559
    %741 = vmatprep.subr.bf16.mxu0 0
    %742 = vmatpush1.bf16.msra.mxu0 %v560
    %743 = vmatprep.subr.bf16.mxu0 0
    %744 = vmatpush1.bf16.msra.mxu0 %v561
    %745 = vmatprep.subr.bf16.mxu0 0
    %746 = vmatpush1.bf16.msra.mxu0 %v562
    %747 = vmatprep.mubr.bf16.mxu0 %v218
    %748 = vmatmul.mubr.bf16.gmra.mrb[0].mxu0 %v216
    %v749 = vpop.f32.mrb[0].mxu0
    %v750 = vadd.f32 %v710, %v749
    %v751 = vpop.f32.mrb[0].mxu0
    %v752 = vpop.f32.mrb[0].mxu0
    %v753 = vpop.f32.mrb[0].mxu0
    %754 = vdwg.mxu0
    %755 = vmatprep.subr.bf16.mxu0 0
    %756 = vmatpush1.bf16.msra.mxu0 %v563
    %757 = vmatprep.subr.bf16.mxu0 0
    %758 = vmatpush1.bf16.msra.mxu0 %v564
    %759 = vmatprep.subr.bf16.mxu0 0
    %760 = vmatpush1.bf16.msra.mxu0 %v565
    %761 = vmatprep.subr.bf16.mxu0 0
    %762 = vmatpush1.bf16.msra.mxu0 %v566
    %763 = vmatprep.subr.bf16.mxu0 0
    %764 = vmatpush1.bf16.msra.mxu0 %v567
    %765 = vmatprep.subr.bf16.mxu0 0
    %766 = vmatpush1.bf16.msra.mxu0 %v568
    %767 = vmatprep.subr.bf16.mxu0 0
    %768 = vmatpush1.bf16.msra.mxu0 %v569
    %769 = vmatprep.subr.bf16.mxu0 0
    %770 = vmatpush1.bf16.msra.mxu0 %v570
    %771 = vmatprep.subr.bf16.mxu0 0
    %772 = vmatpush1.bf16.msra.mxu0 %v571
    %773 = vmatprep.subr.bf16.mxu0 0
    %774 = vmatpush1.bf16.msra.mxu0 %v572
    %775 = vmatprep.subr.bf16.mxu0 0
    %776 = vmatpush1.bf16.msra.mxu0 %v573
    %777 = vmatprep.subr.bf16.mxu0 0
    %778 = vmatpush1.bf16.msra.mxu0 %v574
    %779 = vmatprep.subr.bf16.mxu0 0
    %780 = vmatpush1.bf16.msra.mxu0 %v575
    %781 = vmatprep.subr.bf16.mxu0 0
    %782 = vmatpush1.bf16.msra.mxu0 %v576
    %783 = vmatprep.subr.bf16.mxu0 0
    %784 = vmatpush1.bf16.msra.mxu0 %v577
    %785 = vmatprep.subr.bf16.mxu0 0
    %786 = vmatpush1.bf16.msra.mxu0 %v578
    %787 = vmatprep.mubr.bf16.mxu0 %v215
    %788 = vmatmul.mubr.bf16.gmra.mrb[0].mxu0 %v201
    %v789 = vpop.f32.mrb[0].mxu0
    %v790 = vadd.f32 %v750, %v789
    %v791 = vpop.f32.mrb[0].mxu0
    %v792 = vpop.f32.mrb[0].mxu0
    %v793 = vpop.f32.mrb[0].mxu0
    %794 = vdwg.mxu0
    %795 = vmatprep.subr.bf16.mxu0 0
    %796 = vmatpush1.bf16.msra.mxu0 %v579
    %797 = vmatprep.subr.bf16.mxu0 0
    %798 = vmatpush1.bf16.msra.mxu0 %v580
    %799 = vmatprep.subr.bf16.mxu0 0
    %800 = vmatpush1.bf16.msra.mxu0 %v581
    %801 = vmatprep.subr.bf16.mxu0 0
    %802 = vmatpush1.bf16.msra.mxu0 %v582
    %803 = vmatprep.subr.bf16.mxu0 0
    %804 = vmatpush1.bf16.msra.mxu0 %v583
    %805 = vmatprep.subr.bf16.mxu0 0
    %806 = vmatpush1.bf16.msra.mxu0 %v584
    %807 = vmatprep.subr.bf16.mxu0 0
    %808 = vmatpush1.bf16.msra.mxu0 %v585
    %809 = vmatprep.subr.bf16.mxu0 0
    %810 = vmatpush1.bf16.msra.mxu0 %v586
    %811 = vmatprep.subr.bf16.mxu0 0
    %812 = vmatpush1.bf16.msra.mxu0 %v587
    %813 = vmatprep.subr.bf16.mxu0 0
    %814 = vmatpush1.bf16.msra.mxu0 %v588
    %815 = vmatprep.subr.bf16.mxu0 0
    %816 = vmatpush1.bf16.msra.mxu0 %v589
    %817 = vmatprep.subr.bf16.mxu0 0
    %818 = vmatpush1.bf16.msra.mxu0 %v590
    %819 = vmatprep.subr.bf16.mxu0 0
    %820 = vmatpush1.bf16.msra.mxu0 %v591
    %821 = vmatprep.subr.bf16.mxu0 0
    %822 = vmatpush1.bf16.msra.mxu0 %v592
    %823 = vmatprep.subr.bf16.mxu0 0
    %824 = vmatpush1.bf16.msra.mxu0 %v593
    %825 = vmatprep.subr.bf16.mxu0 0
    %826 = vmatpush1.bf16.msra.mxu0 %v594
    %827 = vmatprep.mubr.bf16.mxu0 %v219
    %828 = vmatmul.mubr.bf16.gmra.mrb[0].mxu0 %v217
    %v829 = vpop.f32.mrb[0].mxu0
    %v830 = vadd.f32 %v790, %v829
    %v831 = vpop.f32.mrb[0].mxu0
    %v832 = vpop.f32.mrb[0].mxu0
    %v833 = vpop.f32.mrb[0].mxu0
    %834 = vdwg.mxu0
    %835 = vmatprep.subr.bf16.mxu0 0
    %836 = vmatpush1.bf16.msra.mxu0 %v595
    %837 = vmatprep.subr.bf16.mxu0 0
    %838 = vmatpush1.bf16.msra.mxu0 %v596
    %839 = vmatprep.subr.bf16.mxu0 0
    %840 = vmatpush1.bf16.msra.mxu0 %v597
    %841 = vmatprep.subr.bf16.mxu0 0
    %842 = vmatpush1.bf16.msra.mxu0 %v598
    %843 = vmatprep.subr.bf16.mxu0 0
    %844 = vmatpush1.bf16.msra.mxu0 %v599
    %845 = vmatprep.subr.bf16.mxu0 0
    %846 = vmatpush1.bf16.msra.mxu0 %v600
    %847 = vmatprep.subr.bf16.mxu0 0
    %848 = vmatpush1.bf16.msra.mxu0 %v601
    %849 = vmatprep.subr.bf16.mxu0 0
    %850 = vmatpush1.bf16.msra.mxu0 %v602
    %851 = vmatprep.subr.bf16.mxu0 0
    %852 = vmatpush1.bf16.msra.mxu0 0
    %853 = vmatprep.subr.bf16.mxu0 0
    %854 = vmatpush1.bf16.msra.mxu0 0
    %855 = vmatprep.subr.bf16.mxu0 0
    %856 = vmatpush1.bf16.msra.mxu0 0
    %857 = vmatprep.subr.bf16.mxu0 0
    %858 = vmatpush1.bf16.msra.mxu0 0
    %859 = vmatprep.subr.bf16.mxu0 0
    %860 = vmatpush1.bf16.msra.mxu0 0
    %861 = vmatprep.subr.bf16.mxu0 0
    %862 = vmatpush1.bf16.msra.mxu0 0
    %863 = vmatprep.subr.bf16.mxu0 0
    %864 = vmatpush1.bf16.msra.mxu0 0
    %865 = vmatprep.subr.bf16.mxu0 0
    %866 = vmatpush1.bf16.msra.mxu0 0
    %867 = vmatprep.mubr.bf16.mxu0 0
    %868 = vmatmul.mubr.bf16.gmra.mrb[0].mxu0 %v233
    %v869 = vpop.f32.mrb[0].mxu0
    %v870 = vadd.f32 %v830, %v869
    %v871 = vpop.f32.mrb[0].mxu0
    %v872 = vpop.f32.mrb[0].mxu0
    %v873 = vpop.f32.mrb[0].mxu0
    %874 = vdwg.mxu0
    %v875 = vmax.f32 %v870, 0.0
    %876 = vst [vmem:[#allocation2] sm:$0x3] %v875
    // Predicated region
    $region14: #{coarse_encoder_fwd.17} parent=1 // pred_check
      _
    $region15: #{coarse_encoder_fwd.17} parent=1 // pred_check_branch
      %878 = sbr.rel (0) target = $region17
    $region16: #{coarse_encoder_fwd.17} parent=1 // pred_region
      %s880 = ssub.s32 32, 32
      %881 = vsyncadd [#allocation3], %s880
      %s883 = sshll.u32 [#allocation2], 4
      %s884 = int_to_ptr.vmem [resolvable:$true] %s883
      %886 = dma.vmem_to_hbm [thread:$0]  %s884, 32, %s3, [#allocation3]
    $region17: #{coarse_encoder_fwd.17} parent=1 // pred_fallthru
      _
    // Predicated region
    $region18: #{coarse_encoder_fwd.17} parent=1 // pred_check
      _
    $region19: #{coarse_encoder_fwd.17} parent=1 // pred_check_branch
      %888 = sbr.rel (0) target = $region21
    $region20: #{coarse_encoder_fwd.17} parent=1 // pred_region
      %889 = dma.done [#allocation3], 32
    $region21: #{coarse_encoder_fwd.17} parent=1 // pred_fallthru
      _
    %890 = vsyncpa [#allocation3], 1

// kernel: coarse_encoder_fwd.13
$region0: #{coarse_encoder_fwd.13}
  #allocation0 [shape = 'u32[]', space=smem, size = 0x4, offset = 0x4, fixed_abs, tag = 'smem constant byte address 0x4 - core index']
  #allocation1 [shape = 'u32[144,128]{1,0:T(1,128)}', space=vmem, size = 0x12000, scoped, tag = 'internal scratch']
  %s0 = inlined_call_operand.vmem [shape: bf16[512,27], index: 0, kind: input, shape index: {}]
  %s1 = inlined_call_operand.vmem [shape: bf16[27,16], index: 1, kind: input, shape index: {}]
  %s2 = inlined_call_operand.vmem [shape: f32[1,16], index: 2, kind: input, shape index: {}]
  %s3 = inlined_call_operand.vmem [shape: f32[512,16], index: 3, kind: output, shape index: {}]
  %s4 = sld [smem:[#allocation0]]
  $region45: #{coarse_encoder_fwd.13} parent=0
    _
  %s6 = ssub.s32 1, %s4
  %s7 = scalar_select 0, %s6, %s4
  loop: start=0, step=1, limit=4
  $region2: #{coarse_encoder_fwd.13} parent=0 // loop_pre_header
    _
  $region3: #{coarse_encoder_fwd.13} parent=0 // loop_header
    %s9 = sphi 0, %s13
    %p10 = scmp.ge.s32.totalorder %s9, 4
    %s19 = sphi 0, %s21
    %s22 = sphi 0, %s19
    %s23 = sphi 0, %s22
    %s39 = sphi 0, %s23
    %s43 = sphi 0, %s43
    %s45 = sphi 0, %s43
    %s46 = sphi 0, %s45
    %s60 = sphi 0, %s46
    %s64 = sphi 0, %s64
    %s66 = sphi 0, %s64
    %s67 = sphi 0, %s66
    %s81 = sphi 0, %s67
    %s87 = sphi 0, %s89
    %s90 = sphi 0, %s87
    %s91 = sphi 0, %s90
    %s107 = sphi 0, %s91
  $region4: #{coarse_encoder_fwd.13} parent=0 // loop_header_branch
    %12 = sbr.rel (%p10) target = $region8
  $region5: #{coarse_encoder_fwd.13} parent=0 // loop_body
    %s14 = ssub.s32 %s9, 1
    %s15 = ssub.s32 %s9, 2
    %s16 = sadd.s32 %s9, 1
    %s17 = ssub.s32 %s9, %s16
    %p18 = scmp.eq.s32.totalorder %s17, 0
    %s20 = sadd.s32 %s19, 1
    %s21 = scalar_select %p18, %s19, %s20
    %p24 = pneg %p18
    %p25 = scmp.eq.s32.totalorder %s9, 1
    %p26 = por %p24, %p25
    %p27 = scmp.ne.s32.totalorder %s19, %s22
    %p28 = scmp.eq.s32.totalorder %s9, 0
    %p29 = por %p27, %p28
    %p30 = scmp.ne.s32.totalorder %s19, %s22
    %p31 = scmp.eq.s32.totalorder %s14, 1
    %p32 = por %p30, %p31
    %p33 = scmp.ne.s32.totalorder %s22, %s23
    %p34 = scmp.eq.s32.totalorder %s14, 0
    %p35 = por %p33, %p34
    %p36 = scmp.ne.s32.totalorder %s22, %s23
    %p37 = scmp.eq.s32.totalorder %s15, 1
    %p38 = por %p36, %p37
    %p40 = scmp.ne.s32.totalorder %s23, %s39
    %p41 = scmp.eq.s32.totalorder %s15, 0
    %p42 = por %p40, %p41
    %s44 = sadd.s32 %s43, 1
    %p47 = scmp.eq.s32.totalorder %s9, 1
    %p48 = scmp.ne.s32.totalorder %s43, %s45
    %p49 = scmp.eq.s32.totalorder %s9, 0
    %p50 = por %p48, %p49
    %p51 = scmp.ne.s32.totalorder %s43, %s45
    %p52 = scmp.eq.s32.totalorder %s14, 1
    %p53 = por %p51, %p52
    %p54 = scmp.ne.s32.totalorder %s45, %s46
    %p55 = scmp.eq.s32.totalorder %s14, 0
    %p56 = por %p54, %p55
    %p57 = scmp.ne.s32.totalorder %s45, %s46
    %p58 = scmp.eq.s32.totalorder %s15, 1
    %p59 = por %p57, %p58
    %p61 = scmp.ne.s32.totalorder %s46, %s60
    %p62 = scmp.eq.s32.totalorder %s15, 0
    %p63 = por %p61, %p62
    %s65 = sadd.s32 %s64, 1
    %p68 = scmp.eq.s32.totalorder %s9, 1
    %p69 = scmp.ne.s32.totalorder %s64, %s66
    %p70 = scmp.eq.s32.totalorder %s9, 0
    %p71 = por %p69, %p70
    %p72 = scmp.ne.s32.totalorder %s64, %s66
    %p73 = scmp.eq.s32.totalorder %s14, 1
    %p74 = por %p72, %p73
    %p75 = scmp.ne.s32.totalorder %s66, %s67
    %p76 = scmp.eq.s32.totalorder %s14, 0
    %p77 = por %p75, %p76
    %p78 = scmp.ne.s32.totalorder %s66, %s67
    %p79 = scmp.eq.s32.totalorder %s15, 1
    %p80 = por %p78, %p79
    %p82 = scmp.ne.s32.totalorder %s67, %s81
    %p83 = scmp.eq.s32.totalorder %s15, 0
    %p84 = por %p82, %p83
    %s85 = ssub.s32 %s9, %s16
    %p86 = scmp.eq.s32.totalorder %s85, 0
    %s88 = sadd.s32 %s87, 1
    %s89 = scalar_select %p86, %s87, %s88
    %p92 = pneg %p86
    %p93 = scmp.eq.s32.totalorder %s9, 1
    %p94 = por %p92, %p93
    %p95 = scmp.ne.s32.totalorder %s87, %s90
    %p96 = scmp.eq.s32.totalorder %s9, 0
    %p97 = por %p95, %p96
    %p98 = scmp.ne.s32.totalorder %s87, %s90
    %p99 = scmp.eq.s32.totalorder %s14, 1
    %p100 = por %p98, %p99
    %p101 = scmp.ne.s32.totalorder %s90, %s91
    %p102 = scmp.eq.s32.totalorder %s14, 0
    %p103 = por %p101, %p102
    %p104 = scmp.ne.s32.totalorder %s90, %s91
    %p105 = scmp.eq.s32.totalorder %s15, 1
    %p106 = por %p104, %p105
    %p108 = scmp.ne.s32.totalorder %s91, %s107
    %p109 = scmp.eq.s32.totalorder %s15, 0
    %p110 = por %p108, %p109
    %p111 = scmp.le.s32.totalorder 1, %s9
    %p112 = scmp.lt.s32.totalorder %s9, 3
    %p113 = pnand %p111, %p112
    %p114 = pneg %p113
    // Predicated region
    $region9: #{coarse_encoder_fwd.13} parent=5 // pred_check
      _
    $region10: #{coarse_encoder_fwd.13} parent=5 // pred_check_branch
      %116 = sbr.rel (%p113) target = $region12
    $region11: #{coarse_encoder_fwd.13} parent=5 // pred_region
      %s117 = ssub.s32 %s9, 1
      // Predicated region
      $region13: #{coarse_encoder_fwd.13} parent=11 // pred_check
        %p118 = pneg %p56
      $region14: #{coarse_encoder_fwd.13} parent=11 // pred_check_branch
        %120 = sbr.rel (%p118) target = $region16
      $region15: #{coarse_encoder_fwd.13} parent=11 // pred_region
        _
      $region16: #{coarse_encoder_fwd.13} parent=11 // pred_fallthru
        _
      // Predicated region
      $region17: #{coarse_encoder_fwd.13} parent=11 // pred_check
        %p121 = pneg %p77
      $region18: #{coarse_encoder_fwd.13} parent=11 // pred_check_branch
        %123 = sbr.rel (%p121) target = $region20
      $region19: #{coarse_encoder_fwd.13} parent=11 // pred_region
        _
      $region20: #{coarse_encoder_fwd.13} parent=11 // pred_fallthru
        _
    $region12: #{coarse_encoder_fwd.13} parent=5 // pred_fallthru
      _
    %p124 = scmp.lt.s32.totalorder %s9, 2
    // Predicated region
    $region21: #{coarse_encoder_fwd.13} parent=5 // pred_check
      %p125 = pneg %p124
    $region22: #{coarse_encoder_fwd.13} parent=5 // pred_check_branch
      %127 = sbr.rel (%p125) target = $region24
    $region23: #{coarse_encoder_fwd.13} parent=5 // pred_region
      // Predicated region
      $region25: #{coarse_encoder_fwd.13} parent=23 // pred_check
        %p128 = pneg %p29
      $region26: #{coarse_encoder_fwd.13} parent=23 // pred_check_branch
        %130 = sbr.rel (%p128) target = $region28
      $region27: #{coarse_encoder_fwd.13} parent=23 // pred_region
        %s131 = smul.u32 32, %s9
        %p132 = scmp.lt.s32.totalorder %s131, 63
        %s133 = scalar_select %p132, %s131, 63
        %s134 = smul.addr %s133, 4
        %s135 = scalar_lea.vmem %s0, %s134
        %s136 = smul.u32 32, %s9
      $region28: #{coarse_encoder_fwd.13} parent=23 // pred_fallthru
        _
    $region24: #{coarse_encoder_fwd.13} parent=5 // pred_fallthru
      _
    %p137 = scmp.le.s32.totalorder 1, %s9
    %p138 = scmp.lt.s32.totalorder %s9, 3
    %p139 = pnand %p137, %p138
    %p140 = pneg %p139
    // Predicated region
    $region29: #{coarse_encoder_fwd.13} parent=5 // pred_check
      _
    $region30: #{coarse_encoder_fwd.13} parent=5 // pred_check_branch
      %142 = sbr.rel (%p139) target = $region32
    $region31: #{coarse_encoder_fwd.13} parent=5 // pred_region
      %s143 = ssub.s32 %s9, 1
      %s144 = smul.u32 32, %s14
      %p145 = scmp.lt.s32.totalorder %s144, 63
      %s146 = scalar_select %p145, %s144, 63
      %s147 = smul.addr %s146, 4
      %s148 = scalar_lea.vmem %s0, %s147
      %p149 = pneg %p35
      %p150 = pneg %p32
      %p151 = pneg %p56
      %p152 = pneg %p53
      %p153 = pneg %p77
      %p154 = pneg %p74
      %p155 = pneg %p103
      %p156 = pneg %p100
      %s157 = smul.u32 32, %s14
      %p158 = scmp.lt.s32.totalorder %s157, 63
      %s159 = scalar_select %p158, %s157, 63
      %s160 = smul.addr %s159, 8
      %s161 = scalar_lea.vmem %s3, %s160
      %s162 = smul.u32 32, %s14
      %p163 = scmp.lt.s32.totalorder %s162, 63
      %s164 = scalar_select %p163, %s162, 63
      %s165 = smul.addr %s164, 4
      %s166 = scalar_lea.vmem %s0, %s165
      %s167 = smul.u32 32, %s14
      %s168 = smul.u32 32, %s14
      %p169 = scmp.lt.s32.totalorder %s168, 63
      %s170 = scalar_select %p169, %s168, 63
      %s171 = smul.addr %s170, 8
      %s172 = scalar_lea.vmem %s3, %s171
      %s173 = smul.u32 32, %s14
      %v175 = vld [vmem:[%s166] sm:$0xf]
      %v176 = vld [vmem:[%s166 + $0x4] sm:$0xf]
      %v177 = vld [vmem:[%s166 + $0x8] sm:$0xf]
      %v178 = vld [vmem:[%s166 + $0xc] sm:$0xf]
      %v179 = vld [vmem:[%s166 + $0x10] sm:$0xf]
      %v180 = vld [vmem:[%s166 + $0x14] sm:$0xf]
      %v181 = vld [vmem:[%s166 + $0x18] sm:$0xf]
      %v182 = vld [vmem:[%s166 + $0x1c] sm:$0xf]
      %v183 = vld [vmem:[%s166 + $0x20] sm:$0xf]
      %v184 = vld [vmem:[%s166 + $0x24] sm:$0xf]
      %v185 = vld [vmem:[%s166 + $0x28] sm:$0xf]
      %v186 = vld [vmem:[%s166 + $0x2c] sm:$0xf]
      %v187 = vld [vmem:[%s166 + $0x30] sm:$0xf]
      %v188 = vld [vmem:[%s166 + $0x34] sm:$0xf]
      %v189 = vld [vmem:[%s166 + $0x38] sm:$0xf]
      %v190 = vld [vmem:[%s166 + $0x3c] sm:$0xf]
      %v191 = vld [vmem:[%s166 + $0x40] sm:$0xf]
      %v192 = vld [vmem:[%s166 + $0x44] sm:$0xf]
      %v193 = vld [vmem:[%s166 + $0x48] sm:$0xf]
      %v194 = vld [vmem:[%s166 + $0x4c] sm:$0xf]
      %v195 = vld [vmem:[%s166 + $0x50] sm:$0xf]
      %v196 = vld [vmem:[%s166 + $0x54] sm:$0xf]
      %v197 = vld [vmem:[%s166 + $0x58] sm:$0xf]
      %v198 = vld [vmem:[%s166 + $0x5c] sm:$0xf]
      %v199 = vld [vmem:[%s166 + $0x60] sm:$0xf]
      %v200 = vld [vmem:[%s166 + $0x64] sm:$0xf]
      %v201 = vld [vmem:[%s166 + $0x68] sm:$0xf]
      %v202 = vld [vmem:[%s166 + $0x6c] sm:$0xf]
      %v203 = vld [vmem:[%s166 + $0x70] sm:$0xf]
      %v204 = vld [vmem:[%s166 + $0x74] sm:$0xf]
      %v205 = vld [vmem:[%s166 + $0x78] sm:$0xf]
      %v206 = vld [vmem:[%s166 + $0x7c] sm:$0xf]
      %v207 = vld [vmem:[%s1] sm:$0xf]
      %v208 = vld [vmem:[%s1 + $0x4] sm:$0xf]
      %v209 = vld [vmem:[%s1 + $0x8] sm:$0xf]
      %v210 = vld [vmem:[%s1 + $0xc] sm:$0x3]
      %v211 = vld [vmem:[%s2] sm:$0x1]
      %v213 = vlaneseq
      %v214 = vshrl.u32 %v213, 7
      %v215 = vsub.s32 0, %v214
      %v216 = vrot.slane %v211, %v215
      %v250 = vunpack.c.l.b16 %v175
      %v251 = vunpack.c.l.b16 %v176
      %v252 = vunpack.c.l.b16 %v177
      %v253 = vunpack.c.l.b16 %v178
      %v254 = vunpack.c.l.b16 %v179
      %v255 = vunpack.c.l.b16 %v180
      %v256 = vunpack.c.l.b16 %v181
      %v257 = vunpack.c.l.b16 %v182
      %v258 = vunpack.c.l.b16 %v183
      %v259 = vunpack.c.l.b16 %v184
      %v260 = vunpack.c.l.b16 %v185
      %v261 = vunpack.c.l.b16 %v186
      %v262 = vunpack.c.l.b16 %v187
      %v263 = vunpack.c.l.b16 %v188
      %v264 = vunpack.c.l.b16 %v189
      %v265 = vunpack.c.l.b16 %v190
      %v266 = vunpack.c.l.b16 %v191
      %v267 = vunpack.c.l.b16 %v192
      %v268 = vunpack.c.l.b16 %v193
      %v269 = vunpack.c.l.b16 %v194
      %v270 = vunpack.c.l.b16 %v195
      %v271 = vunpack.c.l.b16 %v196
      %v272 = vunpack.c.l.b16 %v197
      %v273 = vunpack.c.l.b16 %v198
      %v274 = vunpack.c.l.b16 %v199
      %v275 = vunpack.c.l.b16 %v200
      %v276 = vunpack.c.l.b16 %v201
      %v277 = vunpack.c.l.b16 %v202
      %v278 = vunpack.c.l.b16 %v203
      %v279 = vunpack.c.l.b16 %v204
      %v280 = vunpack.c.l.b16 %v205
      %v281 = vunpack.c.l.b16 %v206
      %v282 = vpack.c.b16 %v251, %v250
      %v283 = vpack.c.b16 %v253, %v252
      %v284 = vpack.c.b16 %v255, %v254
      %v285 = vpack.c.b16 %v257, %v256
      %v286 = vpack.c.b16 %v259, %v258
      %v287 = vpack.c.b16 %v261, %v260
      %v288 = vpack.c.b16 %v263, %v262
      %v289 = vpack.c.b16 %v265, %v264
      %v290 = vpack.c.b16 %v267, %v266
      %v291 = vpack.c.b16 %v269, %v268
      %v292 = vpack.c.b16 %v271, %v270
      %v293 = vpack.c.b16 %v273, %v272
      %v294 = vpack.c.b16 %v275, %v274
      %v295 = vpack.c.b16 %v277, %v276
      %v296 = vpack.c.b16 %v279, %v278
      %v297 = vpack.c.b16 %v281, %v280
      %v302 = vunpack.c.l.b16 %v207
      %v303 = vunpack.c.l.b16 %v208
      %v304 = vunpack.c.l.b16 %v209
      %v305 = vunpack.c.l.b16 %v210
      %v306 = vpack.c.b16 %v303, %v302
      %v307 = vpack.c.b16 %v305, %v304
      %vm309 = vcmask 220160
      %v311 = vsel %vm309, %v282, 0
      %v314 = vsel %vm309, %v283, 0
      %v317 = vsel %vm309, %v284, 0
      %v320 = vsel %vm309, %v285, 0
      %v323 = vsel %vm309, %v286, 0
      %v326 = vsel %vm309, %v287, 0
      %v329 = vsel %vm309, %v288, 0
      %v332 = vsel %vm309, %v289, 0
      %v335 = vsel %vm309, %v290, 0
      %v338 = vsel %vm309, %v291, 0
      %v341 = vsel %vm309, %v292, 0
      %v344 = vsel %vm309, %v293, 0
      %v347 = vsel %vm309, %v294, 0
      %v350 = vsel %vm309, %v295, 0
      %v353 = vsel %vm309, %v296, 0
      %v356 = vsel %vm309, %v297, 0
      %vm358 = vcmask 1044480
      %vm359 = vcmask 1045504
      %v360 = vsel %vm358, 4294967295, 65535
      %v361 = vsel %vm359, %v360, 0
      %v363 = vand.u32 %v307, %v361
      %365 = vmatprep.subr.bf16.mxu0 0
      %366 = vmatpush1.bf16.msra.mxu0 %v306
      %367 = vmatprep.subr.bf16.mxu0 0
      %368 = vmatpush1.bf16.msra.mxu0 %v363
      %369 = vmatprep.subr.bf16.mxu0 0
      %370 = vmatpush1.bf16.msra.mxu0 0
      %371 = vmatprep.subr.bf16.mxu0 0
      %372 = vmatpush1.bf16.msra.mxu0 0
      %373 = vmatprep.subr.bf16.mxu0 0
      %374 = vmatpush1.bf16.msra.mxu0 0
      %375 = vmatprep.subr.bf16.mxu0 0
      %376 = vmatpush1.bf16.msra.mxu0 0
      %377 = vmatprep.subr.bf16.mxu0 0
      %378 = vmatpush1.bf16.msra.mxu0 0
      %379 = vmatprep.subr.bf16.mxu0 0
      %380 = vmatpush1.bf16.msra.mxu0 0
      %381 = vmatprep.subr.bf16.mxu0 0
      %382 = vmatpush1.bf16.msra.mxu0 0
      %383 = vmatprep.subr.bf16.mxu0 0
      %384 = vmatpush1.bf16.msra.mxu0 0
      %385 = vmatprep.subr.bf16.mxu0 0
      %386 = vmatpush1.bf16.msra.mxu0 0
      %387 = vmatprep.subr.bf16.mxu0 0
      %388 = vmatpush1.bf16.msra.mxu0 0
      %389 = vmatprep.subr.bf16.mxu0 0
      %390 = vmatpush1.bf16.msra.mxu0 0
      %391 = vmatprep.subr.bf16.mxu0 0
      %392 = vmatpush1.bf16.msra.mxu0 0
      %393 = vmatprep.subr.bf16.mxu0 0
      %394 = vmatpush1.bf16.msra.mxu0 0
      %395 = vmatprep.subr.bf16.mxu0 0
      %396 = vmatpush1.bf16.msra.mxu0 0
      %397 = vmatprep.mubr.bf16.mxu0 0
      %398 = vmatmul.mubr.bf16.gmra.mrb[0].mxu0 %v311
      %v399 = vpop.f32.mrb[0].mxu0
      %v400 = vadd.f32 %v216, %v399
      %v401 = vpop.f32.mrb[0].mxu0
      %v402 = vpop.f32.mrb[0].mxu0
      %v403 = vadd.f32 %v216, %v402
      %v404 = vpop.f32.mrb[0].mxu0
      %405 = vmatprep.mubr.bf16.mxu0 0
      %406 = vmatmul.mubr.bf16.gmra.mrb[0].mxu0 %v314
      %v407 = vpop.f32.mrb[0].mxu0
      %v408 = vadd.f32 %v216, %v407
      %v409 = vpop.f32.mrb[0].mxu0
      %v410 = vpop.f32.mrb[0].mxu0
      %v411 = vadd.f32 %v216, %v410
      %v412 = vpop.f32.mrb[0].mxu0
      %413 = vmatprep.mubr.bf16.mxu0 0
      %414 = vmatmul.mubr.bf16.gmra.mrb[0].mxu0 %v317
      %v415 = vpop.f32.mrb[0].mxu0
      %v416 = vadd.f32 %v216, %v415
      %v417 = vpop.f32.mrb[0].mxu0
      %v418 = vpop.f32.mrb[0].mxu0
      %v419 = vadd.f32 %v216, %v418
      %v420 = vpop.f32.mrb[0].mxu0
      %421 = vmatprep.mubr.bf16.mxu0 0
      %422 = vmatmul.mubr.bf16.gmra.mrb[0].mxu0 %v320
      %v423 = vpop.f32.mrb[0].mxu0
      %v424 = vadd.f32 %v216, %v423
      %v425 = vpop.f32.mrb[0].mxu0
      %v426 = vpop.f32.mrb[0].mxu0
      %v427 = vadd.f32 %v216, %v426
      %v428 = vpop.f32.mrb[0].mxu0
      %429 = vmatprep.mubr.bf16.mxu0 0
      %430 = vmatmul.mubr.bf16.gmra.mrb[0].mxu0 %v323
      %v431 = vpop.f32.mrb[0].mxu0
      %v432 = vadd.f32 %v216, %v431
      %v433 = vpop.f32.mrb[0].mxu0
      %v434 = vpop.f32.mrb[0].mxu0
      %v435 = vadd.f32 %v216, %v434
      %v436 = vpop.f32.mrb[0].mxu0
      %437 = vmatprep.mubr.bf16.mxu0 0
      %438 = vmatmul.mubr.bf16.gmra.mrb[0].mxu0 %v326
      %v439 = vpop.f32.mrb[0].mxu0
      %v440 = vadd.f32 %v216, %v439
      %v441 = vpop.f32.mrb[0].mxu0
      %v442 = vpop.f32.mrb[0].mxu0
      %v443 = vadd.f32 %v216, %v442
      %v444 = vpop.f32.mrb[0].mxu0
      %445 = vmatprep.mubr.bf16.mxu0 0
      %446 = vmatmul.mubr.bf16.gmra.mrb[0].mxu0 %v329
      %v447 = vpop.f32.mrb[0].mxu0
      %v448 = vadd.f32 %v216, %v447
      %v449 = vpop.f32.mrb[0].mxu0
      %v450 = vpop.f32.mrb[0].mxu0
      %v451 = vadd.f32 %v216, %v450
      %v452 = vpop.f32.mrb[0].mxu0
      %453 = vmatprep.mubr.bf16.mxu0 0
      %454 = vmatmul.mubr.bf16.gmra.mrb[0].mxu0 %v332
      %v455 = vpop.f32.mrb[0].mxu0
      %v456 = vadd.f32 %v216, %v455
      %v457 = vpop.f32.mrb[0].mxu0
      %v458 = vpop.f32.mrb[0].mxu0
      %v459 = vadd.f32 %v216, %v458
      %v460 = vpop.f32.mrb[0].mxu0
      %461 = vmatprep.mubr.bf16.mxu0 0
      %462 = vmatmul.mubr.bf16.gmra.mrb[0].mxu0 %v335
      %v463 = vpop.f32.mrb[0].mxu0
      %v464 = vadd.f32 %v216, %v463
      %v465 = vpop.f32.mrb[0].mxu0
      %v466 = vpop.f32.mrb[0].mxu0
      %v467 = vadd.f32 %v216, %v466
      %v468 = vpop.f32.mrb[0].mxu0
      %469 = vmatprep.mubr.bf16.mxu0 0
      %470 = vmatmul.mubr.bf16.gmra.mrb[0].mxu0 %v338
      %v471 = vpop.f32.mrb[0].mxu0
      %v472 = vadd.f32 %v216, %v471
      %v473 = vpop.f32.mrb[0].mxu0
      %v474 = vpop.f32.mrb[0].mxu0
      %v475 = vadd.f32 %v216, %v474
      %v476 = vpop.f32.mrb[0].mxu0
      %477 = vmatprep.mubr.bf16.mxu0 0
      %478 = vmatmul.mubr.bf16.gmra.mrb[0].mxu0 %v341
      %v479 = vpop.f32.mrb[0].mxu0
      %v480 = vadd.f32 %v216, %v479
      %v481 = vpop.f32.mrb[0].mxu0
      %v482 = vpop.f32.mrb[0].mxu0
      %v483 = vadd.f32 %v216, %v482
      %v484 = vpop.f32.mrb[0].mxu0
      %485 = vmatprep.mubr.bf16.mxu0 0
      %486 = vmatmul.mubr.bf16.gmra.mrb[0].mxu0 %v344
      %v487 = vpop.f32.mrb[0].mxu0
      %v488 = vadd.f32 %v216, %v487
      %v489 = vpop.f32.mrb[0].mxu0
      %v490 = vpop.f32.mrb[0].mxu0
      %v491 = vadd.f32 %v216, %v490
      %v492 = vpop.f32.mrb[0].mxu0
      %493 = vmatprep.mubr.bf16.mxu0 0
      %494 = vmatmul.mubr.bf16.gmra.mrb[0].mxu0 %v347
      %v495 = vpop.f32.mrb[0].mxu0
      %v496 = vadd.f32 %v216, %v495
      %v497 = vpop.f32.mrb[0].mxu0
      %v498 = vpop.f32.mrb[0].mxu0
      %v499 = vadd.f32 %v216, %v498
      %v500 = vpop.f32.mrb[0].mxu0
      %501 = vmatprep.mubr.bf16.mxu0 0
      %502 = vmatmul.mubr.bf16.gmra.mrb[0].mxu0 %v350
      %v503 = vpop.f32.mrb[0].mxu0
      %v504 = vadd.f32 %v216, %v503
      %v505 = vpop.f32.mrb[0].mxu0
      %v506 = vpop.f32.mrb[0].mxu0
      %v507 = vadd.f32 %v216, %v506
      %v508 = vpop.f32.mrb[0].mxu0
      %509 = vmatprep.mubr.bf16.mxu0 0
      %510 = vmatmul.mubr.bf16.gmra.mrb[0].mxu0 %v353
      %v511 = vpop.f32.mrb[0].mxu0
      %v512 = vadd.f32 %v216, %v511
      %v513 = vpop.f32.mrb[0].mxu0
      %v514 = vpop.f32.mrb[0].mxu0
      %v515 = vadd.f32 %v216, %v514
      %v516 = vpop.f32.mrb[0].mxu0
      %517 = vmatprep.mubr.bf16.mxu0 0
      %518 = vmatmul.mubr.bf16.gmra.mrb[0].mxu0 %v356
      %v519 = vpop.f32.mrb[0].mxu0
      %v520 = vadd.f32 %v216, %v519
      %v521 = vpop.f32.mrb[0].mxu0
      %v522 = vpop.f32.mrb[0].mxu0
      %v523 = vadd.f32 %v216, %v522
      %v524 = vpop.f32.mrb[0].mxu0
      %525 = vdwg.mxu0
      %v526 = vmax.f32 %v400, 0.0
      %v527 = vmax.f32 %v403, 0.0
      %v528 = vmax.f32 %v408, 0.0
      %v529 = vmax.f32 %v411, 0.0
      %v530 = vmax.f32 %v416, 0.0
      %v531 = vmax.f32 %v419, 0.0
      %v532 = vmax.f32 %v424, 0.0
      %v533 = vmax.f32 %v427, 0.0
      %v534 = vmax.f32 %v432, 0.0
      %v535 = vmax.f32 %v435, 0.0
      %v536 = vmax.f32 %v440, 0.0
      %v537 = vmax.f32 %v443, 0.0
      %v538 = vmax.f32 %v448, 0.0
      %v539 = vmax.f32 %v451, 0.0
      %v540 = vmax.f32 %v456, 0.0
      %v541 = vmax.f32 %v459, 0.0
      %v542 = vmax.f32 %v464, 0.0
      %v543 = vmax.f32 %v467, 0.0
      %v544 = vmax.f32 %v472, 0.0
      %v545 = vmax.f32 %v475, 0.0
      %v546 = vmax.f32 %v480, 0.0
      %v547 = vmax.f32 %v483, 0.0
      %v548 = vmax.f32 %v488, 0.0
      %v549 = vmax.f32 %v491, 0.0
      %v550 = vmax.f32 %v496, 0.0
      %v551 = vmax.f32 %v499, 0.0
      %v552 = vmax.f32 %v504, 0.0
      %v553 = vmax.f32 %v507, 0.0
      %v554 = vmax.f32 %v512, 0.0
      %v555 = vmax.f32 %v515, 0.0
      %v556 = vmax.f32 %v520, 0.0
      %v557 = vmax.f32 %v523, 0.0
      %vm558 = vcmask 130048
      %559 = vst.msk [vmem:[%s172] sm:$0xff] %vm558, %v526
      %560 = vst.msk [vmem:[%s172 + $0x8] sm:$0xff] %vm558, %v527
      %561 = vst.msk [vmem:[%s172 + $0x10] sm:$0xff] %vm558, %v528
      %562 = vst.msk [vmem:[%s172 + $0x18] sm:$0xff] %vm558, %v529
      %563 = vst.msk [vmem:[%s172 + $0x20] sm:$0xff] %vm558, %v530
      %564 = vst.msk [vmem:[%s172 + $0x28] sm:$0xff] %vm558, %v531
      %565 = vst.msk [vmem:[%s172 + $0x30] sm:$0xff] %vm558, %v532
      %566 = vst.msk [vmem:[%s172 + $0x38] sm:$0xff] %vm558, %v533
      %567 = vst.msk [vmem:[%s172 + $0x40] sm:$0xff] %vm558, %v534
      %568 = vst.msk [vmem:[%s172 + $0x48] sm:$0xff] %vm558, %v535
      %569 = vst.msk [vmem:[%s172 + $0x50] sm:$0xff] %vm558, %v536
      %570 = vst.msk [vmem:[%s172 + $0x58] sm:$0xff] %vm558, %v537
      %571 = vst.msk [vmem:[%s172 + $0x60] sm:$0xff] %vm558, %v538
      %572 = vst.msk [vmem:[%s172 + $0x68] sm:$0xff] %vm558, %v539
      %573 = vst.msk [vmem:[%s172 + $0x70] sm:$0xff] %vm558, %v540
      %574 = vst.msk [vmem:[%s172 + $0x78] sm:$0xff] %vm558, %v541
      %575 = vst.msk [vmem:[%s172 + $0x80] sm:$0xff] %vm558, %v542
      %576 = vst.msk [vmem:[%s172 + $0x88] sm:$0xff] %vm558, %v543
      %577 = vst.msk [vmem:[%s172 + $0x90] sm:$0xff] %vm558, %v544
      %578 = vst.msk [vmem:[%s172 + $0x98] sm:$0xff] %vm558, %v545
      %579 = vst.msk [vmem:[%s172 + $0xa0] sm:$0xff] %vm558, %v546
      %580 = vst.msk [vmem:[%s172 + $0xa8] sm:$0xff] %vm558, %v547
      %581 = vst.msk [vmem:[%s172 + $0xb0] sm:$0xff] %vm558, %v548
      %582 = vst.msk [vmem:[%s172 + $0xb8] sm:$0xff] %vm558, %v549
      %583 = vst.msk [vmem:[%s172 + $0xc0] sm:$0xff] %vm558, %v550
      %584 = vst.msk [vmem:[%s172 + $0xc8] sm:$0xff] %vm558, %v551
      %585 = vst.msk [vmem:[%s172 + $0xd0] sm:$0xff] %vm558, %v552
      %586 = vst.msk [vmem:[%s172 + $0xd8] sm:$0xff] %vm558, %v553
      %587 = vst.msk [vmem:[%s172 + $0xe0] sm:$0xff] %vm558, %v554
      %588 = vst.msk [vmem:[%s172 + $0xe8] sm:$0xff] %vm558, %v555
      %589 = vst.msk [vmem:[%s172 + $0xf0] sm:$0xff] %vm558, %v556
      %590 = vst.msk [vmem:[%s172 + $0xf8] sm:$0xff] %vm558, %v557
      %s591 = smul.u32 32, %s14
      %p592 = scmp.lt.s32.totalorder %s591, 63
      %s593 = scalar_select %p592, %s591, 63
      %s594 = smul.addr %s593, 8
      %s595 = scalar_lea.vmem %s3, %s594
      // Predicated region
      $region33: #{coarse_encoder_fwd.13} parent=31 // pred_check
        %p596 = pneg %p100
      $region34: #{coarse_encoder_fwd.13} parent=31 // pred_check_branch
        %598 = sbr.rel (%p596) target = $region36
      $region35: #{coarse_encoder_fwd.13} parent=31 // pred_region
        %s599 = smul.u32 32, %s14
      $region36: #{coarse_encoder_fwd.13} parent=31 // pred_fallthru
        _
    $region32: #{coarse_encoder_fwd.13} parent=5 // pred_fallthru
      _
    %p600 = scmp.le.s32.totalorder 2, %s9
    // Predicated region
    $region37: #{coarse_encoder_fwd.13} parent=5 // pred_check
      %p601 = pneg %p600
    $region38: #{coarse_encoder_fwd.13} parent=5 // pred_check_branch
      %603 = sbr.rel (%p601) target = $region40
    $region39: #{coarse_encoder_fwd.13} parent=5 // pred_region
      %s604 = ssub.s32 %s9, 2
      // Predicated region
      $region41: #{coarse_encoder_fwd.13} parent=39 // pred_check
        %p605 = pneg %p106
      $region42: #{coarse_encoder_fwd.13} parent=39 // pred_check_branch
        %607 = sbr.rel (%p605) target = $region44
      $region43: #{coarse_encoder_fwd.13} parent=39 // pred_region
        %s608 = smul.u32 32, %s15
        %p609 = scmp.lt.s32.totalorder %s608, 63
        %s610 = scalar_select %p609, %s608, 63
        %s611 = smul.addr %s610, 8
        %s612 = scalar_lea.vmem %s3, %s611
      $region44: #{coarse_encoder_fwd.13} parent=39 // pred_fallthru
        _
    $region40: #{coarse_encoder_fwd.13} parent=5 // pred_fallthru
      _
  $region6: #{coarse_encoder_fwd.13} parent=0 // loop_footer
    %s13 = sadd.s32 1, %s9
  $region7: #{coarse_encoder_fwd.13} parent=0 // loop_footer_branch
    %8 = sbr.rel target = $region3
  $region8: #{coarse_encoder_fwd.13} parent=0 // loop_exit
    _

</llo_original>
